<compile_context>
chip_gen: v6e
topology: v6e:2x2x1
jax: 0.10.0
libtpu: 0.0.40
codegen_flags: <defaults>
</compile_context>

<pallas_src>
import numpy as np

import jax
import jax.numpy as jnp
from jax.experimental import pallas as pl
from jax.experimental.pallas import tpu as pltpu


_VMEM = pl.BlockSpec(memory_space=pltpu.MemorySpace.VMEM)


# ---------------- Pallas kernel: the whole decoder ----------------

def _decoder_kernel(x_ref, w1_ref, b1_ref, w2_ref, b2_ref,
                    m1_ref, mb1_ref, m2_ref, mb2_ref, m3_ref, mb3_ref,
                    o_ref):
    # fc1 -> relu
    h = jnp.dot(x_ref[...], w1_ref[...], preferred_element_type=jnp.float32)
    h = jnp.maximum(h + b1_ref[...], 0.0)
    # fc2 (columns pre-permuted to NHWC order) -> relu
    h = jnp.dot(h, w2_ref[...], preferred_element_type=jnp.float32)
    h = jnp.maximum(h + b2_ref[...], 0.0)
    # conv1 (3x3 SAME, 16->16 on 7x7) as Toeplitz matmul -> relu
    h = jnp.dot(h, m1_ref[...], preferred_element_type=jnp.float32)
    h = jnp.maximum(h + mb1_ref[...], 0.0)
    # nearest-2x upsample + conv2 (16->8 on 14x14), folded into one matrix -> relu
    h = jnp.dot(h, m2_ref[...], preferred_element_type=jnp.float32)
    h = jnp.maximum(h + mb2_ref[...], 0.0)
    # nearest-2x upsample + conv3 (8->1 on 28x28), folded -> sigmoid, lane-dense (B, 784)
    h = jnp.dot(h, m3_ref[...], preferred_element_type=jnp.float32)
    o_ref[...] = jax.nn.sigmoid(h + mb3_ref[...])


def decoder_forward(x, kp):
    B = x.shape[0]
    out = pl.pallas_call(
        _decoder_kernel,
        out_shape=jax.ShapeDtypeStruct((B, 28 * 28), jnp.float32),
        in_specs=[_VMEM] * 11,
        out_specs=_VMEM,
        compiler_params=pltpu.CompilerParams(vmem_limit_bytes=48 * 1024 * 1024),
    )(x, kp["w1"], kp["b1"], kp["w2p"], kp["b2p"],
      kp["m1"], kp["mb1"], kp["m2"], kp["mb2"], kp["m3"], kp["mb3"])
    # metadata-only relayout to the PyTorch NCHW output convention
    return out.reshape(B, 1, 28, 28)


# ---------------- init-time weight preparation (outside jit, runs once) ----------------

def _conv_as_matrix(w_hwio, b, hin, win, upsample):
    """Dense matrix for [optional nearest-2x upsample] + 3x3 SAME conv on an
    NHWC-flattened feature vector (h*W*C + w*C + c)."""
    kh, kw, cin, cout = w_hwio.shape
    hout, wout = (2 * hin, 2 * win) if upsample else (hin, win)
    w = np.asarray(w_hwio, np.float32)
    m = np.zeros((hin * win * cin, hout * wout * cout), np.float32)
    for ho in range(hout):
        for wo in range(wout):
            obase = (ho * wout + wo) * cout
            for ky in range(kh):
                hi = ho + ky - 1
                if not (0 <= hi < hout):
                    continue
                hi_l = hi // 2 if upsample else hi
                for kx in range(kw):
                    wi = wo + kx - 1
                    if not (0 <= wi < wout):
                        continue
                    wi_l = wi // 2 if upsample else wi
                    ibase = (hi_l * win + wi_l) * cin
                    # += because with upsampling several taps hit the same low-res pixel
                    m[ibase:ibase + cin, obase:obase + cout] += w[ky, kx]
    bias = np.tile(np.asarray(b, np.float32), hout * wout).reshape(1, -1)
    return jnp.asarray(m), jnp.asarray(bias)


def prepare_params(p):
    # Permute fc2 columns: NCHW flat (c*49 + h*7 + w)  ->  NHWC flat (h*112 + w*16 + c),
    # so the runtime view/transpose disappears.
    hh, ww, cc = np.meshgrid(np.arange(7), np.arange(7), np.arange(16), indexing="ij")
    perm = (cc * 49 + hh * 7 + ww).reshape(-1)
    w2p = jnp.asarray(np.asarray(p["w2"])[:, perm])
    b2p = jnp.asarray(np.asarray(p["b2"])[perm].reshape(1, -1))

    m1, mb1 = _conv_as_matrix(p["wc1"], p["bc1"], 7, 7, upsample=False)
    m2, mb2 = _conv_as_matrix(p["wc2"], p["bc2"], 7, 7, upsample=True)
    m3, mb3 = _conv_as_matrix(p["wc3"], p["bc3"], 14, 14, upsample=True)

    return {
        "w1": p["w1"], "b1": p["b1"].reshape(1, -1),
        "w2p": w2p, "b2p": b2p,
        "m1": m1, "mb1": mb1,
        "m2": m2, "mb2": mb2,
        "m3": m3, "mb3": mb3,
    }


# ---------------- pure-JAX reference for a correctness check ----------------

def upsample2x_nearest(x):
    return jnp.repeat(jnp.repeat(x, 2, axis=1), 2, axis=2)


def decoder_forward_ref(x, p):
    B = x.shape[0]
    h = jax.nn.relu(x @ p["w1"] + p["b1"])
    h = jax.nn.relu(h @ p["w2"] + p["b2"])
    h = h.reshape(B, 16, 7, 7).transpose(0, 2, 3, 1)

    def conv(h, w, b):
        return jax.lax.conv_general_dilated(
            h, w, window_strides=(1, 1), padding="SAME",
            dimension_numbers=("NHWC", "HWIO", "NHWC")) + b

    h = jax.nn.relu(conv(h, p["wc1"], p["bc1"]))
    h = upsample2x_nearest(h)
    h = jax.nn.relu(conv(h, p["wc2"], p["bc2"]))
    h = upsample2x_nearest(h)
    h = jax.nn.sigmoid(conv(h, p["wc3"], p["bc3"]))
    return h.transpose(0, 3, 1, 2)


def init_params(key):
    ks = jax.random.split(key, 10)

    def u(k, shape, fan_in):
        bound = 1.0 / jnp.sqrt(fan_in)
        return jax.random.uniform(k, shape, jnp.float32, -bound, bound)

    return {
        "w1": u(ks[0], (160, 512), 160),        "b1": u(ks[1], (512,), 160),
        "w2": u(ks[2], (512, 784), 512),        "b2": u(ks[3], (784,), 512),
        "wc1": u(ks[4], (3, 3, 16, 16), 9 * 16), "bc1": u(ks[5], (16,), 9 * 16),
        "wc2": u(ks[6], (3, 3, 16, 8), 9 * 16),  "bc2": u(ks[7], (8,), 9 * 16),
        "wc3": u(ks[8], (3, 3, 8, 1), 9 * 8),    "bc3": u(ks[9], (1,), 9 * 8),
    }


if __name__ == "__main__":
    key = jax.random.PRNGKey(0)
    kx, kp_key = jax.random.split(key)
    params = init_params(kp_key)
    kparams = prepare_params(params)          # one-time, outside the jitted forward

    # fc1 expects 16 * 10 = 160 input features
    x = jax.random.normal(kx, (2, 160), jnp.float32)

    out = jax.jit(decoder_forward)(x, kparams)
    out = jax.block_until_ready(out)
    assert out.shape == (2, 1, 28, 28), out.shape

    ref = decoder_forward_ref(x, params)
    err = float(jnp.max(jnp.abs(out - ref)))
    assert jnp.allclose(out, ref, atol=2e-3, rtol=2e-3), err

    print("KERNEL_OK")
</pallas_src>

<mosaic_0001>
module attributes {stable_mosaic.version = 11 : i64} {
  func.func @_decoder_kernel(%arg0: memref<2x160xf32, #tpu.memory_space<vmem>>, %arg1: memref<160x512xf32, #tpu.memory_space<vmem>>, %arg2: memref<1x512xf32, #tpu.memory_space<vmem>>, %arg3: memref<512x784xf32, #tpu.memory_space<vmem>>, %arg4: memref<1x784xf32, #tpu.memory_space<vmem>>, %arg5: memref<784x784xf32, #tpu.memory_space<vmem>>, %arg6: memref<1x784xf32, #tpu.memory_space<vmem>>, %arg7: memref<784x1568xf32, #tpu.memory_space<vmem>>, %arg8: memref<1x1568xf32, #tpu.memory_space<vmem>>, %arg9: memref<1568x784xf32, #tpu.memory_space<vmem>>, %arg10: memref<1x784xf32, #tpu.memory_space<vmem>>, %arg11: memref<2x784xf32, #tpu.memory_space<vmem>>) attributes {dimension_semantics = [], scalar_prefetch = 0 : i64, scratch_operands = 0 : i64, tpu.core_type = #tpu.core_type<tc>} {
    %c0 = arith.constant 0 : index
    %c0_0 = arith.constant 0 : index
    %0 = vector.load %arg0[%c0, %c0_0] : memref<2x160xf32, #tpu.memory_space<vmem>>, vector<2x160xf32>
    %c0_1 = arith.constant 0 : index
    %c0_2 = arith.constant 0 : index
    %1 = vector.load %arg1[%c0_1, %c0_2] : memref<160x512xf32, #tpu.memory_space<vmem>>, vector<160x512xf32>
    %cst = arith.constant dense<0.000000e+00> : vector<2x512xf32>
    %2 = tpu.matmul %0, %1, %cst {dimension_numbers = #tpu.dot_dimension_numbers<[1], [0], [0], [1], [0, 0, 1, 1], [], []>} : vector<2x160xf32>, vector<160x512xf32>, vector<2x512xf32> -> vector<2x512xf32>
    %c0_3 = arith.constant 0 : index
    %c0_4 = arith.constant 0 : index
    %3 = vector.load %arg2[%c0_3, %c0_4] : memref<1x512xf32, #tpu.memory_space<vmem>>, vector<1x512xf32>
    %4 = vector.broadcast %3 : vector<1x512xf32> to vector<2x512xf32>
    %5 = arith.addf %2, %4 : vector<2x512xf32>
    %cst_5 = arith.constant 0.000000e+00 : f32
    %6 = vector.broadcast %cst_5 : f32 to vector<2x512xf32>
    %7 = arith.maximumf %5, %6 : vector<2x512xf32>
    %c0_6 = arith.constant 0 : index
    %c0_7 = arith.constant 0 : index
    %8 = vector.load %arg3[%c0_6, %c0_7] : memref<512x784xf32, #tpu.memory_space<vmem>>, vector<512x784xf32>
    %cst_8 = arith.constant dense<0.000000e+00> : vector<2x784xf32>
    %9 = tpu.matmul %7, %8, %cst_8 {dimension_numbers = #tpu.dot_dimension_numbers<[1], [0], [0], [1], [0, 0, 1, 1], [], []>} : vector<2x512xf32>, vector<512x784xf32>, vector<2x784xf32> -> vector<2x784xf32>
    %c0_9 = arith.constant 0 : index
    %c0_10 = arith.constant 0 : index
    %10 = vector.load %arg4[%c0_9, %c0_10] : memref<1x784xf32, #tpu.memory_space<vmem>>, vector<1x784xf32>
    %11 = vector.broadcast %10 : vector<1x784xf32> to vector<2x784xf32>
    %12 = arith.addf %9, %11 : vector<2x784xf32>
    %cst_11 = arith.constant 0.000000e+00 : f32
    %13 = vector.broadcast %cst_11 : f32 to vector<2x784xf32>
    %14 = arith.maximumf %12, %13 : vector<2x784xf32>
    %c0_12 = arith.constant 0 : index
    %c0_13 = arith.constant 0 : index
    %15 = vector.load %arg5[%c0_12, %c0_13] : memref<784x784xf32, #tpu.memory_space<vmem>>, vector<784x784xf32>
    %cst_14 = arith.constant dense<0.000000e+00> : vector<2x784xf32>
    %16 = tpu.matmul %14, %15, %cst_14 {dimension_numbers = #tpu.dot_dimension_numbers<[1], [0], [0], [1], [0, 0, 1, 1], [], []>} : vector<2x784xf32>, vector<784x784xf32>, vector<2x784xf32> -> vector<2x784xf32>
    %c0_15 = arith.constant 0 : index
    %c0_16 = arith.constant 0 : index
    %17 = vector.load %arg6[%c0_15, %c0_16] : memref<1x784xf32, #tpu.memory_space<vmem>>, vector<1x784xf32>
    %18 = vector.broadcast %17 : vector<1x784xf32> to vector<2x784xf32>
    %19 = arith.addf %16, %18 : vector<2x784xf32>
    %cst_17 = arith.constant 0.000000e+00 : f32
    %20 = vector.broadcast %cst_17 : f32 to vector<2x784xf32>
    %21 = arith.maximumf %19, %20 : vector<2x784xf32>
    %c0_18 = arith.constant 0 : index
    %c0_19 = arith.constant 0 : index
    %22 = vector.load %arg7[%c0_18, %c0_19] : memref<784x1568xf32, #tpu.memory_space<vmem>>, vector<784x1568xf32>
    %cst_20 = arith.constant dense<0.000000e+00> : vector<2x1568xf32>
    %23 = tpu.matmul %21, %22, %cst_20 {dimension_numbers = #tpu.dot_dimension_numbers<[1], [0], [0], [1], [0, 0, 1, 1], [], []>} : vector<2x784xf32>, vector<784x1568xf32>, vector<2x1568xf32> -> vector<2x1568xf32>
    %c0_21 = arith.constant 0 : index
    %c0_22 = arith.constant 0 : index
    %24 = vector.load %arg8[%c0_21, %c0_22] : memref<1x1568xf32, #tpu.memory_space<vmem>>, vector<1x1568xf32>
    %25 = vector.broadcast %24 : vector<1x1568xf32> to vector<2x1568xf32>
    %26 = arith.addf %23, %25 : vector<2x1568xf32>
    %cst_23 = arith.constant 0.000000e+00 : f32
    %27 = vector.broadcast %cst_23 : f32 to vector<2x1568xf32>
    %28 = arith.maximumf %26, %27 : vector<2x1568xf32>
    %c0_24 = arith.constant 0 : index
    %c0_25 = arith.constant 0 : index
    %29 = vector.load %arg9[%c0_24, %c0_25] : memref<1568x784xf32, #tpu.memory_space<vmem>>, vector<1568x784xf32>
    %cst_26 = arith.constant dense<0.000000e+00> : vector<2x784xf32>
    %30 = tpu.matmul %28, %29, %cst_26 {dimension_numbers = #tpu.dot_dimension_numbers<[1], [0], [0], [1], [0, 0, 1, 1], [], []>} : vector<2x1568xf32>, vector<1568x784xf32>, vector<2x784xf32> -> vector<2x784xf32>
    %c0_27 = arith.constant 0 : index
    %c0_28 = arith.constant 0 : index
    %31 = vector.load %arg10[%c0_27, %c0_28] : memref<1x784xf32, #tpu.memory_space<vmem>>, vector<1x784xf32>
    %32 = vector.broadcast %31 : vector<1x784xf32> to vector<2x784xf32>
    %33 = arith.addf %30, %32 : vector<2x784xf32>
    %34 = arith.negf %33 : vector<2x784xf32>
    %35 = math.exp %34 : vector<2x784xf32>
    %cst_29 = arith.constant 1.000000e+00 : f32
    %36 = vector.broadcast %cst_29 : f32 to vector<2x784xf32>
    %37 = arith.addf %36, %35 : vector<2x784xf32>
    %38 = arith.divf %36, %37 : vector<2x784xf32>
    %c0_30 = arith.constant 0 : index
    %c0_31 = arith.constant 0 : index
    %39 = vector.load %arg11[%c0_30, %c0_31] : memref<2x784xf32, #tpu.memory_space<vmem>>, vector<2x784xf32>
    tpu.vector_store %arg11[%c0_30, %c0_31], %38 {strides = array<i32>} : memref<2x784xf32, #tpu.memory_space<vmem>>, vector<2x784xf32>,
    return
  }
}

</mosaic_0001>

<llo_original>
// kernel: decoder_forward.1
$region0: #{decoder_forward.1}
  #allocation0 [shape = 'u32[]', space=smem, size = 0x4, offset = 0x4, fixed_abs, tag = 'smem constant byte address 0x4 - core index']
  #allocation1 [shape = 'u32[144,128]{1,0:T(1,128)}', space=vmem, size = 0x12000, scoped, tag = 'internal scratch']
  %s0 = inlined_call_operand.vmem [shape: f32[2,160], index: 0, kind: input, shape index: {}]
  %s1 = inlined_call_operand.vmem [shape: f32[160,512], index: 1, kind: input, shape index: {}]
  %s2 = inlined_call_operand.vmem [shape: f32[1,512], index: 2, kind: input, shape index: {}]
  %s3 = inlined_call_operand.vmem [shape: f32[512,784], index: 3, kind: input, shape index: {}]
  %s4 = inlined_call_operand.vmem [shape: f32[1,784], index: 4, kind: input, shape index: {}]
  %s5 = inlined_call_operand.vmem [shape: f32[784,784], index: 5, kind: input, shape index: {}]
  %s6 = inlined_call_operand.vmem [shape: f32[1,784], index: 6, kind: input, shape index: {}]
  %s7 = inlined_call_operand.vmem [shape: f32[784,1568], index: 7, kind: input, shape index: {}]
  %s8 = inlined_call_operand.vmem [shape: f32[1,1568], index: 8, kind: input, shape index: {}]
  %s9 = inlined_call_operand.vmem [shape: f32[1568,784], index: 9, kind: input, shape index: {}]
  %s10 = inlined_call_operand.vmem [shape: f32[1,784], index: 10, kind: input, shape index: {}]
  %s11 = inlined_call_operand.vmem [shape: f32[2,784], index: 11, kind: output, shape index: {}]
  %s12 = sld [smem:[#allocation0]]
  $region54: #{decoder_forward.1} parent=0
    _
  %s14 = ssub.s32 1, %s12
  %s15 = scalar_select 0, %s14, %s12
  // Predicated region
  $region2: #{decoder_forward.1} parent=0 // pred_check
    _
  $region3: #{decoder_forward.1} parent=0 // pred_check_branch
    %17 = sbr.rel (0) target = $region5
  $region4: #{decoder_forward.1} parent=0 // pred_region
    _
  $region5: #{decoder_forward.1} parent=0 // pred_fallthru
    _
  // Predicated region
  $region6: #{decoder_forward.1} parent=0 // pred_check
    _
  $region7: #{decoder_forward.1} parent=0 // pred_check_branch
    %19 = sbr.rel (0) target = $region9
  $region8: #{decoder_forward.1} parent=0 // pred_region
    _
  $region9: #{decoder_forward.1} parent=0 // pred_fallthru
    _
  // Predicated region
  $region10: #{decoder_forward.1} parent=0 // pred_check
    _
  $region11: #{decoder_forward.1} parent=0 // pred_check_branch
    %21 = sbr.rel (0) target = $region13
  $region12: #{decoder_forward.1} parent=0 // pred_region
    _
  $region13: #{decoder_forward.1} parent=0 // pred_fallthru
    _
  // Predicated region
  $region14: #{decoder_forward.1} parent=0 // pred_check
    _
  $region15: #{decoder_forward.1} parent=0 // pred_check_branch
    %23 = sbr.rel (0) target = $region17
  $region16: #{decoder_forward.1} parent=0 // pred_region
    _
  $region17: #{decoder_forward.1} parent=0 // pred_fallthru
    _
  // Predicated region
  $region18: #{decoder_forward.1} parent=0 // pred_check
    _
  $region19: #{decoder_forward.1} parent=0 // pred_check_branch
    %25 = sbr.rel (0) target = $region21
  $region20: #{decoder_forward.1} parent=0 // pred_region
    _
  $region21: #{decoder_forward.1} parent=0 // pred_fallthru
    _
  // Predicated region
  $region22: #{decoder_forward.1} parent=0 // pred_check
    _
  $region23: #{decoder_forward.1} parent=0 // pred_check_branch
    %27 = sbr.rel (0) target = $region25
  $region24: #{decoder_forward.1} parent=0 // pred_region
    _
  $region25: #{decoder_forward.1} parent=0 // pred_fallthru
    _
  // Predicated region
  $region26: #{decoder_forward.1} parent=0 // pred_check
    _
  $region27: #{decoder_forward.1} parent=0 // pred_check_branch
    %29 = sbr.rel (0) target = $region29
  $region28: #{decoder_forward.1} parent=0 // pred_region
    _
  $region29: #{decoder_forward.1} parent=0 // pred_fallthru
    _
  // Predicated region
  $region30: #{decoder_forward.1} parent=0 // pred_check
    _
  $region31: #{decoder_forward.1} parent=0 // pred_check_branch
    %31 = sbr.rel (0) target = $region33
  $region32: #{decoder_forward.1} parent=0 // pred_region
    _
  $region33: #{decoder_forward.1} parent=0 // pred_fallthru
    _
  // Predicated region
  $region34: #{decoder_forward.1} parent=0 // pred_check
    _
  $region35: #{decoder_forward.1} parent=0 // pred_check_branch
    %33 = sbr.rel (0) target = $region37
  $region36: #{decoder_forward.1} parent=0 // pred_region
    _
  $region37: #{decoder_forward.1} parent=0 // pred_fallthru
    _
  // Predicated region
  $region38: #{decoder_forward.1} parent=0 // pred_check
    _
  $region39: #{decoder_forward.1} parent=0 // pred_check_branch
    %35 = sbr.rel (0) target = $region41
  $region40: #{decoder_forward.1} parent=0 // pred_region
    _
  $region41: #{decoder_forward.1} parent=0 // pred_fallthru
    _
  // Predicated region
  $region42: #{decoder_forward.1} parent=0 // pred_check
    _
  $region43: #{decoder_forward.1} parent=0 // pred_check_branch
    %37 = sbr.rel (0) target = $region45
  $region44: #{decoder_forward.1} parent=0 // pred_region
    _
  $region45: #{decoder_forward.1} parent=0 // pred_fallthru
    _
  %v38 = vld [vmem:[%s0] sm:$0xf]
  %v39 = vld [vmem:[%s1] sm:$0xff]
  %v40 = vld [vmem:[%s1 + $0x8] sm:$0xff]
  %v41 = vld [vmem:[%s1 + $0x10] sm:$0xff]
  %v42 = vld [vmem:[%s1 + $0x18] sm:$0xff]
  %v43 = vld [vmem:[%s1 + $0x20] sm:$0xff]
  %v44 = vld [vmem:[%s1 + $0x28] sm:$0xff]
  %v45 = vld [vmem:[%s1 + $0x30] sm:$0xff]
  %v46 = vld [vmem:[%s1 + $0x38] sm:$0xff]
  %v47 = vld [vmem:[%s1 + $0x40] sm:$0xff]
  %v48 = vld [vmem:[%s1 + $0x48] sm:$0xff]
  %v49 = vld [vmem:[%s1 + $0x50] sm:$0xff]
  %v50 = vld [vmem:[%s1 + $0x58] sm:$0xff]
  %v51 = vld [vmem:[%s1 + $0x60] sm:$0xff]
  %v52 = vld [vmem:[%s1 + $0x68] sm:$0xff]
  %v53 = vld [vmem:[%s1 + $0x70] sm:$0xff]
  %v54 = vld [vmem:[%s1 + $0x78] sm:$0xff]
  %v55 = vld [vmem:[%s1 + $0x80] sm:$0xff]
  %v56 = vld [vmem:[%s1 + $0x88] sm:$0xff]
  %v57 = vld [vmem:[%s1 + $0x90] sm:$0xff]
  %v58 = vld [vmem:[%s1 + $0x98] sm:$0xff]
  %v59 = vld [vmem:[%s1 + $0xa0] sm:$0xff]
  %v60 = vld [vmem:[%s1 + $0xa8] sm:$0xff]
  %v61 = vld [vmem:[%s1 + $0xb0] sm:$0xff]
  %v62 = vld [vmem:[%s1 + $0xb8] sm:$0xff]
  %v63 = vld [vmem:[%s1 + $0xc0] sm:$0xff]
  %v64 = vld [vmem:[%s1 + $0xc8] sm:$0xff]
  %v65 = vld [vmem:[%s1 + $0xd0] sm:$0xff]
  %v66 = vld [vmem:[%s1 + $0xd8] sm:$0xff]
  %v67 = vld [vmem:[%s1 + $0xe0] sm:$0xff]
  %v68 = vld [vmem:[%s1 + $0xe8] sm:$0xff]
  %v69 = vld [vmem:[%s1 + $0xf0] sm:$0xff]
  %v70 = vld [vmem:[%s1 + $0xf8] sm:$0xff]
  %v71 = vld [vmem:[%s1 + $0x100] sm:$0xff]
  %v72 = vld [vmem:[%s1 + $0x108] sm:$0xff]
  %v73 = vld [vmem:[%s1 + $0x110] sm:$0xff]
  %v74 = vld [vmem:[%s1 + $0x118] sm:$0xff]
  %v75 = vld [vmem:[%s1 + $0x120] sm:$0xff]
  %v76 = vld [vmem:[%s1 + $0x128] sm:$0xff]
  %v77 = vld [vmem:[%s1 + $0x130] sm:$0xff]
  %v78 = vld [vmem:[%s1 + $0x138] sm:$0xff]
  %v79 = vld [vmem:[%s1 + $0x140] sm:$0xff]
  %v80 = vld [vmem:[%s1 + $0x148] sm:$0xff]
  %v81 = vld [vmem:[%s1 + $0x150] sm:$0xff]
  %v82 = vld [vmem:[%s1 + $0x158] sm:$0xff]
  %v83 = vld [vmem:[%s1 + $0x160] sm:$0xff]
  %v84 = vld [vmem:[%s1 + $0x168] sm:$0xff]
  %v85 = vld [vmem:[%s1 + $0x170] sm:$0xff]
  %v86 = vld [vmem:[%s1 + $0x178] sm:$0xff]
  %v87 = vld [vmem:[%s1 + $0x180] sm:$0xff]
  %v88 = vld [vmem:[%s1 + $0x188] sm:$0xff]
  %v89 = vld [vmem:[%s1 + $0x190] sm:$0xff]
  %v90 = vld [vmem:[%s1 + $0x198] sm:$0xff]
  %v91 = vld [vmem:[%s1 + $0x1a0] sm:$0xff]
  %v92 = vld [vmem:[%s1 + $0x1a8] sm:$0xff]
  %v93 = vld [vmem:[%s1 + $0x1b0] sm:$0xff]
  %v94 = vld [vmem:[%s1 + $0x1b8] sm:$0xff]
  %v95 = vld [vmem:[%s1 + $0x1c0] sm:$0xff]
  %v96 = vld [vmem:[%s1 + $0x1c8] sm:$0xff]
  %v97 = vld [vmem:[%s1 + $0x1d0] sm:$0xff]
  %v98 = vld [vmem:[%s1 + $0x1d8] sm:$0xff]
  %v99 = vld [vmem:[%s1 + $0x1e0] sm:$0xff]
  %v100 = vld [vmem:[%s1 + $0x1e8] sm:$0xff]
  %v101 = vld [vmem:[%s1 + $0x1f0] sm:$0xff]
  %v102 = vld [vmem:[%s1 + $0x1f8] sm:$0xff]
  %v103 = vld [vmem:[%s1 + $0x200] sm:$0xff]
  %v104 = vld [vmem:[%s1 + $0x208] sm:$0xff]
  %v105 = vld [vmem:[%s1 + $0x210] sm:$0xff]
  %v106 = vld [vmem:[%s1 + $0x218] sm:$0xff]
  %v107 = vld [vmem:[%s1 + $0x220] sm:$0xff]
  %v108 = vld [vmem:[%s1 + $0x228] sm:$0xff]
  %v109 = vld [vmem:[%s1 + $0x230] sm:$0xff]
  %v110 = vld [vmem:[%s1 + $0x238] sm:$0xff]
  %v111 = vld [vmem:[%s1 + $0x240] sm:$0xff]
  %v112 = vld [vmem:[%s1 + $0x248] sm:$0xff]
  %v113 = vld [vmem:[%s1 + $0x250] sm:$0xff]
  %v114 = vld [vmem:[%s1 + $0x258] sm:$0xff]
  %v115 = vld [vmem:[%s1 + $0x260] sm:$0xff]
  %v116 = vld [vmem:[%s1 + $0x268] sm:$0xff]
  %v117 = vld [vmem:[%s1 + $0x270] sm:$0xff]
  %v118 = vld [vmem:[%s1 + $0x278] sm:$0xff]
  %v119 = vld [vmem:[%s2] sm:$0xf]
  %v121 = vlaneseq
  %v122 = vshrl.u32 %v121, 7
  %v123 = vsub.s32 0, %v122
  %v124 = vrot.slane %v119, %v123
  %v125 = vlaneseq
  %v126 = vshrl.u32 %v125, 7
  %v127 = vsub.s32 1, %v126
  %v128 = vrot.slane %v119, %v127
  %v129 = vlaneseq
  %v130 = vshrl.u32 %v129, 7
  %v131 = vsub.s32 2, %v130
  %v132 = vrot.slane %v119, %v131
  %v133 = vlaneseq
  %v134 = vshrl.u32 %v133, 7
  %v135 = vsub.s32 3, %v134
  %v136 = vrot.slane %v119, %v135
  %v143 = vunpack.c.l.s4 1983009808
  %v144 = vunpack.c.0.s8 %v143
  %v145 = vlaneseq
  %v146 = vshrl.u32 %v145, 7
  %v147 = vsub.s32 %v144, %v146
  %v148 = vrot.slane %v38, %v147
  %v149 = vcombine.high %v148, %v148
  %vm151 = vcmask 261120
  %v152 = vsel %vm151, %v149, 0
  %154 = vmatprep.subr.mxu0 %v100
  %155 = vmatpush1.msra.mxu0 %v99
  %156 = vmatprep.subr.mxu0 %v96
  %157 = vmatpush1.msra.mxu0 %v95
  %158 = vmatprep.subr.mxu0 %v92
  %159 = vmatpush1.msra.mxu0 %v91
  %160 = vmatprep.subr.mxu0 %v88
  %161 = vmatpush1.msra.mxu0 %v87
  %162 = vmatprep.subr.mxu0 %v84
  %163 = vmatpush1.msra.mxu0 %v83
  %164 = vmatprep.subr.mxu0 %v80
  %165 = vmatpush1.msra.mxu0 %v79
  %166 = vmatprep.subr.mxu0 %v76
  %167 = vmatpush1.msra.mxu0 %v75
  %168 = vmatprep.subr.mxu0 %v72
  %169 = vmatpush1.msra.mxu0 %v71
  %170 = vmatprep.subr.mxu0 %v68
  %171 = vmatpush1.msra.mxu0 %v67
  %172 = vmatprep.subr.mxu0 %v64
  %173 = vmatpush1.msra.mxu0 %v63
  %174 = vmatprep.subr.mxu0 %v60
  %175 = vmatpush1.msra.mxu0 %v59
  %176 = vmatprep.subr.mxu0 %v56
  %177 = vmatpush1.msra.mxu0 %v55
  %178 = vmatprep.subr.mxu0 %v52
  %179 = vmatpush1.msra.mxu0 %v51
  %180 = vmatprep.subr.mxu0 %v48
  %181 = vmatpush1.msra.mxu0 %v47
  %182 = vmatprep.subr.mxu0 %v44
  %183 = vmatpush1.msra.mxu0 %v43
  %184 = vmatprep.subr.mxu0 %v40
  %185 = vmatpush1.msra.mxu0 %v39
  %186 = vmatprep.subr.mxu0 0.0
  %187 = vmatpush2.msra.mxu0 0.0
  %188 = vmatprep.subr.mxu0 0.0
  %189 = vmatpush2.msra.mxu0 0.0
  %190 = vmatprep.subr.mxu0 0.0
  %191 = vmatpush2.msra.mxu0 0.0
  %192 = vmatprep.subr.mxu0 0.0
  %193 = vmatpush2.msra.mxu0 0.0
  %194 = vmatprep.subr.mxu0 0.0
  %195 = vmatpush2.msra.mxu0 0.0
  %196 = vmatprep.subr.mxu0 0.0
  %197 = vmatpush2.msra.mxu0 0.0
  %198 = vmatprep.subr.mxu0 0.0
  %199 = vmatpush2.msra.mxu0 0.0
  %200 = vmatprep.subr.mxu0 0.0
  %201 = vmatpush2.msra.mxu0 0.0
  %202 = vmatprep.subr.mxu0 0.0
  %203 = vmatpush2.msra.mxu0 0.0
  %204 = vmatprep.subr.mxu0 0.0
  %205 = vmatpush2.msra.mxu0 0.0
  %206 = vmatprep.subr.mxu0 0.0
  %207 = vmatpush2.msra.mxu0 0.0
  %208 = vmatprep.subr.mxu0 0.0
  %209 = vmatpush2.msra.mxu0 0.0
  %210 = vmatprep.subr.mxu0 %v116
  %211 = vmatpush2.msra.mxu0 %v115
  %212 = vmatprep.subr.mxu0 %v112
  %213 = vmatpush2.msra.mxu0 %v111
  %214 = vmatprep.subr.mxu0 %v108
  %215 = vmatpush2.msra.mxu0 %v107
  %216 = vmatprep.subr.mxu0 %v104
  %217 = vmatpush2.msra.mxu0 %v103
  %218 = vmatprep.mubr.f32.mxu0 %v152
  %219 = vmatmul.mubr.f32.gmra.mxu0 %v148
  %v220 = vpop.f32.mrf.mxu0
  %v221 = vadd.f32 %v124, %v220
  %v222 = vpop.f32.mrf.mxu0
  %v223 = vadd.f32 %v128, %v222
  %224 = vdwg.mxu0
  %225 = vmatprep.subr.mxu0 %v102
  %226 = vmatpush1.msra.mxu0 %v101
  %227 = vmatprep.subr.mxu0 %v98
  %228 = vmatpush1.msra.mxu0 %v97
  %229 = vmatprep.subr.mxu0 %v94
  %230 = vmatpush1.msra.mxu0 %v93
  %231 = vmatprep.subr.mxu0 %v90
  %232 = vmatpush1.msra.mxu0 %v89
  %233 = vmatprep.subr.mxu0 %v86
  %234 = vmatpush1.msra.mxu0 %v85
  %235 = vmatprep.subr.mxu0 %v82
  %236 = vmatpush1.msra.mxu0 %v81
  %237 = vmatprep.subr.mxu0 %v78
  %238 = vmatpush1.msra.mxu0 %v77
  %239 = vmatprep.subr.mxu0 %v74
  %240 = vmatpush1.msra.mxu0 %v73
  %241 = vmatprep.subr.mxu0 %v70
  %242 = vmatpush1.msra.mxu0 %v69
  %243 = vmatprep.subr.mxu0 %v66
  %244 = vmatpush1.msra.mxu0 %v65
  %245 = vmatprep.subr.mxu0 %v62
  %246 = vmatpush1.msra.mxu0 %v61
  %247 = vmatprep.subr.mxu0 %v58
  %248 = vmatpush1.msra.mxu0 %v57
  %249 = vmatprep.subr.mxu0 %v54
  %250 = vmatpush1.msra.mxu0 %v53
  %251 = vmatprep.subr.mxu0 %v50
  %252 = vmatpush1.msra.mxu0 %v49
  %253 = vmatprep.subr.mxu0 %v46
  %254 = vmatpush1.msra.mxu0 %v45
  %255 = vmatprep.subr.mxu0 %v42
  %256 = vmatpush1.msra.mxu0 %v41
  %257 = vmatprep.subr.mxu0 0.0
  %258 = vmatpush2.msra.mxu0 0.0
  %259 = vmatprep.subr.mxu0 0.0
  %260 = vmatpush2.msra.mxu0 0.0
  %261 = vmatprep.subr.mxu0 0.0
  %262 = vmatpush2.msra.mxu0 0.0
  %263 = vmatprep.subr.mxu0 0.0
  %264 = vmatpush2.msra.mxu0 0.0
  %265 = vmatprep.subr.mxu0 0.0
  %266 = vmatpush2.msra.mxu0 0.0
  %267 = vmatprep.subr.mxu0 0.0
  %268 = vmatpush2.msra.mxu0 0.0
  %269 = vmatprep.subr.mxu0 0.0
  %270 = vmatpush2.msra.mxu0 0.0
  %271 = vmatprep.subr.mxu0 0.0
  %272 = vmatpush2.msra.mxu0 0.0
  %273 = vmatprep.subr.mxu0 0.0
  %274 = vmatpush2.msra.mxu0 0.0
  %275 = vmatprep.subr.mxu0 0.0
  %276 = vmatpush2.msra.mxu0 0.0
  %277 = vmatprep.subr.mxu0 0.0
  %278 = vmatpush2.msra.mxu0 0.0
  %279 = vmatprep.subr.mxu0 0.0
  %280 = vmatpush2.msra.mxu0 0.0
  %281 = vmatprep.subr.mxu0 %v118
  %282 = vmatpush2.msra.mxu0 %v117
  %283 = vmatprep.subr.mxu0 %v114
  %284 = vmatpush2.msra.mxu0 %v113
  %285 = vmatprep.subr.mxu0 %v110
  %286 = vmatpush2.msra.mxu0 %v109
  %287 = vmatprep.subr.mxu0 %v106
  %288 = vmatpush2.msra.mxu0 %v105
  %289 = vmatprep.mubr.f32.mxu0 %v152
  %290 = vmatmul.mubr.f32.gmra.mxu0 %v148
  %v291 = vpop.f32.mrf.mxu0
  %v292 = vadd.f32 %v132, %v291
  %v293 = vpop.f32.mrf.mxu0
  %v294 = vadd.f32 %v136, %v293
  %295 = vdwg.mxu0
  %v296 = vmax.f32 %v221, 0.0
  %v297 = vmax.f32 %v223, 0.0
  %v298 = vmax.f32 %v292, 0.0
  %v299 = vmax.f32 %v294, 0.0
  %v300 = vld [vmem:[%s3] sm:$0xff]
  %v301 = vld [vmem:[%s3 + $0x8] sm:$0xff]
  %v302 = vld [vmem:[%s3 + $0x10] sm:$0xff]
  %v303 = vld [vmem:[%s3 + $0x18] sm:$0xff]
  %v304 = vld [vmem:[%s3 + $0x20] sm:$0xff]
  %v305 = vld [vmem:[%s3 + $0x28] sm:$0xff]
  %v306 = vld [vmem:[%s3 + $0x30] sm:$0xff]
  %v307 = vld [vmem:[%s3 + $0x38] sm:$0xff]
  %v308 = vld [vmem:[%s3 + $0x40] sm:$0xff]
  %v309 = vld [vmem:[%s3 + $0x48] sm:$0xff]
  %v310 = vld [vmem:[%s3 + $0x50] sm:$0xff]
  %v311 = vld [vmem:[%s3 + $0x58] sm:$0xff]
  %v312 = vld [vmem:[%s3 + $0x60] sm:$0xff]
  %v313 = vld [vmem:[%s3 + $0x68] sm:$0xff]
  %v314 = vld [vmem:[%s3 + $0x70] sm:$0xff]
  %v315 = vld [vmem:[%s3 + $0x78] sm:$0xff]
  %v316 = vld [vmem:[%s3 + $0x80] sm:$0xff]
  %v317 = vld [vmem:[%s3 + $0x88] sm:$0xff]
  %v318 = vld [vmem:[%s3 + $0x90] sm:$0xff]
  %v319 = vld [vmem:[%s3 + $0x98] sm:$0xff]
  %v320 = vld [vmem:[%s3 + $0xa0] sm:$0xff]
  %v321 = vld [vmem:[%s3 + $0xa8] sm:$0xff]
  %v322 = vld [vmem:[%s3 + $0xb0] sm:$0xff]
  %v323 = vld [vmem:[%s3 + $0xb8] sm:$0xff]
  %v324 = vld [vmem:[%s3 + $0xc0] sm:$0xff]
  %v325 = vld [vmem:[%s3 + $0xc8] sm:$0xff]
  %v326 = vld [vmem:[%s3 + $0xd0] sm:$0xff]
  %v327 = vld [vmem:[%s3 + $0xd8] sm:$0xff]
  %v328 = vld [vmem:[%s3 + $0xe0] sm:$0xff]
  %v329 = vld [vmem:[%s3 + $0xe8] sm:$0xff]
  %v330 = vld [vmem:[%s3 + $0xf0] sm:$0xff]
  %v331 = vld [vmem:[%s3 + $0xf8] sm:$0xff]
  %v332 = vld [vmem:[%s3 + $0x100] sm:$0xff]
  %v333 = vld [vmem:[%s3 + $0x108] sm:$0xff]
  %v334 = vld [vmem:[%s3 + $0x110] sm:$0xff]
  %v335 = vld [vmem:[%s3 + $0x118] sm:$0xff]
  %v336 = vld [vmem:[%s3 + $0x120] sm:$0xff]
  %v337 = vld [vmem:[%s3 + $0x128] sm:$0xff]
  %v338 = vld [vmem:[%s3 + $0x130] sm:$0xff]
  %v339 = vld [vmem:[%s3 + $0x138] sm:$0xff]
  %v340 = vld [vmem:[%s3 + $0x140] sm:$0xff]
  %v341 = vld [vmem:[%s3 + $0x148] sm:$0xff]
  %v342 = vld [vmem:[%s3 + $0x150] sm:$0xff]
  %v343 = vld [vmem:[%s3 + $0x158] sm:$0xff]
  %v344 = vld [vmem:[%s3 + $0x160] sm:$0xff]
  %v345 = vld [vmem:[%s3 + $0x168] sm:$0xff]
  %v346 = vld [vmem:[%s3 + $0x170] sm:$0xff]
  %v347 = vld [vmem:[%s3 + $0x178] sm:$0xff]
  %v348 = vld [vmem:[%s3 + $0x180] sm:$0xff]
  %v349 = vld [vmem:[%s3 + $0x188] sm:$0xff]
  %v350 = vld [vmem:[%s3 + $0x190] sm:$0xff]
  %v351 = vld [vmem:[%s3 + $0x198] sm:$0xff]
  %v352 = vld [vmem:[%s3 + $0x1a0] sm:$0xff]
  %v353 = vld [vmem:[%s3 + $0x1a8] sm:$0xff]
  %v354 = vld [vmem:[%s3 + $0x1b0] sm:$0xff]
  %v355 = vld [vmem:[%s3 + $0x1b8] sm:$0xff]
  %v356 = vld [vmem:[%s3 + $0x1c0] sm:$0xff]
  %v357 = vld [vmem:[%s3 + $0x1c8] sm:$0xff]
  %v358 = vld [vmem:[%s3 + $0x1d0] sm:$0xff]
  %v359 = vld [vmem:[%s3 + $0x1d8] sm:$0xff]
  %v360 = vld [vmem:[%s3 + $0x1e0] sm:$0xff]
  %v361 = vld [vmem:[%s3 + $0x1e8] sm:$0xff]
  %v362 = vld [vmem:[%s3 + $0x1f0] sm:$0xff]
  %v363 = vld [vmem:[%s3 + $0x1f8] sm:$0xff]
  %v364 = vld [vmem:[%s3 + $0x200] sm:$0xff]
  %v365 = vld [vmem:[%s3 + $0x208] sm:$0xff]
  %v366 = vld [vmem:[%s3 + $0x210] sm:$0xff]
  %v367 = vld [vmem:[%s3 + $0x218] sm:$0xff]
  %v368 = vld [vmem:[%s3 + $0x220] sm:$0xff]
  %v369 = vld [vmem:[%s3 + $0x228] sm:$0xff]
  %v370 = vld [vmem:[%s3 + $0x230] sm:$0xff]
  %v371 = vld [vmem:[%s3 + $0x238] sm:$0xff]
  %v372 = vld [vmem:[%s3 + $0x240] sm:$0xff]
  %v373 = vld [vmem:[%s3 + $0x248] sm:$0xff]
  %v374 = vld [vmem:[%s3 + $0x250] sm:$0xff]
  %v375 = vld [vmem:[%s3 + $0x258] sm:$0xff]
  %v376 = vld [vmem:[%s3 + $0x260] sm:$0xff]
  %v377 = vld [vmem:[%s3 + $0x268] sm:$0xff]
  %v378 = vld [vmem:[%s3 + $0x270] sm:$0xff]
  %v379 = vld [vmem:[%s3 + $0x278] sm:$0xff]
  %v380 = vld [vmem:[%s3 + $0x280] sm:$0xff]
  %v381 = vld [vmem:[%s3 + $0x288] sm:$0xff]
  %v382 = vld [vmem:[%s3 + $0x290] sm:$0xff]
  %v383 = vld [vmem:[%s3 + $0x298] sm:$0xff]
  %v384 = vld [vmem:[%s3 + $0x2a0] sm:$0xff]
  %v385 = vld [vmem:[%s3 + $0x2a8] sm:$0xff]
  %v386 = vld [vmem:[%s3 + $0x2b0] sm:$0xff]
  %v387 = vld [vmem:[%s3 + $0x2b8] sm:$0xff]
  %v388 = vld [vmem:[%s3 + $0x2c0] sm:$0xff]
  %v389 = vld [vmem:[%s3 + $0x2c8] sm:$0xff]
  %v390 = vld [vmem:[%s3 + $0x2d0] sm:$0xff]
  %v391 = vld [vmem:[%s3 + $0x2d8] sm:$0xff]
  %v392 = vld [vmem:[%s3 + $0x2e0] sm:$0xff]
  %v393 = vld [vmem:[%s3 + $0x2e8] sm:$0xff]
  %v394 = vld [vmem:[%s3 + $0x2f0] sm:$0xff]
  %v395 = vld [vmem:[%s3 + $0x2f8] sm:$0xff]
  %v396 = vld [vmem:[%s3 + $0x300] sm:$0xff]
  %v397 = vld [vmem:[%s3 + $0x308] sm:$0xff]
  %v398 = vld [vmem:[%s3 + $0x310] sm:$0xff]
  %v399 = vld [vmem:[%s3 + $0x318] sm:$0xff]
  %v400 = vld [vmem:[%s3 + $0x320] sm:$0xff]
  %v401 = vld [vmem:[%s3 + $0x328] sm:$0xff]
  %v402 = vld [vmem:[%s3 + $0x330] sm:$0xff]
  %v403 = vld [vmem:[%s3 + $0x338] sm:$0xff]
  %v404 = vld [vmem:[%s3 + $0x340] sm:$0xff]
  %v405 = vld [vmem:[%s3 + $0x348] sm:$0xff]
  %v406 = vld [vmem:[%s3 + $0x350] sm:$0xff]
  %v407 = vld [vmem:[%s3 + $0x358] sm:$0xff]
  %v408 = vld [vmem:[%s3 + $0x360] sm:$0xff]
  %v409 = vld [vmem:[%s3 + $0x368] sm:$0xff]
  %v410 = vld [vmem:[%s3 + $0x370] sm:$0xff]
  %v411 = vld [vmem:[%s3 + $0x378] sm:$0xff]
  %v412 = vld [vmem:[%s3 + $0x380] sm:$0xff]
  %v413 = vld [vmem:[%s3 + $0x388] sm:$0xff]
  %v414 = vld [vmem:[%s3 + $0x390] sm:$0xff]
  %v415 = vld [vmem:[%s3 + $0x398] sm:$0xff]
  %v416 = vld [vmem:[%s3 + $0x3a0] sm:$0xff]
  %v417 = vld [vmem:[%s3 + $0x3a8] sm:$0xff]
  %v418 = vld [vmem:[%s3 + $0x3b0] sm:$0xff]
  %v419 = vld [vmem:[%s3 + $0x3b8] sm:$0xff]
  %v420 = vld [vmem:[%s3 + $0x3c0] sm:$0xff]
  %v421 = vld [vmem:[%s3 + $0x3c8] sm:$0xff]
  %v422 = vld [vmem:[%s3 + $0x3d0] sm:$0xff]
  %v423 = vld [vmem:[%s3 + $0x3d8] sm:$0xff]
  %v424 = vld [vmem:[%s3 + $0x3e0] sm:$0xff]
  %v425 = vld [vmem:[%s3 + $0x3e8] sm:$0xff]
  %v426 = vld [vmem:[%s3 + $0x3f0] sm:$0xff]
  %v427 = vld [vmem:[%s3 + $0x3f8] sm:$0xff]
  %v428 = vld [vmem:[%s3 + $0x400] sm:$0xff]
  %v429 = vld [vmem:[%s3 + $0x408] sm:$0xff]
  %v430 = vld [vmem:[%s3 + $0x410] sm:$0xff]
  %v431 = vld [vmem:[%s3 + $0x418] sm:$0xff]
  %v432 = vld [vmem:[%s3 + $0x420] sm:$0xff]
  %v433 = vld [vmem:[%s3 + $0x428] sm:$0xff]
  %v434 = vld [vmem:[%s3 + $0x430] sm:$0xff]
  %v435 = vld [vmem:[%s3 + $0x438] sm:$0xff]
  %v436 = vld [vmem:[%s3 + $0x440] sm:$0xff]
  %v437 = vld [vmem:[%s3 + $0x448] sm:$0xff]
  %v438 = vld [vmem:[%s3 + $0x450] sm:$0xff]
  %v439 = vld [vmem:[%s3 + $0x458] sm:$0xff]
  %v440 = vld [vmem:[%s3 + $0x460] sm:$0xff]
  %v441 = vld [vmem:[%s3 + $0x468] sm:$0xff]
  %v442 = vld [vmem:[%s3 + $0x470] sm:$0xff]
  %v443 = vld [vmem:[%s3 + $0x478] sm:$0xff]
  %v444 = vld [vmem:[%s3 + $0x480] sm:$0xff]
  %v445 = vld [vmem:[%s3 + $0x488] sm:$0xff]
  %v446 = vld [vmem:[%s3 + $0x490] sm:$0xff]
  %v447 = vld [vmem:[%s3 + $0x498] sm:$0xff]
  %v448 = vld [vmem:[%s3 + $0x4a0] sm:$0xff]
  %v449 = vld [vmem:[%s3 + $0x4a8] sm:$0xff]
  %v450 = vld [vmem:[%s3 + $0x4b0] sm:$0xff]
  %v451 = vld [vmem:[%s3 + $0x4b8] sm:$0xff]
  %v452 = vld [vmem:[%s3 + $0x4c0] sm:$0xff]
  %v453 = vld [vmem:[%s3 + $0x4c8] sm:$0xff]
  %v454 = vld [vmem:[%s3 + $0x4d0] sm:$0xff]
  %v455 = vld [vmem:[%s3 + $0x4d8] sm:$0xff]
  %v456 = vld [vmem:[%s3 + $0x4e0] sm:$0xff]
  %v457 = vld [vmem:[%s3 + $0x4e8] sm:$0xff]
  %v458 = vld [vmem:[%s3 + $0x4f0] sm:$0xff]
  %v459 = vld [vmem:[%s3 + $0x4f8] sm:$0xff]
  %v460 = vld [vmem:[%s3 + $0x500] sm:$0xff]
  %v461 = vld [vmem:[%s3 + $0x508] sm:$0xff]
  %v462 = vld [vmem:[%s3 + $0x510] sm:$0xff]
  %v463 = vld [vmem:[%s3 + $0x518] sm:$0xff]
  %v464 = vld [vmem:[%s3 + $0x520] sm:$0xff]
  %v465 = vld [vmem:[%s3 + $0x528] sm:$0xff]
  %v466 = vld [vmem:[%s3 + $0x530] sm:$0xff]
  %v467 = vld [vmem:[%s3 + $0x538] sm:$0xff]
  %v468 = vld [vmem:[%s3 + $0x540] sm:$0xff]
  %v469 = vld [vmem:[%s3 + $0x548] sm:$0xff]
  %v470 = vld [vmem:[%s3 + $0x550] sm:$0xff]
  %v471 = vld [vmem:[%s3 + $0x558] sm:$0xff]
  %v472 = vld [vmem:[%s3 + $0x560] sm:$0xff]
  %v473 = vld [vmem:[%s3 + $0x568] sm:$0xff]
  %v474 = vld [vmem:[%s3 + $0x570] sm:$0xff]
  %v475 = vld [vmem:[%s3 + $0x578] sm:$0xff]
  %v476 = vld [vmem:[%s3 + $0x580] sm:$0xff]
  %v477 = vld [vmem:[%s3 + $0x588] sm:$0xff]
  %v478 = vld [vmem:[%s3 + $0x590] sm:$0xff]
  %v479 = vld [vmem:[%s3 + $0x598] sm:$0xff]
  %v480 = vld [vmem:[%s3 + $0x5a0] sm:$0xff]
  %v481 = vld [vmem:[%s3 + $0x5a8] sm:$0xff]
  %v482 = vld [vmem:[%s3 + $0x5b0] sm:$0xff]
  %v483 = vld [vmem:[%s3 + $0x5b8] sm:$0xff]
  %v484 = vld [vmem:[%s3 + $0x5c0] sm:$0xff]
  %v485 = vld [vmem:[%s3 + $0x5c8] sm:$0xff]
  %v486 = vld [vmem:[%s3 + $0x5d0] sm:$0xff]
  %v487 = vld [vmem:[%s3 + $0x5d8] sm:$0xff]
  %v488 = vld [vmem:[%s3 + $0x5e0] sm:$0xff]
  %v489 = vld [vmem:[%s3 + $0x5e8] sm:$0xff]
  %v490 = vld [vmem:[%s3 + $0x5f0] sm:$0xff]
  %v491 = vld [vmem:[%s3 + $0x5f8] sm:$0xff]
  %v492 = vld [vmem:[%s3 + $0x600] sm:$0xff]
  %v493 = vld [vmem:[%s3 + $0x608] sm:$0xff]
  %v494 = vld [vmem:[%s3 + $0x610] sm:$0xff]
  %v495 = vld [vmem:[%s3 + $0x618] sm:$0xff]
  %v496 = vld [vmem:[%s3 + $0x620] sm:$0xff]
  %v497 = vld [vmem:[%s3 + $0x628] sm:$0xff]
  %v498 = vld [vmem:[%s3 + $0x630] sm:$0xff]
  %v499 = vld [vmem:[%s3 + $0x638] sm:$0xff]
  %v500 = vld [vmem:[%s3 + $0x640] sm:$0xff]
  %v501 = vld [vmem:[%s3 + $0x648] sm:$0xff]
  %v502 = vld [vmem:[%s3 + $0x650] sm:$0xff]
  %v503 = vld [vmem:[%s3 + $0x658] sm:$0xff]
  %v504 = vld [vmem:[%s3 + $0x660] sm:$0xff]
  %v505 = vld [vmem:[%s3 + $0x668] sm:$0xff]
  %v506 = vld [vmem:[%s3 + $0x670] sm:$0xff]
  %v507 = vld [vmem:[%s3 + $0x678] sm:$0xff]
  %v508 = vld [vmem:[%s3 + $0x680] sm:$0xff]
  %v509 = vld [vmem:[%s3 + $0x688] sm:$0xff]
  %v510 = vld [vmem:[%s3 + $0x690] sm:$0xff]
  %v511 = vld [vmem:[%s3 + $0x698] sm:$0xff]
  %v512 = vld [vmem:[%s3 + $0x6a0] sm:$0xff]
  %v513 = vld [vmem:[%s3 + $0x6a8] sm:$0xff]
  %v514 = vld [vmem:[%s3 + $0x6b0] sm:$0xff]
  %v515 = vld [vmem:[%s3 + $0x6b8] sm:$0xff]
  %v516 = vld [vmem:[%s3 + $0x6c0] sm:$0xff]
  %v517 = vld [vmem:[%s3 + $0x6c8] sm:$0xff]
  %v518 = vld [vmem:[%s3 + $0x6d0] sm:$0xff]
  %v519 = vld [vmem:[%s3 + $0x6d8] sm:$0xff]
  %v520 = vld [vmem:[%s3 + $0x6e0] sm:$0xff]
  %v521 = vld [vmem:[%s3 + $0x6e8] sm:$0xff]
  %v522 = vld [vmem:[%s3 + $0x6f0] sm:$0xff]
  %v523 = vld [vmem:[%s3 + $0x6f8] sm:$0xff]
  %v524 = vld [vmem:[%s3 + $0x700] sm:$0xff]
  %v525 = vld [vmem:[%s3 + $0x708] sm:$0xff]
  %v526 = vld [vmem:[%s3 + $0x710] sm:$0xff]
  %v527 = vld [vmem:[%s3 + $0x718] sm:$0xff]
  %v528 = vld [vmem:[%s3 + $0x720] sm:$0xff]
  %v529 = vld [vmem:[%s3 + $0x728] sm:$0xff]
  %v530 = vld [vmem:[%s3 + $0x730] sm:$0xff]
  %v531 = vld [vmem:[%s3 + $0x738] sm:$0xff]
  %v532 = vld [vmem:[%s3 + $0x740] sm:$0xff]
  %v533 = vld [vmem:[%s3 + $0x748] sm:$0xff]
  %v534 = vld [vmem:[%s3 + $0x750] sm:$0xff]
  %v535 = vld [vmem:[%s3 + $0x758] sm:$0xff]
  %v536 = vld [vmem:[%s3 + $0x760] sm:$0xff]
  %v537 = vld [vmem:[%s3 + $0x768] sm:$0xff]
  %v538 = vld [vmem:[%s3 + $0x770] sm:$0xff]
  %v539 = vld [vmem:[%s3 + $0x778] sm:$0xff]
  %v540 = vld [vmem:[%s3 + $0x780] sm:$0xff]
  %v541 = vld [vmem:[%s3 + $0x788] sm:$0xff]
  %v542 = vld [vmem:[%s3 + $0x790] sm:$0xff]
  %v543 = vld [vmem:[%s3 + $0x798] sm:$0xff]
  %v544 = vld [vmem:[%s3 + $0x7a0] sm:$0xff]
  %v545 = vld [vmem:[%s3 + $0x7a8] sm:$0xff]
  %v546 = vld [vmem:[%s3 + $0x7b0] sm:$0xff]
  %v547 = vld [vmem:[%s3 + $0x7b8] sm:$0xff]
  %v548 = vld [vmem:[%s3 + $0x7c0] sm:$0xff]
  %v549 = vld [vmem:[%s3 + $0x7c8] sm:$0xff]
  %v550 = vld [vmem:[%s3 + $0x7d0] sm:$0xff]
  %v551 = vld [vmem:[%s3 + $0x7d8] sm:$0xff]
  %v552 = vld [vmem:[%s3 + $0x7e0] sm:$0xff]
  %v553 = vld [vmem:[%s3 + $0x7e8] sm:$0xff]
  %v554 = vld [vmem:[%s3 + $0x7f0] sm:$0xff]
  %v555 = vld [vmem:[%s3 + $0x7f8] sm:$0xff]
  %v556 = vld [vmem:[%s3 + $0x800] sm:$0xff]
  %v557 = vld [vmem:[%s3 + $0x808] sm:$0xff]
  %v558 = vld [vmem:[%s3 + $0x810] sm:$0xff]
  %v559 = vld [vmem:[%s3 + $0x818] sm:$0xff]
  %v560 = vld [vmem:[%s3 + $0x820] sm:$0xff]
  %v561 = vld [vmem:[%s3 + $0x828] sm:$0xff]
  %v562 = vld [vmem:[%s3 + $0x830] sm:$0xff]
  %v563 = vld [vmem:[%s3 + $0x838] sm:$0xff]
  %v564 = vld [vmem:[%s3 + $0x840] sm:$0xff]
  %v565 = vld [vmem:[%s3 + $0x848] sm:$0xff]
  %v566 = vld [vmem:[%s3 + $0x850] sm:$0xff]
  %v567 = vld [vmem:[%s3 + $0x858] sm:$0xff]
  %v568 = vld [vmem:[%s3 + $0x860] sm:$0xff]
  %v569 = vld [vmem:[%s3 + $0x868] sm:$0xff]
  %v570 = vld [vmem:[%s3 + $0x870] sm:$0xff]
  %v571 = vld [vmem:[%s3 + $0x878] sm:$0xff]
  %v572 = vld [vmem:[%s3 + $0x880] sm:$0xff]
  %v573 = vld [vmem:[%s3 + $0x888] sm:$0xff]
  %v574 = vld [vmem:[%s3 + $0x890] sm:$0xff]
  %v575 = vld [vmem:[%s3 + $0x898] sm:$0xff]
  %v576 = vld [vmem:[%s3 + $0x8a0] sm:$0xff]
  %v577 = vld [vmem:[%s3 + $0x8a8] sm:$0xff]
  %v578 = vld [vmem:[%s3 + $0x8b0] sm:$0xff]
  %v579 = vld [vmem:[%s3 + $0x8b8] sm:$0xff]
  %v580 = vld [vmem:[%s3 + $0x8c0] sm:$0xff]
  %v581 = vld [vmem:[%s3 + $0x8c8] sm:$0xff]
  %v582 = vld [vmem:[%s3 + $0x8d0] sm:$0xff]
  %v583 = vld [vmem:[%s3 + $0x8d8] sm:$0xff]
  %v584 = vld [vmem:[%s3 + $0x8e0] sm:$0xff]
  %v585 = vld [vmem:[%s3 + $0x8e8] sm:$0xff]
  %v586 = vld [vmem:[%s3 + $0x8f0] sm:$0xff]
  %v587 = vld [vmem:[%s3 + $0x8f8] sm:$0xff]
  %v588 = vld [vmem:[%s3 + $0x900] sm:$0xff]
  %v589 = vld [vmem:[%s3 + $0x908] sm:$0xff]
  %v590 = vld [vmem:[%s3 + $0x910] sm:$0xff]
  %v591 = vld [vmem:[%s3 + $0x918] sm:$0xff]
  %v592 = vld [vmem:[%s3 + $0x920] sm:$0xff]
  %v593 = vld [vmem:[%s3 + $0x928] sm:$0xff]
  %v594 = vld [vmem:[%s3 + $0x930] sm:$0xff]
  %v595 = vld [vmem:[%s3 + $0x938] sm:$0xff]
  %v596 = vld [vmem:[%s3 + $0x940] sm:$0xff]
  %v597 = vld [vmem:[%s3 + $0x948] sm:$0xff]
  %v598 = vld [vmem:[%s3 + $0x950] sm:$0xff]
  %v599 = vld [vmem:[%s3 + $0x958] sm:$0xff]
  %v600 = vld [vmem:[%s3 + $0x960] sm:$0xff]
  %v601 = vld [vmem:[%s3 + $0x968] sm:$0xff]
  %v602 = vld [vmem:[%s3 + $0x970] sm:$0xff]
  %v603 = vld [vmem:[%s3 + $0x978] sm:$0xff]
  %v604 = vld [vmem:[%s3 + $0x980] sm:$0xff]
  %v605 = vld [vmem:[%s3 + $0x988] sm:$0xff]
  %v606 = vld [vmem:[%s3 + $0x990] sm:$0xff]
  %v607 = vld [vmem:[%s3 + $0x998] sm:$0xff]
  %v608 = vld [vmem:[%s3 + $0x9a0] sm:$0xff]
  %v609 = vld [vmem:[%s3 + $0x9a8] sm:$0xff]
  %v610 = vld [vmem:[%s3 + $0x9b0] sm:$0xff]
  %v611 = vld [vmem:[%s3 + $0x9b8] sm:$0xff]
  %v612 = vld [vmem:[%s3 + $0x9c0] sm:$0xff]
  %v613 = vld [vmem:[%s3 + $0x9c8] sm:$0xff]
  %v614 = vld [vmem:[%s3 + $0x9d0] sm:$0xff]
  %v615 = vld [vmem:[%s3 + $0x9d8] sm:$0xff]
  %v616 = vld [vmem:[%s3 + $0x9e0] sm:$0xff]
  %v617 = vld [vmem:[%s3 + $0x9e8] sm:$0xff]
  %v618 = vld [vmem:[%s3 + $0x9f0] sm:$0xff]
  %v619 = vld [vmem:[%s3 + $0x9f8] sm:$0xff]
  %v620 = vld [vmem:[%s3 + $0xa00] sm:$0xff]
  %v621 = vld [vmem:[%s3 + $0xa08] sm:$0xff]
  %v622 = vld [vmem:[%s3 + $0xa10] sm:$0xff]
  %v623 = vld [vmem:[%s3 + $0xa18] sm:$0xff]
  %v624 = vld [vmem:[%s3 + $0xa20] sm:$0xff]
  %v625 = vld [vmem:[%s3 + $0xa28] sm:$0xff]
  %v626 = vld [vmem:[%s3 + $0xa30] sm:$0xff]
  %v627 = vld [vmem:[%s3 + $0xa38] sm:$0xff]
  %v628 = vld [vmem:[%s3 + $0xa40] sm:$0xff]
  %v629 = vld [vmem:[%s3 + $0xa48] sm:$0xff]
  %v630 = vld [vmem:[%s3 + $0xa50] sm:$0xff]
  %v631 = vld [vmem:[%s3 + $0xa58] sm:$0xff]
  %v632 = vld [vmem:[%s3 + $0xa60] sm:$0xff]
  %v633 = vld [vmem:[%s3 + $0xa68] sm:$0xff]
  %v634 = vld [vmem:[%s3 + $0xa70] sm:$0xff]
  %v635 = vld [vmem:[%s3 + $0xa78] sm:$0xff]
  %v636 = vld [vmem:[%s3 + $0xa80] sm:$0xff]
  %v637 = vld [vmem:[%s3 + $0xa88] sm:$0xff]
  %v638 = vld [vmem:[%s3 + $0xa90] sm:$0xff]
  %v639 = vld [vmem:[%s3 + $0xa98] sm:$0xff]
  %v640 = vld [vmem:[%s3 + $0xaa0] sm:$0xff]
  %v641 = vld [vmem:[%s3 + $0xaa8] sm:$0xff]
  %v642 = vld [vmem:[%s3 + $0xab0] sm:$0xff]
  %v643 = vld [vmem:[%s3 + $0xab8] sm:$0xff]
  %v644 = vld [vmem:[%s3 + $0xac0] sm:$0xff]
  %v645 = vld [vmem:[%s3 + $0xac8] sm:$0xff]
  %v646 = vld [vmem:[%s3 + $0xad0] sm:$0xff]
  %v647 = vld [vmem:[%s3 + $0xad8] sm:$0xff]
  %v648 = vld [vmem:[%s3 + $0xae0] sm:$0xff]
  %v649 = vld [vmem:[%s3 + $0xae8] sm:$0xff]
  %v650 = vld [vmem:[%s3 + $0xaf0] sm:$0xff]
  %v651 = vld [vmem:[%s3 + $0xaf8] sm:$0xff]
  %v652 = vld [vmem:[%s3 + $0xb00] sm:$0xff]
  %v653 = vld [vmem:[%s3 + $0xb08] sm:$0xff]
  %v654 = vld [vmem:[%s3 + $0xb10] sm:$0xff]
  %v655 = vld [vmem:[%s3 + $0xb18] sm:$0xff]
  %v656 = vld [vmem:[%s3 + $0xb20] sm:$0xff]
  %v657 = vld [vmem:[%s3 + $0xb28] sm:$0xff]
  %v658 = vld [vmem:[%s3 + $0xb30] sm:$0xff]
  %v659 = vld [vmem:[%s3 + $0xb38] sm:$0xff]
  %v660 = vld [vmem:[%s3 + $0xb40] sm:$0xff]
  %v661 = vld [vmem:[%s3 + $0xb48] sm:$0xff]
  %v662 = vld [vmem:[%s3 + $0xb50] sm:$0xff]
  %v663 = vld [vmem:[%s3 + $0xb58] sm:$0xff]
  %v664 = vld [vmem:[%s3 + $0xb60] sm:$0xff]
  %v665 = vld [vmem:[%s3 + $0xb68] sm:$0xff]
  %v666 = vld [vmem:[%s3 + $0xb70] sm:$0xff]
  %v667 = vld [vmem:[%s3 + $0xb78] sm:$0xff]
  %v668 = vld [vmem:[%s3 + $0xb80] sm:$0xff]
  %v669 = vld [vmem:[%s3 + $0xb88] sm:$0xff]
  %v670 = vld [vmem:[%s3 + $0xb90] sm:$0xff]
  %v671 = vld [vmem:[%s3 + $0xb98] sm:$0xff]
  %v672 = vld [vmem:[%s3 + $0xba0] sm:$0xff]
  %v673 = vld [vmem:[%s3 + $0xba8] sm:$0xff]
  %v674 = vld [vmem:[%s3 + $0xbb0] sm:$0xff]
  %v675 = vld [vmem:[%s3 + $0xbb8] sm:$0xff]
  %v676 = vld [vmem:[%s3 + $0xbc0] sm:$0xff]
  %v677 = vld [vmem:[%s3 + $0xbc8] sm:$0xff]
  %v678 = vld [vmem:[%s3 + $0xbd0] sm:$0xff]
  %v679 = vld [vmem:[%s3 + $0xbd8] sm:$0xff]
  %v680 = vld [vmem:[%s3 + $0xbe0] sm:$0xff]
  %v681 = vld [vmem:[%s3 + $0xbe8] sm:$0xff]
  %v682 = vld [vmem:[%s3 + $0xbf0] sm:$0xff]
  %v683 = vld [vmem:[%s3 + $0xbf8] sm:$0xff]
  %v684 = vld [vmem:[%s3 + $0xc00] sm:$0xff]
  %v685 = vld [vmem:[%s3 + $0xc08] sm:$0xff]
  %v686 = vld [vmem:[%s3 + $0xc10] sm:$0xff]
  %v687 = vld [vmem:[%s3 + $0xc18] sm:$0xff]
  %v688 = vld [vmem:[%s3 + $0xc20] sm:$0xff]
  %v689 = vld [vmem:[%s3 + $0xc28] sm:$0xff]
  %v690 = vld [vmem:[%s3 + $0xc30] sm:$0xff]
  %v691 = vld [vmem:[%s3 + $0xc38] sm:$0xff]
  %v692 = vld [vmem:[%s3 + $0xc40] sm:$0xff]
  %v693 = vld [vmem:[%s3 + $0xc48] sm:$0xff]
  %v694 = vld [vmem:[%s3 + $0xc50] sm:$0xff]
  %v695 = vld [vmem:[%s3 + $0xc58] sm:$0xff]
  %v696 = vld [vmem:[%s3 + $0xc60] sm:$0xff]
  %v697 = vld [vmem:[%s3 + $0xc68] sm:$0xff]
  %v698 = vld [vmem:[%s3 + $0xc70] sm:$0xff]
  %v699 = vld [vmem:[%s3 + $0xc78] sm:$0xff]
  %v700 = vld [vmem:[%s3 + $0xc80] sm:$0xff]
  %v701 = vld [vmem:[%s3 + $0xc88] sm:$0xff]
  %v702 = vld [vmem:[%s3 + $0xc90] sm:$0xff]
  %v703 = vld [vmem:[%s3 + $0xc98] sm:$0xff]
  %v704 = vld [vmem:[%s3 + $0xca0] sm:$0xff]
  %v705 = vld [vmem:[%s3 + $0xca8] sm:$0xff]
  %v706 = vld [vmem:[%s3 + $0xcb0] sm:$0xff]
  %v707 = vld [vmem:[%s3 + $0xcb8] sm:$0xff]
  %v708 = vld [vmem:[%s3 + $0xcc0] sm:$0xff]
  %v709 = vld [vmem:[%s3 + $0xcc8] sm:$0xff]
  %v710 = vld [vmem:[%s3 + $0xcd0] sm:$0xff]
  %v711 = vld [vmem:[%s3 + $0xcd8] sm:$0xff]
  %v712 = vld [vmem:[%s3 + $0xce0] sm:$0xff]
  %v713 = vld [vmem:[%s3 + $0xce8] sm:$0xff]
  %v714 = vld [vmem:[%s3 + $0xcf0] sm:$0xff]
  %v715 = vld [vmem:[%s3 + $0xcf8] sm:$0xff]
  %v716 = vld [vmem:[%s3 + $0xd00] sm:$0xff]
  %v717 = vld [vmem:[%s3 + $0xd08] sm:$0xff]
  %v718 = vld [vmem:[%s3 + $0xd10] sm:$0xff]
  %v719 = vld [vmem:[%s3 + $0xd18] sm:$0xff]
  %v720 = vld [vmem:[%s3 + $0xd20] sm:$0xff]
  %v721 = vld [vmem:[%s3 + $0xd28] sm:$0xff]
  %v722 = vld [vmem:[%s3 + $0xd30] sm:$0xff]
  %v723 = vld [vmem:[%s3 + $0xd38] sm:$0xff]
  %v724 = vld [vmem:[%s3 + $0xd40] sm:$0xff]
  %v725 = vld [vmem:[%s3 + $0xd48] sm:$0xff]
  %v726 = vld [vmem:[%s3 + $0xd50] sm:$0xff]
  %v727 = vld [vmem:[%s3 + $0xd58] sm:$0xff]
  %v728 = vld [vmem:[%s3 + $0xd60] sm:$0xff]
  %v729 = vld [vmem:[%s3 + $0xd68] sm:$0xff]
  %v730 = vld [vmem:[%s3 + $0xd70] sm:$0xff]
  %v731 = vld [vmem:[%s3 + $0xd78] sm:$0xff]
  %v732 = vld [vmem:[%s3 + $0xd80] sm:$0xff]
  %v733 = vld [vmem:[%s3 + $0xd88] sm:$0xff]
  %v734 = vld [vmem:[%s3 + $0xd90] sm:$0xff]
  %v735 = vld [vmem:[%s3 + $0xd98] sm:$0xff]
  %v736 = vld [vmem:[%s3 + $0xda0] sm:$0xff]
  %v737 = vld [vmem:[%s3 + $0xda8] sm:$0xff]
  %v738 = vld [vmem:[%s3 + $0xdb0] sm:$0xff]
  %v739 = vld [vmem:[%s3 + $0xdb8] sm:$0xff]
  %v740 = vld [vmem:[%s3 + $0xdc0] sm:$0xff]
  %v741 = vld [vmem:[%s3 + $0xdc8] sm:$0xff]
  %v742 = vld [vmem:[%s3 + $0xdd0] sm:$0xff]
  %v743 = vld [vmem:[%s3 + $0xdd8] sm:$0xff]
  %v744 = vld [vmem:[%s3 + $0xde0] sm:$0xff]
  %v745 = vld [vmem:[%s3 + $0xde8] sm:$0xff]
  %v746 = vld [vmem:[%s3 + $0xdf0] sm:$0xff]
  %v747 = vld [vmem:[%s3 + $0xdf8] sm:$0xff]
  %v748 = vld [vmem:[%s4] sm:$0x7f]
  %v750 = vlaneseq
  %v751 = vshrl.u32 %v750, 7
  %v752 = vsub.s32 0, %v751
  %v753 = vrot.slane %v748, %v752
  %v754 = vlaneseq
  %v755 = vshrl.u32 %v754, 7
  %v756 = vsub.s32 1, %v755
  %v757 = vrot.slane %v748, %v756
  %v758 = vlaneseq
  %v759 = vshrl.u32 %v758, 7
  %v760 = vsub.s32 2, %v759
  %v761 = vrot.slane %v748, %v760
  %v762 = vlaneseq
  %v763 = vshrl.u32 %v762, 7
  %v764 = vsub.s32 3, %v763
  %v765 = vrot.slane %v748, %v764
  %v766 = vlaneseq
  %v767 = vshrl.u32 %v766, 7
  %v768 = vsub.s32 4, %v767
  %v769 = vrot.slane %v748, %v768
  %v770 = vlaneseq
  %v771 = vshrl.u32 %v770, 7
  %v772 = vsub.s32 5, %v771
  %v773 = vrot.slane %v748, %v772
  %v774 = vlaneseq
  %v775 = vshrl.u32 %v774, 7
  %v776 = vsub.s32 6, %v775
  %v777 = vrot.slane %v748, %v776
  %785 = vmatprep.subr.mxu0 %v406
  %786 = vmatpush1.msra.mxu0 %v405
  %787 = vmatprep.subr.mxu0 %v399
  %788 = vmatpush1.msra.mxu0 %v398
  %789 = vmatprep.subr.mxu0 %v392
  %790 = vmatpush1.msra.mxu0 %v391
  %791 = vmatprep.subr.mxu0 %v385
  %792 = vmatpush1.msra.mxu0 %v384
  %793 = vmatprep.subr.mxu0 %v378
  %794 = vmatpush1.msra.mxu0 %v377
  %795 = vmatprep.subr.mxu0 %v371
  %796 = vmatpush1.msra.mxu0 %v370
  %797 = vmatprep.subr.mxu0 %v364
  %798 = vmatpush1.msra.mxu0 %v363
  %799 = vmatprep.subr.mxu0 %v357
  %800 = vmatpush1.msra.mxu0 %v356
  %801 = vmatprep.subr.mxu0 %v350
  %802 = vmatpush1.msra.mxu0 %v349
  %803 = vmatprep.subr.mxu0 %v343
  %804 = vmatpush1.msra.mxu0 %v342
  %805 = vmatprep.subr.mxu0 %v336
  %806 = vmatpush1.msra.mxu0 %v335
  %807 = vmatprep.subr.mxu0 %v329
  %808 = vmatpush1.msra.mxu0 %v328
  %809 = vmatprep.subr.mxu0 %v322
  %810 = vmatpush1.msra.mxu0 %v321
  %811 = vmatprep.subr.mxu0 %v315
  %812 = vmatpush1.msra.mxu0 %v314
  %813 = vmatprep.subr.mxu0 %v308
  %814 = vmatpush1.msra.mxu0 %v307
  %815 = vmatprep.subr.mxu0 %v301
  %816 = vmatpush1.msra.mxu0 %v300
  %817 = vmatprep.subr.mxu0 %v518
  %818 = vmatpush2.msra.mxu0 %v517
  %819 = vmatprep.subr.mxu0 %v511
  %820 = vmatpush2.msra.mxu0 %v510
  %821 = vmatprep.subr.mxu0 %v504
  %822 = vmatpush2.msra.mxu0 %v503
  %823 = vmatprep.subr.mxu0 %v497
  %824 = vmatpush2.msra.mxu0 %v496
  %825 = vmatprep.subr.mxu0 %v490
  %826 = vmatpush2.msra.mxu0 %v489
  %827 = vmatprep.subr.mxu0 %v483
  %828 = vmatpush2.msra.mxu0 %v482
  %829 = vmatprep.subr.mxu0 %v476
  %830 = vmatpush2.msra.mxu0 %v475
  %831 = vmatprep.subr.mxu0 %v469
  %832 = vmatpush2.msra.mxu0 %v468
  %833 = vmatprep.subr.mxu0 %v462
  %834 = vmatpush2.msra.mxu0 %v461
  %835 = vmatprep.subr.mxu0 %v455
  %836 = vmatpush2.msra.mxu0 %v454
  %837 = vmatprep.subr.mxu0 %v448
  %838 = vmatpush2.msra.mxu0 %v447
  %839 = vmatprep.subr.mxu0 %v441
  %840 = vmatpush2.msra.mxu0 %v440
  %841 = vmatprep.subr.mxu0 %v434
  %842 = vmatpush2.msra.mxu0 %v433
  %843 = vmatprep.subr.mxu0 %v427
  %844 = vmatpush2.msra.mxu0 %v426
  %845 = vmatprep.subr.mxu0 %v420
  %846 = vmatpush2.msra.mxu0 %v419
  %847 = vmatprep.subr.mxu0 %v413
  %848 = vmatpush2.msra.mxu0 %v412
  %849 = vmatprep.mubr.f32.mxu0 %v297
  %850 = vmatmul.mubr.f32.gmra.mxu0 %v296
  %v851 = vpop.f32.mrf.mxu0
  %v852 = vadd.f32 %v753, %v851
  %v853 = vpop.f32.mrf.mxu0
  %v854 = vadd.f32 %v757, %v853
  %855 = vdwg.mxu0
  %856 = vmatprep.subr.mxu0 %v630
  %857 = vmatpush1.msra.mxu0 %v629
  %858 = vmatprep.subr.mxu0 %v623
  %859 = vmatpush1.msra.mxu0 %v622
  %860 = vmatprep.subr.mxu0 %v616
  %861 = vmatpush1.msra.mxu0 %v615
  %862 = vmatprep.subr.mxu0 %v609
  %863 = vmatpush1.msra.mxu0 %v608
  %864 = vmatprep.subr.mxu0 %v602
  %865 = vmatpush1.msra.mxu0 %v601
  %866 = vmatprep.subr.mxu0 %v595
  %867 = vmatpush1.msra.mxu0 %v594
  %868 = vmatprep.subr.mxu0 %v588
  %869 = vmatpush1.msra.mxu0 %v587
  %870 = vmatprep.subr.mxu0 %v581
  %871 = vmatpush1.msra.mxu0 %v580
  %872 = vmatprep.subr.mxu0 %v574
  %873 = vmatpush1.msra.mxu0 %v573
  %874 = vmatprep.subr.mxu0 %v567
  %875 = vmatpush1.msra.mxu0 %v566
  %876 = vmatprep.subr.mxu0 %v560
  %877 = vmatpush1.msra.mxu0 %v559
  %878 = vmatprep.subr.mxu0 %v553
  %879 = vmatpush1.msra.mxu0 %v552
  %880 = vmatprep.subr.mxu0 %v546
  %881 = vmatpush1.msra.mxu0 %v545
  %882 = vmatprep.subr.mxu0 %v539
  %883 = vmatpush1.msra.mxu0 %v538
  %884 = vmatprep.subr.mxu0 %v532
  %885 = vmatpush1.msra.mxu0 %v531
  %886 = vmatprep.subr.mxu0 %v525
  %887 = vmatpush1.msra.mxu0 %v524
  %888 = vmatprep.subr.mxu0 %v742
  %889 = vmatpush2.msra.mxu0 %v741
  %890 = vmatprep.subr.mxu0 %v735
  %891 = vmatpush2.msra.mxu0 %v734
  %892 = vmatprep.subr.mxu0 %v728
  %893 = vmatpush2.msra.mxu0 %v727
  %894 = vmatprep.subr.mxu0 %v721
  %895 = vmatpush2.msra.mxu0 %v720
  %896 = vmatprep.subr.mxu0 %v714
  %897 = vmatpush2.msra.mxu0 %v713
  %898 = vmatprep.subr.mxu0 %v707
  %899 = vmatpush2.msra.mxu0 %v706
  %900 = vmatprep.subr.mxu0 %v700
  %901 = vmatpush2.msra.mxu0 %v699
  %902 = vmatprep.subr.mxu0 %v693
  %903 = vmatpush2.msra.mxu0 %v692
  %904 = vmatprep.subr.mxu0 %v686
  %905 = vmatpush2.msra.mxu0 %v685
  %906 = vmatprep.subr.mxu0 %v679
  %907 = vmatpush2.msra.mxu0 %v678
  %908 = vmatprep.subr.mxu0 %v672
  %909 = vmatpush2.msra.mxu0 %v671
  %910 = vmatprep.subr.mxu0 %v665
  %911 = vmatpush2.msra.mxu0 %v664
  %912 = vmatprep.subr.mxu0 %v658
  %913 = vmatpush2.msra.mxu0 %v657
  %914 = vmatprep.subr.mxu0 %v651
  %915 = vmatpush2.msra.mxu0 %v650
  %916 = vmatprep.subr.mxu0 %v644
  %917 = vmatpush2.msra.mxu0 %v643
  %918 = vmatprep.subr.mxu0 %v637
  %919 = vmatpush2.msra.mxu0 %v636
  %920 = vmatprep.mubr.f32.mxu0 %v299
  %921 = vmatmul.mubr.f32.gmra.mxu0 %v298
  %v922 = vpop.f32.mrf.mxu0
  %v923 = vadd.f32 %v852, %v922
  %v924 = vpop.f32.mrf.mxu0
  %v925 = vadd.f32 %v854, %v924
  %926 = vdwg.mxu0
  %927 = vmatprep.subr.mxu0 %v408
  %928 = vmatpush1.msra.mxu0 %v407
  %929 = vmatprep.subr.mxu0 %v401
  %930 = vmatpush1.msra.mxu0 %v400
  %931 = vmatprep.subr.mxu0 %v394
  %932 = vmatpush1.msra.mxu0 %v393
  %933 = vmatprep.subr.mxu0 %v387
  %934 = vmatpush1.msra.mxu0 %v386
  %935 = vmatprep.subr.mxu0 %v380
  %936 = vmatpush1.msra.mxu0 %v379
  %937 = vmatprep.subr.mxu0 %v373
  %938 = vmatpush1.msra.mxu0 %v372
  %939 = vmatprep.subr.mxu0 %v366
  %940 = vmatpush1.msra.mxu0 %v365
  %941 = vmatprep.subr.mxu0 %v359
  %942 = vmatpush1.msra.mxu0 %v358
  %943 = vmatprep.subr.mxu0 %v352
  %944 = vmatpush1.msra.mxu0 %v351
  %945 = vmatprep.subr.mxu0 %v345
  %946 = vmatpush1.msra.mxu0 %v344
  %947 = vmatprep.subr.mxu0 %v338
  %948 = vmatpush1.msra.mxu0 %v337
  %949 = vmatprep.subr.mxu0 %v331
  %950 = vmatpush1.msra.mxu0 %v330
  %951 = vmatprep.subr.mxu0 %v324
  %952 = vmatpush1.msra.mxu0 %v323
  %953 = vmatprep.subr.mxu0 %v317
  %954 = vmatpush1.msra.mxu0 %v316
  %955 = vmatprep.subr.mxu0 %v310
  %956 = vmatpush1.msra.mxu0 %v309
  %957 = vmatprep.subr.mxu0 %v303
  %958 = vmatpush1.msra.mxu0 %v302
  %959 = vmatprep.subr.mxu0 %v520
  %960 = vmatpush2.msra.mxu0 %v519
  %961 = vmatprep.subr.mxu0 %v513
  %962 = vmatpush2.msra.mxu0 %v512
  %963 = vmatprep.subr.mxu0 %v506
  %964 = vmatpush2.msra.mxu0 %v505
  %965 = vmatprep.subr.mxu0 %v499
  %966 = vmatpush2.msra.mxu0 %v498
  %967 = vmatprep.subr.mxu0 %v492
  %968 = vmatpush2.msra.mxu0 %v491
  %969 = vmatprep.subr.mxu0 %v485
  %970 = vmatpush2.msra.mxu0 %v484
  %971 = vmatprep.subr.mxu0 %v478
  %972 = vmatpush2.msra.mxu0 %v477
  %973 = vmatprep.subr.mxu0 %v471
  %974 = vmatpush2.msra.mxu0 %v470
  %975 = vmatprep.subr.mxu0 %v464
  %976 = vmatpush2.msra.mxu0 %v463
  %977 = vmatprep.subr.mxu0 %v457
  %978 = vmatpush2.msra.mxu0 %v456
  %979 = vmatprep.subr.mxu0 %v450
  %980 = vmatpush2.msra.mxu0 %v449
  %981 = vmatprep.subr.mxu0 %v443
  %982 = vmatpush2.msra.mxu0 %v442
  %983 = vmatprep.subr.mxu0 %v436
  %984 = vmatpush2.msra.mxu0 %v435
  %985 = vmatprep.subr.mxu0 %v429
  %986 = vmatpush2.msra.mxu0 %v428
  %987 = vmatprep.subr.mxu0 %v422
  %988 = vmatpush2.msra.mxu0 %v421
  %989 = vmatprep.subr.mxu0 %v415
  %990 = vmatpush2.msra.mxu0 %v414
  %991 = vmatprep.mubr.f32.mxu0 %v297
  %992 = vmatmul.mubr.f32.gmra.mxu0 %v296
  %v993 = vpop.f32.mrf.mxu0
  %v994 = vadd.f32 %v761, %v993
  %v995 = vpop.f32.mrf.mxu0
  %v996 = vadd.f32 %v765, %v995
  %997 = vdwg.mxu0
  %998 = vmatprep.subr.mxu0 %v632
  %999 = vmatpush1.msra.mxu0 %v631
  %1000 = vmatprep.subr.mxu0 %v625
  %1001 = vmatpush1.msra.mxu0 %v624
  %1002 = vmatprep.subr.mxu0 %v618
  %1003 = vmatpush1.msra.mxu0 %v617
  %1004 = vmatprep.subr.mxu0 %v611
  %1005 = vmatpush1.msra.mxu0 %v610
  %1006 = vmatprep.subr.mxu0 %v604
  %1007 = vmatpush1.msra.mxu0 %v603
  %1008 = vmatprep.subr.mxu0 %v597
  %1009 = vmatpush1.msra.mxu0 %v596
  %1010 = vmatprep.subr.mxu0 %v590
  %1011 = vmatpush1.msra.mxu0 %v589
  %1012 = vmatprep.subr.mxu0 %v583
  %1013 = vmatpush1.msra.mxu0 %v582
  %1014 = vmatprep.subr.mxu0 %v576
  %1015 = vmatpush1.msra.mxu0 %v575
  %1016 = vmatprep.subr.mxu0 %v569
  %1017 = vmatpush1.msra.mxu0 %v568
  %1018 = vmatprep.subr.mxu0 %v562
  %1019 = vmatpush1.msra.mxu0 %v561
  %1020 = vmatprep.subr.mxu0 %v555
  %1021 = vmatpush1.msra.mxu0 %v554
  %1022 = vmatprep.subr.mxu0 %v548
  %1023 = vmatpush1.msra.mxu0 %v547
  %1024 = vmatprep.subr.mxu0 %v541
  %1025 = vmatpush1.msra.mxu0 %v540
  %1026 = vmatprep.subr.mxu0 %v534
  %1027 = vmatpush1.msra.mxu0 %v533
  %1028 = vmatprep.subr.mxu0 %v527
  %1029 = vmatpush1.msra.mxu0 %v526
  %1030 = vmatprep.subr.mxu0 %v744
  %1031 = vmatpush2.msra.mxu0 %v743
  %1032 = vmatprep.subr.mxu0 %v737
  %1033 = vmatpush2.msra.mxu0 %v736
  %1034 = vmatprep.subr.mxu0 %v730
  %1035 = vmatpush2.msra.mxu0 %v729
  %1036 = vmatprep.subr.mxu0 %v723
  %1037 = vmatpush2.msra.mxu0 %v722
  %1038 = vmatprep.subr.mxu0 %v716
  %1039 = vmatpush2.msra.mxu0 %v715
  %1040 = vmatprep.subr.mxu0 %v709
  %1041 = vmatpush2.msra.mxu0 %v708
  %1042 = vmatprep.subr.mxu0 %v702
  %1043 = vmatpush2.msra.mxu0 %v701
  %1044 = vmatprep.subr.mxu0 %v695
  %1045 = vmatpush2.msra.mxu0 %v694
  %1046 = vmatprep.subr.mxu0 %v688
  %1047 = vmatpush2.msra.mxu0 %v687
  %1048 = vmatprep.subr.mxu0 %v681
  %1049 = vmatpush2.msra.mxu0 %v680
  %1050 = vmatprep.subr.mxu0 %v674
  %1051 = vmatpush2.msra.mxu0 %v673
  %1052 = vmatprep.subr.mxu0 %v667
  %1053 = vmatpush2.msra.mxu0 %v666
  %1054 = vmatprep.subr.mxu0 %v660
  %1055 = vmatpush2.msra.mxu0 %v659
  %1056 = vmatprep.subr.mxu0 %v653
  %1057 = vmatpush2.msra.mxu0 %v652
  %1058 = vmatprep.subr.mxu0 %v646
  %1059 = vmatpush2.msra.mxu0 %v645
  %1060 = vmatprep.subr.mxu0 %v639
  %1061 = vmatpush2.msra.mxu0 %v638
  %1062 = vmatprep.mubr.f32.mxu0 %v299
  %1063 = vmatmul.mubr.f32.gmra.mxu0 %v298
  %v1064 = vpop.f32.mrf.mxu0
  %v1065 = vadd.f32 %v994, %v1064
  %v1066 = vpop.f32.mrf.mxu0
  %v1067 = vadd.f32 %v996, %v1066
  %1068 = vdwg.mxu0
  %1069 = vmatprep.subr.mxu0 %v410
  %1070 = vmatpush1.msra.mxu0 %v409
  %1071 = vmatprep.subr.mxu0 %v403
  %1072 = vmatpush1.msra.mxu0 %v402
  %1073 = vmatprep.subr.mxu0 %v396
  %1074 = vmatpush1.msra.mxu0 %v395
  %1075 = vmatprep.subr.mxu0 %v389
  %1076 = vmatpush1.msra.mxu0 %v388
  %1077 = vmatprep.subr.mxu0 %v382
  %1078 = vmatpush1.msra.mxu0 %v381
  %1079 = vmatprep.subr.mxu0 %v375
  %1080 = vmatpush1.msra.mxu0 %v374
  %1081 = vmatprep.subr.mxu0 %v368
  %1082 = vmatpush1.msra.mxu0 %v367
  %1083 = vmatprep.subr.mxu0 %v361
  %1084 = vmatpush1.msra.mxu0 %v360
  %1085 = vmatprep.subr.mxu0 %v354
  %1086 = vmatpush1.msra.mxu0 %v353
  %1087 = vmatprep.subr.mxu0 %v347
  %1088 = vmatpush1.msra.mxu0 %v346
  %1089 = vmatprep.subr.mxu0 %v340
  %1090 = vmatpush1.msra.mxu0 %v339
  %1091 = vmatprep.subr.mxu0 %v333
  %1092 = vmatpush1.msra.mxu0 %v332
  %1093 = vmatprep.subr.mxu0 %v326
  %1094 = vmatpush1.msra.mxu0 %v325
  %1095 = vmatprep.subr.mxu0 %v319
  %1096 = vmatpush1.msra.mxu0 %v318
  %1097 = vmatprep.subr.mxu0 %v312
  %1098 = vmatpush1.msra.mxu0 %v311
  %1099 = vmatprep.subr.mxu0 %v305
  %1100 = vmatpush1.msra.mxu0 %v304
  %1101 = vmatprep.subr.mxu0 %v522
  %1102 = vmatpush2.msra.mxu0 %v521
  %1103 = vmatprep.subr.mxu0 %v515
  %1104 = vmatpush2.msra.mxu0 %v514
  %1105 = vmatprep.subr.mxu0 %v508
  %1106 = vmatpush2.msra.mxu0 %v507
  %1107 = vmatprep.subr.mxu0 %v501
  %1108 = vmatpush2.msra.mxu0 %v500
  %1109 = vmatprep.subr.mxu0 %v494
  %1110 = vmatpush2.msra.mxu0 %v493
  %1111 = vmatprep.subr.mxu0 %v487
  %1112 = vmatpush2.msra.mxu0 %v486
  %1113 = vmatprep.subr.mxu0 %v480
  %1114 = vmatpush2.msra.mxu0 %v479
  %1115 = vmatprep.subr.mxu0 %v473
  %1116 = vmatpush2.msra.mxu0 %v472
  %1117 = vmatprep.subr.mxu0 %v466
  %1118 = vmatpush2.msra.mxu0 %v465
  %1119 = vmatprep.subr.mxu0 %v459
  %1120 = vmatpush2.msra.mxu0 %v458
  %1121 = vmatprep.subr.mxu0 %v452
  %1122 = vmatpush2.msra.mxu0 %v451
  %1123 = vmatprep.subr.mxu0 %v445
  %1124 = vmatpush2.msra.mxu0 %v444
  %1125 = vmatprep.subr.mxu0 %v438
  %1126 = vmatpush2.msra.mxu0 %v437
  %1127 = vmatprep.subr.mxu0 %v431
  %1128 = vmatpush2.msra.mxu0 %v430
  %1129 = vmatprep.subr.mxu0 %v424
  %1130 = vmatpush2.msra.mxu0 %v423
  %1131 = vmatprep.subr.mxu0 %v417
  %1132 = vmatpush2.msra.mxu0 %v416
  %1133 = vmatprep.mubr.f32.mxu0 %v297
  %1134 = vmatmul.mubr.f32.gmra.mxu0 %v296
  %v1135 = vpop.f32.mrf.mxu0
  %v1136 = vadd.f32 %v769, %v1135
  %v1137 = vpop.f32.mrf.mxu0
  %v1138 = vadd.f32 %v773, %v1137
  %1139 = vdwg.mxu0
  %1140 = vmatprep.subr.mxu0 %v634
  %1141 = vmatpush1.msra.mxu0 %v633
  %1142 = vmatprep.subr.mxu0 %v627
  %1143 = vmatpush1.msra.mxu0 %v626
  %1144 = vmatprep.subr.mxu0 %v620
  %1145 = vmatpush1.msra.mxu0 %v619
  %1146 = vmatprep.subr.mxu0 %v613
  %1147 = vmatpush1.msra.mxu0 %v612
  %1148 = vmatprep.subr.mxu0 %v606
  %1149 = vmatpush1.msra.mxu0 %v605
  %1150 = vmatprep.subr.mxu0 %v599
  %1151 = vmatpush1.msra.mxu0 %v598
  %1152 = vmatprep.subr.mxu0 %v592
  %1153 = vmatpush1.msra.mxu0 %v591
  %1154 = vmatprep.subr.mxu0 %v585
  %1155 = vmatpush1.msra.mxu0 %v584
  %1156 = vmatprep.subr.mxu0 %v578
  %1157 = vmatpush1.msra.mxu0 %v577
  %1158 = vmatprep.subr.mxu0 %v571
  %1159 = vmatpush1.msra.mxu0 %v570
  %1160 = vmatprep.subr.mxu0 %v564
  %1161 = vmatpush1.msra.mxu0 %v563
  %1162 = vmatprep.subr.mxu0 %v557
  %1163 = vmatpush1.msra.mxu0 %v556
  %1164 = vmatprep.subr.mxu0 %v550
  %1165 = vmatpush1.msra.mxu0 %v549
  %1166 = vmatprep.subr.mxu0 %v543
  %1167 = vmatpush1.msra.mxu0 %v542
  %1168 = vmatprep.subr.mxu0 %v536
  %1169 = vmatpush1.msra.mxu0 %v535
  %1170 = vmatprep.subr.mxu0 %v529
  %1171 = vmatpush1.msra.mxu0 %v528
  %1172 = vmatprep.subr.mxu0 %v746
  %1173 = vmatpush2.msra.mxu0 %v745
  %1174 = vmatprep.subr.mxu0 %v739
  %1175 = vmatpush2.msra.mxu0 %v738
  %1176 = vmatprep.subr.mxu0 %v732
  %1177 = vmatpush2.msra.mxu0 %v731
  %1178 = vmatprep.subr.mxu0 %v725
  %1179 = vmatpush2.msra.mxu0 %v724
  %1180 = vmatprep.subr.mxu0 %v718
  %1181 = vmatpush2.msra.mxu0 %v717
  %1182 = vmatprep.subr.mxu0 %v711
  %1183 = vmatpush2.msra.mxu0 %v710
  %1184 = vmatprep.subr.mxu0 %v704
  %1185 = vmatpush2.msra.mxu0 %v703
  %1186 = vmatprep.subr.mxu0 %v697
  %1187 = vmatpush2.msra.mxu0 %v696
  %1188 = vmatprep.subr.mxu0 %v690
  %1189 = vmatpush2.msra.mxu0 %v689
  %1190 = vmatprep.subr.mxu0 %v683
  %1191 = vmatpush2.msra.mxu0 %v682
  %1192 = vmatprep.subr.mxu0 %v676
  %1193 = vmatpush2.msra.mxu0 %v675
  %1194 = vmatprep.subr.mxu0 %v669
  %1195 = vmatpush2.msra.mxu0 %v668
  %1196 = vmatprep.subr.mxu0 %v662
  %1197 = vmatpush2.msra.mxu0 %v661
  %1198 = vmatprep.subr.mxu0 %v655
  %1199 = vmatpush2.msra.mxu0 %v654
  %1200 = vmatprep.subr.mxu0 %v648
  %1201 = vmatpush2.msra.mxu0 %v647
  %1202 = vmatprep.subr.mxu0 %v641
  %1203 = vmatpush2.msra.mxu0 %v640
  %1204 = vmatprep.mubr.f32.mxu0 %v299
  %1205 = vmatmul.mubr.f32.gmra.mxu0 %v298
  %v1206 = vpop.f32.mrf.mxu0
  %v1207 = vadd.f32 %v1136, %v1206
  %v1208 = vpop.f32.mrf.mxu0
  %v1209 = vadd.f32 %v1138, %v1208
  %1210 = vdwg.mxu0
  %1211 = vmatprep.subr.mxu0 0.0
  %1212 = vmatpush1.msra.mxu0 %v411
  %1213 = vmatprep.subr.mxu0 0.0
  %1214 = vmatpush1.msra.mxu0 %v404
  %1215 = vmatprep.subr.mxu0 0.0
  %1216 = vmatpush1.msra.mxu0 %v397
  %1217 = vmatprep.subr.mxu0 0.0
  %1218 = vmatpush1.msra.mxu0 %v390
  %1219 = vmatprep.subr.mxu0 0.0
  %1220 = vmatpush1.msra.mxu0 %v383
  %1221 = vmatprep.subr.mxu0 0.0
  %1222 = vmatpush1.msra.mxu0 %v376
  %1223 = vmatprep.subr.mxu0 0.0
  %1224 = vmatpush1.msra.mxu0 %v369
  %1225 = vmatprep.subr.mxu0 0.0
  %1226 = vmatpush1.msra.mxu0 %v362
  %1227 = vmatprep.subr.mxu0 0.0
  %1228 = vmatpush1.msra.mxu0 %v355
  %1229 = vmatprep.subr.mxu0 0.0
  %1230 = vmatpush1.msra.mxu0 %v348
  %1231 = vmatprep.subr.mxu0 0.0
  %1232 = vmatpush1.msra.mxu0 %v341
  %1233 = vmatprep.subr.mxu0 0.0
  %1234 = vmatpush1.msra.mxu0 %v334
  %1235 = vmatprep.subr.mxu0 0.0
  %1236 = vmatpush1.msra.mxu0 %v327
  %1237 = vmatprep.subr.mxu0 0.0
  %1238 = vmatpush1.msra.mxu0 %v320
  %1239 = vmatprep.subr.mxu0 0.0
  %1240 = vmatpush1.msra.mxu0 %v313
  %1241 = vmatprep.subr.mxu0 0.0
  %1242 = vmatpush1.msra.mxu0 %v306
  %1243 = vmatprep.subr.mxu0 0.0
  %1244 = vmatpush2.msra.mxu0 %v523
  %1245 = vmatprep.subr.mxu0 0.0
  %1246 = vmatpush2.msra.mxu0 %v516
  %1247 = vmatprep.subr.mxu0 0.0
  %1248 = vmatpush2.msra.mxu0 %v509
  %1249 = vmatprep.subr.mxu0 0.0
  %1250 = vmatpush2.msra.mxu0 %v502
  %1251 = vmatprep.subr.mxu0 0.0
  %1252 = vmatpush2.msra.mxu0 %v495
  %1253 = vmatprep.subr.mxu0 0.0
  %1254 = vmatpush2.msra.mxu0 %v488
  %1255 = vmatprep.subr.mxu0 0.0
  %1256 = vmatpush2.msra.mxu0 %v481
  %1257 = vmatprep.subr.mxu0 0.0
  %1258 = vmatpush2.msra.mxu0 %v474
  %1259 = vmatprep.subr.mxu0 0.0
  %1260 = vmatpush2.msra.mxu0 %v467
  %1261 = vmatprep.subr.mxu0 0.0
  %1262 = vmatpush2.msra.mxu0 %v460
  %1263 = vmatprep.subr.mxu0 0.0
  %1264 = vmatpush2.msra.mxu0 %v453
  %1265 = vmatprep.subr.mxu0 0.0
  %1266 = vmatpush2.msra.mxu0 %v446
  %1267 = vmatprep.subr.mxu0 0.0
  %1268 = vmatpush2.msra.mxu0 %v439
  %1269 = vmatprep.subr.mxu0 0.0
  %1270 = vmatpush2.msra.mxu0 %v432
  %1271 = vmatprep.subr.mxu0 0.0
  %1272 = vmatpush2.msra.mxu0 %v425
  %1273 = vmatprep.subr.mxu0 0.0
  %1274 = vmatpush2.msra.mxu0 %v418
  %1275 = vmatprep.mubr.f32.mxu0 %v297
  %1276 = vmatmul.mubr.f32.gmra.mxu0 %v296
  %v1277 = vpop.f32.mrf.mxu0
  %v1278 = vadd.f32 %v777, %v1277
  %v1279 = vpop.f32.mrf.mxu0
  %1280 = vdwg.mxu0
  %1281 = vmatprep.subr.mxu0 0.0
  %1282 = vmatpush1.msra.mxu0 %v635
  %1283 = vmatprep.subr.mxu0 0.0
  %1284 = vmatpush1.msra.mxu0 %v628
  %1285 = vmatprep.subr.mxu0 0.0
  %1286 = vmatpush1.msra.mxu0 %v621
  %1287 = vmatprep.subr.mxu0 0.0
  %1288 = vmatpush1.msra.mxu0 %v614
  %1289 = vmatprep.subr.mxu0 0.0
  %1290 = vmatpush1.msra.mxu0 %v607
  %1291 = vmatprep.subr.mxu0 0.0
  %1292 = vmatpush1.msra.mxu0 %v600
  %1293 = vmatprep.subr.mxu0 0.0
  %1294 = vmatpush1.msra.mxu0 %v593
  %1295 = vmatprep.subr.mxu0 0.0
  %1296 = vmatpush1.msra.mxu0 %v586
  %1297 = vmatprep.subr.mxu0 0.0
  %1298 = vmatpush1.msra.mxu0 %v579
  %1299 = vmatprep.subr.mxu0 0.0
  %1300 = vmatpush1.msra.mxu0 %v572
  %1301 = vmatprep.subr.mxu0 0.0
  %1302 = vmatpush1.msra.mxu0 %v565
  %1303 = vmatprep.subr.mxu0 0.0
  %1304 = vmatpush1.msra.mxu0 %v558
  %1305 = vmatprep.subr.mxu0 0.0
  %1306 = vmatpush1.msra.mxu0 %v551
  %1307 = vmatprep.subr.mxu0 0.0
  %1308 = vmatpush1.msra.mxu0 %v544
  %1309 = vmatprep.subr.mxu0 0.0
  %1310 = vmatpush1.msra.mxu0 %v537
  %1311 = vmatprep.subr.mxu0 0.0
  %1312 = vmatpush1.msra.mxu0 %v530
  %1313 = vmatprep.subr.mxu0 0.0
  %1314 = vmatpush2.msra.mxu0 %v747
  %1315 = vmatprep.subr.mxu0 0.0
  %1316 = vmatpush2.msra.mxu0 %v740
  %1317 = vmatprep.subr.mxu0 0.0
  %1318 = vmatpush2.msra.mxu0 %v733
  %1319 = vmatprep.subr.mxu0 0.0
  %1320 = vmatpush2.msra.mxu0 %v726
  %1321 = vmatprep.subr.mxu0 0.0
  %1322 = vmatpush2.msra.mxu0 %v719
  %1323 = vmatprep.subr.mxu0 0.0
  %1324 = vmatpush2.msra.mxu0 %v712
  %1325 = vmatprep.subr.mxu0 0.0
  %1326 = vmatpush2.msra.mxu0 %v705
  %1327 = vmatprep.subr.mxu0 0.0
  %1328 = vmatpush2.msra.mxu0 %v698
  %1329 = vmatprep.subr.mxu0 0.0
  %1330 = vmatpush2.msra.mxu0 %v691
  %1331 = vmatprep.subr.mxu0 0.0
  %1332 = vmatpush2.msra.mxu0 %v684
  %1333 = vmatprep.subr.mxu0 0.0
  %1334 = vmatpush2.msra.mxu0 %v677
  %1335 = vmatprep.subr.mxu0 0.0
  %1336 = vmatpush2.msra.mxu0 %v670
  %1337 = vmatprep.subr.mxu0 0.0
  %1338 = vmatpush2.msra.mxu0 %v663
  %1339 = vmatprep.subr.mxu0 0.0
  %1340 = vmatpush2.msra.mxu0 %v656
  %1341 = vmatprep.subr.mxu0 0.0
  %1342 = vmatpush2.msra.mxu0 %v649
  %1343 = vmatprep.subr.mxu0 0.0
  %1344 = vmatpush2.msra.mxu0 %v642
  %1345 = vmatprep.mubr.f32.mxu0 %v299
  %1346 = vmatmul.mubr.f32.gmra.mxu0 %v298
  %v1347 = vpop.f32.mrf.mxu0
  %v1348 = vadd.f32 %v1278, %v1347
  %v1349 = vpop.f32.mrf.mxu0
  %1350 = vdwg.mxu0
  %v1351 = vmax.f32 %v923, 0.0
  %v1352 = vmax.f32 %v925, 0.0
  %v1353 = vmax.f32 %v1065, 0.0
  %v1354 = vmax.f32 %v1067, 0.0
  %v1355 = vmax.f32 %v1207, 0.0
  %v1356 = vmax.f32 %v1209, 0.0
  %v1357 = vmax.f32 %v1348, 0.0
  %v1358 = vld [vmem:[%s5] sm:$0xff]
  %v1359 = vld [vmem:[%s5 + $0x8] sm:$0xff]
  %v1360 = vld [vmem:[%s5 + $0x10] sm:$0xff]
  %v1361 = vld [vmem:[%s5 + $0x18] sm:$0xff]
  %v1362 = vld [vmem:[%s5 + $0x20] sm:$0xff]
  %v1363 = vld [vmem:[%s5 + $0x28] sm:$0xff]
  %v1364 = vld [vmem:[%s5 + $0x30] sm:$0xff]
  %v1365 = vld [vmem:[%s5 + $0x38] sm:$0xff]
  %v1366 = vld [vmem:[%s5 + $0x40] sm:$0xff]
  %v1367 = vld [vmem:[%s5 + $0x48] sm:$0xff]
  %v1368 = vld [vmem:[%s5 + $0x50] sm:$0xff]
  %v1369 = vld [vmem:[%s5 + $0x58] sm:$0xff]
  %v1370 = vld [vmem:[%s5 + $0x60] sm:$0xff]
  %v1371 = vld [vmem:[%s5 + $0x68] sm:$0xff]
  %v1372 = vld [vmem:[%s5 + $0x70] sm:$0xff]
  %v1373 = vld [vmem:[%s5 + $0x78] sm:$0xff]
  %v1374 = vld [vmem:[%s5 + $0x80] sm:$0xff]
  %v1375 = vld [vmem:[%s5 + $0x88] sm:$0xff]
  %v1376 = vld [vmem:[%s5 + $0x90] sm:$0xff]
  %v1377 = vld [vmem:[%s5 + $0x98] sm:$0xff]
  %v1378 = vld [vmem:[%s5 + $0xa0] sm:$0xff]
  %v1379 = vld [vmem:[%s5 + $0xa8] sm:$0xff]
  %v1380 = vld [vmem:[%s5 + $0xb0] sm:$0xff]
  %v1381 = vld [vmem:[%s5 + $0xb8] sm:$0xff]
  %v1382 = vld [vmem:[%s5 + $0xc0] sm:$0xff]
  %v1383 = vld [vmem:[%s5 + $0xc8] sm:$0xff]
  %v1384 = vld [vmem:[%s5 + $0xd0] sm:$0xff]
  %v1385 = vld [vmem:[%s5 + $0xd8] sm:$0xff]
  %v1386 = vld [vmem:[%s5 + $0xe0] sm:$0xff]
  %v1387 = vld [vmem:[%s5 + $0xe8] sm:$0xff]
  %v1388 = vld [vmem:[%s5 + $0xf0] sm:$0xff]
  %v1389 = vld [vmem:[%s5 + $0xf8] sm:$0xff]
  %v1390 = vld [vmem:[%s5 + $0x100] sm:$0xff]
  %v1391 = vld [vmem:[%s5 + $0x108] sm:$0xff]
  %v1392 = vld [vmem:[%s5 + $0x110] sm:$0xff]
  %v1393 = vld [vmem:[%s5 + $0x118] sm:$0xff]
  %v1394 = vld [vmem:[%s5 + $0x120] sm:$0xff]
  %v1395 = vld [vmem:[%s5 + $0x128] sm:$0xff]
  %v1396 = vld [vmem:[%s5 + $0x130] sm:$0xff]
  %v1397 = vld [vmem:[%s5 + $0x138] sm:$0xff]
  %v1398 = vld [vmem:[%s5 + $0x140] sm:$0xff]
  %v1399 = vld [vmem:[%s5 + $0x148] sm:$0xff]
  %v1400 = vld [vmem:[%s5 + $0x150] sm:$0xff]
  %v1401 = vld [vmem:[%s5 + $0x158] sm:$0xff]
  %v1402 = vld [vmem:[%s5 + $0x160] sm:$0xff]
  %v1403 = vld [vmem:[%s5 + $0x168] sm:$0xff]
  %v1404 = vld [vmem:[%s5 + $0x170] sm:$0xff]
  %v1405 = vld [vmem:[%s5 + $0x178] sm:$0xff]
  %v1406 = vld [vmem:[%s5 + $0x180] sm:$0xff]
  %v1407 = vld [vmem:[%s5 + $0x188] sm:$0xff]
  %v1408 = vld [vmem:[%s5 + $0x190] sm:$0xff]
  %v1409 = vld [vmem:[%s5 + $0x198] sm:$0xff]
  %v1410 = vld [vmem:[%s5 + $0x1a0] sm:$0xff]
  %v1411 = vld [vmem:[%s5 + $0x1a8] sm:$0xff]
  %v1412 = vld [vmem:[%s5 + $0x1b0] sm:$0xff]
  %v1413 = vld [vmem:[%s5 + $0x1b8] sm:$0xff]
  %v1414 = vld [vmem:[%s5 + $0x1c0] sm:$0xff]
  %v1415 = vld [vmem:[%s5 + $0x1c8] sm:$0xff]
  %v1416 = vld [vmem:[%s5 + $0x1d0] sm:$0xff]
  %v1417 = vld [vmem:[%s5 + $0x1d8] sm:$0xff]
  %v1418 = vld [vmem:[%s5 + $0x1e0] sm:$0xff]
  %v1419 = vld [vmem:[%s5 + $0x1e8] sm:$0xff]
  %v1420 = vld [vmem:[%s5 + $0x1f0] sm:$0xff]
  %v1421 = vld [vmem:[%s5 + $0x1f8] sm:$0xff]
  %v1422 = vld [vmem:[%s5 + $0x200] sm:$0xff]
  %v1423 = vld [vmem:[%s5 + $0x208] sm:$0xff]
  %v1424 = vld [vmem:[%s5 + $0x210] sm:$0xff]
  %v1425 = vld [vmem:[%s5 + $0x218] sm:$0xff]
  %v1426 = vld [vmem:[%s5 + $0x220] sm:$0xff]
  %v1427 = vld [vmem:[%s5 + $0x228] sm:$0xff]
  %v1428 = vld [vmem:[%s5 + $0x230] sm:$0xff]
  %v1429 = vld [vmem:[%s5 + $0x238] sm:$0xff]
  %v1430 = vld [vmem:[%s5 + $0x240] sm:$0xff]
  %v1431 = vld [vmem:[%s5 + $0x248] sm:$0xff]
  %v1432 = vld [vmem:[%s5 + $0x250] sm:$0xff]
  %v1433 = vld [vmem:[%s5 + $0x258] sm:$0xff]
  %v1434 = vld [vmem:[%s5 + $0x260] sm:$0xff]
  %v1435 = vld [vmem:[%s5 + $0x268] sm:$0xff]
  %v1436 = vld [vmem:[%s5 + $0x270] sm:$0xff]
  %v1437 = vld [vmem:[%s5 + $0x278] sm:$0xff]
  %v1438 = vld [vmem:[%s5 + $0x280] sm:$0xff]
  %v1439 = vld [vmem:[%s5 + $0x288] sm:$0xff]
  %v1440 = vld [vmem:[%s5 + $0x290] sm:$0xff]
  %v1441 = vld [vmem:[%s5 + $0x298] sm:$0xff]
  %v1442 = vld [vmem:[%s5 + $0x2a0] sm:$0xff]
  %v1443 = vld [vmem:[%s5 + $0x2a8] sm:$0xff]
  %v1444 = vld [vmem:[%s5 + $0x2b0] sm:$0xff]
  %v1445 = vld [vmem:[%s5 + $0x2b8] sm:$0xff]
  %v1446 = vld [vmem:[%s5 + $0x2c0] sm:$0xff]
  %v1447 = vld [vmem:[%s5 + $0x2c8] sm:$0xff]
  %v1448 = vld [vmem:[%s5 + $0x2d0] sm:$0xff]
  %v1449 = vld [vmem:[%s5 + $0x2d8] sm:$0xff]
  %v1450 = vld [vmem:[%s5 + $0x2e0] sm:$0xff]
  %v1451 = vld [vmem:[%s5 + $0x2e8] sm:$0xff]
  %v1452 = vld [vmem:[%s5 + $0x2f0] sm:$0xff]
  %v1453 = vld [vmem:[%s5 + $0x2f8] sm:$0xff]
  %v1454 = vld [vmem:[%s5 + $0x300] sm:$0xff]
  %v1455 = vld [vmem:[%s5 + $0x308] sm:$0xff]
  %v1456 = vld [vmem:[%s5 + $0x310] sm:$0xff]
  %v1457 = vld [vmem:[%s5 + $0x318] sm:$0xff]
  %v1458 = vld [vmem:[%s5 + $0x320] sm:$0xff]
  %v1459 = vld [vmem:[%s5 + $0x328] sm:$0xff]
  %v1460 = vld [vmem:[%s5 + $0x330] sm:$0xff]
  %v1461 = vld [vmem:[%s5 + $0x338] sm:$0xff]
  %v1462 = vld [vmem:[%s5 + $0x340] sm:$0xff]
  %v1463 = vld [vmem:[%s5 + $0x348] sm:$0xff]
  %v1464 = vld [vmem:[%s5 + $0x350] sm:$0xff]
  %v1465 = vld [vmem:[%s5 + $0x358] sm:$0xff]
  %v1466 = vld [vmem:[%s5 + $0x360] sm:$0xff]
  %v1467 = vld [vmem:[%s5 + $0x368] sm:$0xff]
  %v1468 = vld [vmem:[%s5 + $0x370] sm:$0xff]
  %v1469 = vld [vmem:[%s5 + $0x378] sm:$0xff]
  %v1470 = vld [vmem:[%s5 + $0x380] sm:$0xff]
  %v1471 = vld [vmem:[%s5 + $0x388] sm:$0xff]
  %v1472 = vld [vmem:[%s5 + $0x390] sm:$0xff]
  %v1473 = vld [vmem:[%s5 + $0x398] sm:$0xff]
  %v1474 = vld [vmem:[%s5 + $0x3a0] sm:$0xff]
  %v1475 = vld [vmem:[%s5 + $0x3a8] sm:$0xff]
  %v1476 = vld [vmem:[%s5 + $0x3b0] sm:$0xff]
  %v1477 = vld [vmem:[%s5 + $0x3b8] sm:$0xff]
  %v1478 = vld [vmem:[%s5 + $0x3c0] sm:$0xff]
  %v1479 = vld [vmem:[%s5 + $0x3c8] sm:$0xff]
  %v1480 = vld [vmem:[%s5 + $0x3d0] sm:$0xff]
  %v1481 = vld [vmem:[%s5 + $0x3d8] sm:$0xff]
  %v1482 = vld [vmem:[%s5 + $0x3e0] sm:$0xff]
  %v1483 = vld [vmem:[%s5 + $0x3e8] sm:$0xff]
  %v1484 = vld [vmem:[%s5 + $0x3f0] sm:$0xff]
  %v1485 = vld [vmem:[%s5 + $0x3f8] sm:$0xff]
  %v1486 = vld [vmem:[%s5 + $0x400] sm:$0xff]
  %v1487 = vld [vmem:[%s5 + $0x408] sm:$0xff]
  %v1488 = vld [vmem:[%s5 + $0x410] sm:$0xff]
  %v1489 = vld [vmem:[%s5 + $0x418] sm:$0xff]
  %v1490 = vld [vmem:[%s5 + $0x420] sm:$0xff]
  %v1491 = vld [vmem:[%s5 + $0x428] sm:$0xff]
  %v1492 = vld [vmem:[%s5 + $0x430] sm:$0xff]
  %v1493 = vld [vmem:[%s5 + $0x438] sm:$0xff]
  %v1494 = vld [vmem:[%s5 + $0x440] sm:$0xff]
  %v1495 = vld [vmem:[%s5 + $0x448] sm:$0xff]
  %v1496 = vld [vmem:[%s5 + $0x450] sm:$0xff]
  %v1497 = vld [vmem:[%s5 + $0x458] sm:$0xff]
  %v1498 = vld [vmem:[%s5 + $0x460] sm:$0xff]
  %v1499 = vld [vmem:[%s5 + $0x468] sm:$0xff]
  %v1500 = vld [vmem:[%s5 + $0x470] sm:$0xff]
  %v1501 = vld [vmem:[%s5 + $0x478] sm:$0xff]
  %v1502 = vld [vmem:[%s5 + $0x480] sm:$0xff]
  %v1503 = vld [vmem:[%s5 + $0x488] sm:$0xff]
  %v1504 = vld [vmem:[%s5 + $0x490] sm:$0xff]
  %v1505 = vld [vmem:[%s5 + $0x498] sm:$0xff]
  %v1506 = vld [vmem:[%s5 + $0x4a0] sm:$0xff]
  %v1507 = vld [vmem:[%s5 + $0x4a8] sm:$0xff]
  %v1508 = vld [vmem:[%s5 + $0x4b0] sm:$0xff]
  %v1509 = vld [vmem:[%s5 + $0x4b8] sm:$0xff]
  %v1510 = vld [vmem:[%s5 + $0x4c0] sm:$0xff]
  %v1511 = vld [vmem:[%s5 + $0x4c8] sm:$0xff]
  %v1512 = vld [vmem:[%s5 + $0x4d0] sm:$0xff]
  %v1513 = vld [vmem:[%s5 + $0x4d8] sm:$0xff]
  %v1514 = vld [vmem:[%s5 + $0x4e0] sm:$0xff]
  %v1515 = vld [vmem:[%s5 + $0x4e8] sm:$0xff]
  %v1516 = vld [vmem:[%s5 + $0x4f0] sm:$0xff]
  %v1517 = vld [vmem:[%s5 + $0x4f8] sm:$0xff]
  %v1518 = vld [vmem:[%s5 + $0x500] sm:$0xff]
  %v1519 = vld [vmem:[%s5 + $0x508] sm:$0xff]
  %v1520 = vld [vmem:[%s5 + $0x510] sm:$0xff]
  %v1521 = vld [vmem:[%s5 + $0x518] sm:$0xff]
  %v1522 = vld [vmem:[%s5 + $0x520] sm:$0xff]
  %v1523 = vld [vmem:[%s5 + $0x528] sm:$0xff]
  %v1524 = vld [vmem:[%s5 + $0x530] sm:$0xff]
  %v1525 = vld [vmem:[%s5 + $0x538] sm:$0xff]
  %v1526 = vld [vmem:[%s5 + $0x540] sm:$0xff]
  %v1527 = vld [vmem:[%s5 + $0x548] sm:$0xff]
  %v1528 = vld [vmem:[%s5 + $0x550] sm:$0xff]
  %v1529 = vld [vmem:[%s5 + $0x558] sm:$0xff]
  %v1530 = vld [vmem:[%s5 + $0x560] sm:$0xff]
  %v1531 = vld [vmem:[%s5 + $0x568] sm:$0xff]
  %v1532 = vld [vmem:[%s5 + $0x570] sm:$0xff]
  %v1533 = vld [vmem:[%s5 + $0x578] sm:$0xff]
  %v1534 = vld [vmem:[%s5 + $0x580] sm:$0xff]
  %v1535 = vld [vmem:[%s5 + $0x588] sm:$0xff]
  %v1536 = vld [vmem:[%s5 + $0x590] sm:$0xff]
  %v1537 = vld [vmem:[%s5 + $0x598] sm:$0xff]
  %v1538 = vld [vmem:[%s5 + $0x5a0] sm:$0xff]
  %v1539 = vld [vmem:[%s5 + $0x5a8] sm:$0xff]
  %v1540 = vld [vmem:[%s5 + $0x5b0] sm:$0xff]
  %v1541 = vld [vmem:[%s5 + $0x5b8] sm:$0xff]
  %v1542 = vld [vmem:[%s5 + $0x5c0] sm:$0xff]
  %v1543 = vld [vmem:[%s5 + $0x5c8] sm:$0xff]
  %v1544 = vld [vmem:[%s5 + $0x5d0] sm:$0xff]
  %v1545 = vld [vmem:[%s5 + $0x5d8] sm:$0xff]
  %v1546 = vld [vmem:[%s5 + $0x5e0] sm:$0xff]
  %v1547 = vld [vmem:[%s5 + $0x5e8] sm:$0xff]
  %v1548 = vld [vmem:[%s5 + $0x5f0] sm:$0xff]
  %v1549 = vld [vmem:[%s5 + $0x5f8] sm:$0xff]
  %v1550 = vld [vmem:[%s5 + $0x600] sm:$0xff]
  %v1551 = vld [vmem:[%s5 + $0x608] sm:$0xff]
  %v1552 = vld [vmem:[%s5 + $0x610] sm:$0xff]
  %v1553 = vld [vmem:[%s5 + $0x618] sm:$0xff]
  %v1554 = vld [vmem:[%s5 + $0x620] sm:$0xff]
  %v1555 = vld [vmem:[%s5 + $0x628] sm:$0xff]
  %v1556 = vld [vmem:[%s5 + $0x630] sm:$0xff]
  %v1557 = vld [vmem:[%s5 + $0x638] sm:$0xff]
  %v1558 = vld [vmem:[%s5 + $0x640] sm:$0xff]
  %v1559 = vld [vmem:[%s5 + $0x648] sm:$0xff]
  %v1560 = vld [vmem:[%s5 + $0x650] sm:$0xff]
  %v1561 = vld [vmem:[%s5 + $0x658] sm:$0xff]
  %v1562 = vld [vmem:[%s5 + $0x660] sm:$0xff]
  %v1563 = vld [vmem:[%s5 + $0x668] sm:$0xff]
  %v1564 = vld [vmem:[%s5 + $0x670] sm:$0xff]
  %v1565 = vld [vmem:[%s5 + $0x678] sm:$0xff]
  %v1566 = vld [vmem:[%s5 + $0x680] sm:$0xff]
  %v1567 = vld [vmem:[%s5 + $0x688] sm:$0xff]
  %v1568 = vld [vmem:[%s5 + $0x690] sm:$0xff]
  %v1569 = vld [vmem:[%s5 + $0x698] sm:$0xff]
  %v1570 = vld [vmem:[%s5 + $0x6a0] sm:$0xff]
  %v1571 = vld [vmem:[%s5 + $0x6a8] sm:$0xff]
  %v1572 = vld [vmem:[%s5 + $0x6b0] sm:$0xff]
  %v1573 = vld [vmem:[%s5 + $0x6b8] sm:$0xff]
  %v1574 = vld [vmem:[%s5 + $0x6c0] sm:$0xff]
  %v1575 = vld [vmem:[%s5 + $0x6c8] sm:$0xff]
  %v1576 = vld [vmem:[%s5 + $0x6d0] sm:$0xff]
  %v1577 = vld [vmem:[%s5 + $0x6d8] sm:$0xff]
  %v1578 = vld [vmem:[%s5 + $0x6e0] sm:$0xff]
  %v1579 = vld [vmem:[%s5 + $0x6e8] sm:$0xff]
  %v1580 = vld [vmem:[%s5 + $0x6f0] sm:$0xff]
  %v1581 = vld [vmem:[%s5 + $0x6f8] sm:$0xff]
  %v1582 = vld [vmem:[%s5 + $0x700] sm:$0xff]
  %v1583 = vld [vmem:[%s5 + $0x708] sm:$0xff]
  %v1584 = vld [vmem:[%s5 + $0x710] sm:$0xff]
  %v1585 = vld [vmem:[%s5 + $0x718] sm:$0xff]
  %v1586 = vld [vmem:[%s5 + $0x720] sm:$0xff]
  %v1587 = vld [vmem:[%s5 + $0x728] sm:$0xff]
  %v1588 = vld [vmem:[%s5 + $0x730] sm:$0xff]
  %v1589 = vld [vmem:[%s5 + $0x738] sm:$0xff]
  %v1590 = vld [vmem:[%s5 + $0x740] sm:$0xff]
  %v1591 = vld [vmem:[%s5 + $0x748] sm:$0xff]
  %v1592 = vld [vmem:[%s5 + $0x750] sm:$0xff]
  %v1593 = vld [vmem:[%s5 + $0x758] sm:$0xff]
  %v1594 = vld [vmem:[%s5 + $0x760] sm:$0xff]
  %v1595 = vld [vmem:[%s5 + $0x768] sm:$0xff]
  %v1596 = vld [vmem:[%s5 + $0x770] sm:$0xff]
  %v1597 = vld [vmem:[%s5 + $0x778] sm:$0xff]
  %v1598 = vld [vmem:[%s5 + $0x780] sm:$0xff]
  %v1599 = vld [vmem:[%s5 + $0x788] sm:$0xff]
  %v1600 = vld [vmem:[%s5 + $0x790] sm:$0xff]
  %v1601 = vld [vmem:[%s5 + $0x798] sm:$0xff]
  %v1602 = vld [vmem:[%s5 + $0x7a0] sm:$0xff]
  %v1603 = vld [vmem:[%s5 + $0x7a8] sm:$0xff]
  %v1604 = vld [vmem:[%s5 + $0x7b0] sm:$0xff]
  %v1605 = vld [vmem:[%s5 + $0x7b8] sm:$0xff]
  %v1606 = vld [vmem:[%s5 + $0x7c0] sm:$0xff]
  %v1607 = vld [vmem:[%s5 + $0x7c8] sm:$0xff]
  %v1608 = vld [vmem:[%s5 + $0x7d0] sm:$0xff]
  %v1609 = vld [vmem:[%s5 + $0x7d8] sm:$0xff]
  %v1610 = vld [vmem:[%s5 + $0x7e0] sm:$0xff]
  %v1611 = vld [vmem:[%s5 + $0x7e8] sm:$0xff]
  %v1612 = vld [vmem:[%s5 + $0x7f0] sm:$0xff]
  %v1613 = vld [vmem:[%s5 + $0x7f8] sm:$0xff]
  %v1614 = vld [vmem:[%s5 + $0x800] sm:$0xff]
  %v1615 = vld [vmem:[%s5 + $0x808] sm:$0xff]
  %v1616 = vld [vmem:[%s5 + $0x810] sm:$0xff]
  %v1617 = vld [vmem:[%s5 + $0x818] sm:$0xff]
  %v1618 = vld [vmem:[%s5 + $0x820] sm:$0xff]
  %v1619 = vld [vmem:[%s5 + $0x828] sm:$0xff]
  %v1620 = vld [vmem:[%s5 + $0x830] sm:$0xff]
  %v1621 = vld [vmem:[%s5 + $0x838] sm:$0xff]
  %v1622 = vld [vmem:[%s5 + $0x840] sm:$0xff]
  %v1623 = vld [vmem:[%s5 + $0x848] sm:$0xff]
  %v1624 = vld [vmem:[%s5 + $0x850] sm:$0xff]
  %v1625 = vld [vmem:[%s5 + $0x858] sm:$0xff]
  %v1626 = vld [vmem:[%s5 + $0x860] sm:$0xff]
  %v1627 = vld [vmem:[%s5 + $0x868] sm:$0xff]
  %v1628 = vld [vmem:[%s5 + $0x870] sm:$0xff]
  %v1629 = vld [vmem:[%s5 + $0x878] sm:$0xff]
  %v1630 = vld [vmem:[%s5 + $0x880] sm:$0xff]
  %v1631 = vld [vmem:[%s5 + $0x888] sm:$0xff]
  %v1632 = vld [vmem:[%s5 + $0x890] sm:$0xff]
  %v1633 = vld [vmem:[%s5 + $0x898] sm:$0xff]
  %v1634 = vld [vmem:[%s5 + $0x8a0] sm:$0xff]
  %v1635 = vld [vmem:[%s5 + $0x8a8] sm:$0xff]
  %v1636 = vld [vmem:[%s5 + $0x8b0] sm:$0xff]
  %v1637 = vld [vmem:[%s5 + $0x8b8] sm:$0xff]
  %v1638 = vld [vmem:[%s5 + $0x8c0] sm:$0xff]
  %v1639 = vld [vmem:[%s5 + $0x8c8] sm:$0xff]
  %v1640 = vld [vmem:[%s5 + $0x8d0] sm:$0xff]
  %v1641 = vld [vmem:[%s5 + $0x8d8] sm:$0xff]
  %v1642 = vld [vmem:[%s5 + $0x8e0] sm:$0xff]
  %v1643 = vld [vmem:[%s5 + $0x8e8] sm:$0xff]
  %v1644 = vld [vmem:[%s5 + $0x8f0] sm:$0xff]
  %v1645 = vld [vmem:[%s5 + $0x8f8] sm:$0xff]
  %v1646 = vld [vmem:[%s5 + $0x900] sm:$0xff]
  %v1647 = vld [vmem:[%s5 + $0x908] sm:$0xff]
  %v1648 = vld [vmem:[%s5 + $0x910] sm:$0xff]
  %v1649 = vld [vmem:[%s5 + $0x918] sm:$0xff]
  %v1650 = vld [vmem:[%s5 + $0x920] sm:$0xff]
  %v1651 = vld [vmem:[%s5 + $0x928] sm:$0xff]
  %v1652 = vld [vmem:[%s5 + $0x930] sm:$0xff]
  %v1653 = vld [vmem:[%s5 + $0x938] sm:$0xff]
  %v1654 = vld [vmem:[%s5 + $0x940] sm:$0xff]
  %v1655 = vld [vmem:[%s5 + $0x948] sm:$0xff]
  %v1656 = vld [vmem:[%s5 + $0x950] sm:$0xff]
  %v1657 = vld [vmem:[%s5 + $0x958] sm:$0xff]
  %v1658 = vld [vmem:[%s5 + $0x960] sm:$0xff]
  %v1659 = vld [vmem:[%s5 + $0x968] sm:$0xff]
  %v1660 = vld [vmem:[%s5 + $0x970] sm:$0xff]
  %v1661 = vld [vmem:[%s5 + $0x978] sm:$0xff]
  %v1662 = vld [vmem:[%s5 + $0x980] sm:$0xff]
  %v1663 = vld [vmem:[%s5 + $0x988] sm:$0xff]
  %v1664 = vld [vmem:[%s5 + $0x990] sm:$0xff]
  %v1665 = vld [vmem:[%s5 + $0x998] sm:$0xff]
  %v1666 = vld [vmem:[%s5 + $0x9a0] sm:$0xff]
  %v1667 = vld [vmem:[%s5 + $0x9a8] sm:$0xff]
  %v1668 = vld [vmem:[%s5 + $0x9b0] sm:$0xff]
  %v1669 = vld [vmem:[%s5 + $0x9b8] sm:$0xff]
  %v1670 = vld [vmem:[%s5 + $0x9c0] sm:$0xff]
  %v1671 = vld [vmem:[%s5 + $0x9c8] sm:$0xff]
  %v1672 = vld [vmem:[%s5 + $0x9d0] sm:$0xff]
  %v1673 = vld [vmem:[%s5 + $0x9d8] sm:$0xff]
  %v1674 = vld [vmem:[%s5 + $0x9e0] sm:$0xff]
  %v1675 = vld [vmem:[%s5 + $0x9e8] sm:$0xff]
  %v1676 = vld [vmem:[%s5 + $0x9f0] sm:$0xff]
  %v1677 = vld [vmem:[%s5 + $0x9f8] sm:$0xff]
  %v1678 = vld [vmem:[%s5 + $0xa00] sm:$0xff]
  %v1679 = vld [vmem:[%s5 + $0xa08] sm:$0xff]
  %v1680 = vld [vmem:[%s5 + $0xa10] sm:$0xff]
  %v1681 = vld [vmem:[%s5 + $0xa18] sm:$0xff]
  %v1682 = vld [vmem:[%s5 + $0xa20] sm:$0xff]
  %v1683 = vld [vmem:[%s5 + $0xa28] sm:$0xff]
  %v1684 = vld [vmem:[%s5 + $0xa30] sm:$0xff]
  %v1685 = vld [vmem:[%s5 + $0xa38] sm:$0xff]
  %v1686 = vld [vmem:[%s5 + $0xa40] sm:$0xff]
  %v1687 = vld [vmem:[%s5 + $0xa48] sm:$0xff]
  %v1688 = vld [vmem:[%s5 + $0xa50] sm:$0xff]
  %v1689 = vld [vmem:[%s5 + $0xa58] sm:$0xff]
  %v1690 = vld [vmem:[%s5 + $0xa60] sm:$0xff]
  %v1691 = vld [vmem:[%s5 + $0xa68] sm:$0xff]
  %v1692 = vld [vmem:[%s5 + $0xa70] sm:$0xff]
  %v1693 = vld [vmem:[%s5 + $0xa78] sm:$0xff]
  %v1694 = vld [vmem:[%s5 + $0xa80] sm:$0xff]
  %v1695 = vld [vmem:[%s5 + $0xa88] sm:$0xff]
  %v1696 = vld [vmem:[%s5 + $0xa90] sm:$0xff]
  %v1697 = vld [vmem:[%s5 + $0xa98] sm:$0xff]
  %v1698 = vld [vmem:[%s5 + $0xaa0] sm:$0xff]
  %v1699 = vld [vmem:[%s5 + $0xaa8] sm:$0xff]
  %v1700 = vld [vmem:[%s5 + $0xab0] sm:$0xff]
  %v1701 = vld [vmem:[%s5 + $0xab8] sm:$0xff]
  %v1702 = vld [vmem:[%s5 + $0xac0] sm:$0xff]
  %v1703 = vld [vmem:[%s5 + $0xac8] sm:$0xff]
  %v1704 = vld [vmem:[%s5 + $0xad0] sm:$0xff]
  %v1705 = vld [vmem:[%s5 + $0xad8] sm:$0xff]
  %v1706 = vld [vmem:[%s5 + $0xae0] sm:$0xff]
  %v1707 = vld [vmem:[%s5 + $0xae8] sm:$0xff]
  %v1708 = vld [vmem:[%s5 + $0xaf0] sm:$0xff]
  %v1709 = vld [vmem:[%s5 + $0xaf8] sm:$0xff]
  %v1710 = vld [vmem:[%s5 + $0xb00] sm:$0xff]
  %v1711 = vld [vmem:[%s5 + $0xb08] sm:$0xff]
  %v1712 = vld [vmem:[%s5 + $0xb10] sm:$0xff]
  %v1713 = vld [vmem:[%s5 + $0xb18] sm:$0xff]
  %v1714 = vld [vmem:[%s5 + $0xb20] sm:$0xff]
  %v1715 = vld [vmem:[%s5 + $0xb28] sm:$0xff]
  %v1716 = vld [vmem:[%s5 + $0xb30] sm:$0xff]
  %v1717 = vld [vmem:[%s5 + $0xb38] sm:$0xff]
  %v1718 = vld [vmem:[%s5 + $0xb40] sm:$0xff]
  %v1719 = vld [vmem:[%s5 + $0xb48] sm:$0xff]
  %v1720 = vld [vmem:[%s5 + $0xb50] sm:$0xff]
  %v1721 = vld [vmem:[%s5 + $0xb58] sm:$0xff]
  %v1722 = vld [vmem:[%s5 + $0xb60] sm:$0xff]
  %v1723 = vld [vmem:[%s5 + $0xb68] sm:$0xff]
  %v1724 = vld [vmem:[%s5 + $0xb70] sm:$0xff]
  %v1725 = vld [vmem:[%s5 + $0xb78] sm:$0xff]
  %v1726 = vld [vmem:[%s5 + $0xb80] sm:$0xff]
  %v1727 = vld [vmem:[%s5 + $0xb88] sm:$0xff]
  %v1728 = vld [vmem:[%s5 + $0xb90] sm:$0xff]
  %v1729 = vld [vmem:[%s5 + $0xb98] sm:$0xff]
  %v1730 = vld [vmem:[%s5 + $0xba0] sm:$0xff]
  %v1731 = vld [vmem:[%s5 + $0xba8] sm:$0xff]
  %v1732 = vld [vmem:[%s5 + $0xbb0] sm:$0xff]
  %v1733 = vld [vmem:[%s5 + $0xbb8] sm:$0xff]
  %v1734 = vld [vmem:[%s5 + $0xbc0] sm:$0xff]
  %v1735 = vld [vmem:[%s5 + $0xbc8] sm:$0xff]
  %v1736 = vld [vmem:[%s5 + $0xbd0] sm:$0xff]
  %v1737 = vld [vmem:[%s5 + $0xbd8] sm:$0xff]
  %v1738 = vld [vmem:[%s5 + $0xbe0] sm:$0xff]
  %v1739 = vld [vmem:[%s5 + $0xbe8] sm:$0xff]
  %v1740 = vld [vmem:[%s5 + $0xbf0] sm:$0xff]
  %v1741 = vld [vmem:[%s5 + $0xbf8] sm:$0xff]
  %v1742 = vld [vmem:[%s5 + $0xc00] sm:$0xff]
  %v1743 = vld [vmem:[%s5 + $0xc08] sm:$0xff]
  %v1744 = vld [vmem:[%s5 + $0xc10] sm:$0xff]
  %v1745 = vld [vmem:[%s5 + $0xc18] sm:$0xff]
  %v1746 = vld [vmem:[%s5 + $0xc20] sm:$0xff]
  %v1747 = vld [vmem:[%s5 + $0xc28] sm:$0xff]
  %v1748 = vld [vmem:[%s5 + $0xc30] sm:$0xff]
  %v1749 = vld [vmem:[%s5 + $0xc38] sm:$0xff]
  %v1750 = vld [vmem:[%s5 + $0xc40] sm:$0xff]
  %v1751 = vld [vmem:[%s5 + $0xc48] sm:$0xff]
  %v1752 = vld [vmem:[%s5 + $0xc50] sm:$0xff]
  %v1753 = vld [vmem:[%s5 + $0xc58] sm:$0xff]
  %v1754 = vld [vmem:[%s5 + $0xc60] sm:$0xff]
  %v1755 = vld [vmem:[%s5 + $0xc68] sm:$0xff]
  %v1756 = vld [vmem:[%s5 + $0xc70] sm:$0xff]
  %v1757 = vld [vmem:[%s5 + $0xc78] sm:$0xff]
  %v1758 = vld [vmem:[%s5 + $0xc80] sm:$0xff]
  %v1759 = vld [vmem:[%s5 + $0xc88] sm:$0xff]
  %v1760 = vld [vmem:[%s5 + $0xc90] sm:$0xff]
  %v1761 = vld [vmem:[%s5 + $0xc98] sm:$0xff]
  %v1762 = vld [vmem:[%s5 + $0xca0] sm:$0xff]
  %v1763 = vld [vmem:[%s5 + $0xca8] sm:$0xff]
  %v1764 = vld [vmem:[%s5 + $0xcb0] sm:$0xff]
  %v1765 = vld [vmem:[%s5 + $0xcb8] sm:$0xff]
  %v1766 = vld [vmem:[%s5 + $0xcc0] sm:$0xff]
  %v1767 = vld [vmem:[%s5 + $0xcc8] sm:$0xff]
  %v1768 = vld [vmem:[%s5 + $0xcd0] sm:$0xff]
  %v1769 = vld [vmem:[%s5 + $0xcd8] sm:$0xff]
  %v1770 = vld [vmem:[%s5 + $0xce0] sm:$0xff]
  %v1771 = vld [vmem:[%s5 + $0xce8] sm:$0xff]
  %v1772 = vld [vmem:[%s5 + $0xcf0] sm:$0xff]
  %v1773 = vld [vmem:[%s5 + $0xcf8] sm:$0xff]
  %v1774 = vld [vmem:[%s5 + $0xd00] sm:$0xff]
  %v1775 = vld [vmem:[%s5 + $0xd08] sm:$0xff]
  %v1776 = vld [vmem:[%s5 + $0xd10] sm:$0xff]
  %v1777 = vld [vmem:[%s5 + $0xd18] sm:$0xff]
  %v1778 = vld [vmem:[%s5 + $0xd20] sm:$0xff]
  %v1779 = vld [vmem:[%s5 + $0xd28] sm:$0xff]
  %v1780 = vld [vmem:[%s5 + $0xd30] sm:$0xff]
  %v1781 = vld [vmem:[%s5 + $0xd38] sm:$0xff]
  %v1782 = vld [vmem:[%s5 + $0xd40] sm:$0xff]
  %v1783 = vld [vmem:[%s5 + $0xd48] sm:$0xff]
  %v1784 = vld [vmem:[%s5 + $0xd50] sm:$0xff]
  %v1785 = vld [vmem:[%s5 + $0xd58] sm:$0xff]
  %v1786 = vld [vmem:[%s5 + $0xd60] sm:$0xff]
  %v1787 = vld [vmem:[%s5 + $0xd68] sm:$0xff]
  %v1788 = vld [vmem:[%s5 + $0xd70] sm:$0xff]
  %v1789 = vld [vmem:[%s5 + $0xd78] sm:$0xff]
  %v1790 = vld [vmem:[%s5 + $0xd80] sm:$0xff]
  %v1791 = vld [vmem:[%s5 + $0xd88] sm:$0xff]
  %v1792 = vld [vmem:[%s5 + $0xd90] sm:$0xff]
  %v1793 = vld [vmem:[%s5 + $0xd98] sm:$0xff]
  %v1794 = vld [vmem:[%s5 + $0xda0] sm:$0xff]
  %v1795 = vld [vmem:[%s5 + $0xda8] sm:$0xff]
  %v1796 = vld [vmem:[%s5 + $0xdb0] sm:$0xff]
  %v1797 = vld [vmem:[%s5 + $0xdb8] sm:$0xff]
  %v1798 = vld [vmem:[%s5 + $0xdc0] sm:$0xff]
  %v1799 = vld [vmem:[%s5 + $0xdc8] sm:$0xff]
  %v1800 = vld [vmem:[%s5 + $0xdd0] sm:$0xff]
  %v1801 = vld [vmem:[%s5 + $0xdd8] sm:$0xff]
  %v1802 = vld [vmem:[%s5 + $0xde0] sm:$0xff]
  %v1803 = vld [vmem:[%s5 + $0xde8] sm:$0xff]
  %v1804 = vld [vmem:[%s5 + $0xdf0] sm:$0xff]
  %v1805 = vld [vmem:[%s5 + $0xdf8] sm:$0xff]
  %v1806 = vld [vmem:[%s5 + $0xe00] sm:$0xff]
  %v1807 = vld [vmem:[%s5 + $0xe08] sm:$0xff]
  %v1808 = vld [vmem:[%s5 + $0xe10] sm:$0xff]
  %v1809 = vld [vmem:[%s5 + $0xe18] sm:$0xff]
  %v1810 = vld [vmem:[%s5 + $0xe20] sm:$0xff]
  %v1811 = vld [vmem:[%s5 + $0xe28] sm:$0xff]
  %v1812 = vld [vmem:[%s5 + $0xe30] sm:$0xff]
  %v1813 = vld [vmem:[%s5 + $0xe38] sm:$0xff]
  %v1814 = vld [vmem:[%s5 + $0xe40] sm:$0xff]
  %v1815 = vld [vmem:[%s5 + $0xe48] sm:$0xff]
  %v1816 = vld [vmem:[%s5 + $0xe50] sm:$0xff]
  %v1817 = vld [vmem:[%s5 + $0xe58] sm:$0xff]
  %v1818 = vld [vmem:[%s5 + $0xe60] sm:$0xff]
  %v1819 = vld [vmem:[%s5 + $0xe68] sm:$0xff]
  %v1820 = vld [vmem:[%s5 + $0xe70] sm:$0xff]
  %v1821 = vld [vmem:[%s5 + $0xe78] sm:$0xff]
  %v1822 = vld [vmem:[%s5 + $0xe80] sm:$0xff]
  %v1823 = vld [vmem:[%s5 + $0xe88] sm:$0xff]
  %v1824 = vld [vmem:[%s5 + $0xe90] sm:$0xff]
  %v1825 = vld [vmem:[%s5 + $0xe98] sm:$0xff]
  %v1826 = vld [vmem:[%s5 + $0xea0] sm:$0xff]
  %v1827 = vld [vmem:[%s5 + $0xea8] sm:$0xff]
  %v1828 = vld [vmem:[%s5 + $0xeb0] sm:$0xff]
  %v1829 = vld [vmem:[%s5 + $0xeb8] sm:$0xff]
  %v1830 = vld [vmem:[%s5 + $0xec0] sm:$0xff]
  %v1831 = vld [vmem:[%s5 + $0xec8] sm:$0xff]
  %v1832 = vld [vmem:[%s5 + $0xed0] sm:$0xff]
  %v1833 = vld [vmem:[%s5 + $0xed8] sm:$0xff]
  %v1834 = vld [vmem:[%s5 + $0xee0] sm:$0xff]
  %v1835 = vld [vmem:[%s5 + $0xee8] sm:$0xff]
  %v1836 = vld [vmem:[%s5 + $0xef0] sm:$0xff]
  %v1837 = vld [vmem:[%s5 + $0xef8] sm:$0xff]
  %v1838 = vld [vmem:[%s5 + $0xf00] sm:$0xff]
  %v1839 = vld [vmem:[%s5 + $0xf08] sm:$0xff]
  %v1840 = vld [vmem:[%s5 + $0xf10] sm:$0xff]
  %v1841 = vld [vmem:[%s5 + $0xf18] sm:$0xff]
  %v1842 = vld [vmem:[%s5 + $0xf20] sm:$0xff]
  %v1843 = vld [vmem:[%s5 + $0xf28] sm:$0xff]
  %v1844 = vld [vmem:[%s5 + $0xf30] sm:$0xff]
  %v1845 = vld [vmem:[%s5 + $0xf38] sm:$0xff]
  %v1846 = vld [vmem:[%s5 + $0xf40] sm:$0xff]
  %v1847 = vld [vmem:[%s5 + $0xf48] sm:$0xff]
  %v1848 = vld [vmem:[%s5 + $0xf50] sm:$0xff]
  %v1849 = vld [vmem:[%s5 + $0xf58] sm:$0xff]
  %v1850 = vld [vmem:[%s5 + $0xf60] sm:$0xff]
  %v1851 = vld [vmem:[%s5 + $0xf68] sm:$0xff]
  %v1852 = vld [vmem:[%s5 + $0xf70] sm:$0xff]
  %v1853 = vld [vmem:[%s5 + $0xf78] sm:$0xff]
  %v1854 = vld [vmem:[%s5 + $0xf80] sm:$0xff]
  %v1855 = vld [vmem:[%s5 + $0xf88] sm:$0xff]
  %v1856 = vld [vmem:[%s5 + $0xf90] sm:$0xff]
  %v1857 = vld [vmem:[%s5 + $0xf98] sm:$0xff]
  %v1858 = vld [vmem:[%s5 + $0xfa0] sm:$0xff]
  %v1859 = vld [vmem:[%s5 + $0xfa8] sm:$0xff]
  %v1860 = vld [vmem:[%s5 + $0xfb0] sm:$0xff]
  %v1861 = vld [vmem:[%s5 + $0xfb8] sm:$0xff]
  %v1862 = vld [vmem:[%s5 + $0xfc0] sm:$0xff]
  %v1863 = vld [vmem:[%s5 + $0xfc8] sm:$0xff]
  %v1864 = vld [vmem:[%s5 + $0xfd0] sm:$0xff]
  %v1865 = vld [vmem:[%s5 + $0xfd8] sm:$0xff]
  %v1866 = vld [vmem:[%s5 + $0xfe0] sm:$0xff]
  %v1867 = vld [vmem:[%s5 + $0xfe8] sm:$0xff]
  %v1868 = vld [vmem:[%s5 + $0xff0] sm:$0xff]
  %v1869 = vld [vmem:[%s5 + $0xff8] sm:$0xff]
  %v1870 = vld [vmem:[%s5 + $0x1000] sm:$0xff]
  %v1871 = vld [vmem:[%s5 + $0x1008] sm:$0xff]
  %v1872 = vld [vmem:[%s5 + $0x1010] sm:$0xff]
  %v1873 = vld [vmem:[%s5 + $0x1018] sm:$0xff]
  %v1874 = vld [vmem:[%s5 + $0x1020] sm:$0xff]
  %v1875 = vld [vmem:[%s5 + $0x1028] sm:$0xff]
  %v1876 = vld [vmem:[%s5 + $0x1030] sm:$0xff]
  %v1877 = vld [vmem:[%s5 + $0x1038] sm:$0xff]
  %v1878 = vld [vmem:[%s5 + $0x1040] sm:$0xff]
  %v1879 = vld [vmem:[%s5 + $0x1048] sm:$0xff]
  %v1880 = vld [vmem:[%s5 + $0x1050] sm:$0xff]
  %v1881 = vld [vmem:[%s5 + $0x1058] sm:$0xff]
  %v1882 = vld [vmem:[%s5 + $0x1060] sm:$0xff]
  %v1883 = vld [vmem:[%s5 + $0x1068] sm:$0xff]
  %v1884 = vld [vmem:[%s5 + $0x1070] sm:$0xff]
  %v1885 = vld [vmem:[%s5 + $0x1078] sm:$0xff]
  %v1886 = vld [vmem:[%s5 + $0x1080] sm:$0xff]
  %v1887 = vld [vmem:[%s5 + $0x1088] sm:$0xff]
  %v1888 = vld [vmem:[%s5 + $0x1090] sm:$0xff]
  %v1889 = vld [vmem:[%s5 + $0x1098] sm:$0xff]
  %v1890 = vld [vmem:[%s5 + $0x10a0] sm:$0xff]
  %v1891 = vld [vmem:[%s5 + $0x10a8] sm:$0xff]
  %v1892 = vld [vmem:[%s5 + $0x10b0] sm:$0xff]
  %v1893 = vld [vmem:[%s5 + $0x10b8] sm:$0xff]
  %v1894 = vld [vmem:[%s5 + $0x10c0] sm:$0xff]
  %v1895 = vld [vmem:[%s5 + $0x10c8] sm:$0xff]
  %v1896 = vld [vmem:[%s5 + $0x10d0] sm:$0xff]
  %v1897 = vld [vmem:[%s5 + $0x10d8] sm:$0xff]
  %v1898 = vld [vmem:[%s5 + $0x10e0] sm:$0xff]
  %v1899 = vld [vmem:[%s5 + $0x10e8] sm:$0xff]
  %v1900 = vld [vmem:[%s5 + $0x10f0] sm:$0xff]
  %v1901 = vld [vmem:[%s5 + $0x10f8] sm:$0xff]
  %v1902 = vld [vmem:[%s5 + $0x1100] sm:$0xff]
  %v1903 = vld [vmem:[%s5 + $0x1108] sm:$0xff]
  %v1904 = vld [vmem:[%s5 + $0x1110] sm:$0xff]
  %v1905 = vld [vmem:[%s5 + $0x1118] sm:$0xff]
  %v1906 = vld [vmem:[%s5 + $0x1120] sm:$0xff]
  %v1907 = vld [vmem:[%s5 + $0x1128] sm:$0xff]
  %v1908 = vld [vmem:[%s5 + $0x1130] sm:$0xff]
  %v1909 = vld [vmem:[%s5 + $0x1138] sm:$0xff]
  %v1910 = vld [vmem:[%s5 + $0x1140] sm:$0xff]
  %v1911 = vld [vmem:[%s5 + $0x1148] sm:$0xff]
  %v1912 = vld [vmem:[%s5 + $0x1150] sm:$0xff]
  %v1913 = vld [vmem:[%s5 + $0x1158] sm:$0xff]
  %v1914 = vld [vmem:[%s5 + $0x1160] sm:$0xff]
  %v1915 = vld [vmem:[%s5 + $0x1168] sm:$0xff]
  %v1916 = vld [vmem:[%s5 + $0x1170] sm:$0xff]
  %v1917 = vld [vmem:[%s5 + $0x1178] sm:$0xff]
  %v1918 = vld [vmem:[%s5 + $0x1180] sm:$0xff]
  %v1919 = vld [vmem:[%s5 + $0x1188] sm:$0xff]
  %v1920 = vld [vmem:[%s5 + $0x1190] sm:$0xff]
  %v1921 = vld [vmem:[%s5 + $0x1198] sm:$0xff]
  %v1922 = vld [vmem:[%s5 + $0x11a0] sm:$0xff]
  %v1923 = vld [vmem:[%s5 + $0x11a8] sm:$0xff]
  %v1924 = vld [vmem:[%s5 + $0x11b0] sm:$0xff]
  %v1925 = vld [vmem:[%s5 + $0x11b8] sm:$0xff]
  %v1926 = vld [vmem:[%s5 + $0x11c0] sm:$0xff]
  %v1927 = vld [vmem:[%s5 + $0x11c8] sm:$0xff]
  %v1928 = vld [vmem:[%s5 + $0x11d0] sm:$0xff]
  %v1929 = vld [vmem:[%s5 + $0x11d8] sm:$0xff]
  %v1930 = vld [vmem:[%s5 + $0x11e0] sm:$0xff]
  %v1931 = vld [vmem:[%s5 + $0x11e8] sm:$0xff]
  %v1932 = vld [vmem:[%s5 + $0x11f0] sm:$0xff]
  %v1933 = vld [vmem:[%s5 + $0x11f8] sm:$0xff]
  %v1934 = vld [vmem:[%s5 + $0x1200] sm:$0xff]
  %v1935 = vld [vmem:[%s5 + $0x1208] sm:$0xff]
  %v1936 = vld [vmem:[%s5 + $0x1210] sm:$0xff]
  %v1937 = vld [vmem:[%s5 + $0x1218] sm:$0xff]
  %v1938 = vld [vmem:[%s5 + $0x1220] sm:$0xff]
  %v1939 = vld [vmem:[%s5 + $0x1228] sm:$0xff]
  %v1940 = vld [vmem:[%s5 + $0x1230] sm:$0xff]
  %v1941 = vld [vmem:[%s5 + $0x1238] sm:$0xff]
  %v1942 = vld [vmem:[%s5 + $0x1240] sm:$0xff]
  %v1943 = vld [vmem:[%s5 + $0x1248] sm:$0xff]
  %v1944 = vld [vmem:[%s5 + $0x1250] sm:$0xff]
  %v1945 = vld [vmem:[%s5 + $0x1258] sm:$0xff]
  %v1946 = vld [vmem:[%s5 + $0x1260] sm:$0xff]
  %v1947 = vld [vmem:[%s5 + $0x1268] sm:$0xff]
  %v1948 = vld [vmem:[%s5 + $0x1270] sm:$0xff]
  %v1949 = vld [vmem:[%s5 + $0x1278] sm:$0xff]
  %v1950 = vld [vmem:[%s5 + $0x1280] sm:$0xff]
  %v1951 = vld [vmem:[%s5 + $0x1288] sm:$0xff]
  %v1952 = vld [vmem:[%s5 + $0x1290] sm:$0xff]
  %v1953 = vld [vmem:[%s5 + $0x1298] sm:$0xff]
  %v1954 = vld [vmem:[%s5 + $0x12a0] sm:$0xff]
  %v1955 = vld [vmem:[%s5 + $0x12a8] sm:$0xff]
  %v1956 = vld [vmem:[%s5 + $0x12b0] sm:$0xff]
  %v1957 = vld [vmem:[%s5 + $0x12b8] sm:$0xff]
  %v1958 = vld [vmem:[%s5 + $0x12c0] sm:$0xff]
  %v1959 = vld [vmem:[%s5 + $0x12c8] sm:$0xff]
  %v1960 = vld [vmem:[%s5 + $0x12d0] sm:$0xff]
  %v1961 = vld [vmem:[%s5 + $0x12d8] sm:$0xff]
  %v1962 = vld [vmem:[%s5 + $0x12e0] sm:$0xff]
  %v1963 = vld [vmem:[%s5 + $0x12e8] sm:$0xff]
  %v1964 = vld [vmem:[%s5 + $0x12f0] sm:$0xff]
  %v1965 = vld [vmem:[%s5 + $0x12f8] sm:$0xff]
  %v1966 = vld [vmem:[%s5 + $0x1300] sm:$0xff]
  %v1967 = vld [vmem:[%s5 + $0x1308] sm:$0xff]
  %v1968 = vld [vmem:[%s5 + $0x1310] sm:$0xff]
  %v1969 = vld [vmem:[%s5 + $0x1318] sm:$0xff]
  %v1970 = vld [vmem:[%s5 + $0x1320] sm:$0xff]
  %v1971 = vld [vmem:[%s5 + $0x1328] sm:$0xff]
  %v1972 = vld [vmem:[%s5 + $0x1330] sm:$0xff]
  %v1973 = vld [vmem:[%s5 + $0x1338] sm:$0xff]
  %v1974 = vld [vmem:[%s5 + $0x1340] sm:$0xff]
  %v1975 = vld [vmem:[%s5 + $0x1348] sm:$0xff]
  %v1976 = vld [vmem:[%s5 + $0x1350] sm:$0xff]
  %v1977 = vld [vmem:[%s5 + $0x1358] sm:$0xff]
  %v1978 = vld [vmem:[%s5 + $0x1360] sm:$0xff]
  %v1979 = vld [vmem:[%s5 + $0x1368] sm:$0xff]
  %v1980 = vld [vmem:[%s5 + $0x1370] sm:$0xff]
  %v1981 = vld [vmem:[%s5 + $0x1378] sm:$0xff]
  %v1982 = vld [vmem:[%s5 + $0x1380] sm:$0xff]
  %v1983 = vld [vmem:[%s5 + $0x1388] sm:$0xff]
  %v1984 = vld [vmem:[%s5 + $0x1390] sm:$0xff]
  %v1985 = vld [vmem:[%s5 + $0x1398] sm:$0xff]
  %v1986 = vld [vmem:[%s5 + $0x13a0] sm:$0xff]
  %v1987 = vld [vmem:[%s5 + $0x13a8] sm:$0xff]
  %v1988 = vld [vmem:[%s5 + $0x13b0] sm:$0xff]
  %v1989 = vld [vmem:[%s5 + $0x13b8] sm:$0xff]
  %v1990 = vld [vmem:[%s5 + $0x13c0] sm:$0xff]
  %v1991 = vld [vmem:[%s5 + $0x13c8] sm:$0xff]
  %v1992 = vld [vmem:[%s5 + $0x13d0] sm:$0xff]
  %v1993 = vld [vmem:[%s5 + $0x13d8] sm:$0xff]
  %v1994 = vld [vmem:[%s5 + $0x13e0] sm:$0xff]
  %v1995 = vld [vmem:[%s5 + $0x13e8] sm:$0xff]
  %v1996 = vld [vmem:[%s5 + $0x13f0] sm:$0xff]
  %v1997 = vld [vmem:[%s5 + $0x13f8] sm:$0xff]
  %v1998 = vld [vmem:[%s5 + $0x1400] sm:$0xff]
  %v1999 = vld [vmem:[%s5 + $0x1408] sm:$0xff]
  %v2000 = vld [vmem:[%s5 + $0x1410] sm:$0xff]
  %v2001 = vld [vmem:[%s5 + $0x1418] sm:$0xff]
  %v2002 = vld [vmem:[%s5 + $0x1420] sm:$0xff]
  %v2003 = vld [vmem:[%s5 + $0x1428] sm:$0xff]
  %v2004 = vld [vmem:[%s5 + $0x1430] sm:$0xff]
  %v2005 = vld [vmem:[%s5 + $0x1438] sm:$0xff]
  %v2006 = vld [vmem:[%s5 + $0x1440] sm:$0xff]
  %v2007 = vld [vmem:[%s5 + $0x1448] sm:$0xff]
  %v2008 = vld [vmem:[%s5 + $0x1450] sm:$0xff]
  %v2009 = vld [vmem:[%s5 + $0x1458] sm:$0xff]
  %v2010 = vld [vmem:[%s5 + $0x1460] sm:$0xff]
  %v2011 = vld [vmem:[%s5 + $0x1468] sm:$0xff]
  %v2012 = vld [vmem:[%s5 + $0x1470] sm:$0xff]
  %v2013 = vld [vmem:[%s5 + $0x1478] sm:$0xff]
  %v2014 = vld [vmem:[%s5 + $0x1480] sm:$0xff]
  %v2015 = vld [vmem:[%s5 + $0x1488] sm:$0xff]
  %v2016 = vld [vmem:[%s5 + $0x1490] sm:$0xff]
  %v2017 = vld [vmem:[%s5 + $0x1498] sm:$0xff]
  %v2018 = vld [vmem:[%s5 + $0x14a0] sm:$0xff]
  %v2019 = vld [vmem:[%s5 + $0x14a8] sm:$0xff]
  %v2020 = vld [vmem:[%s5 + $0x14b0] sm:$0xff]
  %v2021 = vld [vmem:[%s5 + $0x14b8] sm:$0xff]
  %v2022 = vld [vmem:[%s5 + $0x14c0] sm:$0xff]
  %v2023 = vld [vmem:[%s5 + $0x14c8] sm:$0xff]
  %v2024 = vld [vmem:[%s5 + $0x14d0] sm:$0xff]
  %v2025 = vld [vmem:[%s5 + $0x14d8] sm:$0xff]
  %v2026 = vld [vmem:[%s5 + $0x14e0] sm:$0xff]
  %v2027 = vld [vmem:[%s5 + $0x14e8] sm:$0xff]
  %v2028 = vld [vmem:[%s5 + $0x14f0] sm:$0xff]
  %v2029 = vld [vmem:[%s5 + $0x14f8] sm:$0xff]
  %v2030 = vld [vmem:[%s5 + $0x1500] sm:$0xff]
  %v2031 = vld [vmem:[%s5 + $0x1508] sm:$0xff]
  %v2032 = vld [vmem:[%s5 + $0x1510] sm:$0xff]
  %v2033 = vld [vmem:[%s5 + $0x1518] sm:$0xff]
  %v2034 = vld [vmem:[%s5 + $0x1520] sm:$0xff]
  %v2035 = vld [vmem:[%s5 + $0x1528] sm:$0xff]
  %v2036 = vld [vmem:[%s5 + $0x1530] sm:$0xff]
  %v2037 = vld [vmem:[%s5 + $0x1538] sm:$0xff]
  %v2038 = vld [vmem:[%s5 + $0x1540] sm:$0xff]
  %v2039 = vld [vmem:[%s5 + $0x1548] sm:$0xff]
  %v2040 = vld [vmem:[%s5 + $0x1550] sm:$0xff]
  %v2041 = vld [vmem:[%s5 + $0x1558] sm:$0xff]
  %v2042 = vld [vmem:[%s5 + $0x1560] sm:$0xff]
  %v2043 = vld [vmem:[%s5 + $0x1568] sm:$0xff]
  %v2044 = vld [vmem:[%s6] sm:$0x7f]
  %v2046 = vlaneseq
  %v2047 = vshrl.u32 %v2046, 7
  %v2048 = vsub.s32 0, %v2047
  %v2049 = vrot.slane %v2044, %v2048
  %v2050 = vlaneseq
  %v2051 = vshrl.u32 %v2050, 7
  %v2052 = vsub.s32 1, %v2051
  %v2053 = vrot.slane %v2044, %v2052
  %v2054 = vlaneseq
  %v2055 = vshrl.u32 %v2054, 7
  %v2056 = vsub.s32 2, %v2055
  %v2057 = vrot.slane %v2044, %v2056
  %v2058 = vlaneseq
  %v2059 = vshrl.u32 %v2058, 7
  %v2060 = vsub.s32 3, %v2059
  %v2061 = vrot.slane %v2044, %v2060
  %v2062 = vlaneseq
  %v2063 = vshrl.u32 %v2062, 7
  %v2064 = vsub.s32 4, %v2063
  %v2065 = vrot.slane %v2044, %v2064
  %v2066 = vlaneseq
  %v2067 = vshrl.u32 %v2066, 7
  %v2068 = vsub.s32 5, %v2067
  %v2069 = vrot.slane %v2044, %v2068
  %v2070 = vlaneseq
  %v2071 = vshrl.u32 %v2070, 7
  %v2072 = vsub.s32 6, %v2071
  %v2073 = vrot.slane %v2044, %v2072
  %vm2081 = vcmask 130048
  %v2083 = vsel %vm2081, %v1357, 0
  %2085 = vmatprep.subr.mxu0 %v1464
  %2086 = vmatpush1.msra.mxu0 %v1463
  %2087 = vmatprep.subr.mxu0 %v1457
  %2088 = vmatpush1.msra.mxu0 %v1456
  %2089 = vmatprep.subr.mxu0 %v1450
  %2090 = vmatpush1.msra.mxu0 %v1449
  %2091 = vmatprep.subr.mxu0 %v1443
  %2092 = vmatpush1.msra.mxu0 %v1442
  %2093 = vmatprep.subr.mxu0 %v1436
  %2094 = vmatpush1.msra.mxu0 %v1435
  %2095 = vmatprep.subr.mxu0 %v1429
  %2096 = vmatpush1.msra.mxu0 %v1428
  %2097 = vmatprep.subr.mxu0 %v1422
  %2098 = vmatpush1.msra.mxu0 %v1421
  %2099 = vmatprep.subr.mxu0 %v1415
  %2100 = vmatpush1.msra.mxu0 %v1414
  %2101 = vmatprep.subr.mxu0 %v1408
  %2102 = vmatpush1.msra.mxu0 %v1407
  %2103 = vmatprep.subr.mxu0 %v1401
  %2104 = vmatpush1.msra.mxu0 %v1400
  %2105 = vmatprep.subr.mxu0 %v1394
  %2106 = vmatpush1.msra.mxu0 %v1393
  %2107 = vmatprep.subr.mxu0 %v1387
  %2108 = vmatpush1.msra.mxu0 %v1386
  %2109 = vmatprep.subr.mxu0 %v1380
  %2110 = vmatpush1.msra.mxu0 %v1379
  %2111 = vmatprep.subr.mxu0 %v1373
  %2112 = vmatpush1.msra.mxu0 %v1372
  %2113 = vmatprep.subr.mxu0 %v1366
  %2114 = vmatpush1.msra.mxu0 %v1365
  %2115 = vmatprep.subr.mxu0 %v1359
  %2116 = vmatpush1.msra.mxu0 %v1358
  %2117 = vmatprep.subr.mxu0 %v1576
  %2118 = vmatpush2.msra.mxu0 %v1575
  %2119 = vmatprep.subr.mxu0 %v1569
  %2120 = vmatpush2.msra.mxu0 %v1568
  %2121 = vmatprep.subr.mxu0 %v1562
  %2122 = vmatpush2.msra.mxu0 %v1561
  %2123 = vmatprep.subr.mxu0 %v1555
  %2124 = vmatpush2.msra.mxu0 %v1554
  %2125 = vmatprep.subr.mxu0 %v1548
  %2126 = vmatpush2.msra.mxu0 %v1547
  %2127 = vmatprep.subr.mxu0 %v1541
  %2128 = vmatpush2.msra.mxu0 %v1540
  %2129 = vmatprep.subr.mxu0 %v1534
  %2130 = vmatpush2.msra.mxu0 %v1533
  %2131 = vmatprep.subr.mxu0 %v1527
  %2132 = vmatpush2.msra.mxu0 %v1526
  %2133 = vmatprep.subr.mxu0 %v1520
  %2134 = vmatpush2.msra.mxu0 %v1519
  %2135 = vmatprep.subr.mxu0 %v1513
  %2136 = vmatpush2.msra.mxu0 %v1512
  %2137 = vmatprep.subr.mxu0 %v1506
  %2138 = vmatpush2.msra.mxu0 %v1505
  %2139 = vmatprep.subr.mxu0 %v1499
  %2140 = vmatpush2.msra.mxu0 %v1498
  %2141 = vmatprep.subr.mxu0 %v1492
  %2142 = vmatpush2.msra.mxu0 %v1491
  %2143 = vmatprep.subr.mxu0 %v1485
  %2144 = vmatpush2.msra.mxu0 %v1484
  %2145 = vmatprep.subr.mxu0 %v1478
  %2146 = vmatpush2.msra.mxu0 %v1477
  %2147 = vmatprep.subr.mxu0 %v1471
  %2148 = vmatpush2.msra.mxu0 %v1470
  %2149 = vmatprep.mubr.f32.mxu0 %v1352
  %2150 = vmatmul.mubr.f32.gmra.mxu0 %v1351
  %v2151 = vpop.f32.mrf.mxu0
  %v2152 = vadd.f32 %v2049, %v2151
  %v2153 = vpop.f32.mrf.mxu0
  %v2154 = vadd.f32 %v2053, %v2153
  %2155 = vdwg.mxu0
  %2156 = vmatprep.subr.mxu0 %v1688
  %2157 = vmatpush1.msra.mxu0 %v1687
  %2158 = vmatprep.subr.mxu0 %v1681
  %2159 = vmatpush1.msra.mxu0 %v1680
  %2160 = vmatprep.subr.mxu0 %v1674
  %2161 = vmatpush1.msra.mxu0 %v1673
  %2162 = vmatprep.subr.mxu0 %v1667
  %2163 = vmatpush1.msra.mxu0 %v1666
  %2164 = vmatprep.subr.mxu0 %v1660
  %2165 = vmatpush1.msra.mxu0 %v1659
  %2166 = vmatprep.subr.mxu0 %v1653
  %2167 = vmatpush1.msra.mxu0 %v1652
  %2168 = vmatprep.subr.mxu0 %v1646
  %2169 = vmatpush1.msra.mxu0 %v1645
  %2170 = vmatprep.subr.mxu0 %v1639
  %2171 = vmatpush1.msra.mxu0 %v1638
  %2172 = vmatprep.subr.mxu0 %v1632
  %2173 = vmatpush1.msra.mxu0 %v1631
  %2174 = vmatprep.subr.mxu0 %v1625
  %2175 = vmatpush1.msra.mxu0 %v1624
  %2176 = vmatprep.subr.mxu0 %v1618
  %2177 = vmatpush1.msra.mxu0 %v1617
  %2178 = vmatprep.subr.mxu0 %v1611
  %2179 = vmatpush1.msra.mxu0 %v1610
  %2180 = vmatprep.subr.mxu0 %v1604
  %2181 = vmatpush1.msra.mxu0 %v1603
  %2182 = vmatprep.subr.mxu0 %v1597
  %2183 = vmatpush1.msra.mxu0 %v1596
  %2184 = vmatprep.subr.mxu0 %v1590
  %2185 = vmatpush1.msra.mxu0 %v1589
  %2186 = vmatprep.subr.mxu0 %v1583
  %2187 = vmatpush1.msra.mxu0 %v1582
  %2188 = vmatprep.subr.mxu0 %v1800
  %2189 = vmatpush2.msra.mxu0 %v1799
  %2190 = vmatprep.subr.mxu0 %v1793
  %2191 = vmatpush2.msra.mxu0 %v1792
  %2192 = vmatprep.subr.mxu0 %v1786
  %2193 = vmatpush2.msra.mxu0 %v1785
  %2194 = vmatprep.subr.mxu0 %v1779
  %2195 = vmatpush2.msra.mxu0 %v1778
  %2196 = vmatprep.subr.mxu0 %v1772
  %2197 = vmatpush2.msra.mxu0 %v1771
  %2198 = vmatprep.subr.mxu0 %v1765
  %2199 = vmatpush2.msra.mxu0 %v1764
  %2200 = vmatprep.subr.mxu0 %v1758
  %2201 = vmatpush2.msra.mxu0 %v1757
  %2202 = vmatprep.subr.mxu0 %v1751
  %2203 = vmatpush2.msra.mxu0 %v1750
  %2204 = vmatprep.subr.mxu0 %v1744
  %2205 = vmatpush2.msra.mxu0 %v1743
  %2206 = vmatprep.subr.mxu0 %v1737
  %2207 = vmatpush2.msra.mxu0 %v1736
  %2208 = vmatprep.subr.mxu0 %v1730
  %2209 = vmatpush2.msra.mxu0 %v1729
  %2210 = vmatprep.subr.mxu0 %v1723
  %2211 = vmatpush2.msra.mxu0 %v1722
  %2212 = vmatprep.subr.mxu0 %v1716
  %2213 = vmatpush2.msra.mxu0 %v1715
  %2214 = vmatprep.subr.mxu0 %v1709
  %2215 = vmatpush2.msra.mxu0 %v1708
  %2216 = vmatprep.subr.mxu0 %v1702
  %2217 = vmatpush2.msra.mxu0 %v1701
  %2218 = vmatprep.subr.mxu0 %v1695
  %2219 = vmatpush2.msra.mxu0 %v1694
  %2220 = vmatprep.mubr.f32.mxu0 %v1354
  %2221 = vmatmul.mubr.f32.gmra.mxu0 %v1353
  %v2222 = vpop.f32.mrf.mxu0
  %v2223 = vadd.f32 %v2152, %v2222
  %v2224 = vpop.f32.mrf.mxu0
  %v2225 = vadd.f32 %v2154, %v2224
  %2226 = vdwg.mxu0
  %2227 = vmatprep.subr.mxu0 %v1912
  %2228 = vmatpush1.msra.mxu0 %v1911
  %2229 = vmatprep.subr.mxu0 %v1905
  %2230 = vmatpush1.msra.mxu0 %v1904
  %2231 = vmatprep.subr.mxu0 %v1898
  %2232 = vmatpush1.msra.mxu0 %v1897
  %2233 = vmatprep.subr.mxu0 %v1891
  %2234 = vmatpush1.msra.mxu0 %v1890
  %2235 = vmatprep.subr.mxu0 %v1884
  %2236 = vmatpush1.msra.mxu0 %v1883
  %2237 = vmatprep.subr.mxu0 %v1877
  %2238 = vmatpush1.msra.mxu0 %v1876
  %2239 = vmatprep.subr.mxu0 %v1870
  %2240 = vmatpush1.msra.mxu0 %v1869
  %2241 = vmatprep.subr.mxu0 %v1863
  %2242 = vmatpush1.msra.mxu0 %v1862
  %2243 = vmatprep.subr.mxu0 %v1856
  %2244 = vmatpush1.msra.mxu0 %v1855
  %2245 = vmatprep.subr.mxu0 %v1849
  %2246 = vmatpush1.msra.mxu0 %v1848
  %2247 = vmatprep.subr.mxu0 %v1842
  %2248 = vmatpush1.msra.mxu0 %v1841
  %2249 = vmatprep.subr.mxu0 %v1835
  %2250 = vmatpush1.msra.mxu0 %v1834
  %2251 = vmatprep.subr.mxu0 %v1828
  %2252 = vmatpush1.msra.mxu0 %v1827
  %2253 = vmatprep.subr.mxu0 %v1821
  %2254 = vmatpush1.msra.mxu0 %v1820
  %2255 = vmatprep.subr.mxu0 %v1814
  %2256 = vmatpush1.msra.mxu0 %v1813
  %2257 = vmatprep.subr.mxu0 %v1807
  %2258 = vmatpush1.msra.mxu0 %v1806
  %2259 = vmatprep.subr.mxu0 %v2024
  %2260 = vmatpush2.msra.mxu0 %v2023
  %2261 = vmatprep.subr.mxu0 %v2017
  %2262 = vmatpush2.msra.mxu0 %v2016
  %2263 = vmatprep.subr.mxu0 %v2010
  %2264 = vmatpush2.msra.mxu0 %v2009
  %2265 = vmatprep.subr.mxu0 %v2003
  %2266 = vmatpush2.msra.mxu0 %v2002
  %2267 = vmatprep.subr.mxu0 %v1996
  %2268 = vmatpush2.msra.mxu0 %v1995
  %2269 = vmatprep.subr.mxu0 %v1989
  %2270 = vmatpush2.msra.mxu0 %v1988
  %2271 = vmatprep.subr.mxu0 %v1982
  %2272 = vmatpush2.msra.mxu0 %v1981
  %2273 = vmatprep.subr.mxu0 %v1975
  %2274 = vmatpush2.msra.mxu0 %v1974
  %2275 = vmatprep.subr.mxu0 %v1968
  %2276 = vmatpush2.msra.mxu0 %v1967
  %2277 = vmatprep.subr.mxu0 %v1961
  %2278 = vmatpush2.msra.mxu0 %v1960
  %2279 = vmatprep.subr.mxu0 %v1954
  %2280 = vmatpush2.msra.mxu0 %v1953
  %2281 = vmatprep.subr.mxu0 %v1947
  %2282 = vmatpush2.msra.mxu0 %v1946
  %2283 = vmatprep.subr.mxu0 %v1940
  %2284 = vmatpush2.msra.mxu0 %v1939
  %2285 = vmatprep.subr.mxu0 %v1933
  %2286 = vmatpush2.msra.mxu0 %v1932
  %2287 = vmatprep.subr.mxu0 %v1926
  %2288 = vmatpush2.msra.mxu0 %v1925
  %2289 = vmatprep.subr.mxu0 %v1919
  %2290 = vmatpush2.msra.mxu0 %v1918
  %2291 = vmatprep.mubr.f32.mxu0 %v1356
  %2292 = vmatmul.mubr.f32.gmra.mxu0 %v1355
  %v2293 = vpop.f32.mrf.mxu0
  %v2294 = vadd.f32 %v2223, %v2293
  %v2295 = vpop.f32.mrf.mxu0
  %v2296 = vadd.f32 %v2225, %v2295
  %2297 = vdwg.mxu0
  %2298 = vmatprep.subr.mxu0 0.0
  %2299 = vmatpush1.msra.mxu0 0.0
  %2300 = vmatprep.subr.mxu0 0.0
  %2301 = vmatpush1.msra.mxu0 0.0
  %2302 = vmatprep.subr.mxu0 0.0
  %2303 = vmatpush1.msra.mxu0 0.0
  %2304 = vmatprep.subr.mxu0 0.0
  %2305 = vmatpush1.msra.mxu0 0.0
  %2306 = vmatprep.subr.mxu0 0.0
  %2307 = vmatpush1.msra.mxu0 0.0
  %2308 = vmatprep.subr.mxu0 0.0
  %2309 = vmatpush1.msra.mxu0 0.0
  %2310 = vmatprep.subr.mxu0 0.0
  %2311 = vmatpush1.msra.mxu0 0.0
  %2312 = vmatprep.subr.mxu0 0.0
  %2313 = vmatpush1.msra.mxu0 0.0
  %2314 = vmatprep.subr.mxu0 0.0
  %2315 = vmatpush1.msra.mxu0 0.0
  %2316 = vmatprep.subr.mxu0 0.0
  %2317 = vmatpush1.msra.mxu0 0.0
  %2318 = vmatprep.subr.mxu0 0.0
  %2319 = vmatpush1.msra.mxu0 0.0
  %2320 = vmatprep.subr.mxu0 0.0
  %2321 = vmatpush1.msra.mxu0 0.0
  %2322 = vmatprep.subr.mxu0 0.0
  %2323 = vmatpush1.msra.mxu0 0.0
  %2324 = vmatprep.subr.mxu0 0.0
  %2325 = vmatpush1.msra.mxu0 0.0
  %2326 = vmatprep.subr.mxu0 %v2038
  %2327 = vmatpush1.msra.mxu0 %v2037
  %2328 = vmatprep.subr.mxu0 %v2031
  %2329 = vmatpush1.msra.mxu0 %v2030
  %2330 = vmatprep.subr.mxu0 0.0
  %2331 = vmatpush2.msra.mxu0 0.0
  %2332 = vmatprep.subr.mxu0 0.0
  %2333 = vmatpush2.msra.mxu0 0.0
  %2334 = vmatprep.subr.mxu0 0.0
  %2335 = vmatpush2.msra.mxu0 0.0
  %2336 = vmatprep.subr.mxu0 0.0
  %2337 = vmatpush2.msra.mxu0 0.0
  %2338 = vmatprep.subr.mxu0 0.0
  %2339 = vmatpush2.msra.mxu0 0.0
  %2340 = vmatprep.subr.mxu0 0.0
  %2341 = vmatpush2.msra.mxu0 0.0
  %2342 = vmatprep.subr.mxu0 0.0
  %2343 = vmatpush2.msra.mxu0 0.0
  %2344 = vmatprep.subr.mxu0 0.0
  %2345 = vmatpush2.msra.mxu0 0.0
  %2346 = vmatprep.subr.mxu0 0.0
  %2347 = vmatpush2.msra.mxu0 0.0
  %2348 = vmatprep.subr.mxu0 0.0
  %2349 = vmatpush2.msra.mxu0 0.0
  %2350 = vmatprep.subr.mxu0 0.0
  %2351 = vmatpush2.msra.mxu0 0.0
  %2352 = vmatprep.subr.mxu0 0.0
  %2353 = vmatpush2.msra.mxu0 0.0
  %2354 = vmatprep.subr.mxu0 0.0
  %2355 = vmatpush2.msra.mxu0 0.0
  %2356 = vmatprep.subr.mxu0 0.0
  %2357 = vmatpush2.msra.mxu0 0.0
  %2358 = vmatprep.subr.mxu0 0.0
  %2359 = vmatpush2.msra.mxu0 0.0
  %2360 = vmatprep.subr.mxu0 0.0
  %2361 = vmatpush2.msra.mxu0 0.0
  %2362 = vmatprep.mubr.f32.mxu0 0.0
  %2363 = vmatmul.mubr.f32.gmra.mxu0 %v2083
  %v2364 = vpop.f32.mrf.mxu0
  %v2365 = vadd.f32 %v2294, %v2364
  %v2366 = vpop.f32.mrf.mxu0
  %v2367 = vadd.f32 %v2296, %v2366
  %2368 = vdwg.mxu0
  %2369 = vmatprep.subr.mxu0 %v1466
  %2370 = vmatpush1.msra.mxu0 %v1465
  %2371 = vmatprep.subr.mxu0 %v1459
  %2372 = vmatpush1.msra.mxu0 %v1458
  %2373 = vmatprep.subr.mxu0 %v1452
  %2374 = vmatpush1.msra.mxu0 %v1451
  %2375 = vmatprep.subr.mxu0 %v1445
  %2376 = vmatpush1.msra.mxu0 %v1444
  %2377 = vmatprep.subr.mxu0 %v1438
  %2378 = vmatpush1.msra.mxu0 %v1437
  %2379 = vmatprep.subr.mxu0 %v1431
  %2380 = vmatpush1.msra.mxu0 %v1430
  %2381 = vmatprep.subr.mxu0 %v1424
  %2382 = vmatpush1.msra.mxu0 %v1423
  %2383 = vmatprep.subr.mxu0 %v1417
  %2384 = vmatpush1.msra.mxu0 %v1416
  %2385 = vmatprep.subr.mxu0 %v1410
  %2386 = vmatpush1.msra.mxu0 %v1409
  %2387 = vmatprep.subr.mxu0 %v1403
  %2388 = vmatpush1.msra.mxu0 %v1402
  %2389 = vmatprep.subr.mxu0 %v1396
  %2390 = vmatpush1.msra.mxu0 %v1395
  %2391 = vmatprep.subr.mxu0 %v1389
  %2392 = vmatpush1.msra.mxu0 %v1388
  %2393 = vmatprep.subr.mxu0 %v1382
  %2394 = vmatpush1.msra.mxu0 %v1381
  %2395 = vmatprep.subr.mxu0 %v1375
  %2396 = vmatpush1.msra.mxu0 %v1374
  %2397 = vmatprep.subr.mxu0 %v1368
  %2398 = vmatpush1.msra.mxu0 %v1367
  %2399 = vmatprep.subr.mxu0 %v1361
  %2400 = vmatpush1.msra.mxu0 %v1360
  %2401 = vmatprep.subr.mxu0 %v1578
  %2402 = vmatpush2.msra.mxu0 %v1577
  %2403 = vmatprep.subr.mxu0 %v1571
  %2404 = vmatpush2.msra.mxu0 %v1570
  %2405 = vmatprep.subr.mxu0 %v1564
  %2406 = vmatpush2.msra.mxu0 %v1563
  %2407 = vmatprep.subr.mxu0 %v1557
  %2408 = vmatpush2.msra.mxu0 %v1556
  %2409 = vmatprep.subr.mxu0 %v1550
  %2410 = vmatpush2.msra.mxu0 %v1549
  %2411 = vmatprep.subr.mxu0 %v1543
  %2412 = vmatpush2.msra.mxu0 %v1542
  %2413 = vmatprep.subr.mxu0 %v1536
  %2414 = vmatpush2.msra.mxu0 %v1535
  %2415 = vmatprep.subr.mxu0 %v1529
  %2416 = vmatpush2.msra.mxu0 %v1528
  %2417 = vmatprep.subr.mxu0 %v1522
  %2418 = vmatpush2.msra.mxu0 %v1521
  %2419 = vmatprep.subr.mxu0 %v1515
  %2420 = vmatpush2.msra.mxu0 %v1514
  %2421 = vmatprep.subr.mxu0 %v1508
  %2422 = vmatpush2.msra.mxu0 %v1507
  %2423 = vmatprep.subr.mxu0 %v1501
  %2424 = vmatpush2.msra.mxu0 %v1500
  %2425 = vmatprep.subr.mxu0 %v1494
  %2426 = vmatpush2.msra.mxu0 %v1493
  %2427 = vmatprep.subr.mxu0 %v1487
  %2428 = vmatpush2.msra.mxu0 %v1486
  %2429 = vmatprep.subr.mxu0 %v1480
  %2430 = vmatpush2.msra.mxu0 %v1479
  %2431 = vmatprep.subr.mxu0 %v1473
  %2432 = vmatpush2.msra.mxu0 %v1472
  %2433 = vmatprep.mubr.f32.mxu0 %v1352
  %2434 = vmatmul.mubr.f32.gmra.mxu0 %v1351
  %v2435 = vpop.f32.mrf.mxu0
  %v2436 = vadd.f32 %v2057, %v2435
  %v2437 = vpop.f32.mrf.mxu0
  %v2438 = vadd.f32 %v2061, %v2437
  %2439 = vdwg.mxu0
  %2440 = vmatprep.subr.mxu0 %v1690
  %2441 = vmatpush1.msra.mxu0 %v1689
  %2442 = vmatprep.subr.mxu0 %v1683
  %2443 = vmatpush1.msra.mxu0 %v1682
  %2444 = vmatprep.subr.mxu0 %v1676
  %2445 = vmatpush1.msra.mxu0 %v1675
  %2446 = vmatprep.subr.mxu0 %v1669
  %2447 = vmatpush1.msra.mxu0 %v1668
  %2448 = vmatprep.subr.mxu0 %v1662
  %2449 = vmatpush1.msra.mxu0 %v1661
  %2450 = vmatprep.subr.mxu0 %v1655
  %2451 = vmatpush1.msra.mxu0 %v1654
  %2452 = vmatprep.subr.mxu0 %v1648
  %2453 = vmatpush1.msra.mxu0 %v1647
  %2454 = vmatprep.subr.mxu0 %v1641
  %2455 = vmatpush1.msra.mxu0 %v1640
  %2456 = vmatprep.subr.mxu0 %v1634
  %2457 = vmatpush1.msra.mxu0 %v1633
  %2458 = vmatprep.subr.mxu0 %v1627
  %2459 = vmatpush1.msra.mxu0 %v1626
  %2460 = vmatprep.subr.mxu0 %v1620
  %2461 = vmatpush1.msra.mxu0 %v1619
  %2462 = vmatprep.subr.mxu0 %v1613
  %2463 = vmatpush1.msra.mxu0 %v1612
  %2464 = vmatprep.subr.mxu0 %v1606
  %2465 = vmatpush1.msra.mxu0 %v1605
  %2466 = vmatprep.subr.mxu0 %v1599
  %2467 = vmatpush1.msra.mxu0 %v1598
  %2468 = vmatprep.subr.mxu0 %v1592
  %2469 = vmatpush1.msra.mxu0 %v1591
  %2470 = vmatprep.subr.mxu0 %v1585
  %2471 = vmatpush1.msra.mxu0 %v1584
  %2472 = vmatprep.subr.mxu0 %v1802
  %2473 = vmatpush2.msra.mxu0 %v1801
  %2474 = vmatprep.subr.mxu0 %v1795
  %2475 = vmatpush2.msra.mxu0 %v1794
  %2476 = vmatprep.subr.mxu0 %v1788
  %2477 = vmatpush2.msra.mxu0 %v1787
  %2478 = vmatprep.subr.mxu0 %v1781
  %2479 = vmatpush2.msra.mxu0 %v1780
  %2480 = vmatprep.subr.mxu0 %v1774
  %2481 = vmatpush2.msra.mxu0 %v1773
  %2482 = vmatprep.subr.mxu0 %v1767
  %2483 = vmatpush2.msra.mxu0 %v1766
  %2484 = vmatprep.subr.mxu0 %v1760
  %2485 = vmatpush2.msra.mxu0 %v1759
  %2486 = vmatprep.subr.mxu0 %v1753
  %2487 = vmatpush2.msra.mxu0 %v1752
  %2488 = vmatprep.subr.mxu0 %v1746
  %2489 = vmatpush2.msra.mxu0 %v1745
  %2490 = vmatprep.subr.mxu0 %v1739
  %2491 = vmatpush2.msra.mxu0 %v1738
  %2492 = vmatprep.subr.mxu0 %v1732
  %2493 = vmatpush2.msra.mxu0 %v1731
  %2494 = vmatprep.subr.mxu0 %v1725
  %2495 = vmatpush2.msra.mxu0 %v1724
  %2496 = vmatprep.subr.mxu0 %v1718
  %2497 = vmatpush2.msra.mxu0 %v1717
  %2498 = vmatprep.subr.mxu0 %v1711
  %2499 = vmatpush2.msra.mxu0 %v1710
  %2500 = vmatprep.subr.mxu0 %v1704
  %2501 = vmatpush2.msra.mxu0 %v1703
  %2502 = vmatprep.subr.mxu0 %v1697
  %2503 = vmatpush2.msra.mxu0 %v1696
  %2504 = vmatprep.mubr.f32.mxu0 %v1354
  %2505 = vmatmul.mubr.f32.gmra.mxu0 %v1353
  %v2506 = vpop.f32.mrf.mxu0
  %v2507 = vadd.f32 %v2436, %v2506
  %v2508 = vpop.f32.mrf.mxu0
  %v2509 = vadd.f32 %v2438, %v2508
  %2510 = vdwg.mxu0
  %2511 = vmatprep.subr.mxu0 %v1914
  %2512 = vmatpush1.msra.mxu0 %v1913
  %2513 = vmatprep.subr.mxu0 %v1907
  %2514 = vmatpush1.msra.mxu0 %v1906
  %2515 = vmatprep.subr.mxu0 %v1900
  %2516 = vmatpush1.msra.mxu0 %v1899
  %2517 = vmatprep.subr.mxu0 %v1893
  %2518 = vmatpush1.msra.mxu0 %v1892
  %2519 = vmatprep.subr.mxu0 %v1886
  %2520 = vmatpush1.msra.mxu0 %v1885
  %2521 = vmatprep.subr.mxu0 %v1879
  %2522 = vmatpush1.msra.mxu0 %v1878
  %2523 = vmatprep.subr.mxu0 %v1872
  %2524 = vmatpush1.msra.mxu0 %v1871
  %2525 = vmatprep.subr.mxu0 %v1865
  %2526 = vmatpush1.msra.mxu0 %v1864
  %2527 = vmatprep.subr.mxu0 %v1858
  %2528 = vmatpush1.msra.mxu0 %v1857
  %2529 = vmatprep.subr.mxu0 %v1851
  %2530 = vmatpush1.msra.mxu0 %v1850
  %2531 = vmatprep.subr.mxu0 %v1844
  %2532 = vmatpush1.msra.mxu0 %v1843
  %2533 = vmatprep.subr.mxu0 %v1837
  %2534 = vmatpush1.msra.mxu0 %v1836
  %2535 = vmatprep.subr.mxu0 %v1830
  %2536 = vmatpush1.msra.mxu0 %v1829
  %2537 = vmatprep.subr.mxu0 %v1823
  %2538 = vmatpush1.msra.mxu0 %v1822
  %2539 = vmatprep.subr.mxu0 %v1816
  %2540 = vmatpush1.msra.mxu0 %v1815
  %2541 = vmatprep.subr.mxu0 %v1809
  %2542 = vmatpush1.msra.mxu0 %v1808
  %2543 = vmatprep.subr.mxu0 %v2026
  %2544 = vmatpush2.msra.mxu0 %v2025
  %2545 = vmatprep.subr.mxu0 %v2019
  %2546 = vmatpush2.msra.mxu0 %v2018
  %2547 = vmatprep.subr.mxu0 %v2012
  %2548 = vmatpush2.msra.mxu0 %v2011
  %2549 = vmatprep.subr.mxu0 %v2005
  %2550 = vmatpush2.msra.mxu0 %v2004
  %2551 = vmatprep.subr.mxu0 %v1998
  %2552 = vmatpush2.msra.mxu0 %v1997
  %2553 = vmatprep.subr.mxu0 %v1991
  %2554 = vmatpush2.msra.mxu0 %v1990
  %2555 = vmatprep.subr.mxu0 %v1984
  %2556 = vmatpush2.msra.mxu0 %v1983
  %2557 = vmatprep.subr.mxu0 %v1977
  %2558 = vmatpush2.msra.mxu0 %v1976
  %2559 = vmatprep.subr.mxu0 %v1970
  %2560 = vmatpush2.msra.mxu0 %v1969
  %2561 = vmatprep.subr.mxu0 %v1963
  %2562 = vmatpush2.msra.mxu0 %v1962
  %2563 = vmatprep.subr.mxu0 %v1956
  %2564 = vmatpush2.msra.mxu0 %v1955
  %2565 = vmatprep.subr.mxu0 %v1949
  %2566 = vmatpush2.msra.mxu0 %v1948
  %2567 = vmatprep.subr.mxu0 %v1942
  %2568 = vmatpush2.msra.mxu0 %v1941
  %2569 = vmatprep.subr.mxu0 %v1935
  %2570 = vmatpush2.msra.mxu0 %v1934
  %2571 = vmatprep.subr.mxu0 %v1928
  %2572 = vmatpush2.msra.mxu0 %v1927
  %2573 = vmatprep.subr.mxu0 %v1921
  %2574 = vmatpush2.msra.mxu0 %v1920
  %2575 = vmatprep.mubr.f32.mxu0 %v1356
  %2576 = vmatmul.mubr.f32.gmra.mxu0 %v1355
  %v2577 = vpop.f32.mrf.mxu0
  %v2578 = vadd.f32 %v2507, %v2577
  %v2579 = vpop.f32.mrf.mxu0
  %v2580 = vadd.f32 %v2509, %v2579
  %2581 = vdwg.mxu0
  %2582 = vmatprep.subr.mxu0 0.0
  %2583 = vmatpush1.msra.mxu0 0.0
  %2584 = vmatprep.subr.mxu0 0.0
  %2585 = vmatpush1.msra.mxu0 0.0
  %2586 = vmatprep.subr.mxu0 0.0
  %2587 = vmatpush1.msra.mxu0 0.0
  %2588 = vmatprep.subr.mxu0 0.0
  %2589 = vmatpush1.msra.mxu0 0.0
  %2590 = vmatprep.subr.mxu0 0.0
  %2591 = vmatpush1.msra.mxu0 0.0
  %2592 = vmatprep.subr.mxu0 0.0
  %2593 = vmatpush1.msra.mxu0 0.0
  %2594 = vmatprep.subr.mxu0 0.0
  %2595 = vmatpush1.msra.mxu0 0.0
  %2596 = vmatprep.subr.mxu0 0.0
  %2597 = vmatpush1.msra.mxu0 0.0
  %2598 = vmatprep.subr.mxu0 0.0
  %2599 = vmatpush1.msra.mxu0 0.0
  %2600 = vmatprep.subr.mxu0 0.0
  %2601 = vmatpush1.msra.mxu0 0.0
  %2602 = vmatprep.subr.mxu0 0.0
  %2603 = vmatpush1.msra.mxu0 0.0
  %2604 = vmatprep.subr.mxu0 0.0
  %2605 = vmatpush1.msra.mxu0 0.0
  %2606 = vmatprep.subr.mxu0 0.0
  %2607 = vmatpush1.msra.mxu0 0.0
  %2608 = vmatprep.subr.mxu0 0.0
  %2609 = vmatpush1.msra.mxu0 0.0
  %2610 = vmatprep.subr.mxu0 %v2040
  %2611 = vmatpush1.msra.mxu0 %v2039
  %2612 = vmatprep.subr.mxu0 %v2033
  %2613 = vmatpush1.msra.mxu0 %v2032
  %2614 = vmatprep.subr.mxu0 0.0
  %2615 = vmatpush2.msra.mxu0 0.0
  %2616 = vmatprep.subr.mxu0 0.0
  %2617 = vmatpush2.msra.mxu0 0.0
  %2618 = vmatprep.subr.mxu0 0.0
  %2619 = vmatpush2.msra.mxu0 0.0
  %2620 = vmatprep.subr.mxu0 0.0
  %2621 = vmatpush2.msra.mxu0 0.0
  %2622 = vmatprep.subr.mxu0 0.0
  %2623 = vmatpush2.msra.mxu0 0.0
  %2624 = vmatprep.subr.mxu0 0.0
  %2625 = vmatpush2.msra.mxu0 0.0
  %2626 = vmatprep.subr.mxu0 0.0
  %2627 = vmatpush2.msra.mxu0 0.0
  %2628 = vmatprep.subr.mxu0 0.0
  %2629 = vmatpush2.msra.mxu0 0.0
  %2630 = vmatprep.subr.mxu0 0.0
  %2631 = vmatpush2.msra.mxu0 0.0
  %2632 = vmatprep.subr.mxu0 0.0
  %2633 = vmatpush2.msra.mxu0 0.0
  %2634 = vmatprep.subr.mxu0 0.0
  %2635 = vmatpush2.msra.mxu0 0.0
  %2636 = vmatprep.subr.mxu0 0.0
  %2637 = vmatpush2.msra.mxu0 0.0
  %2638 = vmatprep.subr.mxu0 0.0
  %2639 = vmatpush2.msra.mxu0 0.0
  %2640 = vmatprep.subr.mxu0 0.0
  %2641 = vmatpush2.msra.mxu0 0.0
  %2642 = vmatprep.subr.mxu0 0.0
  %2643 = vmatpush2.msra.mxu0 0.0
  %2644 = vmatprep.subr.mxu0 0.0
  %2645 = vmatpush2.msra.mxu0 0.0
  %2646 = vmatprep.mubr.f32.mxu0 0.0
  %2647 = vmatmul.mubr.f32.gmra.mxu0 %v2083
  %v2648 = vpop.f32.mrf.mxu0
  %v2649 = vadd.f32 %v2578, %v2648
  %v2650 = vpop.f32.mrf.mxu0
  %v2651 = vadd.f32 %v2580, %v2650
  %2652 = vdwg.mxu0
  %2653 = vmatprep.subr.mxu0 %v1468
  %2654 = vmatpush1.msra.mxu0 %v1467
  %2655 = vmatprep.subr.mxu0 %v1461
  %2656 = vmatpush1.msra.mxu0 %v1460
  %2657 = vmatprep.subr.mxu0 %v1454
  %2658 = vmatpush1.msra.mxu0 %v1453
  %2659 = vmatprep.subr.mxu0 %v1447
  %2660 = vmatpush1.msra.mxu0 %v1446
  %2661 = vmatprep.subr.mxu0 %v1440
  %2662 = vmatpush1.msra.mxu0 %v1439
  %2663 = vmatprep.subr.mxu0 %v1433
  %2664 = vmatpush1.msra.mxu0 %v1432
  %2665 = vmatprep.subr.mxu0 %v1426
  %2666 = vmatpush1.msra.mxu0 %v1425
  %2667 = vmatprep.subr.mxu0 %v1419
  %2668 = vmatpush1.msra.mxu0 %v1418
  %2669 = vmatprep.subr.mxu0 %v1412
  %2670 = vmatpush1.msra.mxu0 %v1411
  %2671 = vmatprep.subr.mxu0 %v1405
  %2672 = vmatpush1.msra.mxu0 %v1404
  %2673 = vmatprep.subr.mxu0 %v1398
  %2674 = vmatpush1.msra.mxu0 %v1397
  %2675 = vmatprep.subr.mxu0 %v1391
  %2676 = vmatpush1.msra.mxu0 %v1390
  %2677 = vmatprep.subr.mxu0 %v1384
  %2678 = vmatpush1.msra.mxu0 %v1383
  %2679 = vmatprep.subr.mxu0 %v1377
  %2680 = vmatpush1.msra.mxu0 %v1376
  %2681 = vmatprep.subr.mxu0 %v1370
  %2682 = vmatpush1.msra.mxu0 %v1369
  %2683 = vmatprep.subr.mxu0 %v1363
  %2684 = vmatpush1.msra.mxu0 %v1362
  %2685 = vmatprep.subr.mxu0 %v1580
  %2686 = vmatpush2.msra.mxu0 %v1579
  %2687 = vmatprep.subr.mxu0 %v1573
  %2688 = vmatpush2.msra.mxu0 %v1572
  %2689 = vmatprep.subr.mxu0 %v1566
  %2690 = vmatpush2.msra.mxu0 %v1565
  %2691 = vmatprep.subr.mxu0 %v1559
  %2692 = vmatpush2.msra.mxu0 %v1558
  %2693 = vmatprep.subr.mxu0 %v1552
  %2694 = vmatpush2.msra.mxu0 %v1551
  %2695 = vmatprep.subr.mxu0 %v1545
  %2696 = vmatpush2.msra.mxu0 %v1544
  %2697 = vmatprep.subr.mxu0 %v1538
  %2698 = vmatpush2.msra.mxu0 %v1537
  %2699 = vmatprep.subr.mxu0 %v1531
  %2700 = vmatpush2.msra.mxu0 %v1530
  %2701 = vmatprep.subr.mxu0 %v1524
  %2702 = vmatpush2.msra.mxu0 %v1523
  %2703 = vmatprep.subr.mxu0 %v1517
  %2704 = vmatpush2.msra.mxu0 %v1516
  %2705 = vmatprep.subr.mxu0 %v1510
  %2706 = vmatpush2.msra.mxu0 %v1509
  %2707 = vmatprep.subr.mxu0 %v1503
  %2708 = vmatpush2.msra.mxu0 %v1502
  %2709 = vmatprep.subr.mxu0 %v1496
  %2710 = vmatpush2.msra.mxu0 %v1495
  %2711 = vmatprep.subr.mxu0 %v1489
  %2712 = vmatpush2.msra.mxu0 %v1488
  %2713 = vmatprep.subr.mxu0 %v1482
  %2714 = vmatpush2.msra.mxu0 %v1481
  %2715 = vmatprep.subr.mxu0 %v1475
  %2716 = vmatpush2.msra.mxu0 %v1474
  %2717 = vmatprep.mubr.f32.mxu0 %v1352
  %2718 = vmatmul.mubr.f32.gmra.mxu0 %v1351
  %v2719 = vpop.f32.mrf.mxu0
  %v2720 = vadd.f32 %v2065, %v2719
  %v2721 = vpop.f32.mrf.mxu0
  %v2722 = vadd.f32 %v2069, %v2721
  %2723 = vdwg.mxu0
  %2724 = vmatprep.subr.mxu0 %v1692
  %2725 = vmatpush1.msra.mxu0 %v1691
  %2726 = vmatprep.subr.mxu0 %v1685
  %2727 = vmatpush1.msra.mxu0 %v1684
  %2728 = vmatprep.subr.mxu0 %v1678
  %2729 = vmatpush1.msra.mxu0 %v1677
  %2730 = vmatprep.subr.mxu0 %v1671
  %2731 = vmatpush1.msra.mxu0 %v1670
  %2732 = vmatprep.subr.mxu0 %v1664
  %2733 = vmatpush1.msra.mxu0 %v1663
  %2734 = vmatprep.subr.mxu0 %v1657
  %2735 = vmatpush1.msra.mxu0 %v1656
  %2736 = vmatprep.subr.mxu0 %v1650
  %2737 = vmatpush1.msra.mxu0 %v1649
  %2738 = vmatprep.subr.mxu0 %v1643
  %2739 = vmatpush1.msra.mxu0 %v1642
  %2740 = vmatprep.subr.mxu0 %v1636
  %2741 = vmatpush1.msra.mxu0 %v1635
  %2742 = vmatprep.subr.mxu0 %v1629
  %2743 = vmatpush1.msra.mxu0 %v1628
  %2744 = vmatprep.subr.mxu0 %v1622
  %2745 = vmatpush1.msra.mxu0 %v1621
  %2746 = vmatprep.subr.mxu0 %v1615
  %2747 = vmatpush1.msra.mxu0 %v1614
  %2748 = vmatprep.subr.mxu0 %v1608
  %2749 = vmatpush1.msra.mxu0 %v1607
  %2750 = vmatprep.subr.mxu0 %v1601
  %2751 = vmatpush1.msra.mxu0 %v1600
  %2752 = vmatprep.subr.mxu0 %v1594
  %2753 = vmatpush1.msra.mxu0 %v1593
  %2754 = vmatprep.subr.mxu0 %v1587
  %2755 = vmatpush1.msra.mxu0 %v1586
  %2756 = vmatprep.subr.mxu0 %v1804
  %2757 = vmatpush2.msra.mxu0 %v1803
  %2758 = vmatprep.subr.mxu0 %v1797
  %2759 = vmatpush2.msra.mxu0 %v1796
  %2760 = vmatprep.subr.mxu0 %v1790
  %2761 = vmatpush2.msra.mxu0 %v1789
  %2762 = vmatprep.subr.mxu0 %v1783
  %2763 = vmatpush2.msra.mxu0 %v1782
  %2764 = vmatprep.subr.mxu0 %v1776
  %2765 = vmatpush2.msra.mxu0 %v1775
  %2766 = vmatprep.subr.mxu0 %v1769
  %2767 = vmatpush2.msra.mxu0 %v1768
  %2768 = vmatprep.subr.mxu0 %v1762
  %2769 = vmatpush2.msra.mxu0 %v1761
  %2770 = vmatprep.subr.mxu0 %v1755
  %2771 = vmatpush2.msra.mxu0 %v1754
  %2772 = vmatprep.subr.mxu0 %v1748
  %2773 = vmatpush2.msra.mxu0 %v1747
  %2774 = vmatprep.subr.mxu0 %v1741
  %2775 = vmatpush2.msra.mxu0 %v1740
  %2776 = vmatprep.subr.mxu0 %v1734
  %2777 = vmatpush2.msra.mxu0 %v1733
  %2778 = vmatprep.subr.mxu0 %v1727
  %2779 = vmatpush2.msra.mxu0 %v1726
  %2780 = vmatprep.subr.mxu0 %v1720
  %2781 = vmatpush2.msra.mxu0 %v1719
  %2782 = vmatprep.subr.mxu0 %v1713
  %2783 = vmatpush2.msra.mxu0 %v1712
  %2784 = vmatprep.subr.mxu0 %v1706
  %2785 = vmatpush2.msra.mxu0 %v1705
  %2786 = vmatprep.subr.mxu0 %v1699
  %2787 = vmatpush2.msra.mxu0 %v1698
  %2788 = vmatprep.mubr.f32.mxu0 %v1354
  %2789 = vmatmul.mubr.f32.gmra.mxu0 %v1353
  %v2790 = vpop.f32.mrf.mxu0
  %v2791 = vadd.f32 %v2720, %v2790
  %v2792 = vpop.f32.mrf.mxu0
  %v2793 = vadd.f32 %v2722, %v2792
  %2794 = vdwg.mxu0
  %2795 = vmatprep.subr.mxu0 %v1916
  %2796 = vmatpush1.msra.mxu0 %v1915
  %2797 = vmatprep.subr.mxu0 %v1909
  %2798 = vmatpush1.msra.mxu0 %v1908
  %2799 = vmatprep.subr.mxu0 %v1902
  %2800 = vmatpush1.msra.mxu0 %v1901
  %2801 = vmatprep.subr.mxu0 %v1895
  %2802 = vmatpush1.msra.mxu0 %v1894
  %2803 = vmatprep.subr.mxu0 %v1888
  %2804 = vmatpush1.msra.mxu0 %v1887
  %2805 = vmatprep.subr.mxu0 %v1881
  %2806 = vmatpush1.msra.mxu0 %v1880
  %2807 = vmatprep.subr.mxu0 %v1874
  %2808 = vmatpush1.msra.mxu0 %v1873
  %2809 = vmatprep.subr.mxu0 %v1867
  %2810 = vmatpush1.msra.mxu0 %v1866
  %2811 = vmatprep.subr.mxu0 %v1860
  %2812 = vmatpush1.msra.mxu0 %v1859
  %2813 = vmatprep.subr.mxu0 %v1853
  %2814 = vmatpush1.msra.mxu0 %v1852
  %2815 = vmatprep.subr.mxu0 %v1846
  %2816 = vmatpush1.msra.mxu0 %v1845
  %2817 = vmatprep.subr.mxu0 %v1839
  %2818 = vmatpush1.msra.mxu0 %v1838
  %2819 = vmatprep.subr.mxu0 %v1832
  %2820 = vmatpush1.msra.mxu0 %v1831
  %2821 = vmatprep.subr.mxu0 %v1825
  %2822 = vmatpush1.msra.mxu0 %v1824
  %2823 = vmatprep.subr.mxu0 %v1818
  %2824 = vmatpush1.msra.mxu0 %v1817
  %2825 = vmatprep.subr.mxu0 %v1811
  %2826 = vmatpush1.msra.mxu0 %v1810
  %2827 = vmatprep.subr.mxu0 %v2028
  %2828 = vmatpush2.msra.mxu0 %v2027
  %2829 = vmatprep.subr.mxu0 %v2021
  %2830 = vmatpush2.msra.mxu0 %v2020
  %2831 = vmatprep.subr.mxu0 %v2014
  %2832 = vmatpush2.msra.mxu0 %v2013
  %2833 = vmatprep.subr.mxu0 %v2007
  %2834 = vmatpush2.msra.mxu0 %v2006
  %2835 = vmatprep.subr.mxu0 %v2000
  %2836 = vmatpush2.msra.mxu0 %v1999
  %2837 = vmatprep.subr.mxu0 %v1993
  %2838 = vmatpush2.msra.mxu0 %v1992
  %2839 = vmatprep.subr.mxu0 %v1986
  %2840 = vmatpush2.msra.mxu0 %v1985
  %2841 = vmatprep.subr.mxu0 %v1979
  %2842 = vmatpush2.msra.mxu0 %v1978
  %2843 = vmatprep.subr.mxu0 %v1972
  %2844 = vmatpush2.msra.mxu0 %v1971
  %2845 = vmatprep.subr.mxu0 %v1965
  %2846 = vmatpush2.msra.mxu0 %v1964
  %2847 = vmatprep.subr.mxu0 %v1958
  %2848 = vmatpush2.msra.mxu0 %v1957
  %2849 = vmatprep.subr.mxu0 %v1951
  %2850 = vmatpush2.msra.mxu0 %v1950
  %2851 = vmatprep.subr.mxu0 %v1944
  %2852 = vmatpush2.msra.mxu0 %v1943
  %2853 = vmatprep.subr.mxu0 %v1937
  %2854 = vmatpush2.msra.mxu0 %v1936
  %2855 = vmatprep.subr.mxu0 %v1930
  %2856 = vmatpush2.msra.mxu0 %v1929
  %2857 = vmatprep.subr.mxu0 %v1923
  %2858 = vmatpush2.msra.mxu0 %v1922
  %2859 = vmatprep.mubr.f32.mxu0 %v1356
  %2860 = vmatmul.mubr.f32.gmra.mxu0 %v1355
  %v2861 = vpop.f32.mrf.mxu0
  %v2862 = vadd.f32 %v2791, %v2861
  %v2863 = vpop.f32.mrf.mxu0
  %v2864 = vadd.f32 %v2793, %v2863
  %2865 = vdwg.mxu0
  %2866 = vmatprep.subr.mxu0 0.0
  %2867 = vmatpush1.msra.mxu0 0.0
  %2868 = vmatprep.subr.mxu0 0.0
  %2869 = vmatpush1.msra.mxu0 0.0
  %2870 = vmatprep.subr.mxu0 0.0
  %2871 = vmatpush1.msra.mxu0 0.0
  %2872 = vmatprep.subr.mxu0 0.0
  %2873 = vmatpush1.msra.mxu0 0.0
  %2874 = vmatprep.subr.mxu0 0.0
  %2875 = vmatpush1.msra.mxu0 0.0
  %2876 = vmatprep.subr.mxu0 0.0
  %2877 = vmatpush1.msra.mxu0 0.0
  %2878 = vmatprep.subr.mxu0 0.0
  %2879 = vmatpush1.msra.mxu0 0.0
  %2880 = vmatprep.subr.mxu0 0.0
  %2881 = vmatpush1.msra.mxu0 0.0
  %2882 = vmatprep.subr.mxu0 0.0
  %2883 = vmatpush1.msra.mxu0 0.0
  %2884 = vmatprep.subr.mxu0 0.0
  %2885 = vmatpush1.msra.mxu0 0.0
  %2886 = vmatprep.subr.mxu0 0.0
  %2887 = vmatpush1.msra.mxu0 0.0
  %2888 = vmatprep.subr.mxu0 0.0
  %2889 = vmatpush1.msra.mxu0 0.0
  %2890 = vmatprep.subr.mxu0 0.0
  %2891 = vmatpush1.msra.mxu0 0.0
  %2892 = vmatprep.subr.mxu0 0.0
  %2893 = vmatpush1.msra.mxu0 0.0
  %2894 = vmatprep.subr.mxu0 %v2042
  %2895 = vmatpush1.msra.mxu0 %v2041
  %2896 = vmatprep.subr.mxu0 %v2035
  %2897 = vmatpush1.msra.mxu0 %v2034
  %2898 = vmatprep.subr.mxu0 0.0
  %2899 = vmatpush2.msra.mxu0 0.0
  %2900 = vmatprep.subr.mxu0 0.0
  %2901 = vmatpush2.msra.mxu0 0.0
  %2902 = vmatprep.subr.mxu0 0.0
  %2903 = vmatpush2.msra.mxu0 0.0
  %2904 = vmatprep.subr.mxu0 0.0
  %2905 = vmatpush2.msra.mxu0 0.0
  %2906 = vmatprep.subr.mxu0 0.0
  %2907 = vmatpush2.msra.mxu0 0.0
  %2908 = vmatprep.subr.mxu0 0.0
  %2909 = vmatpush2.msra.mxu0 0.0
  %2910 = vmatprep.subr.mxu0 0.0
  %2911 = vmatpush2.msra.mxu0 0.0
  %2912 = vmatprep.subr.mxu0 0.0
  %2913 = vmatpush2.msra.mxu0 0.0
  %2914 = vmatprep.subr.mxu0 0.0
  %2915 = vmatpush2.msra.mxu0 0.0
  %2916 = vmatprep.subr.mxu0 0.0
  %2917 = vmatpush2.msra.mxu0 0.0
  %2918 = vmatprep.subr.mxu0 0.0
  %2919 = vmatpush2.msra.mxu0 0.0
  %2920 = vmatprep.subr.mxu0 0.0
  %2921 = vmatpush2.msra.mxu0 0.0
  %2922 = vmatprep.subr.mxu0 0.0
  %2923 = vmatpush2.msra.mxu0 0.0
  %2924 = vmatprep.subr.mxu0 0.0
  %2925 = vmatpush2.msra.mxu0 0.0
  %2926 = vmatprep.subr.mxu0 0.0
  %2927 = vmatpush2.msra.mxu0 0.0
  %2928 = vmatprep.subr.mxu0 0.0
  %2929 = vmatpush2.msra.mxu0 0.0
  %2930 = vmatprep.mubr.f32.mxu0 0.0
  %2931 = vmatmul.mubr.f32.gmra.mxu0 %v2083
  %v2932 = vpop.f32.mrf.mxu0
  %v2933 = vadd.f32 %v2862, %v2932
  %v2934 = vpop.f32.mrf.mxu0
  %v2935 = vadd.f32 %v2864, %v2934
  %2936 = vdwg.mxu0
  %2937 = vmatprep.subr.mxu0 0.0
  %2938 = vmatpush1.msra.mxu0 %v1469
  %2939 = vmatprep.subr.mxu0 0.0
  %2940 = vmatpush1.msra.mxu0 %v1462
  %2941 = vmatprep.subr.mxu0 0.0
  %2942 = vmatpush1.msra.mxu0 %v1455
  %2943 = vmatprep.subr.mxu0 0.0
  %2944 = vmatpush1.msra.mxu0 %v1448
  %2945 = vmatprep.subr.mxu0 0.0
  %2946 = vmatpush1.msra.mxu0 %v1441
  %2947 = vmatprep.subr.mxu0 0.0
  %2948 = vmatpush1.msra.mxu0 %v1434
  %2949 = vmatprep.subr.mxu0 0.0
  %2950 = vmatpush1.msra.mxu0 %v1427
  %2951 = vmatprep.subr.mxu0 0.0
  %2952 = vmatpush1.msra.mxu0 %v1420
  %2953 = vmatprep.subr.mxu0 0.0
  %2954 = vmatpush1.msra.mxu0 %v1413
  %2955 = vmatprep.subr.mxu0 0.0
  %2956 = vmatpush1.msra.mxu0 %v1406
  %2957 = vmatprep.subr.mxu0 0.0
  %2958 = vmatpush1.msra.mxu0 %v1399
  %2959 = vmatprep.subr.mxu0 0.0
  %2960 = vmatpush1.msra.mxu0 %v1392
  %2961 = vmatprep.subr.mxu0 0.0
  %2962 = vmatpush1.msra.mxu0 %v1385
  %2963 = vmatprep.subr.mxu0 0.0
  %2964 = vmatpush1.msra.mxu0 %v1378
  %2965 = vmatprep.subr.mxu0 0.0
  %2966 = vmatpush1.msra.mxu0 %v1371
  %2967 = vmatprep.subr.mxu0 0.0
  %2968 = vmatpush1.msra.mxu0 %v1364
  %2969 = vmatprep.subr.mxu0 0.0
  %2970 = vmatpush2.msra.mxu0 %v1581
  %2971 = vmatprep.subr.mxu0 0.0
  %2972 = vmatpush2.msra.mxu0 %v1574
  %2973 = vmatprep.subr.mxu0 0.0
  %2974 = vmatpush2.msra.mxu0 %v1567
  %2975 = vmatprep.subr.mxu0 0.0
  %2976 = vmatpush2.msra.mxu0 %v1560
  %2977 = vmatprep.subr.mxu0 0.0
  %2978 = vmatpush2.msra.mxu0 %v1553
  %2979 = vmatprep.subr.mxu0 0.0
  %2980 = vmatpush2.msra.mxu0 %v1546
  %2981 = vmatprep.subr.mxu0 0.0
  %2982 = vmatpush2.msra.mxu0 %v1539
  %2983 = vmatprep.subr.mxu0 0.0
  %2984 = vmatpush2.msra.mxu0 %v1532
  %2985 = vmatprep.subr.mxu0 0.0
  %2986 = vmatpush2.msra.mxu0 %v1525
  %2987 = vmatprep.subr.mxu0 0.0
  %2988 = vmatpush2.msra.mxu0 %v1518
  %2989 = vmatprep.subr.mxu0 0.0
  %2990 = vmatpush2.msra.mxu0 %v1511
  %2991 = vmatprep.subr.mxu0 0.0
  %2992 = vmatpush2.msra.mxu0 %v1504
  %2993 = vmatprep.subr.mxu0 0.0
  %2994 = vmatpush2.msra.mxu0 %v1497
  %2995 = vmatprep.subr.mxu0 0.0
  %2996 = vmatpush2.msra.mxu0 %v1490
  %2997 = vmatprep.subr.mxu0 0.0
  %2998 = vmatpush2.msra.mxu0 %v1483
  %2999 = vmatprep.subr.mxu0 0.0
  %3000 = vmatpush2.msra.mxu0 %v1476
  %3001 = vmatprep.mubr.f32.mxu0 %v1352
  %3002 = vmatmul.mubr.f32.gmra.mxu0 %v1351
  %v3003 = vpop.f32.mrf.mxu0
  %v3004 = vadd.f32 %v2073, %v3003
  %v3005 = vpop.f32.mrf.mxu0
  %3006 = vdwg.mxu0
  %3007 = vmatprep.subr.mxu0 0.0
  %3008 = vmatpush1.msra.mxu0 %v1693
  %3009 = vmatprep.subr.mxu0 0.0
  %3010 = vmatpush1.msra.mxu0 %v1686
  %3011 = vmatprep.subr.mxu0 0.0
  %3012 = vmatpush1.msra.mxu0 %v1679
  %3013 = vmatprep.subr.mxu0 0.0
  %3014 = vmatpush1.msra.mxu0 %v1672
  %3015 = vmatprep.subr.mxu0 0.0
  %3016 = vmatpush1.msra.mxu0 %v1665
  %3017 = vmatprep.subr.mxu0 0.0
  %3018 = vmatpush1.msra.mxu0 %v1658
  %3019 = vmatprep.subr.mxu0 0.0
  %3020 = vmatpush1.msra.mxu0 %v1651
  %3021 = vmatprep.subr.mxu0 0.0
  %3022 = vmatpush1.msra.mxu0 %v1644
  %3023 = vmatprep.subr.mxu0 0.0
  %3024 = vmatpush1.msra.mxu0 %v1637
  %3025 = vmatprep.subr.mxu0 0.0
  %3026 = vmatpush1.msra.mxu0 %v1630
  %3027 = vmatprep.subr.mxu0 0.0
  %3028 = vmatpush1.msra.mxu0 %v1623
  %3029 = vmatprep.subr.mxu0 0.0
  %3030 = vmatpush1.msra.mxu0 %v1616
  %3031 = vmatprep.subr.mxu0 0.0
  %3032 = vmatpush1.msra.mxu0 %v1609
  %3033 = vmatprep.subr.mxu0 0.0
  %3034 = vmatpush1.msra.mxu0 %v1602
  %3035 = vmatprep.subr.mxu0 0.0
  %3036 = vmatpush1.msra.mxu0 %v1595
  %3037 = vmatprep.subr.mxu0 0.0
  %3038 = vmatpush1.msra.mxu0 %v1588
  %3039 = vmatprep.subr.mxu0 0.0
  %3040 = vmatpush2.msra.mxu0 %v1805
  %3041 = vmatprep.subr.mxu0 0.0
  %3042 = vmatpush2.msra.mxu0 %v1798
  %3043 = vmatprep.subr.mxu0 0.0
  %3044 = vmatpush2.msra.mxu0 %v1791
  %3045 = vmatprep.subr.mxu0 0.0
  %3046 = vmatpush2.msra.mxu0 %v1784
  %3047 = vmatprep.subr.mxu0 0.0
  %3048 = vmatpush2.msra.mxu0 %v1777
  %3049 = vmatprep.subr.mxu0 0.0
  %3050 = vmatpush2.msra.mxu0 %v1770
  %3051 = vmatprep.subr.mxu0 0.0
  %3052 = vmatpush2.msra.mxu0 %v1763
  %3053 = vmatprep.subr.mxu0 0.0
  %3054 = vmatpush2.msra.mxu0 %v1756
  %3055 = vmatprep.subr.mxu0 0.0
  %3056 = vmatpush2.msra.mxu0 %v1749
  %3057 = vmatprep.subr.mxu0 0.0
  %3058 = vmatpush2.msra.mxu0 %v1742
  %3059 = vmatprep.subr.mxu0 0.0
  %3060 = vmatpush2.msra.mxu0 %v1735
  %3061 = vmatprep.subr.mxu0 0.0
  %3062 = vmatpush2.msra.mxu0 %v1728
  %3063 = vmatprep.subr.mxu0 0.0
  %3064 = vmatpush2.msra.mxu0 %v1721
  %3065 = vmatprep.subr.mxu0 0.0
  %3066 = vmatpush2.msra.mxu0 %v1714
  %3067 = vmatprep.subr.mxu0 0.0
  %3068 = vmatpush2.msra.mxu0 %v1707
  %3069 = vmatprep.subr.mxu0 0.0
  %3070 = vmatpush2.msra.mxu0 %v1700
  %3071 = vmatprep.mubr.f32.mxu0 %v1354
  %3072 = vmatmul.mubr.f32.gmra.mxu0 %v1353
  %v3073 = vpop.f32.mrf.mxu0
  %v3074 = vadd.f32 %v3004, %v3073
  %v3075 = vpop.f32.mrf.mxu0
  %3076 = vdwg.mxu0
  %3077 = vmatprep.subr.mxu0 0.0
  %3078 = vmatpush1.msra.mxu0 %v1917
  %3079 = vmatprep.subr.mxu0 0.0
  %3080 = vmatpush1.msra.mxu0 %v1910
  %3081 = vmatprep.subr.mxu0 0.0
  %3082 = vmatpush1.msra.mxu0 %v1903
  %3083 = vmatprep.subr.mxu0 0.0
  %3084 = vmatpush1.msra.mxu0 %v1896
  %3085 = vmatprep.subr.mxu0 0.0
  %3086 = vmatpush1.msra.mxu0 %v1889
  %3087 = vmatprep.subr.mxu0 0.0
  %3088 = vmatpush1.msra.mxu0 %v1882
  %3089 = vmatprep.subr.mxu0 0.0
  %3090 = vmatpush1.msra.mxu0 %v1875
  %3091 = vmatprep.subr.mxu0 0.0
  %3092 = vmatpush1.msra.mxu0 %v1868
  %3093 = vmatprep.subr.mxu0 0.0
  %3094 = vmatpush1.msra.mxu0 %v1861
  %3095 = vmatprep.subr.mxu0 0.0
  %3096 = vmatpush1.msra.mxu0 %v1854
  %3097 = vmatprep.subr.mxu0 0.0
  %3098 = vmatpush1.msra.mxu0 %v1847
  %3099 = vmatprep.subr.mxu0 0.0
  %3100 = vmatpush1.msra.mxu0 %v1840
  %3101 = vmatprep.subr.mxu0 0.0
  %3102 = vmatpush1.msra.mxu0 %v1833
  %3103 = vmatprep.subr.mxu0 0.0
  %3104 = vmatpush1.msra.mxu0 %v1826
  %3105 = vmatprep.subr.mxu0 0.0
  %3106 = vmatpush1.msra.mxu0 %v1819
  %3107 = vmatprep.subr.mxu0 0.0
  %3108 = vmatpush1.msra.mxu0 %v1812
  %3109 = vmatprep.subr.mxu0 0.0
  %3110 = vmatpush2.msra.mxu0 %v2029
  %3111 = vmatprep.subr.mxu0 0.0
  %3112 = vmatpush2.msra.mxu0 %v2022
  %3113 = vmatprep.subr.mxu0 0.0
  %3114 = vmatpush2.msra.mxu0 %v2015
  %3115 = vmatprep.subr.mxu0 0.0
  %3116 = vmatpush2.msra.mxu0 %v2008
  %3117 = vmatprep.subr.mxu0 0.0
  %3118 = vmatpush2.msra.mxu0 %v2001
  %3119 = vmatprep.subr.mxu0 0.0
  %3120 = vmatpush2.msra.mxu0 %v1994
  %3121 = vmatprep.subr.mxu0 0.0
  %3122 = vmatpush2.msra.mxu0 %v1987
  %3123 = vmatprep.subr.mxu0 0.0
  %3124 = vmatpush2.msra.mxu0 %v1980
  %3125 = vmatprep.subr.mxu0 0.0
  %3126 = vmatpush2.msra.mxu0 %v1973
  %3127 = vmatprep.subr.mxu0 0.0
  %3128 = vmatpush2.msra.mxu0 %v1966
  %3129 = vmatprep.subr.mxu0 0.0
  %3130 = vmatpush2.msra.mxu0 %v1959
  %3131 = vmatprep.subr.mxu0 0.0
  %3132 = vmatpush2.msra.mxu0 %v1952
  %3133 = vmatprep.subr.mxu0 0.0
  %3134 = vmatpush2.msra.mxu0 %v1945
  %3135 = vmatprep.subr.mxu0 0.0
  %3136 = vmatpush2.msra.mxu0 %v1938
  %3137 = vmatprep.subr.mxu0 0.0
  %3138 = vmatpush2.msra.mxu0 %v1931
  %3139 = vmatprep.subr.mxu0 0.0
  %3140 = vmatpush2.msra.mxu0 %v1924
  %3141 = vmatprep.mubr.f32.mxu0 %v1356
  %3142 = vmatmul.mubr.f32.gmra.mxu0 %v1355
  %v3143 = vpop.f32.mrf.mxu0
  %v3144 = vadd.f32 %v3074, %v3143
  %v3145 = vpop.f32.mrf.mxu0
  %3146 = vdwg.mxu0
  %3147 = vmatprep.subr.mxu0 0.0
  %3148 = vmatpush1.msra.mxu0 0.0
  %3149 = vmatprep.subr.mxu0 0.0
  %3150 = vmatpush1.msra.mxu0 0.0
  %3151 = vmatprep.subr.mxu0 0.0
  %3152 = vmatpush1.msra.mxu0 0.0
  %3153 = vmatprep.subr.mxu0 0.0
  %3154 = vmatpush1.msra.mxu0 0.0
  %3155 = vmatprep.subr.mxu0 0.0
  %3156 = vmatpush1.msra.mxu0 0.0
  %3157 = vmatprep.subr.mxu0 0.0
  %3158 = vmatpush1.msra.mxu0 0.0
  %3159 = vmatprep.subr.mxu0 0.0
  %3160 = vmatpush1.msra.mxu0 0.0
  %3161 = vmatprep.subr.mxu0 0.0
  %3162 = vmatpush1.msra.mxu0 0.0
  %3163 = vmatprep.subr.mxu0 0.0
  %3164 = vmatpush1.msra.mxu0 0.0
  %3165 = vmatprep.subr.mxu0 0.0
  %3166 = vmatpush1.msra.mxu0 0.0
  %3167 = vmatprep.subr.mxu0 0.0
  %3168 = vmatpush1.msra.mxu0 0.0
  %3169 = vmatprep.subr.mxu0 0.0
  %3170 = vmatpush1.msra.mxu0 0.0
  %3171 = vmatprep.subr.mxu0 0.0
  %3172 = vmatpush1.msra.mxu0 0.0
  %3173 = vmatprep.subr.mxu0 0.0
  %3174 = vmatpush1.msra.mxu0 0.0
  %3175 = vmatprep.subr.mxu0 0.0
  %3176 = vmatpush1.msra.mxu0 %v2043
  %3177 = vmatprep.subr.mxu0 0.0
  %3178 = vmatpush1.msra.mxu0 %v2036
  %3179 = vmatprep.subr.mxu0 0.0
  %3180 = vmatpush2.msra.mxu0 0.0
  %3181 = vmatprep.subr.mxu0 0.0
  %3182 = vmatpush2.msra.mxu0 0.0
  %3183 = vmatprep.subr.mxu0 0.0
  %3184 = vmatpush2.msra.mxu0 0.0
  %3185 = vmatprep.subr.mxu0 0.0
  %3186 = vmatpush2.msra.mxu0 0.0
  %3187 = vmatprep.subr.mxu0 0.0
  %3188 = vmatpush2.msra.mxu0 0.0
  %3189 = vmatprep.subr.mxu0 0.0
  %3190 = vmatpush2.msra.mxu0 0.0
  %3191 = vmatprep.subr.mxu0 0.0
  %3192 = vmatpush2.msra.mxu0 0.0
  %3193 = vmatprep.subr.mxu0 0.0
  %3194 = vmatpush2.msra.mxu0 0.0
  %3195 = vmatprep.subr.mxu0 0.0
  %3196 = vmatpush2.msra.mxu0 0.0
  %3197 = vmatprep.subr.mxu0 0.0
  %3198 = vmatpush2.msra.mxu0 0.0
  %3199 = vmatprep.subr.mxu0 0.0
  %3200 = vmatpush2.msra.mxu0 0.0
  %3201 = vmatprep.subr.mxu0 0.0
  %3202 = vmatpush2.msra.mxu0 0.0
  %3203 = vmatprep.subr.mxu0 0.0
  %3204 = vmatpush2.msra.mxu0 0.0
  %3205 = vmatprep.subr.mxu0 0.0
  %3206 = vmatpush2.msra.mxu0 0.0
  %3207 = vmatprep.subr.mxu0 0.0
  %3208 = vmatpush2.msra.mxu0 0.0
  %3209 = vmatprep.subr.mxu0 0.0
  %3210 = vmatpush2.msra.mxu0 0.0
  %3211 = vmatprep.mubr.f32.mxu0 0.0
  %3212 = vmatmul.mubr.f32.gmra.mxu0 %v2083
  %v3213 = vpop.f32.mrf.mxu0
  %v3214 = vadd.f32 %v3144, %v3213
  %v3215 = vpop.f32.mrf.mxu0
  %3216 = vdwg.mxu0
  %v3217 = vmax.f32 %v2365, 0.0
  %v3218 = vmax.f32 %v2367, 0.0
  %v3219 = vmax.f32 %v2649, 0.0
  %v3220 = vmax.f32 %v2651, 0.0
  %v3221 = vmax.f32 %v2933, 0.0
  %v3222 = vmax.f32 %v2935, 0.0
  %v3223 = vmax.f32 %v3214, 0.0
  %v3224 = vld [vmem:[%s7] sm:$0xff]
  %v3225 = vld [vmem:[%s7 + $0x8] sm:$0xff]
  %v3226 = vld [vmem:[%s7 + $0x10] sm:$0xff]
  %v3227 = vld [vmem:[%s7 + $0x18] sm:$0xff]
  %v3228 = vld [vmem:[%s7 + $0x20] sm:$0xff]
  %v3229 = vld [vmem:[%s7 + $0x28] sm:$0xff]
  %v3230 = vld [vmem:[%s7 + $0x30] sm:$0xff]
  %v3231 = vld [vmem:[%s7 + $0x38] sm:$0xff]
  %v3232 = vld [vmem:[%s7 + $0x40] sm:$0xff]
  %v3233 = vld [vmem:[%s7 + $0x48] sm:$0xff]
  %v3234 = vld [vmem:[%s7 + $0x50] sm:$0xff]
  %v3235 = vld [vmem:[%s7 + $0x58] sm:$0xff]
  %v3236 = vld [vmem:[%s7 + $0x60] sm:$0xff]
  %v3237 = vld [vmem:[%s7 + $0x68] sm:$0xff]
  %v3238 = vld [vmem:[%s7 + $0x70] sm:$0xff]
  %v3239 = vld [vmem:[%s7 + $0x78] sm:$0xff]
  %v3240 = vld [vmem:[%s7 + $0x80] sm:$0xff]
  %v3241 = vld [vmem:[%s7 + $0x88] sm:$0xff]
  %v3242 = vld [vmem:[%s7 + $0x90] sm:$0xff]
  %v3243 = vld [vmem:[%s7 + $0x98] sm:$0xff]
  %v3244 = vld [vmem:[%s7 + $0xa0] sm:$0xff]
  %v3245 = vld [vmem:[%s7 + $0xa8] sm:$0xff]
  %v3246 = vld [vmem:[%s7 + $0xb0] sm:$0xff]
  %v3247 = vld [vmem:[%s7 + $0xb8] sm:$0xff]
  %v3248 = vld [vmem:[%s7 + $0xc0] sm:$0xff]
  %v3249 = vld [vmem:[%s7 + $0xc8] sm:$0xff]
  %v3250 = vld [vmem:[%s7 + $0xd0] sm:$0xff]
  %v3251 = vld [vmem:[%s7 + $0xd8] sm:$0xff]
  %v3252 = vld [vmem:[%s7 + $0xe0] sm:$0xff]
  %v3253 = vld [vmem:[%s7 + $0xe8] sm:$0xff]
  %v3254 = vld [vmem:[%s7 + $0xf0] sm:$0xff]
  %v3255 = vld [vmem:[%s7 + $0xf8] sm:$0xff]
  %v3256 = vld [vmem:[%s7 + $0x100] sm:$0xff]
  %v3257 = vld [vmem:[%s7 + $0x108] sm:$0xff]
  %v3258 = vld [vmem:[%s7 + $0x110] sm:$0xff]
  %v3259 = vld [vmem:[%s7 + $0x118] sm:$0xff]
  %v3260 = vld [vmem:[%s7 + $0x120] sm:$0xff]
  %v3261 = vld [vmem:[%s7 + $0x128] sm:$0xff]
  %v3262 = vld [vmem:[%s7 + $0x130] sm:$0xff]
  %v3263 = vld [vmem:[%s7 + $0x138] sm:$0xff]
  %v3264 = vld [vmem:[%s7 + $0x140] sm:$0xff]
  %v3265 = vld [vmem:[%s7 + $0x148] sm:$0xff]
  %v3266 = vld [vmem:[%s7 + $0x150] sm:$0xff]
  %v3267 = vld [vmem:[%s7 + $0x158] sm:$0xff]
  %v3268 = vld [vmem:[%s7 + $0x160] sm:$0xff]
  %v3269 = vld [vmem:[%s7 + $0x168] sm:$0xff]
  %v3270 = vld [vmem:[%s7 + $0x170] sm:$0xff]
  %v3271 = vld [vmem:[%s7 + $0x178] sm:$0xff]
  %v3272 = vld [vmem:[%s7 + $0x180] sm:$0xff]
  %v3273 = vld [vmem:[%s7 + $0x188] sm:$0xff]
  %v3274 = vld [vmem:[%s7 + $0x190] sm:$0xff]
  %v3275 = vld [vmem:[%s7 + $0x198] sm:$0xff]
  %v3276 = vld [vmem:[%s7 + $0x1a0] sm:$0xff]
  %v3277 = vld [vmem:[%s7 + $0x1a8] sm:$0xff]
  %v3278 = vld [vmem:[%s7 + $0x1b0] sm:$0xff]
  %v3279 = vld [vmem:[%s7 + $0x1b8] sm:$0xff]
  %v3280 = vld [vmem:[%s7 + $0x1c0] sm:$0xff]
  %v3281 = vld [vmem:[%s7 + $0x1c8] sm:$0xff]
  %v3282 = vld [vmem:[%s7 + $0x1d0] sm:$0xff]
  %v3283 = vld [vmem:[%s7 + $0x1d8] sm:$0xff]
  %v3284 = vld [vmem:[%s7 + $0x1e0] sm:$0xff]
  %v3285 = vld [vmem:[%s7 + $0x1e8] sm:$0xff]
  %v3286 = vld [vmem:[%s7 + $0x1f0] sm:$0xff]
  %v3287 = vld [vmem:[%s7 + $0x1f8] sm:$0xff]
  %v3288 = vld [vmem:[%s7 + $0x200] sm:$0xff]
  %v3289 = vld [vmem:[%s7 + $0x208] sm:$0xff]
  %v3290 = vld [vmem:[%s7 + $0x210] sm:$0xff]
  %v3291 = vld [vmem:[%s7 + $0x218] sm:$0xff]
  %v3292 = vld [vmem:[%s7 + $0x220] sm:$0xff]
  %v3293 = vld [vmem:[%s7 + $0x228] sm:$0xff]
  %v3294 = vld [vmem:[%s7 + $0x230] sm:$0xff]
  %v3295 = vld [vmem:[%s7 + $0x238] sm:$0xff]
  %v3296 = vld [vmem:[%s7 + $0x240] sm:$0xff]
  %v3297 = vld [vmem:[%s7 + $0x248] sm:$0xff]
  %v3298 = vld [vmem:[%s7 + $0x250] sm:$0xff]
  %v3299 = vld [vmem:[%s7 + $0x258] sm:$0xff]
  %v3300 = vld [vmem:[%s7 + $0x260] sm:$0xff]
  %v3301 = vld [vmem:[%s7 + $0x268] sm:$0xff]
  %v3302 = vld [vmem:[%s7 + $0x270] sm:$0xff]
  %v3303 = vld [vmem:[%s7 + $0x278] sm:$0xff]
  %v3304 = vld [vmem:[%s7 + $0x280] sm:$0xff]
  %v3305 = vld [vmem:[%s7 + $0x288] sm:$0xff]
  %v3306 = vld [vmem:[%s7 + $0x290] sm:$0xff]
  %v3307 = vld [vmem:[%s7 + $0x298] sm:$0xff]
  %v3308 = vld [vmem:[%s7 + $0x2a0] sm:$0xff]
  %v3309 = vld [vmem:[%s7 + $0x2a8] sm:$0xff]
  %v3310 = vld [vmem:[%s7 + $0x2b0] sm:$0xff]
  %v3311 = vld [vmem:[%s7 + $0x2b8] sm:$0xff]
  %v3312 = vld [vmem:[%s7 + $0x2c0] sm:$0xff]
  %v3313 = vld [vmem:[%s7 + $0x2c8] sm:$0xff]
  %v3314 = vld [vmem:[%s7 + $0x2d0] sm:$0xff]
  %v3315 = vld [vmem:[%s7 + $0x2d8] sm:$0xff]
  %v3316 = vld [vmem:[%s7 + $0x2e0] sm:$0xff]
  %v3317 = vld [vmem:[%s7 + $0x2e8] sm:$0xff]
  %v3318 = vld [vmem:[%s7 + $0x2f0] sm:$0xff]
  %v3319 = vld [vmem:[%s7 + $0x2f8] sm:$0xff]
  %v3320 = vld [vmem:[%s7 + $0x300] sm:$0xff]
  %v3321 = vld [vmem:[%s7 + $0x308] sm:$0xff]
  %v3322 = vld [vmem:[%s7 + $0x310] sm:$0xff]
  %v3323 = vld [vmem:[%s7 + $0x318] sm:$0xff]
  %v3324 = vld [vmem:[%s7 + $0x320] sm:$0xff]
  %v3325 = vld [vmem:[%s7 + $0x328] sm:$0xff]
  %v3326 = vld [vmem:[%s7 + $0x330] sm:$0xff]
  %v3327 = vld [vmem:[%s7 + $0x338] sm:$0xff]
  %v3328 = vld [vmem:[%s7 + $0x340] sm:$0xff]
  %v3329 = vld [vmem:[%s7 + $0x348] sm:$0xff]
  %v3330 = vld [vmem:[%s7 + $0x350] sm:$0xff]
  %v3331 = vld [vmem:[%s7 + $0x358] sm:$0xff]
  %v3332 = vld [vmem:[%s7 + $0x360] sm:$0xff]
  %v3333 = vld [vmem:[%s7 + $0x368] sm:$0xff]
  %v3334 = vld [vmem:[%s7 + $0x370] sm:$0xff]
  %v3335 = vld [vmem:[%s7 + $0x378] sm:$0xff]
  %v3336 = vld [vmem:[%s7 + $0x380] sm:$0xff]
  %v3337 = vld [vmem:[%s7 + $0x388] sm:$0xff]
  %v3338 = vld [vmem:[%s7 + $0x390] sm:$0xff]
  %v3339 = vld [vmem:[%s7 + $0x398] sm:$0xff]
  %v3340 = vld [vmem:[%s7 + $0x3a0] sm:$0xff]
  %v3341 = vld [vmem:[%s7 + $0x3a8] sm:$0xff]
  %v3342 = vld [vmem:[%s7 + $0x3b0] sm:$0xff]
  %v3343 = vld [vmem:[%s7 + $0x3b8] sm:$0xff]
  %v3344 = vld [vmem:[%s7 + $0x3c0] sm:$0xff]
  %v3345 = vld [vmem:[%s7 + $0x3c8] sm:$0xff]
  %v3346 = vld [vmem:[%s7 + $0x3d0] sm:$0xff]
  %v3347 = vld [vmem:[%s7 + $0x3d8] sm:$0xff]
  %v3348 = vld [vmem:[%s7 + $0x3e0] sm:$0xff]
  %v3349 = vld [vmem:[%s7 + $0x3e8] sm:$0xff]
  %v3350 = vld [vmem:[%s7 + $0x3f0] sm:$0xff]
  %v3351 = vld [vmem:[%s7 + $0x3f8] sm:$0xff]
  %v3352 = vld [vmem:[%s7 + $0x400] sm:$0xff]
  %v3353 = vld [vmem:[%s7 + $0x408] sm:$0xff]
  %v3354 = vld [vmem:[%s7 + $0x410] sm:$0xff]
  %v3355 = vld [vmem:[%s7 + $0x418] sm:$0xff]
  %v3356 = vld [vmem:[%s7 + $0x420] sm:$0xff]
  %v3357 = vld [vmem:[%s7 + $0x428] sm:$0xff]
  %v3358 = vld [vmem:[%s7 + $0x430] sm:$0xff]
  %v3359 = vld [vmem:[%s7 + $0x438] sm:$0xff]
  %v3360 = vld [vmem:[%s7 + $0x440] sm:$0xff]
  %v3361 = vld [vmem:[%s7 + $0x448] sm:$0xff]
  %v3362 = vld [vmem:[%s7 + $0x450] sm:$0xff]
  %v3363 = vld [vmem:[%s7 + $0x458] sm:$0xff]
  %v3364 = vld [vmem:[%s7 + $0x460] sm:$0xff]
  %v3365 = vld [vmem:[%s7 + $0x468] sm:$0xff]
  %v3366 = vld [vmem:[%s7 + $0x470] sm:$0xff]
  %v3367 = vld [vmem:[%s7 + $0x478] sm:$0xff]
  %v3368 = vld [vmem:[%s7 + $0x480] sm:$0xff]
  %v3369 = vld [vmem:[%s7 + $0x488] sm:$0xff]
  %v3370 = vld [vmem:[%s7 + $0x490] sm:$0xff]
  %v3371 = vld [vmem:[%s7 + $0x498] sm:$0xff]
  %v3372 = vld [vmem:[%s7 + $0x4a0] sm:$0xff]
  %v3373 = vld [vmem:[%s7 + $0x4a8] sm:$0xff]
  %v3374 = vld [vmem:[%s7 + $0x4b0] sm:$0xff]
  %v3375 = vld [vmem:[%s7 + $0x4b8] sm:$0xff]
  %v3376 = vld [vmem:[%s7 + $0x4c0] sm:$0xff]
  %v3377 = vld [vmem:[%s7 + $0x4c8] sm:$0xff]
  %v3378 = vld [vmem:[%s7 + $0x4d0] sm:$0xff]
  %v3379 = vld [vmem:[%s7 + $0x4d8] sm:$0xff]
  %v3380 = vld [vmem:[%s7 + $0x4e0] sm:$0xff]
  %v3381 = vld [vmem:[%s7 + $0x4e8] sm:$0xff]
  %v3382 = vld [vmem:[%s7 + $0x4f0] sm:$0xff]
  %v3383 = vld [vmem:[%s7 + $0x4f8] sm:$0xff]
  %v3384 = vld [vmem:[%s7 + $0x500] sm:$0xff]
  %v3385 = vld [vmem:[%s7 + $0x508] sm:$0xff]
  %v3386 = vld [vmem:[%s7 + $0x510] sm:$0xff]
  %v3387 = vld [vmem:[%s7 + $0x518] sm:$0xff]
  %v3388 = vld [vmem:[%s7 + $0x520] sm:$0xff]
  %v3389 = vld [vmem:[%s7 + $0x528] sm:$0xff]
  %v3390 = vld [vmem:[%s7 + $0x530] sm:$0xff]
  %v3391 = vld [vmem:[%s7 + $0x538] sm:$0xff]
  %v3392 = vld [vmem:[%s7 + $0x540] sm:$0xff]
  %v3393 = vld [vmem:[%s7 + $0x548] sm:$0xff]
  %v3394 = vld [vmem:[%s7 + $0x550] sm:$0xff]
  %v3395 = vld [vmem:[%s7 + $0x558] sm:$0xff]
  %v3396 = vld [vmem:[%s7 + $0x560] sm:$0xff]
  %v3397 = vld [vmem:[%s7 + $0x568] sm:$0xff]
  %v3398 = vld [vmem:[%s7 + $0x570] sm:$0xff]
  %v3399 = vld [vmem:[%s7 + $0x578] sm:$0xff]
  %v3400 = vld [vmem:[%s7 + $0x580] sm:$0xff]
  %v3401 = vld [vmem:[%s7 + $0x588] sm:$0xff]
  %v3402 = vld [vmem:[%s7 + $0x590] sm:$0xff]
  %v3403 = vld [vmem:[%s7 + $0x598] sm:$0xff]
  %v3404 = vld [vmem:[%s7 + $0x5a0] sm:$0xff]
  %v3405 = vld [vmem:[%s7 + $0x5a8] sm:$0xff]
  %v3406 = vld [vmem:[%s7 + $0x5b0] sm:$0xff]
  %v3407 = vld [vmem:[%s7 + $0x5b8] sm:$0xff]
  %v3408 = vld [vmem:[%s7 + $0x5c0] sm:$0xff]
  %v3409 = vld [vmem:[%s7 + $0x5c8] sm:$0xff]
  %v3410 = vld [vmem:[%s7 + $0x5d0] sm:$0xff]
  %v3411 = vld [vmem:[%s7 + $0x5d8] sm:$0xff]
  %v3412 = vld [vmem:[%s7 + $0x5e0] sm:$0xff]
  %v3413 = vld [vmem:[%s7 + $0x5e8] sm:$0xff]
  %v3414 = vld [vmem:[%s7 + $0x5f0] sm:$0xff]
  %v3415 = vld [vmem:[%s7 + $0x5f8] sm:$0xff]
  %v3416 = vld [vmem:[%s7 + $0x600] sm:$0xff]
  %v3417 = vld [vmem:[%s7 + $0x608] sm:$0xff]
  %v3418 = vld [vmem:[%s7 + $0x610] sm:$0xff]
  %v3419 = vld [vmem:[%s7 + $0x618] sm:$0xff]
  %v3420 = vld [vmem:[%s7 + $0x620] sm:$0xff]
  %v3421 = vld [vmem:[%s7 + $0x628] sm:$0xff]
  %v3422 = vld [vmem:[%s7 + $0x630] sm:$0xff]
  %v3423 = vld [vmem:[%s7 + $0x638] sm:$0xff]
  %v3424 = vld [vmem:[%s7 + $0x640] sm:$0xff]
  %v3425 = vld [vmem:[%s7 + $0x648] sm:$0xff]
  %v3426 = vld [vmem:[%s7 + $0x650] sm:$0xff]
  %v3427 = vld [vmem:[%s7 + $0x658] sm:$0xff]
  %v3428 = vld [vmem:[%s7 + $0x660] sm:$0xff]
  %v3429 = vld [vmem:[%s7 + $0x668] sm:$0xff]
  %v3430 = vld [vmem:[%s7 + $0x670] sm:$0xff]
  %v3431 = vld [vmem:[%s7 + $0x678] sm:$0xff]
  %v3432 = vld [vmem:[%s7 + $0x680] sm:$0xff]
  %v3433 = vld [vmem:[%s7 + $0x688] sm:$0xff]
  %v3434 = vld [vmem:[%s7 + $0x690] sm:$0xff]
  %v3435 = vld [vmem:[%s7 + $0x698] sm:$0xff]
  %v3436 = vld [vmem:[%s7 + $0x6a0] sm:$0xff]
  %v3437 = vld [vmem:[%s7 + $0x6a8] sm:$0xff]
  %v3438 = vld [vmem:[%s7 + $0x6b0] sm:$0xff]
  %v3439 = vld [vmem:[%s7 + $0x6b8] sm:$0xff]
  %v3440 = vld [vmem:[%s7 + $0x6c0] sm:$0xff]
  %v3441 = vld [vmem:[%s7 + $0x6c8] sm:$0xff]
  %v3442 = vld [vmem:[%s7 + $0x6d0] sm:$0xff]
  %v3443 = vld [vmem:[%s7 + $0x6d8] sm:$0xff]
  %v3444 = vld [vmem:[%s7 + $0x6e0] sm:$0xff]
  %v3445 = vld [vmem:[%s7 + $0x6e8] sm:$0xff]
  %v3446 = vld [vmem:[%s7 + $0x6f0] sm:$0xff]
  %v3447 = vld [vmem:[%s7 + $0x6f8] sm:$0xff]
  %v3448 = vld [vmem:[%s7 + $0x700] sm:$0xff]
  %v3449 = vld [vmem:[%s7 + $0x708] sm:$0xff]
  %v3450 = vld [vmem:[%s7 + $0x710] sm:$0xff]
  %v3451 = vld [vmem:[%s7 + $0x718] sm:$0xff]
  %v3452 = vld [vmem:[%s7 + $0x720] sm:$0xff]
  %v3453 = vld [vmem:[%s7 + $0x728] sm:$0xff]
  %v3454 = vld [vmem:[%s7 + $0x730] sm:$0xff]
  %v3455 = vld [vmem:[%s7 + $0x738] sm:$0xff]
  %v3456 = vld [vmem:[%s7 + $0x740] sm:$0xff]
  %v3457 = vld [vmem:[%s7 + $0x748] sm:$0xff]
  %v3458 = vld [vmem:[%s7 + $0x750] sm:$0xff]
  %v3459 = vld [vmem:[%s7 + $0x758] sm:$0xff]
  %v3460 = vld [vmem:[%s7 + $0x760] sm:$0xff]
  %v3461 = vld [vmem:[%s7 + $0x768] sm:$0xff]
  %v3462 = vld [vmem:[%s7 + $0x770] sm:$0xff]
  %v3463 = vld [vmem:[%s7 + $0x778] sm:$0xff]
  %v3464 = vld [vmem:[%s7 + $0x780] sm:$0xff]
  %v3465 = vld [vmem:[%s7 + $0x788] sm:$0xff]
  %v3466 = vld [vmem:[%s7 + $0x790] sm:$0xff]
  %v3467 = vld [vmem:[%s7 + $0x798] sm:$0xff]
  %v3468 = vld [vmem:[%s7 + $0x7a0] sm:$0xff]
  %v3469 = vld [vmem:[%s7 + $0x7a8] sm:$0xff]
  %v3470 = vld [vmem:[%s7 + $0x7b0] sm:$0xff]
  %v3471 = vld [vmem:[%s7 + $0x7b8] sm:$0xff]
  %v3472 = vld [vmem:[%s7 + $0x7c0] sm:$0xff]
  %v3473 = vld [vmem:[%s7 + $0x7c8] sm:$0xff]
  %v3474 = vld [vmem:[%s7 + $0x7d0] sm:$0xff]
  %v3475 = vld [vmem:[%s7 + $0x7d8] sm:$0xff]
  %v3476 = vld [vmem:[%s7 + $0x7e0] sm:$0xff]
  %v3477 = vld [vmem:[%s7 + $0x7e8] sm:$0xff]
  %v3478 = vld [vmem:[%s7 + $0x7f0] sm:$0xff]
  %v3479 = vld [vmem:[%s7 + $0x7f8] sm:$0xff]
  %v3480 = vld [vmem:[%s7 + $0x800] sm:$0xff]
  %v3481 = vld [vmem:[%s7 + $0x808] sm:$0xff]
  %v3482 = vld [vmem:[%s7 + $0x810] sm:$0xff]
  %v3483 = vld [vmem:[%s7 + $0x818] sm:$0xff]
  %v3484 = vld [vmem:[%s7 + $0x820] sm:$0xff]
  %v3485 = vld [vmem:[%s7 + $0x828] sm:$0xff]
  %v3486 = vld [vmem:[%s7 + $0x830] sm:$0xff]
  %v3487 = vld [vmem:[%s7 + $0x838] sm:$0xff]
  %v3488 = vld [vmem:[%s7 + $0x840] sm:$0xff]
  %v3489 = vld [vmem:[%s7 + $0x848] sm:$0xff]
  %v3490 = vld [vmem:[%s7 + $0x850] sm:$0xff]
  %v3491 = vld [vmem:[%s7 + $0x858] sm:$0xff]
  %v3492 = vld [vmem:[%s7 + $0x860] sm:$0xff]
  %v3493 = vld [vmem:[%s7 + $0x868] sm:$0xff]
  %v3494 = vld [vmem:[%s7 + $0x870] sm:$0xff]
  %v3495 = vld [vmem:[%s7 + $0x878] sm:$0xff]
  %v3496 = vld [vmem:[%s7 + $0x880] sm:$0xff]
  %v3497 = vld [vmem:[%s7 + $0x888] sm:$0xff]
  %v3498 = vld [vmem:[%s7 + $0x890] sm:$0xff]
  %v3499 = vld [vmem:[%s7 + $0x898] sm:$0xff]
  %v3500 = vld [vmem:[%s7 + $0x8a0] sm:$0xff]
  %v3501 = vld [vmem:[%s7 + $0x8a8] sm:$0xff]
  %v3502 = vld [vmem:[%s7 + $0x8b0] sm:$0xff]
  %v3503 = vld [vmem:[%s7 + $0x8b8] sm:$0xff]
  %v3504 = vld [vmem:[%s7 + $0x8c0] sm:$0xff]
  %v3505 = vld [vmem:[%s7 + $0x8c8] sm:$0xff]
  %v3506 = vld [vmem:[%s7 + $0x8d0] sm:$0xff]
  %v3507 = vld [vmem:[%s7 + $0x8d8] sm:$0xff]
  %v3508 = vld [vmem:[%s7 + $0x8e0] sm:$0xff]
  %v3509 = vld [vmem:[%s7 + $0x8e8] sm:$0xff]
  %v3510 = vld [vmem:[%s7 + $0x8f0] sm:$0xff]
  %v3511 = vld [vmem:[%s7 + $0x8f8] sm:$0xff]
  %v3512 = vld [vmem:[%s7 + $0x900] sm:$0xff]
  %v3513 = vld [vmem:[%s7 + $0x908] sm:$0xff]
  %v3514 = vld [vmem:[%s7 + $0x910] sm:$0xff]
  %v3515 = vld [vmem:[%s7 + $0x918] sm:$0xff]
  %v3516 = vld [vmem:[%s7 + $0x920] sm:$0xff]
  %v3517 = vld [vmem:[%s7 + $0x928] sm:$0xff]
  %v3518 = vld [vmem:[%s7 + $0x930] sm:$0xff]
  %v3519 = vld [vmem:[%s7 + $0x938] sm:$0xff]
  %v3520 = vld [vmem:[%s7 + $0x940] sm:$0xff]
  %v3521 = vld [vmem:[%s7 + $0x948] sm:$0xff]
  %v3522 = vld [vmem:[%s7 + $0x950] sm:$0xff]
  %v3523 = vld [vmem:[%s7 + $0x958] sm:$0xff]
  %v3524 = vld [vmem:[%s7 + $0x960] sm:$0xff]
  %v3525 = vld [vmem:[%s7 + $0x968] sm:$0xff]
  %v3526 = vld [vmem:[%s7 + $0x970] sm:$0xff]
  %v3527 = vld [vmem:[%s7 + $0x978] sm:$0xff]
  %v3528 = vld [vmem:[%s7 + $0x980] sm:$0xff]
  %v3529 = vld [vmem:[%s7 + $0x988] sm:$0xff]
  %v3530 = vld [vmem:[%s7 + $0x990] sm:$0xff]
  %v3531 = vld [vmem:[%s7 + $0x998] sm:$0xff]
  %v3532 = vld [vmem:[%s7 + $0x9a0] sm:$0xff]
  %v3533 = vld [vmem:[%s7 + $0x9a8] sm:$0xff]
  %v3534 = vld [vmem:[%s7 + $0x9b0] sm:$0xff]
  %v3535 = vld [vmem:[%s7 + $0x9b8] sm:$0xff]
  %v3536 = vld [vmem:[%s7 + $0x9c0] sm:$0xff]
  %v3537 = vld [vmem:[%s7 + $0x9c8] sm:$0xff]
  %v3538 = vld [vmem:[%s7 + $0x9d0] sm:$0xff]
  %v3539 = vld [vmem:[%s7 + $0x9d8] sm:$0xff]
  %v3540 = vld [vmem:[%s7 + $0x9e0] sm:$0xff]
  %v3541 = vld [vmem:[%s7 + $0x9e8] sm:$0xff]
  %v3542 = vld [vmem:[%s7 + $0x9f0] sm:$0xff]
  %v3543 = vld [vmem:[%s7 + $0x9f8] sm:$0xff]
  %v3544 = vld [vmem:[%s7 + $0xa00] sm:$0xff]
  %v3545 = vld [vmem:[%s7 + $0xa08] sm:$0xff]
  %v3546 = vld [vmem:[%s7 + $0xa10] sm:$0xff]
  %v3547 = vld [vmem:[%s7 + $0xa18] sm:$0xff]
  %v3548 = vld [vmem:[%s7 + $0xa20] sm:$0xff]
  %v3549 = vld [vmem:[%s7 + $0xa28] sm:$0xff]
  %v3550 = vld [vmem:[%s7 + $0xa30] sm:$0xff]
  %v3551 = vld [vmem:[%s7 + $0xa38] sm:$0xff]
  %v3552 = vld [vmem:[%s7 + $0xa40] sm:$0xff]
  %v3553 = vld [vmem:[%s7 + $0xa48] sm:$0xff]
  %v3554 = vld [vmem:[%s7 + $0xa50] sm:$0xff]
  %v3555 = vld [vmem:[%s7 + $0xa58] sm:$0xff]
  %v3556 = vld [vmem:[%s7 + $0xa60] sm:$0xff]
  %v3557 = vld [vmem:[%s7 + $0xa68] sm:$0xff]
  %v3558 = vld [vmem:[%s7 + $0xa70] sm:$0xff]
  %v3559 = vld [vmem:[%s7 + $0xa78] sm:$0xff]
  %v3560 = vld [vmem:[%s7 + $0xa80] sm:$0xff]
  %v3561 = vld [vmem:[%s7 + $0xa88] sm:$0xff]
  %v3562 = vld [vmem:[%s7 + $0xa90] sm:$0xff]
  %v3563 = vld [vmem:[%s7 + $0xa98] sm:$0xff]
  %v3564 = vld [vmem:[%s7 + $0xaa0] sm:$0xff]
  %v3565 = vld [vmem:[%s7 + $0xaa8] sm:$0xff]
  %v3566 = vld [vmem:[%s7 + $0xab0] sm:$0xff]
  %v3567 = vld [vmem:[%s7 + $0xab8] sm:$0xff]
  %v3568 = vld [vmem:[%s7 + $0xac0] sm:$0xff]
  %v3569 = vld [vmem:[%s7 + $0xac8] sm:$0xff]
  %v3570 = vld [vmem:[%s7 + $0xad0] sm:$0xff]
  %v3571 = vld [vmem:[%s7 + $0xad8] sm:$0xff]
  %v3572 = vld [vmem:[%s7 + $0xae0] sm:$0xff]
  %v3573 = vld [vmem:[%s7 + $0xae8] sm:$0xff]
  %v3574 = vld [vmem:[%s7 + $0xaf0] sm:$0xff]
  %v3575 = vld [vmem:[%s7 + $0xaf8] sm:$0xff]
  %v3576 = vld [vmem:[%s7 + $0xb00] sm:$0xff]
  %v3577 = vld [vmem:[%s7 + $0xb08] sm:$0xff]
  %v3578 = vld [vmem:[%s7 + $0xb10] sm:$0xff]
  %v3579 = vld [vmem:[%s7 + $0xb18] sm:$0xff]
  %v3580 = vld [vmem:[%s7 + $0xb20] sm:$0xff]
  %v3581 = vld [vmem:[%s7 + $0xb28] sm:$0xff]
  %v3582 = vld [vmem:[%s7 + $0xb30] sm:$0xff]
  %v3583 = vld [vmem:[%s7 + $0xb38] sm:$0xff]
  %v3584 = vld [vmem:[%s7 + $0xb40] sm:$0xff]
  %v3585 = vld [vmem:[%s7 + $0xb48] sm:$0xff]
  %v3586 = vld [vmem:[%s7 + $0xb50] sm:$0xff]
  %v3587 = vld [vmem:[%s7 + $0xb58] sm:$0xff]
  %v3588 = vld [vmem:[%s7 + $0xb60] sm:$0xff]
  %v3589 = vld [vmem:[%s7 + $0xb68] sm:$0xff]
  %v3590 = vld [vmem:[%s7 + $0xb70] sm:$0xff]
  %v3591 = vld [vmem:[%s7 + $0xb78] sm:$0xff]
  %v3592 = vld [vmem:[%s7 + $0xb80] sm:$0xff]
  %v3593 = vld [vmem:[%s7 + $0xb88] sm:$0xff]
  %v3594 = vld [vmem:[%s7 + $0xb90] sm:$0xff]
  %v3595 = vld [vmem:[%s7 + $0xb98] sm:$0xff]
  %v3596 = vld [vmem:[%s7 + $0xba0] sm:$0xff]
  %v3597 = vld [vmem:[%s7 + $0xba8] sm:$0xff]
  %v3598 = vld [vmem:[%s7 + $0xbb0] sm:$0xff]
  %v3599 = vld [vmem:[%s7 + $0xbb8] sm:$0xff]
  %v3600 = vld [vmem:[%s7 + $0xbc0] sm:$0xff]
  %v3601 = vld [vmem:[%s7 + $0xbc8] sm:$0xff]
  %v3602 = vld [vmem:[%s7 + $0xbd0] sm:$0xff]
  %v3603 = vld [vmem:[%s7 + $0xbd8] sm:$0xff]
  %v3604 = vld [vmem:[%s7 + $0xbe0] sm:$0xff]
  %v3605 = vld [vmem:[%s7 + $0xbe8] sm:$0xff]
  %v3606 = vld [vmem:[%s7 + $0xbf0] sm:$0xff]
  %v3607 = vld [vmem:[%s7 + $0xbf8] sm:$0xff]
  %v3608 = vld [vmem:[%s7 + $0xc00] sm:$0xff]
  %v3609 = vld [vmem:[%s7 + $0xc08] sm:$0xff]
  %v3610 = vld [vmem:[%s7 + $0xc10] sm:$0xff]
  %v3611 = vld [vmem:[%s7 + $0xc18] sm:$0xff]
  %v3612 = vld [vmem:[%s7 + $0xc20] sm:$0xff]
  %v3613 = vld [vmem:[%s7 + $0xc28] sm:$0xff]
  %v3614 = vld [vmem:[%s7 + $0xc30] sm:$0xff]
  %v3615 = vld [vmem:[%s7 + $0xc38] sm:$0xff]
  %v3616 = vld [vmem:[%s7 + $0xc40] sm:$0xff]
  %v3617 = vld [vmem:[%s7 + $0xc48] sm:$0xff]
  %v3618 = vld [vmem:[%s7 + $0xc50] sm:$0xff]
  %v3619 = vld [vmem:[%s7 + $0xc58] sm:$0xff]
  %v3620 = vld [vmem:[%s7 + $0xc60] sm:$0xff]
  %v3621 = vld [vmem:[%s7 + $0xc68] sm:$0xff]
  %v3622 = vld [vmem:[%s7 + $0xc70] sm:$0xff]
  %v3623 = vld [vmem:[%s7 + $0xc78] sm:$0xff]
  %v3624 = vld [vmem:[%s7 + $0xc80] sm:$0xff]
  %v3625 = vld [vmem:[%s7 + $0xc88] sm:$0xff]
  %v3626 = vld [vmem:[%s7 + $0xc90] sm:$0xff]
  %v3627 = vld [vmem:[%s7 + $0xc98] sm:$0xff]
  %v3628 = vld [vmem:[%s7 + $0xca0] sm:$0xff]
  %v3629 = vld [vmem:[%s7 + $0xca8] sm:$0xff]
  %v3630 = vld [vmem:[%s7 + $0xcb0] sm:$0xff]
  %v3631 = vld [vmem:[%s7 + $0xcb8] sm:$0xff]
  %v3632 = vld [vmem:[%s7 + $0xcc0] sm:$0xff]
  %v3633 = vld [vmem:[%s7 + $0xcc8] sm:$0xff]
  %v3634 = vld [vmem:[%s7 + $0xcd0] sm:$0xff]
  %v3635 = vld [vmem:[%s7 + $0xcd8] sm:$0xff]
  %v3636 = vld [vmem:[%s7 + $0xce0] sm:$0xff]
  %v3637 = vld [vmem:[%s7 + $0xce8] sm:$0xff]
  %v3638 = vld [vmem:[%s7 + $0xcf0] sm:$0xff]
  %v3639 = vld [vmem:[%s7 + $0xcf8] sm:$0xff]
  %v3640 = vld [vmem:[%s7 + $0xd00] sm:$0xff]
  %v3641 = vld [vmem:[%s7 + $0xd08] sm:$0xff]
  %v3642 = vld [vmem:[%s7 + $0xd10] sm:$0xff]
  %v3643 = vld [vmem:[%s7 + $0xd18] sm:$0xff]
  %v3644 = vld [vmem:[%s7 + $0xd20] sm:$0xff]
  %v3645 = vld [vmem:[%s7 + $0xd28] sm:$0xff]
  %v3646 = vld [vmem:[%s7 + $0xd30] sm:$0xff]
  %v3647 = vld [vmem:[%s7 + $0xd38] sm:$0xff]
  %v3648 = vld [vmem:[%s7 + $0xd40] sm:$0xff]
  %v3649 = vld [vmem:[%s7 + $0xd48] sm:$0xff]
  %v3650 = vld [vmem:[%s7 + $0xd50] sm:$0xff]
  %v3651 = vld [vmem:[%s7 + $0xd58] sm:$0xff]
  %v3652 = vld [vmem:[%s7 + $0xd60] sm:$0xff]
  %v3653 = vld [vmem:[%s7 + $0xd68] sm:$0xff]
  %v3654 = vld [vmem:[%s7 + $0xd70] sm:$0xff]
  %v3655 = vld [vmem:[%s7 + $0xd78] sm:$0xff]
  %v3656 = vld [vmem:[%s7 + $0xd80] sm:$0xff]
  %v3657 = vld [vmem:[%s7 + $0xd88] sm:$0xff]
  %v3658 = vld [vmem:[%s7 + $0xd90] sm:$0xff]
  %v3659 = vld [vmem:[%s7 + $0xd98] sm:$0xff]
  %v3660 = vld [vmem:[%s7 + $0xda0] sm:$0xff]
  %v3661 = vld [vmem:[%s7 + $0xda8] sm:$0xff]
  %v3662 = vld [vmem:[%s7 + $0xdb0] sm:$0xff]
  %v3663 = vld [vmem:[%s7 + $0xdb8] sm:$0xff]
  %v3664 = vld [vmem:[%s7 + $0xdc0] sm:$0xff]
  %v3665 = vld [vmem:[%s7 + $0xdc8] sm:$0xff]
  %v3666 = vld [vmem:[%s7 + $0xdd0] sm:$0xff]
  %v3667 = vld [vmem:[%s7 + $0xdd8] sm:$0xff]
  %v3668 = vld [vmem:[%s7 + $0xde0] sm:$0xff]
  %v3669 = vld [vmem:[%s7 + $0xde8] sm:$0xff]
  %v3670 = vld [vmem:[%s7 + $0xdf0] sm:$0xff]
  %v3671 = vld [vmem:[%s7 + $0xdf8] sm:$0xff]
  %v3672 = vld [vmem:[%s7 + $0xe00] sm:$0xff]
  %v3673 = vld [vmem:[%s7 + $0xe08] sm:$0xff]
  %v3674 = vld [vmem:[%s7 + $0xe10] sm:$0xff]
  %v3675 = vld [vmem:[%s7 + $0xe18] sm:$0xff]
  %v3676 = vld [vmem:[%s7 + $0xe20] sm:$0xff]
  %v3677 = vld [vmem:[%s7 + $0xe28] sm:$0xff]
  %v3678 = vld [vmem:[%s7 + $0xe30] sm:$0xff]
  %v3679 = vld [vmem:[%s7 + $0xe38] sm:$0xff]
  %v3680 = vld [vmem:[%s7 + $0xe40] sm:$0xff]
  %v3681 = vld [vmem:[%s7 + $0xe48] sm:$0xff]
  %v3682 = vld [vmem:[%s7 + $0xe50] sm:$0xff]
  %v3683 = vld [vmem:[%s7 + $0xe58] sm:$0xff]
  %v3684 = vld [vmem:[%s7 + $0xe60] sm:$0xff]
  %v3685 = vld [vmem:[%s7 + $0xe68] sm:$0xff]
  %v3686 = vld [vmem:[%s7 + $0xe70] sm:$0xff]
  %v3687 = vld [vmem:[%s7 + $0xe78] sm:$0xff]
  %v3688 = vld [vmem:[%s7 + $0xe80] sm:$0xff]
  %v3689 = vld [vmem:[%s7 + $0xe88] sm:$0xff]
  %v3690 = vld [vmem:[%s7 + $0xe90] sm:$0xff]
  %v3691 = vld [vmem:[%s7 + $0xe98] sm:$0xff]
  %v3692 = vld [vmem:[%s7 + $0xea0] sm:$0xff]
  %v3693 = vld [vmem:[%s7 + $0xea8] sm:$0xff]
  %v3694 = vld [vmem:[%s7 + $0xeb0] sm:$0xff]
  %v3695 = vld [vmem:[%s7 + $0xeb8] sm:$0xff]
  %v3696 = vld [vmem:[%s7 + $0xec0] sm:$0xff]
  %v3697 = vld [vmem:[%s7 + $0xec8] sm:$0xff]
  %v3698 = vld [vmem:[%s7 + $0xed0] sm:$0xff]
  %v3699 = vld [vmem:[%s7 + $0xed8] sm:$0xff]
  %v3700 = vld [vmem:[%s7 + $0xee0] sm:$0xff]
  %v3701 = vld [vmem:[%s7 + $0xee8] sm:$0xff]
  %v3702 = vld [vmem:[%s7 + $0xef0] sm:$0xff]
  %v3703 = vld [vmem:[%s7 + $0xef8] sm:$0xff]
  %v3704 = vld [vmem:[%s7 + $0xf00] sm:$0xff]
  %v3705 = vld [vmem:[%s7 + $0xf08] sm:$0xff]
  %v3706 = vld [vmem:[%s7 + $0xf10] sm:$0xff]
  %v3707 = vld [vmem:[%s7 + $0xf18] sm:$0xff]
  %v3708 = vld [vmem:[%s7 + $0xf20] sm:$0xff]
  %v3709 = vld [vmem:[%s7 + $0xf28] sm:$0xff]
  %v3710 = vld [vmem:[%s7 + $0xf30] sm:$0xff]
  %v3711 = vld [vmem:[%s7 + $0xf38] sm:$0xff]
  %v3712 = vld [vmem:[%s7 + $0xf40] sm:$0xff]
  %v3713 = vld [vmem:[%s7 + $0xf48] sm:$0xff]
  %v3714 = vld [vmem:[%s7 + $0xf50] sm:$0xff]
  %v3715 = vld [vmem:[%s7 + $0xf58] sm:$0xff]
  %v3716 = vld [vmem:[%s7 + $0xf60] sm:$0xff]
  %v3717 = vld [vmem:[%s7 + $0xf68] sm:$0xff]
  %v3718 = vld [vmem:[%s7 + $0xf70] sm:$0xff]
  %v3719 = vld [vmem:[%s7 + $0xf78] sm:$0xff]
  %v3720 = vld [vmem:[%s7 + $0xf80] sm:$0xff]
  %v3721 = vld [vmem:[%s7 + $0xf88] sm:$0xff]
  %v3722 = vld [vmem:[%s7 + $0xf90] sm:$0xff]
  %v3723 = vld [vmem:[%s7 + $0xf98] sm:$0xff]
  %v3724 = vld [vmem:[%s7 + $0xfa0] sm:$0xff]
  %v3725 = vld [vmem:[%s7 + $0xfa8] sm:$0xff]
  %v3726 = vld [vmem:[%s7 + $0xfb0] sm:$0xff]
  %v3727 = vld [vmem:[%s7 + $0xfb8] sm:$0xff]
  %v3728 = vld [vmem:[%s7 + $0xfc0] sm:$0xff]
  %v3729 = vld [vmem:[%s7 + $0xfc8] sm:$0xff]
  %v3730 = vld [vmem:[%s7 + $0xfd0] sm:$0xff]
  %v3731 = vld [vmem:[%s7 + $0xfd8] sm:$0xff]
  %v3732 = vld [vmem:[%s7 + $0xfe0] sm:$0xff]
  %v3733 = vld [vmem:[%s7 + $0xfe8] sm:$0xff]
  %v3734 = vld [vmem:[%s7 + $0xff0] sm:$0xff]
  %v3735 = vld [vmem:[%s7 + $0xff8] sm:$0xff]
  %v3736 = vld [vmem:[%s7 + $0x1000] sm:$0xff]
  %v3737 = vld [vmem:[%s7 + $0x1008] sm:$0xff]
  %v3738 = vld [vmem:[%s7 + $0x1010] sm:$0xff]
  %v3739 = vld [vmem:[%s7 + $0x1018] sm:$0xff]
  %v3740 = vld [vmem:[%s7 + $0x1020] sm:$0xff]
  %v3741 = vld [vmem:[%s7 + $0x1028] sm:$0xff]
  %v3742 = vld [vmem:[%s7 + $0x1030] sm:$0xff]
  %v3743 = vld [vmem:[%s7 + $0x1038] sm:$0xff]
  %v3744 = vld [vmem:[%s7 + $0x1040] sm:$0xff]
  %v3745 = vld [vmem:[%s7 + $0x1048] sm:$0xff]
  %v3746 = vld [vmem:[%s7 + $0x1050] sm:$0xff]
  %v3747 = vld [vmem:[%s7 + $0x1058] sm:$0xff]
  %v3748 = vld [vmem:[%s7 + $0x1060] sm:$0xff]
  %v3749 = vld [vmem:[%s7 + $0x1068] sm:$0xff]
  %v3750 = vld [vmem:[%s7 + $0x1070] sm:$0xff]
  %v3751 = vld [vmem:[%s7 + $0x1078] sm:$0xff]
  %v3752 = vld [vmem:[%s7 + $0x1080] sm:$0xff]
  %v3753 = vld [vmem:[%s7 + $0x1088] sm:$0xff]
  %v3754 = vld [vmem:[%s7 + $0x1090] sm:$0xff]
  %v3755 = vld [vmem:[%s7 + $0x1098] sm:$0xff]
  %v3756 = vld [vmem:[%s7 + $0x10a0] sm:$0xff]
  %v3757 = vld [vmem:[%s7 + $0x10a8] sm:$0xff]
  %v3758 = vld [vmem:[%s7 + $0x10b0] sm:$0xff]
  %v3759 = vld [vmem:[%s7 + $0x10b8] sm:$0xff]
  %v3760 = vld [vmem:[%s7 + $0x10c0] sm:$0xff]
  %v3761 = vld [vmem:[%s7 + $0x10c8] sm:$0xff]
  %v3762 = vld [vmem:[%s7 + $0x10d0] sm:$0xff]
  %v3763 = vld [vmem:[%s7 + $0x10d8] sm:$0xff]
  %v3764 = vld [vmem:[%s7 + $0x10e0] sm:$0xff]
  %v3765 = vld [vmem:[%s7 + $0x10e8] sm:$0xff]
  %v3766 = vld [vmem:[%s7 + $0x10f0] sm:$0xff]
  %v3767 = vld [vmem:[%s7 + $0x10f8] sm:$0xff]
  %v3768 = vld [vmem:[%s7 + $0x1100] sm:$0xff]
  %v3769 = vld [vmem:[%s7 + $0x1108] sm:$0xff]
  %v3770 = vld [vmem:[%s7 + $0x1110] sm:$0xff]
  %v3771 = vld [vmem:[%s7 + $0x1118] sm:$0xff]
  %v3772 = vld [vmem:[%s7 + $0x1120] sm:$0xff]
  %v3773 = vld [vmem:[%s7 + $0x1128] sm:$0xff]
  %v3774 = vld [vmem:[%s7 + $0x1130] sm:$0xff]
  %v3775 = vld [vmem:[%s7 + $0x1138] sm:$0xff]
  %v3776 = vld [vmem:[%s7 + $0x1140] sm:$0xff]
  %v3777 = vld [vmem:[%s7 + $0x1148] sm:$0xff]
  %v3778 = vld [vmem:[%s7 + $0x1150] sm:$0xff]
  %v3779 = vld [vmem:[%s7 + $0x1158] sm:$0xff]
  %v3780 = vld [vmem:[%s7 + $0x1160] sm:$0xff]
  %v3781 = vld [vmem:[%s7 + $0x1168] sm:$0xff]
  %v3782 = vld [vmem:[%s7 + $0x1170] sm:$0xff]
  %v3783 = vld [vmem:[%s7 + $0x1178] sm:$0xff]
  %v3784 = vld [vmem:[%s7 + $0x1180] sm:$0xff]
  %v3785 = vld [vmem:[%s7 + $0x1188] sm:$0xff]
  %v3786 = vld [vmem:[%s7 + $0x1190] sm:$0xff]
  %v3787 = vld [vmem:[%s7 + $0x1198] sm:$0xff]
  %v3788 = vld [vmem:[%s7 + $0x11a0] sm:$0xff]
  %v3789 = vld [vmem:[%s7 + $0x11a8] sm:$0xff]
  %v3790 = vld [vmem:[%s7 + $0x11b0] sm:$0xff]
  %v3791 = vld [vmem:[%s7 + $0x11b8] sm:$0xff]
  %v3792 = vld [vmem:[%s7 + $0x11c0] sm:$0xff]
  %v3793 = vld [vmem:[%s7 + $0x11c8] sm:$0xff]
  %v3794 = vld [vmem:[%s7 + $0x11d0] sm:$0xff]
  %v3795 = vld [vmem:[%s7 + $0x11d8] sm:$0xff]
  %v3796 = vld [vmem:[%s7 + $0x11e0] sm:$0xff]
  %v3797 = vld [vmem:[%s7 + $0x11e8] sm:$0xff]
  %v3798 = vld [vmem:[%s7 + $0x11f0] sm:$0xff]
  %v3799 = vld [vmem:[%s7 + $0x11f8] sm:$0xff]
  %v3800 = vld [vmem:[%s7 + $0x1200] sm:$0xff]
  %v3801 = vld [vmem:[%s7 + $0x1208] sm:$0xff]
  %v3802 = vld [vmem:[%s7 + $0x1210] sm:$0xff]
  %v3803 = vld [vmem:[%s7 + $0x1218] sm:$0xff]
  %v3804 = vld [vmem:[%s7 + $0x1220] sm:$0xff]
  %v3805 = vld [vmem:[%s7 + $0x1228] sm:$0xff]
  %v3806 = vld [vmem:[%s7 + $0x1230] sm:$0xff]
  %v3807 = vld [vmem:[%s7 + $0x1238] sm:$0xff]
  %v3808 = vld [vmem:[%s7 + $0x1240] sm:$0xff]
  %v3809 = vld [vmem:[%s7 + $0x1248] sm:$0xff]
  %v3810 = vld [vmem:[%s7 + $0x1250] sm:$0xff]
  %v3811 = vld [vmem:[%s7 + $0x1258] sm:$0xff]
  %v3812 = vld [vmem:[%s7 + $0x1260] sm:$0xff]
  %v3813 = vld [vmem:[%s7 + $0x1268] sm:$0xff]
  %v3814 = vld [vmem:[%s7 + $0x1270] sm:$0xff]
  %v3815 = vld [vmem:[%s7 + $0x1278] sm:$0xff]
  %v3816 = vld [vmem:[%s7 + $0x1280] sm:$0xff]
  %v3817 = vld [vmem:[%s7 + $0x1288] sm:$0xff]
  %v3818 = vld [vmem:[%s7 + $0x1290] sm:$0xff]
  %v3819 = vld [vmem:[%s7 + $0x1298] sm:$0xff]
  %v3820 = vld [vmem:[%s7 + $0x12a0] sm:$0xff]
  %v3821 = vld [vmem:[%s7 + $0x12a8] sm:$0xff]
  %v3822 = vld [vmem:[%s7 + $0x12b0] sm:$0xff]
  %v3823 = vld [vmem:[%s7 + $0x12b8] sm:$0xff]
  %v3824 = vld [vmem:[%s7 + $0x12c0] sm:$0xff]
  %v3825 = vld [vmem:[%s7 + $0x12c8] sm:$0xff]
  %v3826 = vld [vmem:[%s7 + $0x12d0] sm:$0xff]
  %v3827 = vld [vmem:[%s7 + $0x12d8] sm:$0xff]
  %v3828 = vld [vmem:[%s7 + $0x12e0] sm:$0xff]
  %v3829 = vld [vmem:[%s7 + $0x12e8] sm:$0xff]
  %v3830 = vld [vmem:[%s7 + $0x12f0] sm:$0xff]
  %v3831 = vld [vmem:[%s7 + $0x12f8] sm:$0xff]
  %v3832 = vld [vmem:[%s7 + $0x1300] sm:$0xff]
  %v3833 = vld [vmem:[%s7 + $0x1308] sm:$0xff]
  %v3834 = vld [vmem:[%s7 + $0x1310] sm:$0xff]
  %v3835 = vld [vmem:[%s7 + $0x1318] sm:$0xff]
  %v3836 = vld [vmem:[%s7 + $0x1320] sm:$0xff]
  %v3837 = vld [vmem:[%s7 + $0x1328] sm:$0xff]
  %v3838 = vld [vmem:[%s7 + $0x1330] sm:$0xff]
  %v3839 = vld [vmem:[%s7 + $0x1338] sm:$0xff]
  %v3840 = vld [vmem:[%s7 + $0x1340] sm:$0xff]
  %v3841 = vld [vmem:[%s7 + $0x1348] sm:$0xff]
  %v3842 = vld [vmem:[%s7 + $0x1350] sm:$0xff]
  %v3843 = vld [vmem:[%s7 + $0x1358] sm:$0xff]
  %v3844 = vld [vmem:[%s7 + $0x1360] sm:$0xff]
  %v3845 = vld [vmem:[%s7 + $0x1368] sm:$0xff]
  %v3846 = vld [vmem:[%s7 + $0x1370] sm:$0xff]
  %v3847 = vld [vmem:[%s7 + $0x1378] sm:$0xff]
  %v3848 = vld [vmem:[%s7 + $0x1380] sm:$0xff]
  %v3849 = vld [vmem:[%s7 + $0x1388] sm:$0xff]
  %v3850 = vld [vmem:[%s7 + $0x1390] sm:$0xff]
  %v3851 = vld [vmem:[%s7 + $0x1398] sm:$0xff]
  %v3852 = vld [vmem:[%s7 + $0x13a0] sm:$0xff]
  %v3853 = vld [vmem:[%s7 + $0x13a8] sm:$0xff]
  %v3854 = vld [vmem:[%s7 + $0x13b0] sm:$0xff]
  %v3855 = vld [vmem:[%s7 + $0x13b8] sm:$0xff]
  %v3856 = vld [vmem:[%s7 + $0x13c0] sm:$0xff]
  %v3857 = vld [vmem:[%s7 + $0x13c8] sm:$0xff]
  %v3858 = vld [vmem:[%s7 + $0x13d0] sm:$0xff]
  %v3859 = vld [vmem:[%s7 + $0x13d8] sm:$0xff]
  %v3860 = vld [vmem:[%s7 + $0x13e0] sm:$0xff]
  %v3861 = vld [vmem:[%s7 + $0x13e8] sm:$0xff]
  %v3862 = vld [vmem:[%s7 + $0x13f0] sm:$0xff]
  %v3863 = vld [vmem:[%s7 + $0x13f8] sm:$0xff]
  %v3864 = vld [vmem:[%s7 + $0x1400] sm:$0xff]
  %v3865 = vld [vmem:[%s7 + $0x1408] sm:$0xff]
  %v3866 = vld [vmem:[%s7 + $0x1410] sm:$0xff]
  %v3867 = vld [vmem:[%s7 + $0x1418] sm:$0xff]
  %v3868 = vld [vmem:[%s7 + $0x1420] sm:$0xff]
  %v3869 = vld [vmem:[%s7 + $0x1428] sm:$0xff]
  %v3870 = vld [vmem:[%s7 + $0x1430] sm:$0xff]
  %v3871 = vld [vmem:[%s7 + $0x1438] sm:$0xff]
  %v3872 = vld [vmem:[%s7 + $0x1440] sm:$0xff]
  %v3873 = vld [vmem:[%s7 + $0x1448] sm:$0xff]
  %v3874 = vld [vmem:[%s7 + $0x1450] sm:$0xff]
  %v3875 = vld [vmem:[%s7 + $0x1458] sm:$0xff]
  %v3876 = vld [vmem:[%s7 + $0x1460] sm:$0xff]
  %v3877 = vld [vmem:[%s7 + $0x1468] sm:$0xff]
  %v3878 = vld [vmem:[%s7 + $0x1470] sm:$0xff]
  %v3879 = vld [vmem:[%s7 + $0x1478] sm:$0xff]
  %v3880 = vld [vmem:[%s7 + $0x1480] sm:$0xff]
  %v3881 = vld [vmem:[%s7 + $0x1488] sm:$0xff]
  %v3882 = vld [vmem:[%s7 + $0x1490] sm:$0xff]
  %v3883 = vld [vmem:[%s7 + $0x1498] sm:$0xff]
  %v3884 = vld [vmem:[%s7 + $0x14a0] sm:$0xff]
  %v3885 = vld [vmem:[%s7 + $0x14a8] sm:$0xff]
  %v3886 = vld [vmem:[%s7 + $0x14b0] sm:$0xff]
  %v3887 = vld [vmem:[%s7 + $0x14b8] sm:$0xff]
  %v3888 = vld [vmem:[%s7 + $0x14c0] sm:$0xff]
  %v3889 = vld [vmem:[%s7 + $0x14c8] sm:$0xff]
  %v3890 = vld [vmem:[%s7 + $0x14d0] sm:$0xff]
  %v3891 = vld [vmem:[%s7 + $0x14d8] sm:$0xff]
  %v3892 = vld [vmem:[%s7 + $0x14e0] sm:$0xff]
  %v3893 = vld [vmem:[%s7 + $0x14e8] sm:$0xff]
  %v3894 = vld [vmem:[%s7 + $0x14f0] sm:$0xff]
  %v3895 = vld [vmem:[%s7 + $0x14f8] sm:$0xff]
  %v3896 = vld [vmem:[%s7 + $0x1500] sm:$0xff]
  %v3897 = vld [vmem:[%s7 + $0x1508] sm:$0xff]
  %v3898 = vld [vmem:[%s7 + $0x1510] sm:$0xff]
  %v3899 = vld [vmem:[%s7 + $0x1518] sm:$0xff]
  %v3900 = vld [vmem:[%s7 + $0x1520] sm:$0xff]
  %v3901 = vld [vmem:[%s7 + $0x1528] sm:$0xff]
  %v3902 = vld [vmem:[%s7 + $0x1530] sm:$0xff]
  %v3903 = vld [vmem:[%s7 + $0x1538] sm:$0xff]
  %v3904 = vld [vmem:[%s7 + $0x1540] sm:$0xff]
  %v3905 = vld [vmem:[%s7 + $0x1548] sm:$0xff]
  %v3906 = vld [vmem:[%s7 + $0x1550] sm:$0xff]
  %v3907 = vld [vmem:[%s7 + $0x1558] sm:$0xff]
  %v3908 = vld [vmem:[%s7 + $0x1560] sm:$0xff]
  %v3909 = vld [vmem:[%s7 + $0x1568] sm:$0xff]
  %v3910 = vld [vmem:[%s7 + $0x1570] sm:$0xff]
  %v3911 = vld [vmem:[%s7 + $0x1578] sm:$0xff]
  %v3912 = vld [vmem:[%s7 + $0x1580] sm:$0xff]
  %v3913 = vld [vmem:[%s7 + $0x1588] sm:$0xff]
  %v3914 = vld [vmem:[%s7 + $0x1590] sm:$0xff]
  %v3915 = vld [vmem:[%s7 + $0x1598] sm:$0xff]
  %v3916 = vld [vmem:[%s7 + $0x15a0] sm:$0xff]
  %v3917 = vld [vmem:[%s7 + $0x15a8] sm:$0xff]
  %v3918 = vld [vmem:[%s7 + $0x15b0] sm:$0xff]
  %v3919 = vld [vmem:[%s7 + $0x15b8] sm:$0xff]
  %v3920 = vld [vmem:[%s7 + $0x15c0] sm:$0xff]
  %v3921 = vld [vmem:[%s7 + $0x15c8] sm:$0xff]
  %v3922 = vld [vmem:[%s7 + $0x15d0] sm:$0xff]
  %v3923 = vld [vmem:[%s7 + $0x15d8] sm:$0xff]
  %v3924 = vld [vmem:[%s7 + $0x15e0] sm:$0xff]
  %v3925 = vld [vmem:[%s7 + $0x15e8] sm:$0xff]
  %v3926 = vld [vmem:[%s7 + $0x15f0] sm:$0xff]
  %v3927 = vld [vmem:[%s7 + $0x15f8] sm:$0xff]
  %v3928 = vld [vmem:[%s7 + $0x1600] sm:$0xff]
  %v3929 = vld [vmem:[%s7 + $0x1608] sm:$0xff]
  %v3930 = vld [vmem:[%s7 + $0x1610] sm:$0xff]
  %v3931 = vld [vmem:[%s7 + $0x1618] sm:$0xff]
  %v3932 = vld [vmem:[%s7 + $0x1620] sm:$0xff]
  %v3933 = vld [vmem:[%s7 + $0x1628] sm:$0xff]
  %v3934 = vld [vmem:[%s7 + $0x1630] sm:$0xff]
  %v3935 = vld [vmem:[%s7 + $0x1638] sm:$0xff]
  %v3936 = vld [vmem:[%s7 + $0x1640] sm:$0xff]
  %v3937 = vld [vmem:[%s7 + $0x1648] sm:$0xff]
  %v3938 = vld [vmem:[%s7 + $0x1650] sm:$0xff]
  %v3939 = vld [vmem:[%s7 + $0x1658] sm:$0xff]
  %v3940 = vld [vmem:[%s7 + $0x1660] sm:$0xff]
  %v3941 = vld [vmem:[%s7 + $0x1668] sm:$0xff]
  %v3942 = vld [vmem:[%s7 + $0x1670] sm:$0xff]
  %v3943 = vld [vmem:[%s7 + $0x1678] sm:$0xff]
  %v3944 = vld [vmem:[%s7 + $0x1680] sm:$0xff]
  %v3945 = vld [vmem:[%s7 + $0x1688] sm:$0xff]
  %v3946 = vld [vmem:[%s7 + $0x1690] sm:$0xff]
  %v3947 = vld [vmem:[%s7 + $0x1698] sm:$0xff]
  %v3948 = vld [vmem:[%s7 + $0x16a0] sm:$0xff]
  %v3949 = vld [vmem:[%s7 + $0x16a8] sm:$0xff]
  %v3950 = vld [vmem:[%s7 + $0x16b0] sm:$0xff]
  %v3951 = vld [vmem:[%s7 + $0x16b8] sm:$0xff]
  %v3952 = vld [vmem:[%s7 + $0x16c0] sm:$0xff]
  %v3953 = vld [vmem:[%s7 + $0x16c8] sm:$0xff]
  %v3954 = vld [vmem:[%s7 + $0x16d0] sm:$0xff]
  %v3955 = vld [vmem:[%s7 + $0x16d8] sm:$0xff]
  %v3956 = vld [vmem:[%s7 + $0x16e0] sm:$0xff]
  %v3957 = vld [vmem:[%s7 + $0x16e8] sm:$0xff]
  %v3958 = vld [vmem:[%s7 + $0x16f0] sm:$0xff]
  %v3959 = vld [vmem:[%s7 + $0x16f8] sm:$0xff]
  %v3960 = vld [vmem:[%s7 + $0x1700] sm:$0xff]
  %v3961 = vld [vmem:[%s7 + $0x1708] sm:$0xff]
  %v3962 = vld [vmem:[%s7 + $0x1710] sm:$0xff]
  %v3963 = vld [vmem:[%s7 + $0x1718] sm:$0xff]
  %v3964 = vld [vmem:[%s7 + $0x1720] sm:$0xff]
  %v3965 = vld [vmem:[%s7 + $0x1728] sm:$0xff]
  %v3966 = vld [vmem:[%s7 + $0x1730] sm:$0xff]
  %v3967 = vld [vmem:[%s7 + $0x1738] sm:$0xff]
  %v3968 = vld [vmem:[%s7 + $0x1740] sm:$0xff]
  %v3969 = vld [vmem:[%s7 + $0x1748] sm:$0xff]
  %v3970 = vld [vmem:[%s7 + $0x1750] sm:$0xff]
  %v3971 = vld [vmem:[%s7 + $0x1758] sm:$0xff]
  %v3972 = vld [vmem:[%s7 + $0x1760] sm:$0xff]
  %v3973 = vld [vmem:[%s7 + $0x1768] sm:$0xff]
  %v3974 = vld [vmem:[%s7 + $0x1770] sm:$0xff]
  %v3975 = vld [vmem:[%s7 + $0x1778] sm:$0xff]
  %v3976 = vld [vmem:[%s7 + $0x1780] sm:$0xff]
  %v3977 = vld [vmem:[%s7 + $0x1788] sm:$0xff]
  %v3978 = vld [vmem:[%s7 + $0x1790] sm:$0xff]
  %v3979 = vld [vmem:[%s7 + $0x1798] sm:$0xff]
  %v3980 = vld [vmem:[%s7 + $0x17a0] sm:$0xff]
  %v3981 = vld [vmem:[%s7 + $0x17a8] sm:$0xff]
  %v3982 = vld [vmem:[%s7 + $0x17b0] sm:$0xff]
  %v3983 = vld [vmem:[%s7 + $0x17b8] sm:$0xff]
  %v3984 = vld [vmem:[%s7 + $0x17c0] sm:$0xff]
  %v3985 = vld [vmem:[%s7 + $0x17c8] sm:$0xff]
  %v3986 = vld [vmem:[%s7 + $0x17d0] sm:$0xff]
  %v3987 = vld [vmem:[%s7 + $0x17d8] sm:$0xff]
  %v3988 = vld [vmem:[%s7 + $0x17e0] sm:$0xff]
  %v3989 = vld [vmem:[%s7 + $0x17e8] sm:$0xff]
  %v3990 = vld [vmem:[%s7 + $0x17f0] sm:$0xff]
  %v3991 = vld [vmem:[%s7 + $0x17f8] sm:$0xff]
  %v3992 = vld [vmem:[%s7 + $0x1800] sm:$0xff]
  %v3993 = vld [vmem:[%s7 + $0x1808] sm:$0xff]
  %v3994 = vld [vmem:[%s7 + $0x1810] sm:$0xff]
  %v3995 = vld [vmem:[%s7 + $0x1818] sm:$0xff]
  %v3996 = vld [vmem:[%s7 + $0x1820] sm:$0xff]
  %v3997 = vld [vmem:[%s7 + $0x1828] sm:$0xff]
  %v3998 = vld [vmem:[%s7 + $0x1830] sm:$0xff]
  %v3999 = vld [vmem:[%s7 + $0x1838] sm:$0xff]
  %v4000 = vld [vmem:[%s7 + $0x1840] sm:$0xff]
  %v4001 = vld [vmem:[%s7 + $0x1848] sm:$0xff]
  %v4002 = vld [vmem:[%s7 + $0x1850] sm:$0xff]
  %v4003 = vld [vmem:[%s7 + $0x1858] sm:$0xff]
  %v4004 = vld [vmem:[%s7 + $0x1860] sm:$0xff]
  %v4005 = vld [vmem:[%s7 + $0x1868] sm:$0xff]
  %v4006 = vld [vmem:[%s7 + $0x1870] sm:$0xff]
  %v4007 = vld [vmem:[%s7 + $0x1878] sm:$0xff]
  %v4008 = vld [vmem:[%s7 + $0x1880] sm:$0xff]
  %v4009 = vld [vmem:[%s7 + $0x1888] sm:$0xff]
  %v4010 = vld [vmem:[%s7 + $0x1890] sm:$0xff]
  %v4011 = vld [vmem:[%s7 + $0x1898] sm:$0xff]
  %v4012 = vld [vmem:[%s7 + $0x18a0] sm:$0xff]
  %v4013 = vld [vmem:[%s7 + $0x18a8] sm:$0xff]
  %v4014 = vld [vmem:[%s7 + $0x18b0] sm:$0xff]
  %v4015 = vld [vmem:[%s7 + $0x18b8] sm:$0xff]
  %v4016 = vld [vmem:[%s7 + $0x18c0] sm:$0xff]
  %v4017 = vld [vmem:[%s7 + $0x18c8] sm:$0xff]
  %v4018 = vld [vmem:[%s7 + $0x18d0] sm:$0xff]
  %v4019 = vld [vmem:[%s7 + $0x18d8] sm:$0xff]
  %v4020 = vld [vmem:[%s7 + $0x18e0] sm:$0xff]
  %v4021 = vld [vmem:[%s7 + $0x18e8] sm:$0xff]
  %v4022 = vld [vmem:[%s7 + $0x18f0] sm:$0xff]
  %v4023 = vld [vmem:[%s7 + $0x18f8] sm:$0xff]
  %v4024 = vld [vmem:[%s7 + $0x1900] sm:$0xff]
  %v4025 = vld [vmem:[%s7 + $0x1908] sm:$0xff]
  %v4026 = vld [vmem:[%s7 + $0x1910] sm:$0xff]
  %v4027 = vld [vmem:[%s7 + $0x1918] sm:$0xff]
  %v4028 = vld [vmem:[%s7 + $0x1920] sm:$0xff]
  %v4029 = vld [vmem:[%s7 + $0x1928] sm:$0xff]
  %v4030 = vld [vmem:[%s7 + $0x1930] sm:$0xff]
  %v4031 = vld [vmem:[%s7 + $0x1938] sm:$0xff]
  %v4032 = vld [vmem:[%s7 + $0x1940] sm:$0xff]
  %v4033 = vld [vmem:[%s7 + $0x1948] sm:$0xff]
  %v4034 = vld [vmem:[%s7 + $0x1950] sm:$0xff]
  %v4035 = vld [vmem:[%s7 + $0x1958] sm:$0xff]
  %v4036 = vld [vmem:[%s7 + $0x1960] sm:$0xff]
  %v4037 = vld [vmem:[%s7 + $0x1968] sm:$0xff]
  %v4038 = vld [vmem:[%s7 + $0x1970] sm:$0xff]
  %v4039 = vld [vmem:[%s7 + $0x1978] sm:$0xff]
  %v4040 = vld [vmem:[%s7 + $0x1980] sm:$0xff]
  %v4041 = vld [vmem:[%s7 + $0x1988] sm:$0xff]
  %v4042 = vld [vmem:[%s7 + $0x1990] sm:$0xff]
  %v4043 = vld [vmem:[%s7 + $0x1998] sm:$0xff]
  %v4044 = vld [vmem:[%s7 + $0x19a0] sm:$0xff]
  %v4045 = vld [vmem:[%s7 + $0x19a8] sm:$0xff]
  %v4046 = vld [vmem:[%s7 + $0x19b0] sm:$0xff]
  %v4047 = vld [vmem:[%s7 + $0x19b8] sm:$0xff]
  %v4048 = vld [vmem:[%s7 + $0x19c0] sm:$0xff]
  %v4049 = vld [vmem:[%s7 + $0x19c8] sm:$0xff]
  %v4050 = vld [vmem:[%s7 + $0x19d0] sm:$0xff]
  %v4051 = vld [vmem:[%s7 + $0x19d8] sm:$0xff]
  %v4052 = vld [vmem:[%s7 + $0x19e0] sm:$0xff]
  %v4053 = vld [vmem:[%s7 + $0x19e8] sm:$0xff]
  %v4054 = vld [vmem:[%s7 + $0x19f0] sm:$0xff]
  %v4055 = vld [vmem:[%s7 + $0x19f8] sm:$0xff]
  %v4056 = vld [vmem:[%s7 + $0x1a00] sm:$0xff]
  %v4057 = vld [vmem:[%s7 + $0x1a08] sm:$0xff]
  %v4058 = vld [vmem:[%s7 + $0x1a10] sm:$0xff]
  %v4059 = vld [vmem:[%s7 + $0x1a18] sm:$0xff]
  %v4060 = vld [vmem:[%s7 + $0x1a20] sm:$0xff]
  %v4061 = vld [vmem:[%s7 + $0x1a28] sm:$0xff]
  %v4062 = vld [vmem:[%s7 + $0x1a30] sm:$0xff]
  %v4063 = vld [vmem:[%s7 + $0x1a38] sm:$0xff]
  %v4064 = vld [vmem:[%s7 + $0x1a40] sm:$0xff]
  %v4065 = vld [vmem:[%s7 + $0x1a48] sm:$0xff]
  %v4066 = vld [vmem:[%s7 + $0x1a50] sm:$0xff]
  %v4067 = vld [vmem:[%s7 + $0x1a58] sm:$0xff]
  %v4068 = vld [vmem:[%s7 + $0x1a60] sm:$0xff]
  %v4069 = vld [vmem:[%s7 + $0x1a68] sm:$0xff]
  %v4070 = vld [vmem:[%s7 + $0x1a70] sm:$0xff]
  %v4071 = vld [vmem:[%s7 + $0x1a78] sm:$0xff]
  %v4072 = vld [vmem:[%s7 + $0x1a80] sm:$0xff]
  %v4073 = vld [vmem:[%s7 + $0x1a88] sm:$0xff]
  %v4074 = vld [vmem:[%s7 + $0x1a90] sm:$0xff]
  %v4075 = vld [vmem:[%s7 + $0x1a98] sm:$0xff]
  %v4076 = vld [vmem:[%s7 + $0x1aa0] sm:$0xff]
  %v4077 = vld [vmem:[%s7 + $0x1aa8] sm:$0xff]
  %v4078 = vld [vmem:[%s7 + $0x1ab0] sm:$0xff]
  %v4079 = vld [vmem:[%s7 + $0x1ab8] sm:$0xff]
  %v4080 = vld [vmem:[%s7 + $0x1ac0] sm:$0xff]
  %v4081 = vld [vmem:[%s7 + $0x1ac8] sm:$0xff]
  %v4082 = vld [vmem:[%s7 + $0x1ad0] sm:$0xff]
  %v4083 = vld [vmem:[%s7 + $0x1ad8] sm:$0xff]
  %v4084 = vld [vmem:[%s7 + $0x1ae0] sm:$0xff]
  %v4085 = vld [vmem:[%s7 + $0x1ae8] sm:$0xff]
  %v4086 = vld [vmem:[%s7 + $0x1af0] sm:$0xff]
  %v4087 = vld [vmem:[%s7 + $0x1af8] sm:$0xff]
  %v4088 = vld [vmem:[%s7 + $0x1b00] sm:$0xff]
  %v4089 = vld [vmem:[%s7 + $0x1b08] sm:$0xff]
  %v4090 = vld [vmem:[%s7 + $0x1b10] sm:$0xff]
  %v4091 = vld [vmem:[%s7 + $0x1b18] sm:$0xff]
  %v4092 = vld [vmem:[%s7 + $0x1b20] sm:$0xff]
  %v4093 = vld [vmem:[%s7 + $0x1b28] sm:$0xff]
  %v4094 = vld [vmem:[%s7 + $0x1b30] sm:$0xff]
  %v4095 = vld [vmem:[%s7 + $0x1b38] sm:$0xff]
  %v4096 = vld [vmem:[%s7 + $0x1b40] sm:$0xff]
  %v4097 = vld [vmem:[%s7 + $0x1b48] sm:$0xff]
  %v4098 = vld [vmem:[%s7 + $0x1b50] sm:$0xff]
  %v4099 = vld [vmem:[%s7 + $0x1b58] sm:$0xff]
  %v4100 = vld [vmem:[%s7 + $0x1b60] sm:$0xff]
  %v4101 = vld [vmem:[%s7 + $0x1b68] sm:$0xff]
  %v4102 = vld [vmem:[%s7 + $0x1b70] sm:$0xff]
  %v4103 = vld [vmem:[%s7 + $0x1b78] sm:$0xff]
  %v4104 = vld [vmem:[%s7 + $0x1b80] sm:$0xff]
  %v4105 = vld [vmem:[%s7 + $0x1b88] sm:$0xff]
  %v4106 = vld [vmem:[%s7 + $0x1b90] sm:$0xff]
  %v4107 = vld [vmem:[%s7 + $0x1b98] sm:$0xff]
  %v4108 = vld [vmem:[%s7 + $0x1ba0] sm:$0xff]
  %v4109 = vld [vmem:[%s7 + $0x1ba8] sm:$0xff]
  %v4110 = vld [vmem:[%s7 + $0x1bb0] sm:$0xff]
  %v4111 = vld [vmem:[%s7 + $0x1bb8] sm:$0xff]
  %v4112 = vld [vmem:[%s7 + $0x1bc0] sm:$0xff]
  %v4113 = vld [vmem:[%s7 + $0x1bc8] sm:$0xff]
  %v4114 = vld [vmem:[%s7 + $0x1bd0] sm:$0xff]
  %v4115 = vld [vmem:[%s7 + $0x1bd8] sm:$0xff]
  %v4116 = vld [vmem:[%s7 + $0x1be0] sm:$0xff]
  %v4117 = vld [vmem:[%s7 + $0x1be8] sm:$0xff]
  %v4118 = vld [vmem:[%s7 + $0x1bf0] sm:$0xff]
  %v4119 = vld [vmem:[%s7 + $0x1bf8] sm:$0xff]
  %v4120 = vld [vmem:[%s7 + $0x1c00] sm:$0xff]
  %v4121 = vld [vmem:[%s7 + $0x1c08] sm:$0xff]
  %v4122 = vld [vmem:[%s7 + $0x1c10] sm:$0xff]
  %v4123 = vld [vmem:[%s7 + $0x1c18] sm:$0xff]
  %v4124 = vld [vmem:[%s7 + $0x1c20] sm:$0xff]
  %v4125 = vld [vmem:[%s7 + $0x1c28] sm:$0xff]
  %v4126 = vld [vmem:[%s7 + $0x1c30] sm:$0xff]
  %v4127 = vld [vmem:[%s7 + $0x1c38] sm:$0xff]
  %v4128 = vld [vmem:[%s7 + $0x1c40] sm:$0xff]
  %v4129 = vld [vmem:[%s7 + $0x1c48] sm:$0xff]
  %v4130 = vld [vmem:[%s7 + $0x1c50] sm:$0xff]
  %v4131 = vld [vmem:[%s7 + $0x1c58] sm:$0xff]
  %v4132 = vld [vmem:[%s7 + $0x1c60] sm:$0xff]
  %v4133 = vld [vmem:[%s7 + $0x1c68] sm:$0xff]
  %v4134 = vld [vmem:[%s7 + $0x1c70] sm:$0xff]
  %v4135 = vld [vmem:[%s7 + $0x1c78] sm:$0xff]
  %v4136 = vld [vmem:[%s7 + $0x1c80] sm:$0xff]
  %v4137 = vld [vmem:[%s7 + $0x1c88] sm:$0xff]
  %v4138 = vld [vmem:[%s7 + $0x1c90] sm:$0xff]
  %v4139 = vld [vmem:[%s7 + $0x1c98] sm:$0xff]
  %v4140 = vld [vmem:[%s7 + $0x1ca0] sm:$0xff]
  %v4141 = vld [vmem:[%s7 + $0x1ca8] sm:$0xff]
  %v4142 = vld [vmem:[%s7 + $0x1cb0] sm:$0xff]
  %v4143 = vld [vmem:[%s7 + $0x1cb8] sm:$0xff]
  %v4144 = vld [vmem:[%s7 + $0x1cc0] sm:$0xff]
  %v4145 = vld [vmem:[%s7 + $0x1cc8] sm:$0xff]
  %v4146 = vld [vmem:[%s7 + $0x1cd0] sm:$0xff]
  %v4147 = vld [vmem:[%s7 + $0x1cd8] sm:$0xff]
  %v4148 = vld [vmem:[%s7 + $0x1ce0] sm:$0xff]
  %v4149 = vld [vmem:[%s7 + $0x1ce8] sm:$0xff]
  %v4150 = vld [vmem:[%s7 + $0x1cf0] sm:$0xff]
  %v4151 = vld [vmem:[%s7 + $0x1cf8] sm:$0xff]
  %v4152 = vld [vmem:[%s7 + $0x1d00] sm:$0xff]
  %v4153 = vld [vmem:[%s7 + $0x1d08] sm:$0xff]
  %v4154 = vld [vmem:[%s7 + $0x1d10] sm:$0xff]
  %v4155 = vld [vmem:[%s7 + $0x1d18] sm:$0xff]
  %v4156 = vld [vmem:[%s7 + $0x1d20] sm:$0xff]
  %v4157 = vld [vmem:[%s7 + $0x1d28] sm:$0xff]
  %v4158 = vld [vmem:[%s7 + $0x1d30] sm:$0xff]
  %v4159 = vld [vmem:[%s7 + $0x1d38] sm:$0xff]
  %v4160 = vld [vmem:[%s7 + $0x1d40] sm:$0xff]
  %v4161 = vld [vmem:[%s7 + $0x1d48] sm:$0xff]
  %v4162 = vld [vmem:[%s7 + $0x1d50] sm:$0xff]
  %v4163 = vld [vmem:[%s7 + $0x1d58] sm:$0xff]
  %v4164 = vld [vmem:[%s7 + $0x1d60] sm:$0xff]
  %v4165 = vld [vmem:[%s7 + $0x1d68] sm:$0xff]
  %v4166 = vld [vmem:[%s7 + $0x1d70] sm:$0xff]
  %v4167 = vld [vmem:[%s7 + $0x1d78] sm:$0xff]
  %v4168 = vld [vmem:[%s7 + $0x1d80] sm:$0xff]
  %v4169 = vld [vmem:[%s7 + $0x1d88] sm:$0xff]
  %v4170 = vld [vmem:[%s7 + $0x1d90] sm:$0xff]
  %v4171 = vld [vmem:[%s7 + $0x1d98] sm:$0xff]
  %v4172 = vld [vmem:[%s7 + $0x1da0] sm:$0xff]
  %v4173 = vld [vmem:[%s7 + $0x1da8] sm:$0xff]
  %v4174 = vld [vmem:[%s7 + $0x1db0] sm:$0xff]
  %v4175 = vld [vmem:[%s7 + $0x1db8] sm:$0xff]
  %v4176 = vld [vmem:[%s7 + $0x1dc0] sm:$0xff]
  %v4177 = vld [vmem:[%s7 + $0x1dc8] sm:$0xff]
  %v4178 = vld [vmem:[%s7 + $0x1dd0] sm:$0xff]
  %v4179 = vld [vmem:[%s7 + $0x1dd8] sm:$0xff]
  %v4180 = vld [vmem:[%s7 + $0x1de0] sm:$0xff]
  %v4181 = vld [vmem:[%s7 + $0x1de8] sm:$0xff]
  %v4182 = vld [vmem:[%s7 + $0x1df0] sm:$0xff]
  %v4183 = vld [vmem:[%s7 + $0x1df8] sm:$0xff]
  %v4184 = vld [vmem:[%s7 + $0x1e00] sm:$0xff]
  %v4185 = vld [vmem:[%s7 + $0x1e08] sm:$0xff]
  %v4186 = vld [vmem:[%s7 + $0x1e10] sm:$0xff]
  %v4187 = vld [vmem:[%s7 + $0x1e18] sm:$0xff]
  %v4188 = vld [vmem:[%s7 + $0x1e20] sm:$0xff]
  %v4189 = vld [vmem:[%s7 + $0x1e28] sm:$0xff]
  %v4190 = vld [vmem:[%s7 + $0x1e30] sm:$0xff]
  %v4191 = vld [vmem:[%s7 + $0x1e38] sm:$0xff]
  %v4192 = vld [vmem:[%s7 + $0x1e40] sm:$0xff]
  %v4193 = vld [vmem:[%s7 + $0x1e48] sm:$0xff]
  %v4194 = vld [vmem:[%s7 + $0x1e50] sm:$0xff]
  %v4195 = vld [vmem:[%s7 + $0x1e58] sm:$0xff]
  %v4196 = vld [vmem:[%s7 + $0x1e60] sm:$0xff]
  %v4197 = vld [vmem:[%s7 + $0x1e68] sm:$0xff]
  %v4198 = vld [vmem:[%s7 + $0x1e70] sm:$0xff]
  %v4199 = vld [vmem:[%s7 + $0x1e78] sm:$0xff]
  %v4200 = vld [vmem:[%s7 + $0x1e80] sm:$0xff]
  %v4201 = vld [vmem:[%s7 + $0x1e88] sm:$0xff]
  %v4202 = vld [vmem:[%s7 + $0x1e90] sm:$0xff]
  %v4203 = vld [vmem:[%s7 + $0x1e98] sm:$0xff]
  %v4204 = vld [vmem:[%s7 + $0x1ea0] sm:$0xff]
  %v4205 = vld [vmem:[%s7 + $0x1ea8] sm:$0xff]
  %v4206 = vld [vmem:[%s7 + $0x1eb0] sm:$0xff]
  %v4207 = vld [vmem:[%s7 + $0x1eb8] sm:$0xff]
  %v4208 = vld [vmem:[%s7 + $0x1ec0] sm:$0xff]
  %v4209 = vld [vmem:[%s7 + $0x1ec8] sm:$0xff]
  %v4210 = vld [vmem:[%s7 + $0x1ed0] sm:$0xff]
  %v4211 = vld [vmem:[%s7 + $0x1ed8] sm:$0xff]
  %v4212 = vld [vmem:[%s7 + $0x1ee0] sm:$0xff]
  %v4213 = vld [vmem:[%s7 + $0x1ee8] sm:$0xff]
  %v4214 = vld [vmem:[%s7 + $0x1ef0] sm:$0xff]
  %v4215 = vld [vmem:[%s7 + $0x1ef8] sm:$0xff]
  %v4216 = vld [vmem:[%s7 + $0x1f00] sm:$0xff]
  %v4217 = vld [vmem:[%s7 + $0x1f08] sm:$0xff]
  %v4218 = vld [vmem:[%s7 + $0x1f10] sm:$0xff]
  %v4219 = vld [vmem:[%s7 + $0x1f18] sm:$0xff]
  %v4220 = vld [vmem:[%s7 + $0x1f20] sm:$0xff]
  %v4221 = vld [vmem:[%s7 + $0x1f28] sm:$0xff]
  %v4222 = vld [vmem:[%s7 + $0x1f30] sm:$0xff]
  %v4223 = vld [vmem:[%s7 + $0x1f38] sm:$0xff]
  %v4224 = vld [vmem:[%s7 + $0x1f40] sm:$0xff]
  %v4225 = vld [vmem:[%s7 + $0x1f48] sm:$0xff]
  %v4226 = vld [vmem:[%s7 + $0x1f50] sm:$0xff]
  %v4227 = vld [vmem:[%s7 + $0x1f58] sm:$0xff]
  %v4228 = vld [vmem:[%s7 + $0x1f60] sm:$0xff]
  %v4229 = vld [vmem:[%s7 + $0x1f68] sm:$0xff]
  %v4230 = vld [vmem:[%s7 + $0x1f70] sm:$0xff]
  %v4231 = vld [vmem:[%s7 + $0x1f78] sm:$0xff]
  %v4232 = vld [vmem:[%s7 + $0x1f80] sm:$0xff]
  %v4233 = vld [vmem:[%s7 + $0x1f88] sm:$0xff]
  %v4234 = vld [vmem:[%s7 + $0x1f90] sm:$0xff]
  %v4235 = vld [vmem:[%s7 + $0x1f98] sm:$0xff]
  %v4236 = vld [vmem:[%s7 + $0x1fa0] sm:$0xff]
  %v4237 = vld [vmem:[%s7 + $0x1fa8] sm:$0xff]
  %v4238 = vld [vmem:[%s7 + $0x1fb0] sm:$0xff]
  %v4239 = vld [vmem:[%s7 + $0x1fb8] sm:$0xff]
  %v4240 = vld [vmem:[%s7 + $0x1fc0] sm:$0xff]
  %v4241 = vld [vmem:[%s7 + $0x1fc8] sm:$0xff]
  %v4242 = vld [vmem:[%s7 + $0x1fd0] sm:$0xff]
  %v4243 = vld [vmem:[%s7 + $0x1fd8] sm:$0xff]
  %v4244 = vld [vmem:[%s7 + $0x1fe0] sm:$0xff]
  %v4245 = vld [vmem:[%s7 + $0x1fe8] sm:$0xff]
  %v4246 = vld [vmem:[%s7 + $0x1ff0] sm:$0xff]
  %v4247 = vld [vmem:[%s7 + $0x1ff8] sm:$0xff]
  %v4248 = vld [vmem:[%s7 + $0x2000] sm:$0xff]
  %v4249 = vld [vmem:[%s7 + $0x2008] sm:$0xff]
  %v4250 = vld [vmem:[%s7 + $0x2010] sm:$0xff]
  %v4251 = vld [vmem:[%s7 + $0x2018] sm:$0xff]
  %v4252 = vld [vmem:[%s7 + $0x2020] sm:$0xff]
  %v4253 = vld [vmem:[%s7 + $0x2028] sm:$0xff]
  %v4254 = vld [vmem:[%s7 + $0x2030] sm:$0xff]
  %v4255 = vld [vmem:[%s7 + $0x2038] sm:$0xff]
  %v4256 = vld [vmem:[%s7 + $0x2040] sm:$0xff]
  %v4257 = vld [vmem:[%s7 + $0x2048] sm:$0xff]
  %v4258 = vld [vmem:[%s7 + $0x2050] sm:$0xff]
  %v4259 = vld [vmem:[%s7 + $0x2058] sm:$0xff]
  %v4260 = vld [vmem:[%s7 + $0x2060] sm:$0xff]
  %v4261 = vld [vmem:[%s7 + $0x2068] sm:$0xff]
  %v4262 = vld [vmem:[%s7 + $0x2070] sm:$0xff]
  %v4263 = vld [vmem:[%s7 + $0x2078] sm:$0xff]
  %v4264 = vld [vmem:[%s7 + $0x2080] sm:$0xff]
  %v4265 = vld [vmem:[%s7 + $0x2088] sm:$0xff]
  %v4266 = vld [vmem:[%s7 + $0x2090] sm:$0xff]
  %v4267 = vld [vmem:[%s7 + $0x2098] sm:$0xff]
  %v4268 = vld [vmem:[%s7 + $0x20a0] sm:$0xff]
  %v4269 = vld [vmem:[%s7 + $0x20a8] sm:$0xff]
  %v4270 = vld [vmem:[%s7 + $0x20b0] sm:$0xff]
  %v4271 = vld [vmem:[%s7 + $0x20b8] sm:$0xff]
  %v4272 = vld [vmem:[%s7 + $0x20c0] sm:$0xff]
  %v4273 = vld [vmem:[%s7 + $0x20c8] sm:$0xff]
  %v4274 = vld [vmem:[%s7 + $0x20d0] sm:$0xff]
  %v4275 = vld [vmem:[%s7 + $0x20d8] sm:$0xff]
  %v4276 = vld [vmem:[%s7 + $0x20e0] sm:$0xff]
  %v4277 = vld [vmem:[%s7 + $0x20e8] sm:$0xff]
  %v4278 = vld [vmem:[%s7 + $0x20f0] sm:$0xff]
  %v4279 = vld [vmem:[%s7 + $0x20f8] sm:$0xff]
  %v4280 = vld [vmem:[%s7 + $0x2100] sm:$0xff]
  %v4281 = vld [vmem:[%s7 + $0x2108] sm:$0xff]
  %v4282 = vld [vmem:[%s7 + $0x2110] sm:$0xff]
  %v4283 = vld [vmem:[%s7 + $0x2118] sm:$0xff]
  %v4284 = vld [vmem:[%s7 + $0x2120] sm:$0xff]
  %v4285 = vld [vmem:[%s7 + $0x2128] sm:$0xff]
  %v4286 = vld [vmem:[%s7 + $0x2130] sm:$0xff]
  %v4287 = vld [vmem:[%s7 + $0x2138] sm:$0xff]
  %v4288 = vld [vmem:[%s7 + $0x2140] sm:$0xff]
  %v4289 = vld [vmem:[%s7 + $0x2148] sm:$0xff]
  %v4290 = vld [vmem:[%s7 + $0x2150] sm:$0xff]
  %v4291 = vld [vmem:[%s7 + $0x2158] sm:$0xff]
  %v4292 = vld [vmem:[%s7 + $0x2160] sm:$0xff]
  %v4293 = vld [vmem:[%s7 + $0x2168] sm:$0xff]
  %v4294 = vld [vmem:[%s7 + $0x2170] sm:$0xff]
  %v4295 = vld [vmem:[%s7 + $0x2178] sm:$0xff]
  %v4296 = vld [vmem:[%s7 + $0x2180] sm:$0xff]
  %v4297 = vld [vmem:[%s7 + $0x2188] sm:$0xff]
  %v4298 = vld [vmem:[%s7 + $0x2190] sm:$0xff]
  %v4299 = vld [vmem:[%s7 + $0x2198] sm:$0xff]
  %v4300 = vld [vmem:[%s7 + $0x21a0] sm:$0xff]
  %v4301 = vld [vmem:[%s7 + $0x21a8] sm:$0xff]
  %v4302 = vld [vmem:[%s7 + $0x21b0] sm:$0xff]
  %v4303 = vld [vmem:[%s7 + $0x21b8] sm:$0xff]
  %v4304 = vld [vmem:[%s7 + $0x21c0] sm:$0xff]
  %v4305 = vld [vmem:[%s7 + $0x21c8] sm:$0xff]
  %v4306 = vld [vmem:[%s7 + $0x21d0] sm:$0xff]
  %v4307 = vld [vmem:[%s7 + $0x21d8] sm:$0xff]
  %v4308 = vld [vmem:[%s7 + $0x21e0] sm:$0xff]
  %v4309 = vld [vmem:[%s7 + $0x21e8] sm:$0xff]
  %v4310 = vld [vmem:[%s7 + $0x21f0] sm:$0xff]
  %v4311 = vld [vmem:[%s7 + $0x21f8] sm:$0xff]
  %v4312 = vld [vmem:[%s7 + $0x2200] sm:$0xff]
  %v4313 = vld [vmem:[%s7 + $0x2208] sm:$0xff]
  %v4314 = vld [vmem:[%s7 + $0x2210] sm:$0xff]
  %v4315 = vld [vmem:[%s7 + $0x2218] sm:$0xff]
  %v4316 = vld [vmem:[%s7 + $0x2220] sm:$0xff]
  %v4317 = vld [vmem:[%s7 + $0x2228] sm:$0xff]
  %v4318 = vld [vmem:[%s7 + $0x2230] sm:$0xff]
  %v4319 = vld [vmem:[%s7 + $0x2238] sm:$0xff]
  %v4320 = vld [vmem:[%s7 + $0x2240] sm:$0xff]
  %v4321 = vld [vmem:[%s7 + $0x2248] sm:$0xff]
  %v4322 = vld [vmem:[%s7 + $0x2250] sm:$0xff]
  %v4323 = vld [vmem:[%s7 + $0x2258] sm:$0xff]
  %v4324 = vld [vmem:[%s7 + $0x2260] sm:$0xff]
  %v4325 = vld [vmem:[%s7 + $0x2268] sm:$0xff]
  %v4326 = vld [vmem:[%s7 + $0x2270] sm:$0xff]
  %v4327 = vld [vmem:[%s7 + $0x2278] sm:$0xff]
  %v4328 = vld [vmem:[%s7 + $0x2280] sm:$0xff]
  %v4329 = vld [vmem:[%s7 + $0x2288] sm:$0xff]
  %v4330 = vld [vmem:[%s7 + $0x2290] sm:$0xff]
  %v4331 = vld [vmem:[%s7 + $0x2298] sm:$0xff]
  %v4332 = vld [vmem:[%s7 + $0x22a0] sm:$0xff]
  %v4333 = vld [vmem:[%s7 + $0x22a8] sm:$0xff]
  %v4334 = vld [vmem:[%s7 + $0x22b0] sm:$0xff]
  %v4335 = vld [vmem:[%s7 + $0x22b8] sm:$0xff]
  %v4336 = vld [vmem:[%s7 + $0x22c0] sm:$0xff]
  %v4337 = vld [vmem:[%s7 + $0x22c8] sm:$0xff]
  %v4338 = vld [vmem:[%s7 + $0x22d0] sm:$0xff]
  %v4339 = vld [vmem:[%s7 + $0x22d8] sm:$0xff]
  %v4340 = vld [vmem:[%s7 + $0x22e0] sm:$0xff]
  %v4341 = vld [vmem:[%s7 + $0x22e8] sm:$0xff]
  %v4342 = vld [vmem:[%s7 + $0x22f0] sm:$0xff]
  %v4343 = vld [vmem:[%s7 + $0x22f8] sm:$0xff]
  %v4344 = vld [vmem:[%s7 + $0x2300] sm:$0xff]
  %v4345 = vld [vmem:[%s7 + $0x2308] sm:$0xff]
  %v4346 = vld [vmem:[%s7 + $0x2310] sm:$0xff]
  %v4347 = vld [vmem:[%s7 + $0x2318] sm:$0xff]
  %v4348 = vld [vmem:[%s7 + $0x2320] sm:$0xff]
  %v4349 = vld [vmem:[%s7 + $0x2328] sm:$0xff]
  %v4350 = vld [vmem:[%s7 + $0x2330] sm:$0xff]
  %v4351 = vld [vmem:[%s7 + $0x2338] sm:$0xff]
  %v4352 = vld [vmem:[%s7 + $0x2340] sm:$0xff]
  %v4353 = vld [vmem:[%s7 + $0x2348] sm:$0xff]
  %v4354 = vld [vmem:[%s7 + $0x2350] sm:$0xff]
  %v4355 = vld [vmem:[%s7 + $0x2358] sm:$0xff]
  %v4356 = vld [vmem:[%s7 + $0x2360] sm:$0xff]
  %v4357 = vld [vmem:[%s7 + $0x2368] sm:$0xff]
  %v4358 = vld [vmem:[%s7 + $0x2370] sm:$0xff]
  %v4359 = vld [vmem:[%s7 + $0x2378] sm:$0xff]
  %v4360 = vld [vmem:[%s7 + $0x2380] sm:$0xff]
  %v4361 = vld [vmem:[%s7 + $0x2388] sm:$0xff]
  %v4362 = vld [vmem:[%s7 + $0x2390] sm:$0xff]
  %v4363 = vld [vmem:[%s7 + $0x2398] sm:$0xff]
  %v4364 = vld [vmem:[%s7 + $0x23a0] sm:$0xff]
  %v4365 = vld [vmem:[%s7 + $0x23a8] sm:$0xff]
  %v4366 = vld [vmem:[%s7 + $0x23b0] sm:$0xff]
  %v4367 = vld [vmem:[%s7 + $0x23b8] sm:$0xff]
  %v4368 = vld [vmem:[%s7 + $0x23c0] sm:$0xff]
  %v4369 = vld [vmem:[%s7 + $0x23c8] sm:$0xff]
  %v4370 = vld [vmem:[%s7 + $0x23d0] sm:$0xff]
  %v4371 = vld [vmem:[%s7 + $0x23d8] sm:$0xff]
  %v4372 = vld [vmem:[%s7 + $0x23e0] sm:$0xff]
  %v4373 = vld [vmem:[%s7 + $0x23e8] sm:$0xff]
  %v4374 = vld [vmem:[%s7 + $0x23f0] sm:$0xff]
  %v4375 = vld [vmem:[%s7 + $0x23f8] sm:$0xff]
  %v4376 = vld [vmem:[%s7 + $0x2400] sm:$0xff]
  %v4377 = vld [vmem:[%s7 + $0x2408] sm:$0xff]
  %v4378 = vld [vmem:[%s7 + $0x2410] sm:$0xff]
  %v4379 = vld [vmem:[%s7 + $0x2418] sm:$0xff]
  %v4380 = vld [vmem:[%s7 + $0x2420] sm:$0xff]
  %v4381 = vld [vmem:[%s7 + $0x2428] sm:$0xff]
  %v4382 = vld [vmem:[%s7 + $0x2430] sm:$0xff]
  %v4383 = vld [vmem:[%s7 + $0x2438] sm:$0xff]
  %v4384 = vld [vmem:[%s7 + $0x2440] sm:$0xff]
  %v4385 = vld [vmem:[%s7 + $0x2448] sm:$0xff]
  %v4386 = vld [vmem:[%s7 + $0x2450] sm:$0xff]
  %v4387 = vld [vmem:[%s7 + $0x2458] sm:$0xff]
  %v4388 = vld [vmem:[%s7 + $0x2460] sm:$0xff]
  %v4389 = vld [vmem:[%s7 + $0x2468] sm:$0xff]
  %v4390 = vld [vmem:[%s7 + $0x2470] sm:$0xff]
  %v4391 = vld [vmem:[%s7 + $0x2478] sm:$0xff]
  %v4392 = vld [vmem:[%s7 + $0x2480] sm:$0xff]
  %v4393 = vld [vmem:[%s7 + $0x2488] sm:$0xff]
  %v4394 = vld [vmem:[%s7 + $0x2490] sm:$0xff]
  %v4395 = vld [vmem:[%s7 + $0x2498] sm:$0xff]
  %v4396 = vld [vmem:[%s7 + $0x24a0] sm:$0xff]
  %v4397 = vld [vmem:[%s7 + $0x24a8] sm:$0xff]
  %v4398 = vld [vmem:[%s7 + $0x24b0] sm:$0xff]
  %v4399 = vld [vmem:[%s7 + $0x24b8] sm:$0xff]
  %v4400 = vld [vmem:[%s7 + $0x24c0] sm:$0xff]
  %v4401 = vld [vmem:[%s7 + $0x24c8] sm:$0xff]
  %v4402 = vld [vmem:[%s7 + $0x24d0] sm:$0xff]
  %v4403 = vld [vmem:[%s7 + $0x24d8] sm:$0xff]
  %v4404 = vld [vmem:[%s7 + $0x24e0] sm:$0xff]
  %v4405 = vld [vmem:[%s7 + $0x24e8] sm:$0xff]
  %v4406 = vld [vmem:[%s7 + $0x24f0] sm:$0xff]
  %v4407 = vld [vmem:[%s7 + $0x24f8] sm:$0xff]
  %v4408 = vld [vmem:[%s7 + $0x2500] sm:$0xff]
  %v4409 = vld [vmem:[%s7 + $0x2508] sm:$0xff]
  %v4410 = vld [vmem:[%s7 + $0x2510] sm:$0xff]
  %v4411 = vld [vmem:[%s7 + $0x2518] sm:$0xff]
  %v4412 = vld [vmem:[%s7 + $0x2520] sm:$0xff]
  %v4413 = vld [vmem:[%s7 + $0x2528] sm:$0xff]
  %v4414 = vld [vmem:[%s7 + $0x2530] sm:$0xff]
  %v4415 = vld [vmem:[%s7 + $0x2538] sm:$0xff]
  %v4416 = vld [vmem:[%s7 + $0x2540] sm:$0xff]
  %v4417 = vld [vmem:[%s7 + $0x2548] sm:$0xff]
  %v4418 = vld [vmem:[%s7 + $0x2550] sm:$0xff]
  %v4419 = vld [vmem:[%s7 + $0x2558] sm:$0xff]
  %v4420 = vld [vmem:[%s7 + $0x2560] sm:$0xff]
  %v4421 = vld [vmem:[%s7 + $0x2568] sm:$0xff]
  %v4422 = vld [vmem:[%s7 + $0x2570] sm:$0xff]
  %v4423 = vld [vmem:[%s7 + $0x2578] sm:$0xff]
  %v4424 = vld [vmem:[%s7 + $0x2580] sm:$0xff]
  %v4425 = vld [vmem:[%s7 + $0x2588] sm:$0xff]
  %v4426 = vld [vmem:[%s7 + $0x2590] sm:$0xff]
  %v4427 = vld [vmem:[%s7 + $0x2598] sm:$0xff]
  %v4428 = vld [vmem:[%s7 + $0x25a0] sm:$0xff]
  %v4429 = vld [vmem:[%s7 + $0x25a8] sm:$0xff]
  %v4430 = vld [vmem:[%s7 + $0x25b0] sm:$0xff]
  %v4431 = vld [vmem:[%s7 + $0x25b8] sm:$0xff]
  %v4432 = vld [vmem:[%s7 + $0x25c0] sm:$0xff]
  %v4433 = vld [vmem:[%s7 + $0x25c8] sm:$0xff]
  %v4434 = vld [vmem:[%s7 + $0x25d0] sm:$0xff]
  %v4435 = vld [vmem:[%s7 + $0x25d8] sm:$0xff]
  %v4436 = vld [vmem:[%s7 + $0x25e0] sm:$0xff]
  %v4437 = vld [vmem:[%s7 + $0x25e8] sm:$0xff]
  %v4438 = vld [vmem:[%s7 + $0x25f0] sm:$0xff]
  %v4439 = vld [vmem:[%s7 + $0x25f8] sm:$0xff]
  %v4440 = vld [vmem:[%s7 + $0x2600] sm:$0xff]
  %v4441 = vld [vmem:[%s7 + $0x2608] sm:$0xff]
  %v4442 = vld [vmem:[%s7 + $0x2610] sm:$0xff]
  %v4443 = vld [vmem:[%s7 + $0x2618] sm:$0xff]
  %v4444 = vld [vmem:[%s7 + $0x2620] sm:$0xff]
  %v4445 = vld [vmem:[%s7 + $0x2628] sm:$0xff]
  %v4446 = vld [vmem:[%s7 + $0x2630] sm:$0xff]
  %v4447 = vld [vmem:[%s7 + $0x2638] sm:$0xff]
  %v4448 = vld [vmem:[%s7 + $0x2640] sm:$0xff]
  %v4449 = vld [vmem:[%s7 + $0x2648] sm:$0xff]
  %v4450 = vld [vmem:[%s7 + $0x2650] sm:$0xff]
  %v4451 = vld [vmem:[%s7 + $0x2658] sm:$0xff]
  %v4452 = vld [vmem:[%s7 + $0x2660] sm:$0xff]
  %v4453 = vld [vmem:[%s7 + $0x2668] sm:$0xff]
  %v4454 = vld [vmem:[%s7 + $0x2670] sm:$0xff]
  %v4455 = vld [vmem:[%s7 + $0x2678] sm:$0xff]
  %v4456 = vld [vmem:[%s7 + $0x2680] sm:$0xff]
  %v4457 = vld [vmem:[%s7 + $0x2688] sm:$0xff]
  %v4458 = vld [vmem:[%s7 + $0x2690] sm:$0xff]
  %v4459 = vld [vmem:[%s7 + $0x2698] sm:$0xff]
  %v4460 = vld [vmem:[%s7 + $0x26a0] sm:$0xff]
  %v4461 = vld [vmem:[%s7 + $0x26a8] sm:$0xff]
  %v4462 = vld [vmem:[%s7 + $0x26b0] sm:$0xff]
  %v4463 = vld [vmem:[%s7 + $0x26b8] sm:$0xff]
  %v4464 = vld [vmem:[%s7 + $0x26c0] sm:$0xff]
  %v4465 = vld [vmem:[%s7 + $0x26c8] sm:$0xff]
  %v4466 = vld [vmem:[%s7 + $0x26d0] sm:$0xff]
  %v4467 = vld [vmem:[%s7 + $0x26d8] sm:$0xff]
  %v4468 = vld [vmem:[%s7 + $0x26e0] sm:$0xff]
  %v4469 = vld [vmem:[%s7 + $0x26e8] sm:$0xff]
  %v4470 = vld [vmem:[%s7 + $0x26f0] sm:$0xff]
  %v4471 = vld [vmem:[%s7 + $0x26f8] sm:$0xff]
  %v4472 = vld [vmem:[%s7 + $0x2700] sm:$0xff]
  %v4473 = vld [vmem:[%s7 + $0x2708] sm:$0xff]
  %v4474 = vld [vmem:[%s7 + $0x2710] sm:$0xff]
  %v4475 = vld [vmem:[%s7 + $0x2718] sm:$0xff]
  %v4476 = vld [vmem:[%s7 + $0x2720] sm:$0xff]
  %v4477 = vld [vmem:[%s7 + $0x2728] sm:$0xff]
  %v4478 = vld [vmem:[%s7 + $0x2730] sm:$0xff]
  %v4479 = vld [vmem:[%s7 + $0x2738] sm:$0xff]
  %v4480 = vld [vmem:[%s7 + $0x2740] sm:$0xff]
  %v4481 = vld [vmem:[%s7 + $0x2748] sm:$0xff]
  %v4482 = vld [vmem:[%s7 + $0x2750] sm:$0xff]
  %v4483 = vld [vmem:[%s7 + $0x2758] sm:$0xff]
  %v4484 = vld [vmem:[%s7 + $0x2760] sm:$0xff]
  %v4485 = vld [vmem:[%s7 + $0x2768] sm:$0xff]
  %v4486 = vld [vmem:[%s7 + $0x2770] sm:$0xff]
  %v4487 = vld [vmem:[%s7 + $0x2778] sm:$0xff]
  %v4488 = vld [vmem:[%s7 + $0x2780] sm:$0xff]
  %v4489 = vld [vmem:[%s7 + $0x2788] sm:$0xff]
  %v4490 = vld [vmem:[%s7 + $0x2790] sm:$0xff]
  %v4491 = vld [vmem:[%s7 + $0x2798] sm:$0xff]
  %v4492 = vld [vmem:[%s7 + $0x27a0] sm:$0xff]
  %v4493 = vld [vmem:[%s7 + $0x27a8] sm:$0xff]
  %v4494 = vld [vmem:[%s7 + $0x27b0] sm:$0xff]
  %v4495 = vld [vmem:[%s7 + $0x27b8] sm:$0xff]
  %v4496 = vld [vmem:[%s7 + $0x27c0] sm:$0xff]
  %v4497 = vld [vmem:[%s7 + $0x27c8] sm:$0xff]
  %v4498 = vld [vmem:[%s8] sm:$0xff]
  %v4499 = vld [vmem:[%s8 + $0x8] sm:$0x1f]
  %v4502 = vlaneseq
  %v4503 = vshrl.u32 %v4502, 7
  %v4504 = vsub.s32 0, %v4503
  %v4505 = vrot.slane %v4498, %v4504
  %v4506 = vlaneseq
  %v4507 = vshrl.u32 %v4506, 7
  %v4508 = vsub.s32 1, %v4507
  %v4509 = vrot.slane %v4498, %v4508
  %v4510 = vlaneseq
  %v4511 = vshrl.u32 %v4510, 7
  %v4512 = vsub.s32 2, %v4511
  %v4513 = vrot.slane %v4498, %v4512
  %v4514 = vlaneseq
  %v4515 = vshrl.u32 %v4514, 7
  %v4516 = vsub.s32 3, %v4515
  %v4517 = vrot.slane %v4498, %v4516
  %v4518 = vlaneseq
  %v4519 = vshrl.u32 %v4518, 7
  %v4520 = vsub.s32 4, %v4519
  %v4521 = vrot.slane %v4498, %v4520
  %v4522 = vlaneseq
  %v4523 = vshrl.u32 %v4522, 7
  %v4524 = vsub.s32 5, %v4523
  %v4525 = vrot.slane %v4498, %v4524
  %v4526 = vlaneseq
  %v4527 = vshrl.u32 %v4526, 7
  %v4528 = vsub.s32 6, %v4527
  %v4529 = vrot.slane %v4498, %v4528
  %v4530 = vlaneseq
  %v4531 = vshrl.u32 %v4530, 7
  %v4532 = vsub.s32 7, %v4531
  %v4533 = vrot.slane %v4498, %v4532
  %v4534 = vlaneseq
  %v4535 = vshrl.u32 %v4534, 7
  %v4536 = vsub.s32 0, %v4535
  %v4537 = vrot.slane %v4499, %v4536
  %v4538 = vlaneseq
  %v4539 = vshrl.u32 %v4538, 7
  %v4540 = vsub.s32 1, %v4539
  %v4541 = vrot.slane %v4499, %v4540
  %v4542 = vlaneseq
  %v4543 = vshrl.u32 %v4542, 7
  %v4544 = vsub.s32 2, %v4543
  %v4545 = vrot.slane %v4499, %v4544
  %v4546 = vlaneseq
  %v4547 = vshrl.u32 %v4546, 7
  %v4548 = vsub.s32 3, %v4547
  %v4549 = vrot.slane %v4499, %v4548
  %v4550 = vlaneseq
  %v4551 = vshrl.u32 %v4550, 7
  %v4552 = vsub.s32 4, %v4551
  %v4553 = vrot.slane %v4499, %v4552
  %v4568 = vsel %vm2081, %v3223, 0
  %4570 = vmatprep.subr.mxu0 %v3420
  %4571 = vmatpush1.msra.mxu0 %v3419
  %4572 = vmatprep.subr.mxu0 %v3407
  %4573 = vmatpush1.msra.mxu0 %v3406
  %4574 = vmatprep.subr.mxu0 %v3394
  %4575 = vmatpush1.msra.mxu0 %v3393
  %4576 = vmatprep.subr.mxu0 %v3381
  %4577 = vmatpush1.msra.mxu0 %v3380
  %4578 = vmatprep.subr.mxu0 %v3368
  %4579 = vmatpush1.msra.mxu0 %v3367
  %4580 = vmatprep.subr.mxu0 %v3355
  %4581 = vmatpush1.msra.mxu0 %v3354
  %4582 = vmatprep.subr.mxu0 %v3342
  %4583 = vmatpush1.msra.mxu0 %v3341
  %4584 = vmatprep.subr.mxu0 %v3329
  %4585 = vmatpush1.msra.mxu0 %v3328
  %4586 = vmatprep.subr.mxu0 %v3316
  %4587 = vmatpush1.msra.mxu0 %v3315
  %4588 = vmatprep.subr.mxu0 %v3303
  %4589 = vmatpush1.msra.mxu0 %v3302
  %4590 = vmatprep.subr.mxu0 %v3290
  %4591 = vmatpush1.msra.mxu0 %v3289
  %4592 = vmatprep.subr.mxu0 %v3277
  %4593 = vmatpush1.msra.mxu0 %v3276
  %4594 = vmatprep.subr.mxu0 %v3264
  %4595 = vmatpush1.msra.mxu0 %v3263
  %4596 = vmatprep.subr.mxu0 %v3251
  %4597 = vmatpush1.msra.mxu0 %v3250
  %4598 = vmatprep.subr.mxu0 %v3238
  %4599 = vmatpush1.msra.mxu0 %v3237
  %4600 = vmatprep.subr.mxu0 %v3225
  %4601 = vmatpush1.msra.mxu0 %v3224
  %4602 = vmatprep.subr.mxu0 %v3628
  %4603 = vmatpush2.msra.mxu0 %v3627
  %4604 = vmatprep.subr.mxu0 %v3615
  %4605 = vmatpush2.msra.mxu0 %v3614
  %4606 = vmatprep.subr.mxu0 %v3602
  %4607 = vmatpush2.msra.mxu0 %v3601
  %4608 = vmatprep.subr.mxu0 %v3589
  %4609 = vmatpush2.msra.mxu0 %v3588
  %4610 = vmatprep.subr.mxu0 %v3576
  %4611 = vmatpush2.msra.mxu0 %v3575
  %4612 = vmatprep.subr.mxu0 %v3563
  %4613 = vmatpush2.msra.mxu0 %v3562
  %4614 = vmatprep.subr.mxu0 %v3550
  %4615 = vmatpush2.msra.mxu0 %v3549
  %4616 = vmatprep.subr.mxu0 %v3537
  %4617 = vmatpush2.msra.mxu0 %v3536
  %4618 = vmatprep.subr.mxu0 %v3524
  %4619 = vmatpush2.msra.mxu0 %v3523
  %4620 = vmatprep.subr.mxu0 %v3511
  %4621 = vmatpush2.msra.mxu0 %v3510
  %4622 = vmatprep.subr.mxu0 %v3498
  %4623 = vmatpush2.msra.mxu0 %v3497
  %4624 = vmatprep.subr.mxu0 %v3485
  %4625 = vmatpush2.msra.mxu0 %v3484
  %4626 = vmatprep.subr.mxu0 %v3472
  %4627 = vmatpush2.msra.mxu0 %v3471
  %4628 = vmatprep.subr.mxu0 %v3459
  %4629 = vmatpush2.msra.mxu0 %v3458
  %4630 = vmatprep.subr.mxu0 %v3446
  %4631 = vmatpush2.msra.mxu0 %v3445
  %4632 = vmatprep.subr.mxu0 %v3433
  %4633 = vmatpush2.msra.mxu0 %v3432
  %4634 = vmatprep.mubr.f32.mxu0 %v3218
  %4635 = vmatmul.mubr.f32.gmra.mxu0 %v3217
  %v4636 = vpop.f32.mrf.mxu0
  %v4637 = vadd.f32 %v4505, %v4636
  %v4638 = vpop.f32.mrf.mxu0
  %v4639 = vadd.f32 %v4509, %v4638
  %4640 = vdwg.mxu0
  %4641 = vmatprep.subr.mxu0 %v3836
  %4642 = vmatpush1.msra.mxu0 %v3835
  %4643 = vmatprep.subr.mxu0 %v3823
  %4644 = vmatpush1.msra.mxu0 %v3822
  %4645 = vmatprep.subr.mxu0 %v3810
  %4646 = vmatpush1.msra.mxu0 %v3809
  %4647 = vmatprep.subr.mxu0 %v3797
  %4648 = vmatpush1.msra.mxu0 %v3796
  %4649 = vmatprep.subr.mxu0 %v3784
  %4650 = vmatpush1.msra.mxu0 %v3783
  %4651 = vmatprep.subr.mxu0 %v3771
  %4652 = vmatpush1.msra.mxu0 %v3770
  %4653 = vmatprep.subr.mxu0 %v3758
  %4654 = vmatpush1.msra.mxu0 %v3757
  %4655 = vmatprep.subr.mxu0 %v3745
  %4656 = vmatpush1.msra.mxu0 %v3744
  %4657 = vmatprep.subr.mxu0 %v3732
  %4658 = vmatpush1.msra.mxu0 %v3731
  %4659 = vmatprep.subr.mxu0 %v3719
  %4660 = vmatpush1.msra.mxu0 %v3718
  %4661 = vmatprep.subr.mxu0 %v3706
  %4662 = vmatpush1.msra.mxu0 %v3705
  %4663 = vmatprep.subr.mxu0 %v3693
  %4664 = vmatpush1.msra.mxu0 %v3692
  %4665 = vmatprep.subr.mxu0 %v3680
  %4666 = vmatpush1.msra.mxu0 %v3679
  %4667 = vmatprep.subr.mxu0 %v3667
  %4668 = vmatpush1.msra.mxu0 %v3666
  %4669 = vmatprep.subr.mxu0 %v3654
  %4670 = vmatpush1.msra.mxu0 %v3653
  %4671 = vmatprep.subr.mxu0 %v3641
  %4672 = vmatpush1.msra.mxu0 %v3640
  %4673 = vmatprep.subr.mxu0 %v4044
  %4674 = vmatpush2.msra.mxu0 %v4043
  %4675 = vmatprep.subr.mxu0 %v4031
  %4676 = vmatpush2.msra.mxu0 %v4030
  %4677 = vmatprep.subr.mxu0 %v4018
  %4678 = vmatpush2.msra.mxu0 %v4017
  %4679 = vmatprep.subr.mxu0 %v4005
  %4680 = vmatpush2.msra.mxu0 %v4004
  %4681 = vmatprep.subr.mxu0 %v3992
  %4682 = vmatpush2.msra.mxu0 %v3991
  %4683 = vmatprep.subr.mxu0 %v3979
  %4684 = vmatpush2.msra.mxu0 %v3978
  %4685 = vmatprep.subr.mxu0 %v3966
  %4686 = vmatpush2.msra.mxu0 %v3965
  %4687 = vmatprep.subr.mxu0 %v3953
  %4688 = vmatpush2.msra.mxu0 %v3952
  %4689 = vmatprep.subr.mxu0 %v3940
  %4690 = vmatpush2.msra.mxu0 %v3939
  %4691 = vmatprep.subr.mxu0 %v3927
  %4692 = vmatpush2.msra.mxu0 %v3926
  %4693 = vmatprep.subr.mxu0 %v3914
  %4694 = vmatpush2.msra.mxu0 %v3913
  %4695 = vmatprep.subr.mxu0 %v3901
  %4696 = vmatpush2.msra.mxu0 %v3900
  %4697 = vmatprep.subr.mxu0 %v3888
  %4698 = vmatpush2.msra.mxu0 %v3887
  %4699 = vmatprep.subr.mxu0 %v3875
  %4700 = vmatpush2.msra.mxu0 %v3874
  %4701 = vmatprep.subr.mxu0 %v3862
  %4702 = vmatpush2.msra.mxu0 %v3861
  %4703 = vmatprep.subr.mxu0 %v3849
  %4704 = vmatpush2.msra.mxu0 %v3848
  %4705 = vmatprep.mubr.f32.mxu0 %v3220
  %4706 = vmatmul.mubr.f32.gmra.mxu0 %v3219
  %v4707 = vpop.f32.mrf.mxu0
  %v4708 = vadd.f32 %v4637, %v4707
  %v4709 = vpop.f32.mrf.mxu0
  %v4710 = vadd.f32 %v4639, %v4709
  %4711 = vdwg.mxu0
  %4712 = vmatprep.subr.mxu0 %v4252
  %4713 = vmatpush1.msra.mxu0 %v4251
  %4714 = vmatprep.subr.mxu0 %v4239
  %4715 = vmatpush1.msra.mxu0 %v4238
  %4716 = vmatprep.subr.mxu0 %v4226
  %4717 = vmatpush1.msra.mxu0 %v4225
  %4718 = vmatprep.subr.mxu0 %v4213
  %4719 = vmatpush1.msra.mxu0 %v4212
  %4720 = vmatprep.subr.mxu0 %v4200
  %4721 = vmatpush1.msra.mxu0 %v4199
  %4722 = vmatprep.subr.mxu0 %v4187
  %4723 = vmatpush1.msra.mxu0 %v4186
  %4724 = vmatprep.subr.mxu0 %v4174
  %4725 = vmatpush1.msra.mxu0 %v4173
  %4726 = vmatprep.subr.mxu0 %v4161
  %4727 = vmatpush1.msra.mxu0 %v4160
  %4728 = vmatprep.subr.mxu0 %v4148
  %4729 = vmatpush1.msra.mxu0 %v4147
  %4730 = vmatprep.subr.mxu0 %v4135
  %4731 = vmatpush1.msra.mxu0 %v4134
  %4732 = vmatprep.subr.mxu0 %v4122
  %4733 = vmatpush1.msra.mxu0 %v4121
  %4734 = vmatprep.subr.mxu0 %v4109
  %4735 = vmatpush1.msra.mxu0 %v4108
  %4736 = vmatprep.subr.mxu0 %v4096
  %4737 = vmatpush1.msra.mxu0 %v4095
  %4738 = vmatprep.subr.mxu0 %v4083
  %4739 = vmatpush1.msra.mxu0 %v4082
  %4740 = vmatprep.subr.mxu0 %v4070
  %4741 = vmatpush1.msra.mxu0 %v4069
  %4742 = vmatprep.subr.mxu0 %v4057
  %4743 = vmatpush1.msra.mxu0 %v4056
  %4744 = vmatprep.subr.mxu0 %v4460
  %4745 = vmatpush2.msra.mxu0 %v4459
  %4746 = vmatprep.subr.mxu0 %v4447
  %4747 = vmatpush2.msra.mxu0 %v4446
  %4748 = vmatprep.subr.mxu0 %v4434
  %4749 = vmatpush2.msra.mxu0 %v4433
  %4750 = vmatprep.subr.mxu0 %v4421
  %4751 = vmatpush2.msra.mxu0 %v4420
  %4752 = vmatprep.subr.mxu0 %v4408
  %4753 = vmatpush2.msra.mxu0 %v4407
  %4754 = vmatprep.subr.mxu0 %v4395
  %4755 = vmatpush2.msra.mxu0 %v4394
  %4756 = vmatprep.subr.mxu0 %v4382
  %4757 = vmatpush2.msra.mxu0 %v4381
  %4758 = vmatprep.subr.mxu0 %v4369
  %4759 = vmatpush2.msra.mxu0 %v4368
  %4760 = vmatprep.subr.mxu0 %v4356
  %4761 = vmatpush2.msra.mxu0 %v4355
  %4762 = vmatprep.subr.mxu0 %v4343
  %4763 = vmatpush2.msra.mxu0 %v4342
  %4764 = vmatprep.subr.mxu0 %v4330
  %4765 = vmatpush2.msra.mxu0 %v4329
  %4766 = vmatprep.subr.mxu0 %v4317
  %4767 = vmatpush2.msra.mxu0 %v4316
  %4768 = vmatprep.subr.mxu0 %v4304
  %4769 = vmatpush2.msra.mxu0 %v4303
  %4770 = vmatprep.subr.mxu0 %v4291
  %4771 = vmatpush2.msra.mxu0 %v4290
  %4772 = vmatprep.subr.mxu0 %v4278
  %4773 = vmatpush2.msra.mxu0 %v4277
  %4774 = vmatprep.subr.mxu0 %v4265
  %4775 = vmatpush2.msra.mxu0 %v4264
  %4776 = vmatprep.mubr.f32.mxu0 %v3222
  %4777 = vmatmul.mubr.f32.gmra.mxu0 %v3221
  %v4778 = vpop.f32.mrf.mxu0
  %v4779 = vadd.f32 %v4708, %v4778
  %v4780 = vpop.f32.mrf.mxu0
  %v4781 = vadd.f32 %v4710, %v4780
  %4782 = vdwg.mxu0
  %4783 = vmatprep.subr.mxu0 0.0
  %4784 = vmatpush1.msra.mxu0 0.0
  %4785 = vmatprep.subr.mxu0 0.0
  %4786 = vmatpush1.msra.mxu0 0.0
  %4787 = vmatprep.subr.mxu0 0.0
  %4788 = vmatpush1.msra.mxu0 0.0
  %4789 = vmatprep.subr.mxu0 0.0
  %4790 = vmatpush1.msra.mxu0 0.0
  %4791 = vmatprep.subr.mxu0 0.0
  %4792 = vmatpush1.msra.mxu0 0.0
  %4793 = vmatprep.subr.mxu0 0.0
  %4794 = vmatpush1.msra.mxu0 0.0
  %4795 = vmatprep.subr.mxu0 0.0
  %4796 = vmatpush1.msra.mxu0 0.0
  %4797 = vmatprep.subr.mxu0 0.0
  %4798 = vmatpush1.msra.mxu0 0.0
  %4799 = vmatprep.subr.mxu0 0.0
  %4800 = vmatpush1.msra.mxu0 0.0
  %4801 = vmatprep.subr.mxu0 0.0
  %4802 = vmatpush1.msra.mxu0 0.0
  %4803 = vmatprep.subr.mxu0 0.0
  %4804 = vmatpush1.msra.mxu0 0.0
  %4805 = vmatprep.subr.mxu0 0.0
  %4806 = vmatpush1.msra.mxu0 0.0
  %4807 = vmatprep.subr.mxu0 0.0
  %4808 = vmatpush1.msra.mxu0 0.0
  %4809 = vmatprep.subr.mxu0 0.0
  %4810 = vmatpush1.msra.mxu0 0.0
  %4811 = vmatprep.subr.mxu0 %v4486
  %4812 = vmatpush1.msra.mxu0 %v4485
  %4813 = vmatprep.subr.mxu0 %v4473
  %4814 = vmatpush1.msra.mxu0 %v4472
  %4815 = vmatprep.subr.mxu0 0.0
  %4816 = vmatpush2.msra.mxu0 0.0
  %4817 = vmatprep.subr.mxu0 0.0
  %4818 = vmatpush2.msra.mxu0 0.0
  %4819 = vmatprep.subr.mxu0 0.0
  %4820 = vmatpush2.msra.mxu0 0.0
  %4821 = vmatprep.subr.mxu0 0.0
  %4822 = vmatpush2.msra.mxu0 0.0
  %4823 = vmatprep.subr.mxu0 0.0
  %4824 = vmatpush2.msra.mxu0 0.0
  %4825 = vmatprep.subr.mxu0 0.0
  %4826 = vmatpush2.msra.mxu0 0.0
  %4827 = vmatprep.subr.mxu0 0.0
  %4828 = vmatpush2.msra.mxu0 0.0
  %4829 = vmatprep.subr.mxu0 0.0
  %4830 = vmatpush2.msra.mxu0 0.0
  %4831 = vmatprep.subr.mxu0 0.0
  %4832 = vmatpush2.msra.mxu0 0.0
  %4833 = vmatprep.subr.mxu0 0.0
  %4834 = vmatpush2.msra.mxu0 0.0
  %4835 = vmatprep.subr.mxu0 0.0
  %4836 = vmatpush2.msra.mxu0 0.0
  %4837 = vmatprep.subr.mxu0 0.0
  %4838 = vmatpush2.msra.mxu0 0.0
  %4839 = vmatprep.subr.mxu0 0.0
  %4840 = vmatpush2.msra.mxu0 0.0
  %4841 = vmatprep.subr.mxu0 0.0
  %4842 = vmatpush2.msra.mxu0 0.0
  %4843 = vmatprep.subr.mxu0 0.0
  %4844 = vmatpush2.msra.mxu0 0.0
  %4845 = vmatprep.subr.mxu0 0.0
  %4846 = vmatpush2.msra.mxu0 0.0
  %4847 = vmatprep.mubr.f32.mxu0 0.0
  %4848 = vmatmul.mubr.f32.gmra.mxu0 %v4568
  %v4849 = vpop.f32.mrf.mxu0
  %v4850 = vadd.f32 %v4779, %v4849
  %v4851 = vpop.f32.mrf.mxu0
  %v4852 = vadd.f32 %v4781, %v4851
  %4853 = vdwg.mxu0
  %4854 = vmatprep.subr.mxu0 %v3422
  %4855 = vmatpush1.msra.mxu0 %v3421
  %4856 = vmatprep.subr.mxu0 %v3409
  %4857 = vmatpush1.msra.mxu0 %v3408
  %4858 = vmatprep.subr.mxu0 %v3396
  %4859 = vmatpush1.msra.mxu0 %v3395
  %4860 = vmatprep.subr.mxu0 %v3383
  %4861 = vmatpush1.msra.mxu0 %v3382
  %4862 = vmatprep.subr.mxu0 %v3370
  %4863 = vmatpush1.msra.mxu0 %v3369
  %4864 = vmatprep.subr.mxu0 %v3357
  %4865 = vmatpush1.msra.mxu0 %v3356
  %4866 = vmatprep.subr.mxu0 %v3344
  %4867 = vmatpush1.msra.mxu0 %v3343
  %4868 = vmatprep.subr.mxu0 %v3331
  %4869 = vmatpush1.msra.mxu0 %v3330
  %4870 = vmatprep.subr.mxu0 %v3318
  %4871 = vmatpush1.msra.mxu0 %v3317
  %4872 = vmatprep.subr.mxu0 %v3305
  %4873 = vmatpush1.msra.mxu0 %v3304
  %4874 = vmatprep.subr.mxu0 %v3292
  %4875 = vmatpush1.msra.mxu0 %v3291
  %4876 = vmatprep.subr.mxu0 %v3279
  %4877 = vmatpush1.msra.mxu0 %v3278
  %4878 = vmatprep.subr.mxu0 %v3266
  %4879 = vmatpush1.msra.mxu0 %v3265
  %4880 = vmatprep.subr.mxu0 %v3253
  %4881 = vmatpush1.msra.mxu0 %v3252
  %4882 = vmatprep.subr.mxu0 %v3240
  %4883 = vmatpush1.msra.mxu0 %v3239
  %4884 = vmatprep.subr.mxu0 %v3227
  %4885 = vmatpush1.msra.mxu0 %v3226
  %4886 = vmatprep.subr.mxu0 %v3630
  %4887 = vmatpush2.msra.mxu0 %v3629
  %4888 = vmatprep.subr.mxu0 %v3617
  %4889 = vmatpush2.msra.mxu0 %v3616
  %4890 = vmatprep.subr.mxu0 %v3604
  %4891 = vmatpush2.msra.mxu0 %v3603
  %4892 = vmatprep.subr.mxu0 %v3591
  %4893 = vmatpush2.msra.mxu0 %v3590
  %4894 = vmatprep.subr.mxu0 %v3578
  %4895 = vmatpush2.msra.mxu0 %v3577
  %4896 = vmatprep.subr.mxu0 %v3565
  %4897 = vmatpush2.msra.mxu0 %v3564
  %4898 = vmatprep.subr.mxu0 %v3552
  %4899 = vmatpush2.msra.mxu0 %v3551
  %4900 = vmatprep.subr.mxu0 %v3539
  %4901 = vmatpush2.msra.mxu0 %v3538
  %4902 = vmatprep.subr.mxu0 %v3526
  %4903 = vmatpush2.msra.mxu0 %v3525
  %4904 = vmatprep.subr.mxu0 %v3513
  %4905 = vmatpush2.msra.mxu0 %v3512
  %4906 = vmatprep.subr.mxu0 %v3500
  %4907 = vmatpush2.msra.mxu0 %v3499
  %4908 = vmatprep.subr.mxu0 %v3487
  %4909 = vmatpush2.msra.mxu0 %v3486
  %4910 = vmatprep.subr.mxu0 %v3474
  %4911 = vmatpush2.msra.mxu0 %v3473
  %4912 = vmatprep.subr.mxu0 %v3461
  %4913 = vmatpush2.msra.mxu0 %v3460
  %4914 = vmatprep.subr.mxu0 %v3448
  %4915 = vmatpush2.msra.mxu0 %v3447
  %4916 = vmatprep.subr.mxu0 %v3435
  %4917 = vmatpush2.msra.mxu0 %v3434
  %4918 = vmatprep.mubr.f32.mxu0 %v3218
  %4919 = vmatmul.mubr.f32.gmra.mxu0 %v3217
  %v4920 = vpop.f32.mrf.mxu0
  %v4921 = vadd.f32 %v4513, %v4920
  %v4922 = vpop.f32.mrf.mxu0
  %v4923 = vadd.f32 %v4517, %v4922
  %4924 = vdwg.mxu0
  %4925 = vmatprep.subr.mxu0 %v3838
  %4926 = vmatpush1.msra.mxu0 %v3837
  %4927 = vmatprep.subr.mxu0 %v3825
  %4928 = vmatpush1.msra.mxu0 %v3824
  %4929 = vmatprep.subr.mxu0 %v3812
  %4930 = vmatpush1.msra.mxu0 %v3811
  %4931 = vmatprep.subr.mxu0 %v3799
  %4932 = vmatpush1.msra.mxu0 %v3798
  %4933 = vmatprep.subr.mxu0 %v3786
  %4934 = vmatpush1.msra.mxu0 %v3785
  %4935 = vmatprep.subr.mxu0 %v3773
  %4936 = vmatpush1.msra.mxu0 %v3772
  %4937 = vmatprep.subr.mxu0 %v3760
  %4938 = vmatpush1.msra.mxu0 %v3759
  %4939 = vmatprep.subr.mxu0 %v3747
  %4940 = vmatpush1.msra.mxu0 %v3746
  %4941 = vmatprep.subr.mxu0 %v3734
  %4942 = vmatpush1.msra.mxu0 %v3733
  %4943 = vmatprep.subr.mxu0 %v3721
  %4944 = vmatpush1.msra.mxu0 %v3720
  %4945 = vmatprep.subr.mxu0 %v3708
  %4946 = vmatpush1.msra.mxu0 %v3707
  %4947 = vmatprep.subr.mxu0 %v3695
  %4948 = vmatpush1.msra.mxu0 %v3694
  %4949 = vmatprep.subr.mxu0 %v3682
  %4950 = vmatpush1.msra.mxu0 %v3681
  %4951 = vmatprep.subr.mxu0 %v3669
  %4952 = vmatpush1.msra.mxu0 %v3668
  %4953 = vmatprep.subr.mxu0 %v3656
  %4954 = vmatpush1.msra.mxu0 %v3655
  %4955 = vmatprep.subr.mxu0 %v3643
  %4956 = vmatpush1.msra.mxu0 %v3642
  %4957 = vmatprep.subr.mxu0 %v4046
  %4958 = vmatpush2.msra.mxu0 %v4045
  %4959 = vmatprep.subr.mxu0 %v4033
  %4960 = vmatpush2.msra.mxu0 %v4032
  %4961 = vmatprep.subr.mxu0 %v4020
  %4962 = vmatpush2.msra.mxu0 %v4019
  %4963 = vmatprep.subr.mxu0 %v4007
  %4964 = vmatpush2.msra.mxu0 %v4006
  %4965 = vmatprep.subr.mxu0 %v3994
  %4966 = vmatpush2.msra.mxu0 %v3993
  %4967 = vmatprep.subr.mxu0 %v3981
  %4968 = vmatpush2.msra.mxu0 %v3980
  %4969 = vmatprep.subr.mxu0 %v3968
  %4970 = vmatpush2.msra.mxu0 %v3967
  %4971 = vmatprep.subr.mxu0 %v3955
  %4972 = vmatpush2.msra.mxu0 %v3954
  %4973 = vmatprep.subr.mxu0 %v3942
  %4974 = vmatpush2.msra.mxu0 %v3941
  %4975 = vmatprep.subr.mxu0 %v3929
  %4976 = vmatpush2.msra.mxu0 %v3928
  %4977 = vmatprep.subr.mxu0 %v3916
  %4978 = vmatpush2.msra.mxu0 %v3915
  %4979 = vmatprep.subr.mxu0 %v3903
  %4980 = vmatpush2.msra.mxu0 %v3902
  %4981 = vmatprep.subr.mxu0 %v3890
  %4982 = vmatpush2.msra.mxu0 %v3889
  %4983 = vmatprep.subr.mxu0 %v3877
  %4984 = vmatpush2.msra.mxu0 %v3876
  %4985 = vmatprep.subr.mxu0 %v3864
  %4986 = vmatpush2.msra.mxu0 %v3863
  %4987 = vmatprep.subr.mxu0 %v3851
  %4988 = vmatpush2.msra.mxu0 %v3850
  %4989 = vmatprep.mubr.f32.mxu0 %v3220
  %4990 = vmatmul.mubr.f32.gmra.mxu0 %v3219
  %v4991 = vpop.f32.mrf.mxu0
  %v4992 = vadd.f32 %v4921, %v4991
  %v4993 = vpop.f32.mrf.mxu0
  %v4994 = vadd.f32 %v4923, %v4993
  %4995 = vdwg.mxu0
  %4996 = vmatprep.subr.mxu0 %v4254
  %4997 = vmatpush1.msra.mxu0 %v4253
  %4998 = vmatprep.subr.mxu0 %v4241
  %4999 = vmatpush1.msra.mxu0 %v4240
  %5000 = vmatprep.subr.mxu0 %v4228
  %5001 = vmatpush1.msra.mxu0 %v4227
  %5002 = vmatprep.subr.mxu0 %v4215
  %5003 = vmatpush1.msra.mxu0 %v4214
  %5004 = vmatprep.subr.mxu0 %v4202
  %5005 = vmatpush1.msra.mxu0 %v4201
  %5006 = vmatprep.subr.mxu0 %v4189
  %5007 = vmatpush1.msra.mxu0 %v4188
  %5008 = vmatprep.subr.mxu0 %v4176
  %5009 = vmatpush1.msra.mxu0 %v4175
  %5010 = vmatprep.subr.mxu0 %v4163
  %5011 = vmatpush1.msra.mxu0 %v4162
  %5012 = vmatprep.subr.mxu0 %v4150
  %5013 = vmatpush1.msra.mxu0 %v4149
  %5014 = vmatprep.subr.mxu0 %v4137
  %5015 = vmatpush1.msra.mxu0 %v4136
  %5016 = vmatprep.subr.mxu0 %v4124
  %5017 = vmatpush1.msra.mxu0 %v4123
  %5018 = vmatprep.subr.mxu0 %v4111
  %5019 = vmatpush1.msra.mxu0 %v4110
  %5020 = vmatprep.subr.mxu0 %v4098
  %5021 = vmatpush1.msra.mxu0 %v4097
  %5022 = vmatprep.subr.mxu0 %v4085
  %5023 = vmatpush1.msra.mxu0 %v4084
  %5024 = vmatprep.subr.mxu0 %v4072
  %5025 = vmatpush1.msra.mxu0 %v4071
  %5026 = vmatprep.subr.mxu0 %v4059
  %5027 = vmatpush1.msra.mxu0 %v4058
  %5028 = vmatprep.subr.mxu0 %v4462
  %5029 = vmatpush2.msra.mxu0 %v4461
  %5030 = vmatprep.subr.mxu0 %v4449
  %5031 = vmatpush2.msra.mxu0 %v4448
  %5032 = vmatprep.subr.mxu0 %v4436
  %5033 = vmatpush2.msra.mxu0 %v4435
  %5034 = vmatprep.subr.mxu0 %v4423
  %5035 = vmatpush2.msra.mxu0 %v4422
  %5036 = vmatprep.subr.mxu0 %v4410
  %5037 = vmatpush2.msra.mxu0 %v4409
  %5038 = vmatprep.subr.mxu0 %v4397
  %5039 = vmatpush2.msra.mxu0 %v4396
  %5040 = vmatprep.subr.mxu0 %v4384
  %5041 = vmatpush2.msra.mxu0 %v4383
  %5042 = vmatprep.subr.mxu0 %v4371
  %5043 = vmatpush2.msra.mxu0 %v4370
  %5044 = vmatprep.subr.mxu0 %v4358
  %5045 = vmatpush2.msra.mxu0 %v4357
  %5046 = vmatprep.subr.mxu0 %v4345
  %5047 = vmatpush2.msra.mxu0 %v4344
  %5048 = vmatprep.subr.mxu0 %v4332
  %5049 = vmatpush2.msra.mxu0 %v4331
  %5050 = vmatprep.subr.mxu0 %v4319
  %5051 = vmatpush2.msra.mxu0 %v4318
  %5052 = vmatprep.subr.mxu0 %v4306
  %5053 = vmatpush2.msra.mxu0 %v4305
  %5054 = vmatprep.subr.mxu0 %v4293
  %5055 = vmatpush2.msra.mxu0 %v4292
  %5056 = vmatprep.subr.mxu0 %v4280
  %5057 = vmatpush2.msra.mxu0 %v4279
  %5058 = vmatprep.subr.mxu0 %v4267
  %5059 = vmatpush2.msra.mxu0 %v4266
  %5060 = vmatprep.mubr.f32.mxu0 %v3222
  %5061 = vmatmul.mubr.f32.gmra.mxu0 %v3221
  %v5062 = vpop.f32.mrf.mxu0
  %v5063 = vadd.f32 %v4992, %v5062
  %v5064 = vpop.f32.mrf.mxu0
  %v5065 = vadd.f32 %v4994, %v5064
  %5066 = vdwg.mxu0
  %5067 = vmatprep.subr.mxu0 0.0
  %5068 = vmatpush1.msra.mxu0 0.0
  %5069 = vmatprep.subr.mxu0 0.0
  %5070 = vmatpush1.msra.mxu0 0.0
  %5071 = vmatprep.subr.mxu0 0.0
  %5072 = vmatpush1.msra.mxu0 0.0
  %5073 = vmatprep.subr.mxu0 0.0
  %5074 = vmatpush1.msra.mxu0 0.0
  %5075 = vmatprep.subr.mxu0 0.0
  %5076 = vmatpush1.msra.mxu0 0.0
  %5077 = vmatprep.subr.mxu0 0.0
  %5078 = vmatpush1.msra.mxu0 0.0
  %5079 = vmatprep.subr.mxu0 0.0
  %5080 = vmatpush1.msra.mxu0 0.0
  %5081 = vmatprep.subr.mxu0 0.0
  %5082 = vmatpush1.msra.mxu0 0.0
  %5083 = vmatprep.subr.mxu0 0.0
  %5084 = vmatpush1.msra.mxu0 0.0
  %5085 = vmatprep.subr.mxu0 0.0
  %5086 = vmatpush1.msra.mxu0 0.0
  %5087 = vmatprep.subr.mxu0 0.0
  %5088 = vmatpush1.msra.mxu0 0.0
  %5089 = vmatprep.subr.mxu0 0.0
  %5090 = vmatpush1.msra.mxu0 0.0
  %5091 = vmatprep.subr.mxu0 0.0
  %5092 = vmatpush1.msra.mxu0 0.0
  %5093 = vmatprep.subr.mxu0 0.0
  %5094 = vmatpush1.msra.mxu0 0.0
  %5095 = vmatprep.subr.mxu0 %v4488
  %5096 = vmatpush1.msra.mxu0 %v4487
  %5097 = vmatprep.subr.mxu0 %v4475
  %5098 = vmatpush1.msra.mxu0 %v4474
  %5099 = vmatprep.subr.mxu0 0.0
  %5100 = vmatpush2.msra.mxu0 0.0
  %5101 = vmatprep.subr.mxu0 0.0
  %5102 = vmatpush2.msra.mxu0 0.0
  %5103 = vmatprep.subr.mxu0 0.0
  %5104 = vmatpush2.msra.mxu0 0.0
  %5105 = vmatprep.subr.mxu0 0.0
  %5106 = vmatpush2.msra.mxu0 0.0
  %5107 = vmatprep.subr.mxu0 0.0
  %5108 = vmatpush2.msra.mxu0 0.0
  %5109 = vmatprep.subr.mxu0 0.0
  %5110 = vmatpush2.msra.mxu0 0.0
  %5111 = vmatprep.subr.mxu0 0.0
  %5112 = vmatpush2.msra.mxu0 0.0
  %5113 = vmatprep.subr.mxu0 0.0
  %5114 = vmatpush2.msra.mxu0 0.0
  %5115 = vmatprep.subr.mxu0 0.0
  %5116 = vmatpush2.msra.mxu0 0.0
  %5117 = vmatprep.subr.mxu0 0.0
  %5118 = vmatpush2.msra.mxu0 0.0
  %5119 = vmatprep.subr.mxu0 0.0
  %5120 = vmatpush2.msra.mxu0 0.0
  %5121 = vmatprep.subr.mxu0 0.0
  %5122 = vmatpush2.msra.mxu0 0.0
  %5123 = vmatprep.subr.mxu0 0.0
  %5124 = vmatpush2.msra.mxu0 0.0
  %5125 = vmatprep.subr.mxu0 0.0
  %5126 = vmatpush2.msra.mxu0 0.0
  %5127 = vmatprep.subr.mxu0 0.0
  %5128 = vmatpush2.msra.mxu0 0.0
  %5129 = vmatprep.subr.mxu0 0.0
  %5130 = vmatpush2.msra.mxu0 0.0
  %5131 = vmatprep.mubr.f32.mxu0 0.0
  %5132 = vmatmul.mubr.f32.gmra.mxu0 %v4568
  %v5133 = vpop.f32.mrf.mxu0
  %v5134 = vadd.f32 %v5063, %v5133
  %v5135 = vpop.f32.mrf.mxu0
  %v5136 = vadd.f32 %v5065, %v5135
  %5137 = vdwg.mxu0
  %5138 = vmatprep.subr.mxu0 %v3424
  %5139 = vmatpush1.msra.mxu0 %v3423
  %5140 = vmatprep.subr.mxu0 %v3411
  %5141 = vmatpush1.msra.mxu0 %v3410
  %5142 = vmatprep.subr.mxu0 %v3398
  %5143 = vmatpush1.msra.mxu0 %v3397
  %5144 = vmatprep.subr.mxu0 %v3385
  %5145 = vmatpush1.msra.mxu0 %v3384
  %5146 = vmatprep.subr.mxu0 %v3372
  %5147 = vmatpush1.msra.mxu0 %v3371
  %5148 = vmatprep.subr.mxu0 %v3359
  %5149 = vmatpush1.msra.mxu0 %v3358
  %5150 = vmatprep.subr.mxu0 %v3346
  %5151 = vmatpush1.msra.mxu0 %v3345
  %5152 = vmatprep.subr.mxu0 %v3333
  %5153 = vmatpush1.msra.mxu0 %v3332
  %5154 = vmatprep.subr.mxu0 %v3320
  %5155 = vmatpush1.msra.mxu0 %v3319
  %5156 = vmatprep.subr.mxu0 %v3307
  %5157 = vmatpush1.msra.mxu0 %v3306
  %5158 = vmatprep.subr.mxu0 %v3294
  %5159 = vmatpush1.msra.mxu0 %v3293
  %5160 = vmatprep.subr.mxu0 %v3281
  %5161 = vmatpush1.msra.mxu0 %v3280
  %5162 = vmatprep.subr.mxu0 %v3268
  %5163 = vmatpush1.msra.mxu0 %v3267
  %5164 = vmatprep.subr.mxu0 %v3255
  %5165 = vmatpush1.msra.mxu0 %v3254
  %5166 = vmatprep.subr.mxu0 %v3242
  %5167 = vmatpush1.msra.mxu0 %v3241
  %5168 = vmatprep.subr.mxu0 %v3229
  %5169 = vmatpush1.msra.mxu0 %v3228
  %5170 = vmatprep.subr.mxu0 %v3632
  %5171 = vmatpush2.msra.mxu0 %v3631
  %5172 = vmatprep.subr.mxu0 %v3619
  %5173 = vmatpush2.msra.mxu0 %v3618
  %5174 = vmatprep.subr.mxu0 %v3606
  %5175 = vmatpush2.msra.mxu0 %v3605
  %5176 = vmatprep.subr.mxu0 %v3593
  %5177 = vmatpush2.msra.mxu0 %v3592
  %5178 = vmatprep.subr.mxu0 %v3580
  %5179 = vmatpush2.msra.mxu0 %v3579
  %5180 = vmatprep.subr.mxu0 %v3567
  %5181 = vmatpush2.msra.mxu0 %v3566
  %5182 = vmatprep.subr.mxu0 %v3554
  %5183 = vmatpush2.msra.mxu0 %v3553
  %5184 = vmatprep.subr.mxu0 %v3541
  %5185 = vmatpush2.msra.mxu0 %v3540
  %5186 = vmatprep.subr.mxu0 %v3528
  %5187 = vmatpush2.msra.mxu0 %v3527
  %5188 = vmatprep.subr.mxu0 %v3515
  %5189 = vmatpush2.msra.mxu0 %v3514
  %5190 = vmatprep.subr.mxu0 %v3502
  %5191 = vmatpush2.msra.mxu0 %v3501
  %5192 = vmatprep.subr.mxu0 %v3489
  %5193 = vmatpush2.msra.mxu0 %v3488
  %5194 = vmatprep.subr.mxu0 %v3476
  %5195 = vmatpush2.msra.mxu0 %v3475
  %5196 = vmatprep.subr.mxu0 %v3463
  %5197 = vmatpush2.msra.mxu0 %v3462
  %5198 = vmatprep.subr.mxu0 %v3450
  %5199 = vmatpush2.msra.mxu0 %v3449
  %5200 = vmatprep.subr.mxu0 %v3437
  %5201 = vmatpush2.msra.mxu0 %v3436
  %5202 = vmatprep.mubr.f32.mxu0 %v3218
  %5203 = vmatmul.mubr.f32.gmra.mxu0 %v3217
  %v5204 = vpop.f32.mrf.mxu0
  %v5205 = vadd.f32 %v4521, %v5204
  %v5206 = vpop.f32.mrf.mxu0
  %v5207 = vadd.f32 %v4525, %v5206
  %5208 = vdwg.mxu0
  %5209 = vmatprep.subr.mxu0 %v3840
  %5210 = vmatpush1.msra.mxu0 %v3839
  %5211 = vmatprep.subr.mxu0 %v3827
  %5212 = vmatpush1.msra.mxu0 %v3826
  %5213 = vmatprep.subr.mxu0 %v3814
  %5214 = vmatpush1.msra.mxu0 %v3813
  %5215 = vmatprep.subr.mxu0 %v3801
  %5216 = vmatpush1.msra.mxu0 %v3800
  %5217 = vmatprep.subr.mxu0 %v3788
  %5218 = vmatpush1.msra.mxu0 %v3787
  %5219 = vmatprep.subr.mxu0 %v3775
  %5220 = vmatpush1.msra.mxu0 %v3774
  %5221 = vmatprep.subr.mxu0 %v3762
  %5222 = vmatpush1.msra.mxu0 %v3761
  %5223 = vmatprep.subr.mxu0 %v3749
  %5224 = vmatpush1.msra.mxu0 %v3748
  %5225 = vmatprep.subr.mxu0 %v3736
  %5226 = vmatpush1.msra.mxu0 %v3735
  %5227 = vmatprep.subr.mxu0 %v3723
  %5228 = vmatpush1.msra.mxu0 %v3722
  %5229 = vmatprep.subr.mxu0 %v3710
  %5230 = vmatpush1.msra.mxu0 %v3709
  %5231 = vmatprep.subr.mxu0 %v3697
  %5232 = vmatpush1.msra.mxu0 %v3696
  %5233 = vmatprep.subr.mxu0 %v3684
  %5234 = vmatpush1.msra.mxu0 %v3683
  %5235 = vmatprep.subr.mxu0 %v3671
  %5236 = vmatpush1.msra.mxu0 %v3670
  %5237 = vmatprep.subr.mxu0 %v3658
  %5238 = vmatpush1.msra.mxu0 %v3657
  %5239 = vmatprep.subr.mxu0 %v3645
  %5240 = vmatpush1.msra.mxu0 %v3644
  %5241 = vmatprep.subr.mxu0 %v4048
  %5242 = vmatpush2.msra.mxu0 %v4047
  %5243 = vmatprep.subr.mxu0 %v4035
  %5244 = vmatpush2.msra.mxu0 %v4034
  %5245 = vmatprep.subr.mxu0 %v4022
  %5246 = vmatpush2.msra.mxu0 %v4021
  %5247 = vmatprep.subr.mxu0 %v4009
  %5248 = vmatpush2.msra.mxu0 %v4008
  %5249 = vmatprep.subr.mxu0 %v3996
  %5250 = vmatpush2.msra.mxu0 %v3995
  %5251 = vmatprep.subr.mxu0 %v3983
  %5252 = vmatpush2.msra.mxu0 %v3982
  %5253 = vmatprep.subr.mxu0 %v3970
  %5254 = vmatpush2.msra.mxu0 %v3969
  %5255 = vmatprep.subr.mxu0 %v3957
  %5256 = vmatpush2.msra.mxu0 %v3956
  %5257 = vmatprep.subr.mxu0 %v3944
  %5258 = vmatpush2.msra.mxu0 %v3943
  %5259 = vmatprep.subr.mxu0 %v3931
  %5260 = vmatpush2.msra.mxu0 %v3930
  %5261 = vmatprep.subr.mxu0 %v3918
  %5262 = vmatpush2.msra.mxu0 %v3917
  %5263 = vmatprep.subr.mxu0 %v3905
  %5264 = vmatpush2.msra.mxu0 %v3904
  %5265 = vmatprep.subr.mxu0 %v3892
  %5266 = vmatpush2.msra.mxu0 %v3891
  %5267 = vmatprep.subr.mxu0 %v3879
  %5268 = vmatpush2.msra.mxu0 %v3878
  %5269 = vmatprep.subr.mxu0 %v3866
  %5270 = vmatpush2.msra.mxu0 %v3865
  %5271 = vmatprep.subr.mxu0 %v3853
  %5272 = vmatpush2.msra.mxu0 %v3852
  %5273 = vmatprep.mubr.f32.mxu0 %v3220
  %5274 = vmatmul.mubr.f32.gmra.mxu0 %v3219
  %v5275 = vpop.f32.mrf.mxu0
  %v5276 = vadd.f32 %v5205, %v5275
  %v5277 = vpop.f32.mrf.mxu0
  %v5278 = vadd.f32 %v5207, %v5277
  %5279 = vdwg.mxu0
  %5280 = vmatprep.subr.mxu0 %v4256
  %5281 = vmatpush1.msra.mxu0 %v4255
  %5282 = vmatprep.subr.mxu0 %v4243
  %5283 = vmatpush1.msra.mxu0 %v4242
  %5284 = vmatprep.subr.mxu0 %v4230
  %5285 = vmatpush1.msra.mxu0 %v4229
  %5286 = vmatprep.subr.mxu0 %v4217
  %5287 = vmatpush1.msra.mxu0 %v4216
  %5288 = vmatprep.subr.mxu0 %v4204
  %5289 = vmatpush1.msra.mxu0 %v4203
  %5290 = vmatprep.subr.mxu0 %v4191
  %5291 = vmatpush1.msra.mxu0 %v4190
  %5292 = vmatprep.subr.mxu0 %v4178
  %5293 = vmatpush1.msra.mxu0 %v4177
  %5294 = vmatprep.subr.mxu0 %v4165
  %5295 = vmatpush1.msra.mxu0 %v4164
  %5296 = vmatprep.subr.mxu0 %v4152
  %5297 = vmatpush1.msra.mxu0 %v4151
  %5298 = vmatprep.subr.mxu0 %v4139
  %5299 = vmatpush1.msra.mxu0 %v4138
  %5300 = vmatprep.subr.mxu0 %v4126
  %5301 = vmatpush1.msra.mxu0 %v4125
  %5302 = vmatprep.subr.mxu0 %v4113
  %5303 = vmatpush1.msra.mxu0 %v4112
  %5304 = vmatprep.subr.mxu0 %v4100
  %5305 = vmatpush1.msra.mxu0 %v4099
  %5306 = vmatprep.subr.mxu0 %v4087
  %5307 = vmatpush1.msra.mxu0 %v4086
  %5308 = vmatprep.subr.mxu0 %v4074
  %5309 = vmatpush1.msra.mxu0 %v4073
  %5310 = vmatprep.subr.mxu0 %v4061
  %5311 = vmatpush1.msra.mxu0 %v4060
  %5312 = vmatprep.subr.mxu0 %v4464
  %5313 = vmatpush2.msra.mxu0 %v4463
  %5314 = vmatprep.subr.mxu0 %v4451
  %5315 = vmatpush2.msra.mxu0 %v4450
  %5316 = vmatprep.subr.mxu0 %v4438
  %5317 = vmatpush2.msra.mxu0 %v4437
  %5318 = vmatprep.subr.mxu0 %v4425
  %5319 = vmatpush2.msra.mxu0 %v4424
  %5320 = vmatprep.subr.mxu0 %v4412
  %5321 = vmatpush2.msra.mxu0 %v4411
  %5322 = vmatprep.subr.mxu0 %v4399
  %5323 = vmatpush2.msra.mxu0 %v4398
  %5324 = vmatprep.subr.mxu0 %v4386
  %5325 = vmatpush2.msra.mxu0 %v4385
  %5326 = vmatprep.subr.mxu0 %v4373
  %5327 = vmatpush2.msra.mxu0 %v4372
  %5328 = vmatprep.subr.mxu0 %v4360
  %5329 = vmatpush2.msra.mxu0 %v4359
  %5330 = vmatprep.subr.mxu0 %v4347
  %5331 = vmatpush2.msra.mxu0 %v4346
  %5332 = vmatprep.subr.mxu0 %v4334
  %5333 = vmatpush2.msra.mxu0 %v4333
  %5334 = vmatprep.subr.mxu0 %v4321
  %5335 = vmatpush2.msra.mxu0 %v4320
  %5336 = vmatprep.subr.mxu0 %v4308
  %5337 = vmatpush2.msra.mxu0 %v4307
  %5338 = vmatprep.subr.mxu0 %v4295
  %5339 = vmatpush2.msra.mxu0 %v4294
  %5340 = vmatprep.subr.mxu0 %v4282
  %5341 = vmatpush2.msra.mxu0 %v4281
  %5342 = vmatprep.subr.mxu0 %v4269
  %5343 = vmatpush2.msra.mxu0 %v4268
  %5344 = vmatprep.mubr.f32.mxu0 %v3222
  %5345 = vmatmul.mubr.f32.gmra.mxu0 %v3221
  %v5346 = vpop.f32.mrf.mxu0
  %v5347 = vadd.f32 %v5276, %v5346
  %v5348 = vpop.f32.mrf.mxu0
  %v5349 = vadd.f32 %v5278, %v5348
  %5350 = vdwg.mxu0
  %5351 = vmatprep.subr.mxu0 0.0
  %5352 = vmatpush1.msra.mxu0 0.0
  %5353 = vmatprep.subr.mxu0 0.0
  %5354 = vmatpush1.msra.mxu0 0.0
  %5355 = vmatprep.subr.mxu0 0.0
  %5356 = vmatpush1.msra.mxu0 0.0
  %5357 = vmatprep.subr.mxu0 0.0
  %5358 = vmatpush1.msra.mxu0 0.0
  %5359 = vmatprep.subr.mxu0 0.0
  %5360 = vmatpush1.msra.mxu0 0.0
  %5361 = vmatprep.subr.mxu0 0.0
  %5362 = vmatpush1.msra.mxu0 0.0
  %5363 = vmatprep.subr.mxu0 0.0
  %5364 = vmatpush1.msra.mxu0 0.0
  %5365 = vmatprep.subr.mxu0 0.0
  %5366 = vmatpush1.msra.mxu0 0.0
  %5367 = vmatprep.subr.mxu0 0.0
  %5368 = vmatpush1.msra.mxu0 0.0
  %5369 = vmatprep.subr.mxu0 0.0
  %5370 = vmatpush1.msra.mxu0 0.0
  %5371 = vmatprep.subr.mxu0 0.0
  %5372 = vmatpush1.msra.mxu0 0.0
  %5373 = vmatprep.subr.mxu0 0.0
  %5374 = vmatpush1.msra.mxu0 0.0
  %5375 = vmatprep.subr.mxu0 0.0
  %5376 = vmatpush1.msra.mxu0 0.0
  %5377 = vmatprep.subr.mxu0 0.0
  %5378 = vmatpush1.msra.mxu0 0.0
  %5379 = vmatprep.subr.mxu0 %v4490
  %5380 = vmatpush1.msra.mxu0 %v4489
  %5381 = vmatprep.subr.mxu0 %v4477
  %5382 = vmatpush1.msra.mxu0 %v4476
  %5383 = vmatprep.subr.mxu0 0.0
  %5384 = vmatpush2.msra.mxu0 0.0
  %5385 = vmatprep.subr.mxu0 0.0
  %5386 = vmatpush2.msra.mxu0 0.0
  %5387 = vmatprep.subr.mxu0 0.0
  %5388 = vmatpush2.msra.mxu0 0.0
  %5389 = vmatprep.subr.mxu0 0.0
  %5390 = vmatpush2.msra.mxu0 0.0
  %5391 = vmatprep.subr.mxu0 0.0
  %5392 = vmatpush2.msra.mxu0 0.0
  %5393 = vmatprep.subr.mxu0 0.0
  %5394 = vmatpush2.msra.mxu0 0.0
  %5395 = vmatprep.subr.mxu0 0.0
  %5396 = vmatpush2.msra.mxu0 0.0
  %5397 = vmatprep.subr.mxu0 0.0
  %5398 = vmatpush2.msra.mxu0 0.0
  %5399 = vmatprep.subr.mxu0 0.0
  %5400 = vmatpush2.msra.mxu0 0.0
  %5401 = vmatprep.subr.mxu0 0.0
  %5402 = vmatpush2.msra.mxu0 0.0
  %5403 = vmatprep.subr.mxu0 0.0
  %5404 = vmatpush2.msra.mxu0 0.0
  %5405 = vmatprep.subr.mxu0 0.0
  %5406 = vmatpush2.msra.mxu0 0.0
  %5407 = vmatprep.subr.mxu0 0.0
  %5408 = vmatpush2.msra.mxu0 0.0
  %5409 = vmatprep.subr.mxu0 0.0
  %5410 = vmatpush2.msra.mxu0 0.0
  %5411 = vmatprep.subr.mxu0 0.0
  %5412 = vmatpush2.msra.mxu0 0.0
  %5413 = vmatprep.subr.mxu0 0.0
  %5414 = vmatpush2.msra.mxu0 0.0
  %5415 = vmatprep.mubr.f32.mxu0 0.0
  %5416 = vmatmul.mubr.f32.gmra.mxu0 %v4568
  %v5417 = vpop.f32.mrf.mxu0
  %v5418 = vadd.f32 %v5347, %v5417
  %v5419 = vpop.f32.mrf.mxu0
  %v5420 = vadd.f32 %v5349, %v5419
  %5421 = vdwg.mxu0
  %5422 = vmatprep.subr.mxu0 %v3426
  %5423 = vmatpush1.msra.mxu0 %v3425
  %5424 = vmatprep.subr.mxu0 %v3413
  %5425 = vmatpush1.msra.mxu0 %v3412
  %5426 = vmatprep.subr.mxu0 %v3400
  %5427 = vmatpush1.msra.mxu0 %v3399
  %5428 = vmatprep.subr.mxu0 %v3387
  %5429 = vmatpush1.msra.mxu0 %v3386
  %5430 = vmatprep.subr.mxu0 %v3374
  %5431 = vmatpush1.msra.mxu0 %v3373
  %5432 = vmatprep.subr.mxu0 %v3361
  %5433 = vmatpush1.msra.mxu0 %v3360
  %5434 = vmatprep.subr.mxu0 %v3348
  %5435 = vmatpush1.msra.mxu0 %v3347
  %5436 = vmatprep.subr.mxu0 %v3335
  %5437 = vmatpush1.msra.mxu0 %v3334
  %5438 = vmatprep.subr.mxu0 %v3322
  %5439 = vmatpush1.msra.mxu0 %v3321
  %5440 = vmatprep.subr.mxu0 %v3309
  %5441 = vmatpush1.msra.mxu0 %v3308
  %5442 = vmatprep.subr.mxu0 %v3296
  %5443 = vmatpush1.msra.mxu0 %v3295
  %5444 = vmatprep.subr.mxu0 %v3283
  %5445 = vmatpush1.msra.mxu0 %v3282
  %5446 = vmatprep.subr.mxu0 %v3270
  %5447 = vmatpush1.msra.mxu0 %v3269
  %5448 = vmatprep.subr.mxu0 %v3257
  %5449 = vmatpush1.msra.mxu0 %v3256
  %5450 = vmatprep.subr.mxu0 %v3244
  %5451 = vmatpush1.msra.mxu0 %v3243
  %5452 = vmatprep.subr.mxu0 %v3231
  %5453 = vmatpush1.msra.mxu0 %v3230
  %5454 = vmatprep.subr.mxu0 %v3634
  %5455 = vmatpush2.msra.mxu0 %v3633
  %5456 = vmatprep.subr.mxu0 %v3621
  %5457 = vmatpush2.msra.mxu0 %v3620
  %5458 = vmatprep.subr.mxu0 %v3608
  %5459 = vmatpush2.msra.mxu0 %v3607
  %5460 = vmatprep.subr.mxu0 %v3595
  %5461 = vmatpush2.msra.mxu0 %v3594
  %5462 = vmatprep.subr.mxu0 %v3582
  %5463 = vmatpush2.msra.mxu0 %v3581
  %5464 = vmatprep.subr.mxu0 %v3569
  %5465 = vmatpush2.msra.mxu0 %v3568
  %5466 = vmatprep.subr.mxu0 %v3556
  %5467 = vmatpush2.msra.mxu0 %v3555
  %5468 = vmatprep.subr.mxu0 %v3543
  %5469 = vmatpush2.msra.mxu0 %v3542
  %5470 = vmatprep.subr.mxu0 %v3530
  %5471 = vmatpush2.msra.mxu0 %v3529
  %5472 = vmatprep.subr.mxu0 %v3517
  %5473 = vmatpush2.msra.mxu0 %v3516
  %5474 = vmatprep.subr.mxu0 %v3504
  %5475 = vmatpush2.msra.mxu0 %v3503
  %5476 = vmatprep.subr.mxu0 %v3491
  %5477 = vmatpush2.msra.mxu0 %v3490
  %5478 = vmatprep.subr.mxu0 %v3478
  %5479 = vmatpush2.msra.mxu0 %v3477
  %5480 = vmatprep.subr.mxu0 %v3465
  %5481 = vmatpush2.msra.mxu0 %v3464
  %5482 = vmatprep.subr.mxu0 %v3452
  %5483 = vmatpush2.msra.mxu0 %v3451
  %5484 = vmatprep.subr.mxu0 %v3439
  %5485 = vmatpush2.msra.mxu0 %v3438
  %5486 = vmatprep.mubr.f32.mxu0 %v3218
  %5487 = vmatmul.mubr.f32.gmra.mxu0 %v3217
  %v5488 = vpop.f32.mrf.mxu0
  %v5489 = vadd.f32 %v4529, %v5488
  %v5490 = vpop.f32.mrf.mxu0
  %v5491 = vadd.f32 %v4533, %v5490
  %5492 = vdwg.mxu0
  %5493 = vmatprep.subr.mxu0 %v3842
  %5494 = vmatpush1.msra.mxu0 %v3841
  %5495 = vmatprep.subr.mxu0 %v3829
  %5496 = vmatpush1.msra.mxu0 %v3828
  %5497 = vmatprep.subr.mxu0 %v3816
  %5498 = vmatpush1.msra.mxu0 %v3815
  %5499 = vmatprep.subr.mxu0 %v3803
  %5500 = vmatpush1.msra.mxu0 %v3802
  %5501 = vmatprep.subr.mxu0 %v3790
  %5502 = vmatpush1.msra.mxu0 %v3789
  %5503 = vmatprep.subr.mxu0 %v3777
  %5504 = vmatpush1.msra.mxu0 %v3776
  %5505 = vmatprep.subr.mxu0 %v3764
  %5506 = vmatpush1.msra.mxu0 %v3763
  %5507 = vmatprep.subr.mxu0 %v3751
  %5508 = vmatpush1.msra.mxu0 %v3750
  %5509 = vmatprep.subr.mxu0 %v3738
  %5510 = vmatpush1.msra.mxu0 %v3737
  %5511 = vmatprep.subr.mxu0 %v3725
  %5512 = vmatpush1.msra.mxu0 %v3724
  %5513 = vmatprep.subr.mxu0 %v3712
  %5514 = vmatpush1.msra.mxu0 %v3711
  %5515 = vmatprep.subr.mxu0 %v3699
  %5516 = vmatpush1.msra.mxu0 %v3698
  %5517 = vmatprep.subr.mxu0 %v3686
  %5518 = vmatpush1.msra.mxu0 %v3685
  %5519 = vmatprep.subr.mxu0 %v3673
  %5520 = vmatpush1.msra.mxu0 %v3672
  %5521 = vmatprep.subr.mxu0 %v3660
  %5522 = vmatpush1.msra.mxu0 %v3659
  %5523 = vmatprep.subr.mxu0 %v3647
  %5524 = vmatpush1.msra.mxu0 %v3646
  %5525 = vmatprep.subr.mxu0 %v4050
  %5526 = vmatpush2.msra.mxu0 %v4049
  %5527 = vmatprep.subr.mxu0 %v4037
  %5528 = vmatpush2.msra.mxu0 %v4036
  %5529 = vmatprep.subr.mxu0 %v4024
  %5530 = vmatpush2.msra.mxu0 %v4023
  %5531 = vmatprep.subr.mxu0 %v4011
  %5532 = vmatpush2.msra.mxu0 %v4010
  %5533 = vmatprep.subr.mxu0 %v3998
  %5534 = vmatpush2.msra.mxu0 %v3997
  %5535 = vmatprep.subr.mxu0 %v3985
  %5536 = vmatpush2.msra.mxu0 %v3984
  %5537 = vmatprep.subr.mxu0 %v3972
  %5538 = vmatpush2.msra.mxu0 %v3971
  %5539 = vmatprep.subr.mxu0 %v3959
  %5540 = vmatpush2.msra.mxu0 %v3958
  %5541 = vmatprep.subr.mxu0 %v3946
  %5542 = vmatpush2.msra.mxu0 %v3945
  %5543 = vmatprep.subr.mxu0 %v3933
  %5544 = vmatpush2.msra.mxu0 %v3932
  %5545 = vmatprep.subr.mxu0 %v3920
  %5546 = vmatpush2.msra.mxu0 %v3919
  %5547 = vmatprep.subr.mxu0 %v3907
  %5548 = vmatpush2.msra.mxu0 %v3906
  %5549 = vmatprep.subr.mxu0 %v3894
  %5550 = vmatpush2.msra.mxu0 %v3893
  %5551 = vmatprep.subr.mxu0 %v3881
  %5552 = vmatpush2.msra.mxu0 %v3880
  %5553 = vmatprep.subr.mxu0 %v3868
  %5554 = vmatpush2.msra.mxu0 %v3867
  %5555 = vmatprep.subr.mxu0 %v3855
  %5556 = vmatpush2.msra.mxu0 %v3854
  %5557 = vmatprep.mubr.f32.mxu0 %v3220
  %5558 = vmatmul.mubr.f32.gmra.mxu0 %v3219
  %v5559 = vpop.f32.mrf.mxu0
  %v5560 = vadd.f32 %v5489, %v5559
  %v5561 = vpop.f32.mrf.mxu0
  %v5562 = vadd.f32 %v5491, %v5561
  %5563 = vdwg.mxu0
  %5564 = vmatprep.subr.mxu0 %v4258
  %5565 = vmatpush1.msra.mxu0 %v4257
  %5566 = vmatprep.subr.mxu0 %v4245
  %5567 = vmatpush1.msra.mxu0 %v4244
  %5568 = vmatprep.subr.mxu0 %v4232
  %5569 = vmatpush1.msra.mxu0 %v4231
  %5570 = vmatprep.subr.mxu0 %v4219
  %5571 = vmatpush1.msra.mxu0 %v4218
  %5572 = vmatprep.subr.mxu0 %v4206
  %5573 = vmatpush1.msra.mxu0 %v4205
  %5574 = vmatprep.subr.mxu0 %v4193
  %5575 = vmatpush1.msra.mxu0 %v4192
  %5576 = vmatprep.subr.mxu0 %v4180
  %5577 = vmatpush1.msra.mxu0 %v4179
  %5578 = vmatprep.subr.mxu0 %v4167
  %5579 = vmatpush1.msra.mxu0 %v4166
  %5580 = vmatprep.subr.mxu0 %v4154
  %5581 = vmatpush1.msra.mxu0 %v4153
  %5582 = vmatprep.subr.mxu0 %v4141
  %5583 = vmatpush1.msra.mxu0 %v4140
  %5584 = vmatprep.subr.mxu0 %v4128
  %5585 = vmatpush1.msra.mxu0 %v4127
  %5586 = vmatprep.subr.mxu0 %v4115
  %5587 = vmatpush1.msra.mxu0 %v4114
  %5588 = vmatprep.subr.mxu0 %v4102
  %5589 = vmatpush1.msra.mxu0 %v4101
  %5590 = vmatprep.subr.mxu0 %v4089
  %5591 = vmatpush1.msra.mxu0 %v4088
  %5592 = vmatprep.subr.mxu0 %v4076
  %5593 = vmatpush1.msra.mxu0 %v4075
  %5594 = vmatprep.subr.mxu0 %v4063
  %5595 = vmatpush1.msra.mxu0 %v4062
  %5596 = vmatprep.subr.mxu0 %v4466
  %5597 = vmatpush2.msra.mxu0 %v4465
  %5598 = vmatprep.subr.mxu0 %v4453
  %5599 = vmatpush2.msra.mxu0 %v4452
  %5600 = vmatprep.subr.mxu0 %v4440
  %5601 = vmatpush2.msra.mxu0 %v4439
  %5602 = vmatprep.subr.mxu0 %v4427
  %5603 = vmatpush2.msra.mxu0 %v4426
  %5604 = vmatprep.subr.mxu0 %v4414
  %5605 = vmatpush2.msra.mxu0 %v4413
  %5606 = vmatprep.subr.mxu0 %v4401
  %5607 = vmatpush2.msra.mxu0 %v4400
  %5608 = vmatprep.subr.mxu0 %v4388
  %5609 = vmatpush2.msra.mxu0 %v4387
  %5610 = vmatprep.subr.mxu0 %v4375
  %5611 = vmatpush2.msra.mxu0 %v4374
  %5612 = vmatprep.subr.mxu0 %v4362
  %5613 = vmatpush2.msra.mxu0 %v4361
  %5614 = vmatprep.subr.mxu0 %v4349
  %5615 = vmatpush2.msra.mxu0 %v4348
  %5616 = vmatprep.subr.mxu0 %v4336
  %5617 = vmatpush2.msra.mxu0 %v4335
  %5618 = vmatprep.subr.mxu0 %v4323
  %5619 = vmatpush2.msra.mxu0 %v4322
  %5620 = vmatprep.subr.mxu0 %v4310
  %5621 = vmatpush2.msra.mxu0 %v4309
  %5622 = vmatprep.subr.mxu0 %v4297
  %5623 = vmatpush2.msra.mxu0 %v4296
  %5624 = vmatprep.subr.mxu0 %v4284
  %5625 = vmatpush2.msra.mxu0 %v4283
  %5626 = vmatprep.subr.mxu0 %v4271
  %5627 = vmatpush2.msra.mxu0 %v4270
  %5628 = vmatprep.mubr.f32.mxu0 %v3222
  %5629 = vmatmul.mubr.f32.gmra.mxu0 %v3221
  %v5630 = vpop.f32.mrf.mxu0
  %v5631 = vadd.f32 %v5560, %v5630
  %v5632 = vpop.f32.mrf.mxu0
  %v5633 = vadd.f32 %v5562, %v5632
  %5634 = vdwg.mxu0
  %5635 = vmatprep.subr.mxu0 0.0
  %5636 = vmatpush1.msra.mxu0 0.0
  %5637 = vmatprep.subr.mxu0 0.0
  %5638 = vmatpush1.msra.mxu0 0.0
  %5639 = vmatprep.subr.mxu0 0.0
  %5640 = vmatpush1.msra.mxu0 0.0
  %5641 = vmatprep.subr.mxu0 0.0
  %5642 = vmatpush1.msra.mxu0 0.0
  %5643 = vmatprep.subr.mxu0 0.0
  %5644 = vmatpush1.msra.mxu0 0.0
  %5645 = vmatprep.subr.mxu0 0.0
  %5646 = vmatpush1.msra.mxu0 0.0
  %5647 = vmatprep.subr.mxu0 0.0
  %5648 = vmatpush1.msra.mxu0 0.0
  %5649 = vmatprep.subr.mxu0 0.0
  %5650 = vmatpush1.msra.mxu0 0.0
  %5651 = vmatprep.subr.mxu0 0.0
  %5652 = vmatpush1.msra.mxu0 0.0
  %5653 = vmatprep.subr.mxu0 0.0
  %5654 = vmatpush1.msra.mxu0 0.0
  %5655 = vmatprep.subr.mxu0 0.0
  %5656 = vmatpush1.msra.mxu0 0.0
  %5657 = vmatprep.subr.mxu0 0.0
  %5658 = vmatpush1.msra.mxu0 0.0
  %5659 = vmatprep.subr.mxu0 0.0
  %5660 = vmatpush1.msra.mxu0 0.0
  %5661 = vmatprep.subr.mxu0 0.0
  %5662 = vmatpush1.msra.mxu0 0.0
  %5663 = vmatprep.subr.mxu0 %v4492
  %5664 = vmatpush1.msra.mxu0 %v4491
  %5665 = vmatprep.subr.mxu0 %v4479
  %5666 = vmatpush1.msra.mxu0 %v4478
  %5667 = vmatprep.subr.mxu0 0.0
  %5668 = vmatpush2.msra.mxu0 0.0
  %5669 = vmatprep.subr.mxu0 0.0
  %5670 = vmatpush2.msra.mxu0 0.0
  %5671 = vmatprep.subr.mxu0 0.0
  %5672 = vmatpush2.msra.mxu0 0.0
  %5673 = vmatprep.subr.mxu0 0.0
  %5674 = vmatpush2.msra.mxu0 0.0
  %5675 = vmatprep.subr.mxu0 0.0
  %5676 = vmatpush2.msra.mxu0 0.0
  %5677 = vmatprep.subr.mxu0 0.0
  %5678 = vmatpush2.msra.mxu0 0.0
  %5679 = vmatprep.subr.mxu0 0.0
  %5680 = vmatpush2.msra.mxu0 0.0
  %5681 = vmatprep.subr.mxu0 0.0
  %5682 = vmatpush2.msra.mxu0 0.0
  %5683 = vmatprep.subr.mxu0 0.0
  %5684 = vmatpush2.msra.mxu0 0.0
  %5685 = vmatprep.subr.mxu0 0.0
  %5686 = vmatpush2.msra.mxu0 0.0
  %5687 = vmatprep.subr.mxu0 0.0
  %5688 = vmatpush2.msra.mxu0 0.0
  %5689 = vmatprep.subr.mxu0 0.0
  %5690 = vmatpush2.msra.mxu0 0.0
  %5691 = vmatprep.subr.mxu0 0.0
  %5692 = vmatpush2.msra.mxu0 0.0
  %5693 = vmatprep.subr.mxu0 0.0
  %5694 = vmatpush2.msra.mxu0 0.0
  %5695 = vmatprep.subr.mxu0 0.0
  %5696 = vmatpush2.msra.mxu0 0.0
  %5697 = vmatprep.subr.mxu0 0.0
  %5698 = vmatpush2.msra.mxu0 0.0
  %5699 = vmatprep.mubr.f32.mxu0 0.0
  %5700 = vmatmul.mubr.f32.gmra.mxu0 %v4568
  %v5701 = vpop.f32.mrf.mxu0
  %v5702 = vadd.f32 %v5631, %v5701
  %v5703 = vpop.f32.mrf.mxu0
  %v5704 = vadd.f32 %v5633, %v5703
  %5705 = vdwg.mxu0
  %5706 = vmatprep.subr.mxu0 %v3428
  %5707 = vmatpush1.msra.mxu0 %v3427
  %5708 = vmatprep.subr.mxu0 %v3415
  %5709 = vmatpush1.msra.mxu0 %v3414
  %5710 = vmatprep.subr.mxu0 %v3402
  %5711 = vmatpush1.msra.mxu0 %v3401
  %5712 = vmatprep.subr.mxu0 %v3389
  %5713 = vmatpush1.msra.mxu0 %v3388
  %5714 = vmatprep.subr.mxu0 %v3376
  %5715 = vmatpush1.msra.mxu0 %v3375
  %5716 = vmatprep.subr.mxu0 %v3363
  %5717 = vmatpush1.msra.mxu0 %v3362
  %5718 = vmatprep.subr.mxu0 %v3350
  %5719 = vmatpush1.msra.mxu0 %v3349
  %5720 = vmatprep.subr.mxu0 %v3337
  %5721 = vmatpush1.msra.mxu0 %v3336
  %5722 = vmatprep.subr.mxu0 %v3324
  %5723 = vmatpush1.msra.mxu0 %v3323
  %5724 = vmatprep.subr.mxu0 %v3311
  %5725 = vmatpush1.msra.mxu0 %v3310
  %5726 = vmatprep.subr.mxu0 %v3298
  %5727 = vmatpush1.msra.mxu0 %v3297
  %5728 = vmatprep.subr.mxu0 %v3285
  %5729 = vmatpush1.msra.mxu0 %v3284
  %5730 = vmatprep.subr.mxu0 %v3272
  %5731 = vmatpush1.msra.mxu0 %v3271
  %5732 = vmatprep.subr.mxu0 %v3259
  %5733 = vmatpush1.msra.mxu0 %v3258
  %5734 = vmatprep.subr.mxu0 %v3246
  %5735 = vmatpush1.msra.mxu0 %v3245
  %5736 = vmatprep.subr.mxu0 %v3233
  %5737 = vmatpush1.msra.mxu0 %v3232
  %5738 = vmatprep.subr.mxu0 %v3636
  %5739 = vmatpush2.msra.mxu0 %v3635
  %5740 = vmatprep.subr.mxu0 %v3623
  %5741 = vmatpush2.msra.mxu0 %v3622
  %5742 = vmatprep.subr.mxu0 %v3610
  %5743 = vmatpush2.msra.mxu0 %v3609
  %5744 = vmatprep.subr.mxu0 %v3597
  %5745 = vmatpush2.msra.mxu0 %v3596
  %5746 = vmatprep.subr.mxu0 %v3584
  %5747 = vmatpush2.msra.mxu0 %v3583
  %5748 = vmatprep.subr.mxu0 %v3571
  %5749 = vmatpush2.msra.mxu0 %v3570
  %5750 = vmatprep.subr.mxu0 %v3558
  %5751 = vmatpush2.msra.mxu0 %v3557
  %5752 = vmatprep.subr.mxu0 %v3545
  %5753 = vmatpush2.msra.mxu0 %v3544
  %5754 = vmatprep.subr.mxu0 %v3532
  %5755 = vmatpush2.msra.mxu0 %v3531
  %5756 = vmatprep.subr.mxu0 %v3519
  %5757 = vmatpush2.msra.mxu0 %v3518
  %5758 = vmatprep.subr.mxu0 %v3506
  %5759 = vmatpush2.msra.mxu0 %v3505
  %5760 = vmatprep.subr.mxu0 %v3493
  %5761 = vmatpush2.msra.mxu0 %v3492
  %5762 = vmatprep.subr.mxu0 %v3480
  %5763 = vmatpush2.msra.mxu0 %v3479
  %5764 = vmatprep.subr.mxu0 %v3467
  %5765 = vmatpush2.msra.mxu0 %v3466
  %5766 = vmatprep.subr.mxu0 %v3454
  %5767 = vmatpush2.msra.mxu0 %v3453
  %5768 = vmatprep.subr.mxu0 %v3441
  %5769 = vmatpush2.msra.mxu0 %v3440
  %5770 = vmatprep.mubr.f32.mxu0 %v3218
  %5771 = vmatmul.mubr.f32.gmra.mxu0 %v3217
  %v5772 = vpop.f32.mrf.mxu0
  %v5773 = vadd.f32 %v4537, %v5772
  %v5774 = vpop.f32.mrf.mxu0
  %v5775 = vadd.f32 %v4541, %v5774
  %5776 = vdwg.mxu0
  %5777 = vmatprep.subr.mxu0 %v3844
  %5778 = vmatpush1.msra.mxu0 %v3843
  %5779 = vmatprep.subr.mxu0 %v3831
  %5780 = vmatpush1.msra.mxu0 %v3830
  %5781 = vmatprep.subr.mxu0 %v3818
  %5782 = vmatpush1.msra.mxu0 %v3817
  %5783 = vmatprep.subr.mxu0 %v3805
  %5784 = vmatpush1.msra.mxu0 %v3804
  %5785 = vmatprep.subr.mxu0 %v3792
  %5786 = vmatpush1.msra.mxu0 %v3791
  %5787 = vmatprep.subr.mxu0 %v3779
  %5788 = vmatpush1.msra.mxu0 %v3778
  %5789 = vmatprep.subr.mxu0 %v3766
  %5790 = vmatpush1.msra.mxu0 %v3765
  %5791 = vmatprep.subr.mxu0 %v3753
  %5792 = vmatpush1.msra.mxu0 %v3752
  %5793 = vmatprep.subr.mxu0 %v3740
  %5794 = vmatpush1.msra.mxu0 %v3739
  %5795 = vmatprep.subr.mxu0 %v3727
  %5796 = vmatpush1.msra.mxu0 %v3726
  %5797 = vmatprep.subr.mxu0 %v3714
  %5798 = vmatpush1.msra.mxu0 %v3713
  %5799 = vmatprep.subr.mxu0 %v3701
  %5800 = vmatpush1.msra.mxu0 %v3700
  %5801 = vmatprep.subr.mxu0 %v3688
  %5802 = vmatpush1.msra.mxu0 %v3687
  %5803 = vmatprep.subr.mxu0 %v3675
  %5804 = vmatpush1.msra.mxu0 %v3674
  %5805 = vmatprep.subr.mxu0 %v3662
  %5806 = vmatpush1.msra.mxu0 %v3661
  %5807 = vmatprep.subr.mxu0 %v3649
  %5808 = vmatpush1.msra.mxu0 %v3648
  %5809 = vmatprep.subr.mxu0 %v4052
  %5810 = vmatpush2.msra.mxu0 %v4051
  %5811 = vmatprep.subr.mxu0 %v4039
  %5812 = vmatpush2.msra.mxu0 %v4038
  %5813 = vmatprep.subr.mxu0 %v4026
  %5814 = vmatpush2.msra.mxu0 %v4025
  %5815 = vmatprep.subr.mxu0 %v4013
  %5816 = vmatpush2.msra.mxu0 %v4012
  %5817 = vmatprep.subr.mxu0 %v4000
  %5818 = vmatpush2.msra.mxu0 %v3999
  %5819 = vmatprep.subr.mxu0 %v3987
  %5820 = vmatpush2.msra.mxu0 %v3986
  %5821 = vmatprep.subr.mxu0 %v3974
  %5822 = vmatpush2.msra.mxu0 %v3973
  %5823 = vmatprep.subr.mxu0 %v3961
  %5824 = vmatpush2.msra.mxu0 %v3960
  %5825 = vmatprep.subr.mxu0 %v3948
  %5826 = vmatpush2.msra.mxu0 %v3947
  %5827 = vmatprep.subr.mxu0 %v3935
  %5828 = vmatpush2.msra.mxu0 %v3934
  %5829 = vmatprep.subr.mxu0 %v3922
  %5830 = vmatpush2.msra.mxu0 %v3921
  %5831 = vmatprep.subr.mxu0 %v3909
  %5832 = vmatpush2.msra.mxu0 %v3908
  %5833 = vmatprep.subr.mxu0 %v3896
  %5834 = vmatpush2.msra.mxu0 %v3895
  %5835 = vmatprep.subr.mxu0 %v3883
  %5836 = vmatpush2.msra.mxu0 %v3882
  %5837 = vmatprep.subr.mxu0 %v3870
  %5838 = vmatpush2.msra.mxu0 %v3869
  %5839 = vmatprep.subr.mxu0 %v3857
  %5840 = vmatpush2.msra.mxu0 %v3856
  %5841 = vmatprep.mubr.f32.mxu0 %v3220
  %5842 = vmatmul.mubr.f32.gmra.mxu0 %v3219
  %v5843 = vpop.f32.mrf.mxu0
  %v5844 = vadd.f32 %v5773, %v5843
  %v5845 = vpop.f32.mrf.mxu0
  %v5846 = vadd.f32 %v5775, %v5845
  %5847 = vdwg.mxu0
  %5848 = vmatprep.subr.mxu0 %v4260
  %5849 = vmatpush1.msra.mxu0 %v4259
  %5850 = vmatprep.subr.mxu0 %v4247
  %5851 = vmatpush1.msra.mxu0 %v4246
  %5852 = vmatprep.subr.mxu0 %v4234
  %5853 = vmatpush1.msra.mxu0 %v4233
  %5854 = vmatprep.subr.mxu0 %v4221
  %5855 = vmatpush1.msra.mxu0 %v4220
  %5856 = vmatprep.subr.mxu0 %v4208
  %5857 = vmatpush1.msra.mxu0 %v4207
  %5858 = vmatprep.subr.mxu0 %v4195
  %5859 = vmatpush1.msra.mxu0 %v4194
  %5860 = vmatprep.subr.mxu0 %v4182
  %5861 = vmatpush1.msra.mxu0 %v4181
  %5862 = vmatprep.subr.mxu0 %v4169
  %5863 = vmatpush1.msra.mxu0 %v4168
  %5864 = vmatprep.subr.mxu0 %v4156
  %5865 = vmatpush1.msra.mxu0 %v4155
  %5866 = vmatprep.subr.mxu0 %v4143
  %5867 = vmatpush1.msra.mxu0 %v4142
  %5868 = vmatprep.subr.mxu0 %v4130
  %5869 = vmatpush1.msra.mxu0 %v4129
  %5870 = vmatprep.subr.mxu0 %v4117
  %5871 = vmatpush1.msra.mxu0 %v4116
  %5872 = vmatprep.subr.mxu0 %v4104
  %5873 = vmatpush1.msra.mxu0 %v4103
  %5874 = vmatprep.subr.mxu0 %v4091
  %5875 = vmatpush1.msra.mxu0 %v4090
  %5876 = vmatprep.subr.mxu0 %v4078
  %5877 = vmatpush1.msra.mxu0 %v4077
  %5878 = vmatprep.subr.mxu0 %v4065
  %5879 = vmatpush1.msra.mxu0 %v4064
  %5880 = vmatprep.subr.mxu0 %v4468
  %5881 = vmatpush2.msra.mxu0 %v4467
  %5882 = vmatprep.subr.mxu0 %v4455
  %5883 = vmatpush2.msra.mxu0 %v4454
  %5884 = vmatprep.subr.mxu0 %v4442
  %5885 = vmatpush2.msra.mxu0 %v4441
  %5886 = vmatprep.subr.mxu0 %v4429
  %5887 = vmatpush2.msra.mxu0 %v4428
  %5888 = vmatprep.subr.mxu0 %v4416
  %5889 = vmatpush2.msra.mxu0 %v4415
  %5890 = vmatprep.subr.mxu0 %v4403
  %5891 = vmatpush2.msra.mxu0 %v4402
  %5892 = vmatprep.subr.mxu0 %v4390
  %5893 = vmatpush2.msra.mxu0 %v4389
  %5894 = vmatprep.subr.mxu0 %v4377
  %5895 = vmatpush2.msra.mxu0 %v4376
  %5896 = vmatprep.subr.mxu0 %v4364
  %5897 = vmatpush2.msra.mxu0 %v4363
  %5898 = vmatprep.subr.mxu0 %v4351
  %5899 = vmatpush2.msra.mxu0 %v4350
  %5900 = vmatprep.subr.mxu0 %v4338
  %5901 = vmatpush2.msra.mxu0 %v4337
  %5902 = vmatprep.subr.mxu0 %v4325
  %5903 = vmatpush2.msra.mxu0 %v4324
  %5904 = vmatprep.subr.mxu0 %v4312
  %5905 = vmatpush2.msra.mxu0 %v4311
  %5906 = vmatprep.subr.mxu0 %v4299
  %5907 = vmatpush2.msra.mxu0 %v4298
  %5908 = vmatprep.subr.mxu0 %v4286
  %5909 = vmatpush2.msra.mxu0 %v4285
  %5910 = vmatprep.subr.mxu0 %v4273
  %5911 = vmatpush2.msra.mxu0 %v4272
  %5912 = vmatprep.mubr.f32.mxu0 %v3222
  %5913 = vmatmul.mubr.f32.gmra.mxu0 %v3221
  %v5914 = vpop.f32.mrf.mxu0
  %v5915 = vadd.f32 %v5844, %v5914
  %v5916 = vpop.f32.mrf.mxu0
  %v5917 = vadd.f32 %v5846, %v5916
  %5918 = vdwg.mxu0
  %5919 = vmatprep.subr.mxu0 0.0
  %5920 = vmatpush1.msra.mxu0 0.0
  %5921 = vmatprep.subr.mxu0 0.0
  %5922 = vmatpush1.msra.mxu0 0.0
  %5923 = vmatprep.subr.mxu0 0.0
  %5924 = vmatpush1.msra.mxu0 0.0
  %5925 = vmatprep.subr.mxu0 0.0
  %5926 = vmatpush1.msra.mxu0 0.0
  %5927 = vmatprep.subr.mxu0 0.0
  %5928 = vmatpush1.msra.mxu0 0.0
  %5929 = vmatprep.subr.mxu0 0.0
  %5930 = vmatpush1.msra.mxu0 0.0
  %5931 = vmatprep.subr.mxu0 0.0
  %5932 = vmatpush1.msra.mxu0 0.0
  %5933 = vmatprep.subr.mxu0 0.0
  %5934 = vmatpush1.msra.mxu0 0.0
  %5935 = vmatprep.subr.mxu0 0.0
  %5936 = vmatpush1.msra.mxu0 0.0
  %5937 = vmatprep.subr.mxu0 0.0
  %5938 = vmatpush1.msra.mxu0 0.0
  %5939 = vmatprep.subr.mxu0 0.0
  %5940 = vmatpush1.msra.mxu0 0.0
  %5941 = vmatprep.subr.mxu0 0.0
  %5942 = vmatpush1.msra.mxu0 0.0
  %5943 = vmatprep.subr.mxu0 0.0
  %5944 = vmatpush1.msra.mxu0 0.0
  %5945 = vmatprep.subr.mxu0 0.0
  %5946 = vmatpush1.msra.mxu0 0.0
  %5947 = vmatprep.subr.mxu0 %v4494
  %5948 = vmatpush1.msra.mxu0 %v4493
  %5949 = vmatprep.subr.mxu0 %v4481
  %5950 = vmatpush1.msra.mxu0 %v4480
  %5951 = vmatprep.subr.mxu0 0.0
  %5952 = vmatpush2.msra.mxu0 0.0
  %5953 = vmatprep.subr.mxu0 0.0
  %5954 = vmatpush2.msra.mxu0 0.0
  %5955 = vmatprep.subr.mxu0 0.0
  %5956 = vmatpush2.msra.mxu0 0.0
  %5957 = vmatprep.subr.mxu0 0.0
  %5958 = vmatpush2.msra.mxu0 0.0
  %5959 = vmatprep.subr.mxu0 0.0
  %5960 = vmatpush2.msra.mxu0 0.0
  %5961 = vmatprep.subr.mxu0 0.0
  %5962 = vmatpush2.msra.mxu0 0.0
  %5963 = vmatprep.subr.mxu0 0.0
  %5964 = vmatpush2.msra.mxu0 0.0
  %5965 = vmatprep.subr.mxu0 0.0
  %5966 = vmatpush2.msra.mxu0 0.0
  %5967 = vmatprep.subr.mxu0 0.0
  %5968 = vmatpush2.msra.mxu0 0.0
  %5969 = vmatprep.subr.mxu0 0.0
  %5970 = vmatpush2.msra.mxu0 0.0
  %5971 = vmatprep.subr.mxu0 0.0
  %5972 = vmatpush2.msra.mxu0 0.0
  %5973 = vmatprep.subr.mxu0 0.0
  %5974 = vmatpush2.msra.mxu0 0.0
  %5975 = vmatprep.subr.mxu0 0.0
  %5976 = vmatpush2.msra.mxu0 0.0
  %5977 = vmatprep.subr.mxu0 0.0
  %5978 = vmatpush2.msra.mxu0 0.0
  %5979 = vmatprep.subr.mxu0 0.0
  %5980 = vmatpush2.msra.mxu0 0.0
  %5981 = vmatprep.subr.mxu0 0.0
  %5982 = vmatpush2.msra.mxu0 0.0
  %5983 = vmatprep.mubr.f32.mxu0 0.0
  %5984 = vmatmul.mubr.f32.gmra.mxu0 %v4568
  %v5985 = vpop.f32.mrf.mxu0
  %v5986 = vadd.f32 %v5915, %v5985
  %v5987 = vpop.f32.mrf.mxu0
  %v5988 = vadd.f32 %v5917, %v5987
  %5989 = vdwg.mxu0
  %5990 = vmatprep.subr.mxu0 %v3430
  %5991 = vmatpush1.msra.mxu0 %v3429
  %5992 = vmatprep.subr.mxu0 %v3417
  %5993 = vmatpush1.msra.mxu0 %v3416
  %5994 = vmatprep.subr.mxu0 %v3404
  %5995 = vmatpush1.msra.mxu0 %v3403
  %5996 = vmatprep.subr.mxu0 %v3391
  %5997 = vmatpush1.msra.mxu0 %v3390
  %5998 = vmatprep.subr.mxu0 %v3378
  %5999 = vmatpush1.msra.mxu0 %v3377
  %6000 = vmatprep.subr.mxu0 %v3365
  %6001 = vmatpush1.msra.mxu0 %v3364
  %6002 = vmatprep.subr.mxu0 %v3352
  %6003 = vmatpush1.msra.mxu0 %v3351
  %6004 = vmatprep.subr.mxu0 %v3339
  %6005 = vmatpush1.msra.mxu0 %v3338
  %6006 = vmatprep.subr.mxu0 %v3326
  %6007 = vmatpush1.msra.mxu0 %v3325
  %6008 = vmatprep.subr.mxu0 %v3313
  %6009 = vmatpush1.msra.mxu0 %v3312
  %6010 = vmatprep.subr.mxu0 %v3300
  %6011 = vmatpush1.msra.mxu0 %v3299
  %6012 = vmatprep.subr.mxu0 %v3287
  %6013 = vmatpush1.msra.mxu0 %v3286
  %6014 = vmatprep.subr.mxu0 %v3274
  %6015 = vmatpush1.msra.mxu0 %v3273
  %6016 = vmatprep.subr.mxu0 %v3261
  %6017 = vmatpush1.msra.mxu0 %v3260
  %6018 = vmatprep.subr.mxu0 %v3248
  %6019 = vmatpush1.msra.mxu0 %v3247
  %6020 = vmatprep.subr.mxu0 %v3235
  %6021 = vmatpush1.msra.mxu0 %v3234
  %6022 = vmatprep.subr.mxu0 %v3638
  %6023 = vmatpush2.msra.mxu0 %v3637
  %6024 = vmatprep.subr.mxu0 %v3625
  %6025 = vmatpush2.msra.mxu0 %v3624
  %6026 = vmatprep.subr.mxu0 %v3612
  %6027 = vmatpush2.msra.mxu0 %v3611
  %6028 = vmatprep.subr.mxu0 %v3599
  %6029 = vmatpush2.msra.mxu0 %v3598
  %6030 = vmatprep.subr.mxu0 %v3586
  %6031 = vmatpush2.msra.mxu0 %v3585
  %6032 = vmatprep.subr.mxu0 %v3573
  %6033 = vmatpush2.msra.mxu0 %v3572
  %6034 = vmatprep.subr.mxu0 %v3560
  %6035 = vmatpush2.msra.mxu0 %v3559
  %6036 = vmatprep.subr.mxu0 %v3547
  %6037 = vmatpush2.msra.mxu0 %v3546
  %6038 = vmatprep.subr.mxu0 %v3534
  %6039 = vmatpush2.msra.mxu0 %v3533
  %6040 = vmatprep.subr.mxu0 %v3521
  %6041 = vmatpush2.msra.mxu0 %v3520
  %6042 = vmatprep.subr.mxu0 %v3508
  %6043 = vmatpush2.msra.mxu0 %v3507
  %6044 = vmatprep.subr.mxu0 %v3495
  %6045 = vmatpush2.msra.mxu0 %v3494
  %6046 = vmatprep.subr.mxu0 %v3482
  %6047 = vmatpush2.msra.mxu0 %v3481
  %6048 = vmatprep.subr.mxu0 %v3469
  %6049 = vmatpush2.msra.mxu0 %v3468
  %6050 = vmatprep.subr.mxu0 %v3456
  %6051 = vmatpush2.msra.mxu0 %v3455
  %6052 = vmatprep.subr.mxu0 %v3443
  %6053 = vmatpush2.msra.mxu0 %v3442
  %6054 = vmatprep.mubr.f32.mxu0 %v3218
  %6055 = vmatmul.mubr.f32.gmra.mxu0 %v3217
  %v6056 = vpop.f32.mrf.mxu0
  %v6057 = vadd.f32 %v4545, %v6056
  %v6058 = vpop.f32.mrf.mxu0
  %v6059 = vadd.f32 %v4549, %v6058
  %6060 = vdwg.mxu0
  %6061 = vmatprep.subr.mxu0 %v3846
  %6062 = vmatpush1.msra.mxu0 %v3845
  %6063 = vmatprep.subr.mxu0 %v3833
  %6064 = vmatpush1.msra.mxu0 %v3832
  %6065 = vmatprep.subr.mxu0 %v3820
  %6066 = vmatpush1.msra.mxu0 %v3819
  %6067 = vmatprep.subr.mxu0 %v3807
  %6068 = vmatpush1.msra.mxu0 %v3806
  %6069 = vmatprep.subr.mxu0 %v3794
  %6070 = vmatpush1.msra.mxu0 %v3793
  %6071 = vmatprep.subr.mxu0 %v3781
  %6072 = vmatpush1.msra.mxu0 %v3780
  %6073 = vmatprep.subr.mxu0 %v3768
  %6074 = vmatpush1.msra.mxu0 %v3767
  %6075 = vmatprep.subr.mxu0 %v3755
  %6076 = vmatpush1.msra.mxu0 %v3754
  %6077 = vmatprep.subr.mxu0 %v3742
  %6078 = vmatpush1.msra.mxu0 %v3741
  %6079 = vmatprep.subr.mxu0 %v3729
  %6080 = vmatpush1.msra.mxu0 %v3728
  %6081 = vmatprep.subr.mxu0 %v3716
  %6082 = vmatpush1.msra.mxu0 %v3715
  %6083 = vmatprep.subr.mxu0 %v3703
  %6084 = vmatpush1.msra.mxu0 %v3702
  %6085 = vmatprep.subr.mxu0 %v3690
  %6086 = vmatpush1.msra.mxu0 %v3689
  %6087 = vmatprep.subr.mxu0 %v3677
  %6088 = vmatpush1.msra.mxu0 %v3676
  %6089 = vmatprep.subr.mxu0 %v3664
  %6090 = vmatpush1.msra.mxu0 %v3663
  %6091 = vmatprep.subr.mxu0 %v3651
  %6092 = vmatpush1.msra.mxu0 %v3650
  %6093 = vmatprep.subr.mxu0 %v4054
  %6094 = vmatpush2.msra.mxu0 %v4053
  %6095 = vmatprep.subr.mxu0 %v4041
  %6096 = vmatpush2.msra.mxu0 %v4040
  %6097 = vmatprep.subr.mxu0 %v4028
  %6098 = vmatpush2.msra.mxu0 %v4027
  %6099 = vmatprep.subr.mxu0 %v4015
  %6100 = vmatpush2.msra.mxu0 %v4014
  %6101 = vmatprep.subr.mxu0 %v4002
  %6102 = vmatpush2.msra.mxu0 %v4001
  %6103 = vmatprep.subr.mxu0 %v3989
  %6104 = vmatpush2.msra.mxu0 %v3988
  %6105 = vmatprep.subr.mxu0 %v3976
  %6106 = vmatpush2.msra.mxu0 %v3975
  %6107 = vmatprep.subr.mxu0 %v3963
  %6108 = vmatpush2.msra.mxu0 %v3962
  %6109 = vmatprep.subr.mxu0 %v3950
  %6110 = vmatpush2.msra.mxu0 %v3949
  %6111 = vmatprep.subr.mxu0 %v3937
  %6112 = vmatpush2.msra.mxu0 %v3936
  %6113 = vmatprep.subr.mxu0 %v3924
  %6114 = vmatpush2.msra.mxu0 %v3923
  %6115 = vmatprep.subr.mxu0 %v3911
  %6116 = vmatpush2.msra.mxu0 %v3910
  %6117 = vmatprep.subr.mxu0 %v3898
  %6118 = vmatpush2.msra.mxu0 %v3897
  %6119 = vmatprep.subr.mxu0 %v3885
  %6120 = vmatpush2.msra.mxu0 %v3884
  %6121 = vmatprep.subr.mxu0 %v3872
  %6122 = vmatpush2.msra.mxu0 %v3871
  %6123 = vmatprep.subr.mxu0 %v3859
  %6124 = vmatpush2.msra.mxu0 %v3858
  %6125 = vmatprep.mubr.f32.mxu0 %v3220
  %6126 = vmatmul.mubr.f32.gmra.mxu0 %v3219
  %v6127 = vpop.f32.mrf.mxu0
  %v6128 = vadd.f32 %v6057, %v6127
  %v6129 = vpop.f32.mrf.mxu0
  %v6130 = vadd.f32 %v6059, %v6129
  %6131 = vdwg.mxu0
  %6132 = vmatprep.subr.mxu0 %v4262
  %6133 = vmatpush1.msra.mxu0 %v4261
  %6134 = vmatprep.subr.mxu0 %v4249
  %6135 = vmatpush1.msra.mxu0 %v4248
  %6136 = vmatprep.subr.mxu0 %v4236
  %6137 = vmatpush1.msra.mxu0 %v4235
  %6138 = vmatprep.subr.mxu0 %v4223
  %6139 = vmatpush1.msra.mxu0 %v4222
  %6140 = vmatprep.subr.mxu0 %v4210
  %6141 = vmatpush1.msra.mxu0 %v4209
  %6142 = vmatprep.subr.mxu0 %v4197
  %6143 = vmatpush1.msra.mxu0 %v4196
  %6144 = vmatprep.subr.mxu0 %v4184
  %6145 = vmatpush1.msra.mxu0 %v4183
  %6146 = vmatprep.subr.mxu0 %v4171
  %6147 = vmatpush1.msra.mxu0 %v4170
  %6148 = vmatprep.subr.mxu0 %v4158
  %6149 = vmatpush1.msra.mxu0 %v4157
  %6150 = vmatprep.subr.mxu0 %v4145
  %6151 = vmatpush1.msra.mxu0 %v4144
  %6152 = vmatprep.subr.mxu0 %v4132
  %6153 = vmatpush1.msra.mxu0 %v4131
  %6154 = vmatprep.subr.mxu0 %v4119
  %6155 = vmatpush1.msra.mxu0 %v4118
  %6156 = vmatprep.subr.mxu0 %v4106
  %6157 = vmatpush1.msra.mxu0 %v4105
  %6158 = vmatprep.subr.mxu0 %v4093
  %6159 = vmatpush1.msra.mxu0 %v4092
  %6160 = vmatprep.subr.mxu0 %v4080
  %6161 = vmatpush1.msra.mxu0 %v4079
  %6162 = vmatprep.subr.mxu0 %v4067
  %6163 = vmatpush1.msra.mxu0 %v4066
  %6164 = vmatprep.subr.mxu0 %v4470
  %6165 = vmatpush2.msra.mxu0 %v4469
  %6166 = vmatprep.subr.mxu0 %v4457
  %6167 = vmatpush2.msra.mxu0 %v4456
  %6168 = vmatprep.subr.mxu0 %v4444
  %6169 = vmatpush2.msra.mxu0 %v4443
  %6170 = vmatprep.subr.mxu0 %v4431
  %6171 = vmatpush2.msra.mxu0 %v4430
  %6172 = vmatprep.subr.mxu0 %v4418
  %6173 = vmatpush2.msra.mxu0 %v4417
  %6174 = vmatprep.subr.mxu0 %v4405
  %6175 = vmatpush2.msra.mxu0 %v4404
  %6176 = vmatprep.subr.mxu0 %v4392
  %6177 = vmatpush2.msra.mxu0 %v4391
  %6178 = vmatprep.subr.mxu0 %v4379
  %6179 = vmatpush2.msra.mxu0 %v4378
  %6180 = vmatprep.subr.mxu0 %v4366
  %6181 = vmatpush2.msra.mxu0 %v4365
  %6182 = vmatprep.subr.mxu0 %v4353
  %6183 = vmatpush2.msra.mxu0 %v4352
  %6184 = vmatprep.subr.mxu0 %v4340
  %6185 = vmatpush2.msra.mxu0 %v4339
  %6186 = vmatprep.subr.mxu0 %v4327
  %6187 = vmatpush2.msra.mxu0 %v4326
  %6188 = vmatprep.subr.mxu0 %v4314
  %6189 = vmatpush2.msra.mxu0 %v4313
  %6190 = vmatprep.subr.mxu0 %v4301
  %6191 = vmatpush2.msra.mxu0 %v4300
  %6192 = vmatprep.subr.mxu0 %v4288
  %6193 = vmatpush2.msra.mxu0 %v4287
  %6194 = vmatprep.subr.mxu0 %v4275
  %6195 = vmatpush2.msra.mxu0 %v4274
  %6196 = vmatprep.mubr.f32.mxu0 %v3222
  %6197 = vmatmul.mubr.f32.gmra.mxu0 %v3221
  %v6198 = vpop.f32.mrf.mxu0
  %v6199 = vadd.f32 %v6128, %v6198
  %v6200 = vpop.f32.mrf.mxu0
  %v6201 = vadd.f32 %v6130, %v6200
  %6202 = vdwg.mxu0
  %6203 = vmatprep.subr.mxu0 0.0
  %6204 = vmatpush1.msra.mxu0 0.0
  %6205 = vmatprep.subr.mxu0 0.0
  %6206 = vmatpush1.msra.mxu0 0.0
  %6207 = vmatprep.subr.mxu0 0.0
  %6208 = vmatpush1.msra.mxu0 0.0
  %6209 = vmatprep.subr.mxu0 0.0
  %6210 = vmatpush1.msra.mxu0 0.0
  %6211 = vmatprep.subr.mxu0 0.0
  %6212 = vmatpush1.msra.mxu0 0.0
  %6213 = vmatprep.subr.mxu0 0.0
  %6214 = vmatpush1.msra.mxu0 0.0
  %6215 = vmatprep.subr.mxu0 0.0
  %6216 = vmatpush1.msra.mxu0 0.0
  %6217 = vmatprep.subr.mxu0 0.0
  %6218 = vmatpush1.msra.mxu0 0.0
  %6219 = vmatprep.subr.mxu0 0.0
  %6220 = vmatpush1.msra.mxu0 0.0
  %6221 = vmatprep.subr.mxu0 0.0
  %6222 = vmatpush1.msra.mxu0 0.0
  %6223 = vmatprep.subr.mxu0 0.0
  %6224 = vmatpush1.msra.mxu0 0.0
  %6225 = vmatprep.subr.mxu0 0.0
  %6226 = vmatpush1.msra.mxu0 0.0
  %6227 = vmatprep.subr.mxu0 0.0
  %6228 = vmatpush1.msra.mxu0 0.0
  %6229 = vmatprep.subr.mxu0 0.0
  %6230 = vmatpush1.msra.mxu0 0.0
  %6231 = vmatprep.subr.mxu0 %v4496
  %6232 = vmatpush1.msra.mxu0 %v4495
  %6233 = vmatprep.subr.mxu0 %v4483
  %6234 = vmatpush1.msra.mxu0 %v4482
  %6235 = vmatprep.subr.mxu0 0.0
  %6236 = vmatpush2.msra.mxu0 0.0
  %6237 = vmatprep.subr.mxu0 0.0
  %6238 = vmatpush2.msra.mxu0 0.0
  %6239 = vmatprep.subr.mxu0 0.0
  %6240 = vmatpush2.msra.mxu0 0.0
  %6241 = vmatprep.subr.mxu0 0.0
  %6242 = vmatpush2.msra.mxu0 0.0
  %6243 = vmatprep.subr.mxu0 0.0
  %6244 = vmatpush2.msra.mxu0 0.0
  %6245 = vmatprep.subr.mxu0 0.0
  %6246 = vmatpush2.msra.mxu0 0.0
  %6247 = vmatprep.subr.mxu0 0.0
  %6248 = vmatpush2.msra.mxu0 0.0
  %6249 = vmatprep.subr.mxu0 0.0
  %6250 = vmatpush2.msra.mxu0 0.0
  %6251 = vmatprep.subr.mxu0 0.0
  %6252 = vmatpush2.msra.mxu0 0.0
  %6253 = vmatprep.subr.mxu0 0.0
  %6254 = vmatpush2.msra.mxu0 0.0
  %6255 = vmatprep.subr.mxu0 0.0
  %6256 = vmatpush2.msra.mxu0 0.0
  %6257 = vmatprep.subr.mxu0 0.0
  %6258 = vmatpush2.msra.mxu0 0.0
  %6259 = vmatprep.subr.mxu0 0.0
  %6260 = vmatpush2.msra.mxu0 0.0
  %6261 = vmatprep.subr.mxu0 0.0
  %6262 = vmatpush2.msra.mxu0 0.0
  %6263 = vmatprep.subr.mxu0 0.0
  %6264 = vmatpush2.msra.mxu0 0.0
  %6265 = vmatprep.subr.mxu0 0.0
  %6266 = vmatpush2.msra.mxu0 0.0
  %6267 = vmatprep.mubr.f32.mxu0 0.0
  %6268 = vmatmul.mubr.f32.gmra.mxu0 %v4568
  %v6269 = vpop.f32.mrf.mxu0
  %v6270 = vadd.f32 %v6199, %v6269
  %v6271 = vpop.f32.mrf.mxu0
  %v6272 = vadd.f32 %v6201, %v6271
  %6273 = vdwg.mxu0
  %6274 = vmatprep.subr.mxu0 0.0
  %6275 = vmatpush1.msra.mxu0 %v3431
  %6276 = vmatprep.subr.mxu0 0.0
  %6277 = vmatpush1.msra.mxu0 %v3418
  %6278 = vmatprep.subr.mxu0 0.0
  %6279 = vmatpush1.msra.mxu0 %v3405
  %6280 = vmatprep.subr.mxu0 0.0
  %6281 = vmatpush1.msra.mxu0 %v3392
  %6282 = vmatprep.subr.mxu0 0.0
  %6283 = vmatpush1.msra.mxu0 %v3379
  %6284 = vmatprep.subr.mxu0 0.0
  %6285 = vmatpush1.msra.mxu0 %v3366
  %6286 = vmatprep.subr.mxu0 0.0
  %6287 = vmatpush1.msra.mxu0 %v3353
  %6288 = vmatprep.subr.mxu0 0.0
  %6289 = vmatpush1.msra.mxu0 %v3340
  %6290 = vmatprep.subr.mxu0 0.0
  %6291 = vmatpush1.msra.mxu0 %v3327
  %6292 = vmatprep.subr.mxu0 0.0
  %6293 = vmatpush1.msra.mxu0 %v3314
  %6294 = vmatprep.subr.mxu0 0.0
  %6295 = vmatpush1.msra.mxu0 %v3301
  %6296 = vmatprep.subr.mxu0 0.0
  %6297 = vmatpush1.msra.mxu0 %v3288
  %6298 = vmatprep.subr.mxu0 0.0
  %6299 = vmatpush1.msra.mxu0 %v3275
  %6300 = vmatprep.subr.mxu0 0.0
  %6301 = vmatpush1.msra.mxu0 %v3262
  %6302 = vmatprep.subr.mxu0 0.0
  %6303 = vmatpush1.msra.mxu0 %v3249
  %6304 = vmatprep.subr.mxu0 0.0
  %6305 = vmatpush1.msra.mxu0 %v3236
  %6306 = vmatprep.subr.mxu0 0.0
  %6307 = vmatpush2.msra.mxu0 %v3639
  %6308 = vmatprep.subr.mxu0 0.0
  %6309 = vmatpush2.msra.mxu0 %v3626
  %6310 = vmatprep.subr.mxu0 0.0
  %6311 = vmatpush2.msra.mxu0 %v3613
  %6312 = vmatprep.subr.mxu0 0.0
  %6313 = vmatpush2.msra.mxu0 %v3600
  %6314 = vmatprep.subr.mxu0 0.0
  %6315 = vmatpush2.msra.mxu0 %v3587
  %6316 = vmatprep.subr.mxu0 0.0
  %6317 = vmatpush2.msra.mxu0 %v3574
  %6318 = vmatprep.subr.mxu0 0.0
  %6319 = vmatpush2.msra.mxu0 %v3561
  %6320 = vmatprep.subr.mxu0 0.0
  %6321 = vmatpush2.msra.mxu0 %v3548
  %6322 = vmatprep.subr.mxu0 0.0
  %6323 = vmatpush2.msra.mxu0 %v3535
  %6324 = vmatprep.subr.mxu0 0.0
  %6325 = vmatpush2.msra.mxu0 %v3522
  %6326 = vmatprep.subr.mxu0 0.0
  %6327 = vmatpush2.msra.mxu0 %v3509
  %6328 = vmatprep.subr.mxu0 0.0
  %6329 = vmatpush2.msra.mxu0 %v3496
  %6330 = vmatprep.subr.mxu0 0.0
  %6331 = vmatpush2.msra.mxu0 %v3483
  %6332 = vmatprep.subr.mxu0 0.0
  %6333 = vmatpush2.msra.mxu0 %v3470
  %6334 = vmatprep.subr.mxu0 0.0
  %6335 = vmatpush2.msra.mxu0 %v3457
  %6336 = vmatprep.subr.mxu0 0.0
  %6337 = vmatpush2.msra.mxu0 %v3444
  %6338 = vmatprep.mubr.f32.mxu0 %v3218
  %6339 = vmatmul.mubr.f32.gmra.mxu0 %v3217
  %v6340 = vpop.f32.mrf.mxu0
  %v6341 = vadd.f32 %v4553, %v6340
  %v6342 = vpop.f32.mrf.mxu0
  %6343 = vdwg.mxu0
  %6344 = vmatprep.subr.mxu0 0.0
  %6345 = vmatpush1.msra.mxu0 %v3847
  %6346 = vmatprep.subr.mxu0 0.0
  %6347 = vmatpush1.msra.mxu0 %v3834
  %6348 = vmatprep.subr.mxu0 0.0
  %6349 = vmatpush1.msra.mxu0 %v3821
  %6350 = vmatprep.subr.mxu0 0.0
  %6351 = vmatpush1.msra.mxu0 %v3808
  %6352 = vmatprep.subr.mxu0 0.0
  %6353 = vmatpush1.msra.mxu0 %v3795
  %6354 = vmatprep.subr.mxu0 0.0
  %6355 = vmatpush1.msra.mxu0 %v3782
  %6356 = vmatprep.subr.mxu0 0.0
  %6357 = vmatpush1.msra.mxu0 %v3769
  %6358 = vmatprep.subr.mxu0 0.0
  %6359 = vmatpush1.msra.mxu0 %v3756
  %6360 = vmatprep.subr.mxu0 0.0
  %6361 = vmatpush1.msra.mxu0 %v3743
  %6362 = vmatprep.subr.mxu0 0.0
  %6363 = vmatpush1.msra.mxu0 %v3730
  %6364 = vmatprep.subr.mxu0 0.0
  %6365 = vmatpush1.msra.mxu0 %v3717
  %6366 = vmatprep.subr.mxu0 0.0
  %6367 = vmatpush1.msra.mxu0 %v3704
  %6368 = vmatprep.subr.mxu0 0.0
  %6369 = vmatpush1.msra.mxu0 %v3691
  %6370 = vmatprep.subr.mxu0 0.0
  %6371 = vmatpush1.msra.mxu0 %v3678
  %6372 = vmatprep.subr.mxu0 0.0
  %6373 = vmatpush1.msra.mxu0 %v3665
  %6374 = vmatprep.subr.mxu0 0.0
  %6375 = vmatpush1.msra.mxu0 %v3652
  %6376 = vmatprep.subr.mxu0 0.0
  %6377 = vmatpush2.msra.mxu0 %v4055
  %6378 = vmatprep.subr.mxu0 0.0
  %6379 = vmatpush2.msra.mxu0 %v4042
  %6380 = vmatprep.subr.mxu0 0.0
  %6381 = vmatpush2.msra.mxu0 %v4029
  %6382 = vmatprep.subr.mxu0 0.0
  %6383 = vmatpush2.msra.mxu0 %v4016
  %6384 = vmatprep.subr.mxu0 0.0
  %6385 = vmatpush2.msra.mxu0 %v4003
  %6386 = vmatprep.subr.mxu0 0.0
  %6387 = vmatpush2.msra.mxu0 %v3990
  %6388 = vmatprep.subr.mxu0 0.0
  %6389 = vmatpush2.msra.mxu0 %v3977
  %6390 = vmatprep.subr.mxu0 0.0
  %6391 = vmatpush2.msra.mxu0 %v3964
  %6392 = vmatprep.subr.mxu0 0.0
  %6393 = vmatpush2.msra.mxu0 %v3951
  %6394 = vmatprep.subr.mxu0 0.0
  %6395 = vmatpush2.msra.mxu0 %v3938
  %6396 = vmatprep.subr.mxu0 0.0
  %6397 = vmatpush2.msra.mxu0 %v3925
  %6398 = vmatprep.subr.mxu0 0.0
  %6399 = vmatpush2.msra.mxu0 %v3912
  %6400 = vmatprep.subr.mxu0 0.0
  %6401 = vmatpush2.msra.mxu0 %v3899
  %6402 = vmatprep.subr.mxu0 0.0
  %6403 = vmatpush2.msra.mxu0 %v3886
  %6404 = vmatprep.subr.mxu0 0.0
  %6405 = vmatpush2.msra.mxu0 %v3873
  %6406 = vmatprep.subr.mxu0 0.0
  %6407 = vmatpush2.msra.mxu0 %v3860
  %6408 = vmatprep.mubr.f32.mxu0 %v3220
  %6409 = vmatmul.mubr.f32.gmra.mxu0 %v3219
  %v6410 = vpop.f32.mrf.mxu0
  %v6411 = vadd.f32 %v6341, %v6410
  %v6412 = vpop.f32.mrf.mxu0
  %6413 = vdwg.mxu0
  %6414 = vmatprep.subr.mxu0 0.0
  %6415 = vmatpush1.msra.mxu0 %v4263
  %6416 = vmatprep.subr.mxu0 0.0
  %6417 = vmatpush1.msra.mxu0 %v4250
  %6418 = vmatprep.subr.mxu0 0.0
  %6419 = vmatpush1.msra.mxu0 %v4237
  %6420 = vmatprep.subr.mxu0 0.0
  %6421 = vmatpush1.msra.mxu0 %v4224
  %6422 = vmatprep.subr.mxu0 0.0
  %6423 = vmatpush1.msra.mxu0 %v4211
  %6424 = vmatprep.subr.mxu0 0.0
  %6425 = vmatpush1.msra.mxu0 %v4198
  %6426 = vmatprep.subr.mxu0 0.0
  %6427 = vmatpush1.msra.mxu0 %v4185
  %6428 = vmatprep.subr.mxu0 0.0
  %6429 = vmatpush1.msra.mxu0 %v4172
  %6430 = vmatprep.subr.mxu0 0.0
  %6431 = vmatpush1.msra.mxu0 %v4159
  %6432 = vmatprep.subr.mxu0 0.0
  %6433 = vmatpush1.msra.mxu0 %v4146
  %6434 = vmatprep.subr.mxu0 0.0
  %6435 = vmatpush1.msra.mxu0 %v4133
  %6436 = vmatprep.subr.mxu0 0.0
  %6437 = vmatpush1.msra.mxu0 %v4120
  %6438 = vmatprep.subr.mxu0 0.0
  %6439 = vmatpush1.msra.mxu0 %v4107
  %6440 = vmatprep.subr.mxu0 0.0
  %6441 = vmatpush1.msra.mxu0 %v4094
  %6442 = vmatprep.subr.mxu0 0.0
  %6443 = vmatpush1.msra.mxu0 %v4081
  %6444 = vmatprep.subr.mxu0 0.0
  %6445 = vmatpush1.msra.mxu0 %v4068
  %6446 = vmatprep.subr.mxu0 0.0
  %6447 = vmatpush2.msra.mxu0 %v4471
  %6448 = vmatprep.subr.mxu0 0.0
  %6449 = vmatpush2.msra.mxu0 %v4458
  %6450 = vmatprep.subr.mxu0 0.0
  %6451 = vmatpush2.msra.mxu0 %v4445
  %6452 = vmatprep.subr.mxu0 0.0
  %6453 = vmatpush2.msra.mxu0 %v4432
  %6454 = vmatprep.subr.mxu0 0.0
  %6455 = vmatpush2.msra.mxu0 %v4419
  %6456 = vmatprep.subr.mxu0 0.0
  %6457 = vmatpush2.msra.mxu0 %v4406
  %6458 = vmatprep.subr.mxu0 0.0
  %6459 = vmatpush2.msra.mxu0 %v4393
  %6460 = vmatprep.subr.mxu0 0.0
  %6461 = vmatpush2.msra.mxu0 %v4380
  %6462 = vmatprep.subr.mxu0 0.0
  %6463 = vmatpush2.msra.mxu0 %v4367
  %6464 = vmatprep.subr.mxu0 0.0
  %6465 = vmatpush2.msra.mxu0 %v4354
  %6466 = vmatprep.subr.mxu0 0.0
  %6467 = vmatpush2.msra.mxu0 %v4341
  %6468 = vmatprep.subr.mxu0 0.0
  %6469 = vmatpush2.msra.mxu0 %v4328
  %6470 = vmatprep.subr.mxu0 0.0
  %6471 = vmatpush2.msra.mxu0 %v4315
  %6472 = vmatprep.subr.mxu0 0.0
  %6473 = vmatpush2.msra.mxu0 %v4302
  %6474 = vmatprep.subr.mxu0 0.0
  %6475 = vmatpush2.msra.mxu0 %v4289
  %6476 = vmatprep.subr.mxu0 0.0
  %6477 = vmatpush2.msra.mxu0 %v4276
  %6478 = vmatprep.mubr.f32.mxu0 %v3222
  %6479 = vmatmul.mubr.f32.gmra.mxu0 %v3221
  %v6480 = vpop.f32.mrf.mxu0
  %v6481 = vadd.f32 %v6411, %v6480
  %v6482 = vpop.f32.mrf.mxu0
  %6483 = vdwg.mxu0
  %6484 = vmatprep.subr.mxu0 0.0
  %6485 = vmatpush1.msra.mxu0 0.0
  %6486 = vmatprep.subr.mxu0 0.0
  %6487 = vmatpush1.msra.mxu0 0.0
  %6488 = vmatprep.subr.mxu0 0.0
  %6489 = vmatpush1.msra.mxu0 0.0
  %6490 = vmatprep.subr.mxu0 0.0
  %6491 = vmatpush1.msra.mxu0 0.0
  %6492 = vmatprep.subr.mxu0 0.0
  %6493 = vmatpush1.msra.mxu0 0.0
  %6494 = vmatprep.subr.mxu0 0.0
  %6495 = vmatpush1.msra.mxu0 0.0
  %6496 = vmatprep.subr.mxu0 0.0
  %6497 = vmatpush1.msra.mxu0 0.0
  %6498 = vmatprep.subr.mxu0 0.0
  %6499 = vmatpush1.msra.mxu0 0.0
  %6500 = vmatprep.subr.mxu0 0.0
  %6501 = vmatpush1.msra.mxu0 0.0
  %6502 = vmatprep.subr.mxu0 0.0
  %6503 = vmatpush1.msra.mxu0 0.0
  %6504 = vmatprep.subr.mxu0 0.0
  %6505 = vmatpush1.msra.mxu0 0.0
  %6506 = vmatprep.subr.mxu0 0.0
  %6507 = vmatpush1.msra.mxu0 0.0
  %6508 = vmatprep.subr.mxu0 0.0
  %6509 = vmatpush1.msra.mxu0 0.0
  %6510 = vmatprep.subr.mxu0 0.0
  %6511 = vmatpush1.msra.mxu0 0.0
  %6512 = vmatprep.subr.mxu0 0.0
  %6513 = vmatpush1.msra.mxu0 %v4497
  %6514 = vmatprep.subr.mxu0 0.0
  %6515 = vmatpush1.msra.mxu0 %v4484
  %6516 = vmatprep.subr.mxu0 0.0
  %6517 = vmatpush2.msra.mxu0 0.0
  %6518 = vmatprep.subr.mxu0 0.0
  %6519 = vmatpush2.msra.mxu0 0.0
  %6520 = vmatprep.subr.mxu0 0.0
  %6521 = vmatpush2.msra.mxu0 0.0
  %6522 = vmatprep.subr.mxu0 0.0
  %6523 = vmatpush2.msra.mxu0 0.0
  %6524 = vmatprep.subr.mxu0 0.0
  %6525 = vmatpush2.msra.mxu0 0.0
  %6526 = vmatprep.subr.mxu0 0.0
  %6527 = vmatpush2.msra.mxu0 0.0
  %6528 = vmatprep.subr.mxu0 0.0
  %6529 = vmatpush2.msra.mxu0 0.0
  %6530 = vmatprep.subr.mxu0 0.0
  %6531 = vmatpush2.msra.mxu0 0.0
  %6532 = vmatprep.subr.mxu0 0.0
  %6533 = vmatpush2.msra.mxu0 0.0
  %6534 = vmatprep.subr.mxu0 0.0
  %6535 = vmatpush2.msra.mxu0 0.0
  %6536 = vmatprep.subr.mxu0 0.0
  %6537 = vmatpush2.msra.mxu0 0.0
  %6538 = vmatprep.subr.mxu0 0.0
  %6539 = vmatpush2.msra.mxu0 0.0
  %6540 = vmatprep.subr.mxu0 0.0
  %6541 = vmatpush2.msra.mxu0 0.0
  %6542 = vmatprep.subr.mxu0 0.0
  %6543 = vmatpush2.msra.mxu0 0.0
  %6544 = vmatprep.subr.mxu0 0.0
  %6545 = vmatpush2.msra.mxu0 0.0
  %6546 = vmatprep.subr.mxu0 0.0
  %6547 = vmatpush2.msra.mxu0 0.0
  %6548 = vmatprep.mubr.f32.mxu0 0.0
  %6549 = vmatmul.mubr.f32.gmra.mxu0 %v4568
  %v6550 = vpop.f32.mrf.mxu0
  %v6551 = vadd.f32 %v6481, %v6550
  %v6552 = vpop.f32.mrf.mxu0
  %6553 = vdwg.mxu0
  %v6554 = vmax.f32 %v4850, 0.0
  %v6555 = vmax.f32 %v4852, 0.0
  %v6556 = vmax.f32 %v5134, 0.0
  %v6557 = vmax.f32 %v5136, 0.0
  %v6558 = vmax.f32 %v5418, 0.0
  %v6559 = vmax.f32 %v5420, 0.0
  %v6560 = vmax.f32 %v5702, 0.0
  %v6561 = vmax.f32 %v5704, 0.0
  %v6562 = vmax.f32 %v5986, 0.0
  %v6563 = vmax.f32 %v5988, 0.0
  %v6564 = vmax.f32 %v6270, 0.0
  %v6565 = vmax.f32 %v6272, 0.0
  %v6566 = vmax.f32 %v6551, 0.0
  %v6567 = vld [vmem:[%s9] sm:$0xff]
  %v6568 = vld [vmem:[%s9 + $0x8] sm:$0xff]
  %v6569 = vld [vmem:[%s9 + $0x10] sm:$0xff]
  %v6570 = vld [vmem:[%s9 + $0x18] sm:$0xff]
  %v6571 = vld [vmem:[%s9 + $0x20] sm:$0xff]
  %v6572 = vld [vmem:[%s9 + $0x28] sm:$0xff]
  %v6573 = vld [vmem:[%s9 + $0x30] sm:$0xff]
  %v6574 = vld [vmem:[%s9 + $0x38] sm:$0xff]
  %v6575 = vld [vmem:[%s9 + $0x40] sm:$0xff]
  %v6576 = vld [vmem:[%s9 + $0x48] sm:$0xff]
  %v6577 = vld [vmem:[%s9 + $0x50] sm:$0xff]
  %v6578 = vld [vmem:[%s9 + $0x58] sm:$0xff]
  %v6579 = vld [vmem:[%s9 + $0x60] sm:$0xff]
  %v6580 = vld [vmem:[%s9 + $0x68] sm:$0xff]
  %v6581 = vld [vmem:[%s9 + $0x70] sm:$0xff]
  %v6582 = vld [vmem:[%s9 + $0x78] sm:$0xff]
  %v6583 = vld [vmem:[%s9 + $0x80] sm:$0xff]
  %v6584 = vld [vmem:[%s9 + $0x88] sm:$0xff]
  %v6585 = vld [vmem:[%s9 + $0x90] sm:$0xff]
  %v6586 = vld [vmem:[%s9 + $0x98] sm:$0xff]
  %v6587 = vld [vmem:[%s9 + $0xa0] sm:$0xff]
  %v6588 = vld [vmem:[%s9 + $0xa8] sm:$0xff]
  %v6589 = vld [vmem:[%s9 + $0xb0] sm:$0xff]
  %v6590 = vld [vmem:[%s9 + $0xb8] sm:$0xff]
  %v6591 = vld [vmem:[%s9 + $0xc0] sm:$0xff]
  %v6592 = vld [vmem:[%s9 + $0xc8] sm:$0xff]
  %v6593 = vld [vmem:[%s9 + $0xd0] sm:$0xff]
  %v6594 = vld [vmem:[%s9 + $0xd8] sm:$0xff]
  %v6595 = vld [vmem:[%s9 + $0xe0] sm:$0xff]
  %v6596 = vld [vmem:[%s9 + $0xe8] sm:$0xff]
  %v6597 = vld [vmem:[%s9 + $0xf0] sm:$0xff]
  %v6598 = vld [vmem:[%s9 + $0xf8] sm:$0xff]
  %v6599 = vld [vmem:[%s9 + $0x100] sm:$0xff]
  %v6600 = vld [vmem:[%s9 + $0x108] sm:$0xff]
  %v6601 = vld [vmem:[%s9 + $0x110] sm:$0xff]
  %v6602 = vld [vmem:[%s9 + $0x118] sm:$0xff]
  %v6603 = vld [vmem:[%s9 + $0x120] sm:$0xff]
  %v6604 = vld [vmem:[%s9 + $0x128] sm:$0xff]
  %v6605 = vld [vmem:[%s9 + $0x130] sm:$0xff]
  %v6606 = vld [vmem:[%s9 + $0x138] sm:$0xff]
  %v6607 = vld [vmem:[%s9 + $0x140] sm:$0xff]
  %v6608 = vld [vmem:[%s9 + $0x148] sm:$0xff]
  %v6609 = vld [vmem:[%s9 + $0x150] sm:$0xff]
  %v6610 = vld [vmem:[%s9 + $0x158] sm:$0xff]
  %v6611 = vld [vmem:[%s9 + $0x160] sm:$0xff]
  %v6612 = vld [vmem:[%s9 + $0x168] sm:$0xff]
  %v6613 = vld [vmem:[%s9 + $0x170] sm:$0xff]
  %v6614 = vld [vmem:[%s9 + $0x178] sm:$0xff]
  %v6615 = vld [vmem:[%s9 + $0x180] sm:$0xff]
  %v6616 = vld [vmem:[%s9 + $0x188] sm:$0xff]
  %v6617 = vld [vmem:[%s9 + $0x190] sm:$0xff]
  %v6618 = vld [vmem:[%s9 + $0x198] sm:$0xff]
  %v6619 = vld [vmem:[%s9 + $0x1a0] sm:$0xff]
  %v6620 = vld [vmem:[%s9 + $0x1a8] sm:$0xff]
  %v6621 = vld [vmem:[%s9 + $0x1b0] sm:$0xff]
  %v6622 = vld [vmem:[%s9 + $0x1b8] sm:$0xff]
  %v6623 = vld [vmem:[%s9 + $0x1c0] sm:$0xff]
  %v6624 = vld [vmem:[%s9 + $0x1c8] sm:$0xff]
  %v6625 = vld [vmem:[%s9 + $0x1d0] sm:$0xff]
  %v6626 = vld [vmem:[%s9 + $0x1d8] sm:$0xff]
  %v6627 = vld [vmem:[%s9 + $0x1e0] sm:$0xff]
  %v6628 = vld [vmem:[%s9 + $0x1e8] sm:$0xff]
  %v6629 = vld [vmem:[%s9 + $0x1f0] sm:$0xff]
  %v6630 = vld [vmem:[%s9 + $0x1f8] sm:$0xff]
  %v6631 = vld [vmem:[%s9 + $0x200] sm:$0xff]
  %v6632 = vld [vmem:[%s9 + $0x208] sm:$0xff]
  %v6633 = vld [vmem:[%s9 + $0x210] sm:$0xff]
  %v6634 = vld [vmem:[%s9 + $0x218] sm:$0xff]
  %v6635 = vld [vmem:[%s9 + $0x220] sm:$0xff]
  %v6636 = vld [vmem:[%s9 + $0x228] sm:$0xff]
  %v6637 = vld [vmem:[%s9 + $0x230] sm:$0xff]
  %v6638 = vld [vmem:[%s9 + $0x238] sm:$0xff]
  %v6639 = vld [vmem:[%s9 + $0x240] sm:$0xff]
  %v6640 = vld [vmem:[%s9 + $0x248] sm:$0xff]
  %v6641 = vld [vmem:[%s9 + $0x250] sm:$0xff]
  %v6642 = vld [vmem:[%s9 + $0x258] sm:$0xff]
  %v6643 = vld [vmem:[%s9 + $0x260] sm:$0xff]
  %v6644 = vld [vmem:[%s9 + $0x268] sm:$0xff]
  %v6645 = vld [vmem:[%s9 + $0x270] sm:$0xff]
  %v6646 = vld [vmem:[%s9 + $0x278] sm:$0xff]
  %v6647 = vld [vmem:[%s9 + $0x280] sm:$0xff]
  %v6648 = vld [vmem:[%s9 + $0x288] sm:$0xff]
  %v6649 = vld [vmem:[%s9 + $0x290] sm:$0xff]
  %v6650 = vld [vmem:[%s9 + $0x298] sm:$0xff]
  %v6651 = vld [vmem:[%s9 + $0x2a0] sm:$0xff]
  %v6652 = vld [vmem:[%s9 + $0x2a8] sm:$0xff]
  %v6653 = vld [vmem:[%s9 + $0x2b0] sm:$0xff]
  %v6654 = vld [vmem:[%s9 + $0x2b8] sm:$0xff]
  %v6655 = vld [vmem:[%s9 + $0x2c0] sm:$0xff]
  %v6656 = vld [vmem:[%s9 + $0x2c8] sm:$0xff]
  %v6657 = vld [vmem:[%s9 + $0x2d0] sm:$0xff]
  %v6658 = vld [vmem:[%s9 + $0x2d8] sm:$0xff]
  %v6659 = vld [vmem:[%s9 + $0x2e0] sm:$0xff]
  %v6660 = vld [vmem:[%s9 + $0x2e8] sm:$0xff]
  %v6661 = vld [vmem:[%s9 + $0x2f0] sm:$0xff]
  %v6662 = vld [vmem:[%s9 + $0x2f8] sm:$0xff]
  %v6663 = vld [vmem:[%s9 + $0x300] sm:$0xff]
  %v6664 = vld [vmem:[%s9 + $0x308] sm:$0xff]
  %v6665 = vld [vmem:[%s9 + $0x310] sm:$0xff]
  %v6666 = vld [vmem:[%s9 + $0x318] sm:$0xff]
  %v6667 = vld [vmem:[%s9 + $0x320] sm:$0xff]
  %v6668 = vld [vmem:[%s9 + $0x328] sm:$0xff]
  %v6669 = vld [vmem:[%s9 + $0x330] sm:$0xff]
  %v6670 = vld [vmem:[%s9 + $0x338] sm:$0xff]
  %v6671 = vld [vmem:[%s9 + $0x340] sm:$0xff]
  %v6672 = vld [vmem:[%s9 + $0x348] sm:$0xff]
  %v6673 = vld [vmem:[%s9 + $0x350] sm:$0xff]
  %v6674 = vld [vmem:[%s9 + $0x358] sm:$0xff]
  %v6675 = vld [vmem:[%s9 + $0x360] sm:$0xff]
  %v6676 = vld [vmem:[%s9 + $0x368] sm:$0xff]
  %v6677 = vld [vmem:[%s9 + $0x370] sm:$0xff]
  %v6678 = vld [vmem:[%s9 + $0x378] sm:$0xff]
  %v6679 = vld [vmem:[%s9 + $0x380] sm:$0xff]
  %v6680 = vld [vmem:[%s9 + $0x388] sm:$0xff]
  %v6681 = vld [vmem:[%s9 + $0x390] sm:$0xff]
  %v6682 = vld [vmem:[%s9 + $0x398] sm:$0xff]
  %v6683 = vld [vmem:[%s9 + $0x3a0] sm:$0xff]
  %v6684 = vld [vmem:[%s9 + $0x3a8] sm:$0xff]
  %v6685 = vld [vmem:[%s9 + $0x3b0] sm:$0xff]
  %v6686 = vld [vmem:[%s9 + $0x3b8] sm:$0xff]
  %v6687 = vld [vmem:[%s9 + $0x3c0] sm:$0xff]
  %v6688 = vld [vmem:[%s9 + $0x3c8] sm:$0xff]
  %v6689 = vld [vmem:[%s9 + $0x3d0] sm:$0xff]
  %v6690 = vld [vmem:[%s9 + $0x3d8] sm:$0xff]
  %v6691 = vld [vmem:[%s9 + $0x3e0] sm:$0xff]
  %v6692 = vld [vmem:[%s9 + $0x3e8] sm:$0xff]
  %v6693 = vld [vmem:[%s9 + $0x3f0] sm:$0xff]
  %v6694 = vld [vmem:[%s9 + $0x3f8] sm:$0xff]
  %v6695 = vld [vmem:[%s9 + $0x400] sm:$0xff]
  %v6696 = vld [vmem:[%s9 + $0x408] sm:$0xff]
  %v6697 = vld [vmem:[%s9 + $0x410] sm:$0xff]
  %v6698 = vld [vmem:[%s9 + $0x418] sm:$0xff]
  %v6699 = vld [vmem:[%s9 + $0x420] sm:$0xff]
  %v6700 = vld [vmem:[%s9 + $0x428] sm:$0xff]
  %v6701 = vld [vmem:[%s9 + $0x430] sm:$0xff]
  %v6702 = vld [vmem:[%s9 + $0x438] sm:$0xff]
  %v6703 = vld [vmem:[%s9 + $0x440] sm:$0xff]
  %v6704 = vld [vmem:[%s9 + $0x448] sm:$0xff]
  %v6705 = vld [vmem:[%s9 + $0x450] sm:$0xff]
  %v6706 = vld [vmem:[%s9 + $0x458] sm:$0xff]
  %v6707 = vld [vmem:[%s9 + $0x460] sm:$0xff]
  %v6708 = vld [vmem:[%s9 + $0x468] sm:$0xff]
  %v6709 = vld [vmem:[%s9 + $0x470] sm:$0xff]
  %v6710 = vld [vmem:[%s9 + $0x478] sm:$0xff]
  %v6711 = vld [vmem:[%s9 + $0x480] sm:$0xff]
  %v6712 = vld [vmem:[%s9 + $0x488] sm:$0xff]
  %v6713 = vld [vmem:[%s9 + $0x490] sm:$0xff]
  %v6714 = vld [vmem:[%s9 + $0x498] sm:$0xff]
  %v6715 = vld [vmem:[%s9 + $0x4a0] sm:$0xff]
  %v6716 = vld [vmem:[%s9 + $0x4a8] sm:$0xff]
  %v6717 = vld [vmem:[%s9 + $0x4b0] sm:$0xff]
  %v6718 = vld [vmem:[%s9 + $0x4b8] sm:$0xff]
  %v6719 = vld [vmem:[%s9 + $0x4c0] sm:$0xff]
  %v6720 = vld [vmem:[%s9 + $0x4c8] sm:$0xff]
  %v6721 = vld [vmem:[%s9 + $0x4d0] sm:$0xff]
  %v6722 = vld [vmem:[%s9 + $0x4d8] sm:$0xff]
  %v6723 = vld [vmem:[%s9 + $0x4e0] sm:$0xff]
  %v6724 = vld [vmem:[%s9 + $0x4e8] sm:$0xff]
  %v6725 = vld [vmem:[%s9 + $0x4f0] sm:$0xff]
  %v6726 = vld [vmem:[%s9 + $0x4f8] sm:$0xff]
  %v6727 = vld [vmem:[%s9 + $0x500] sm:$0xff]
  %v6728 = vld [vmem:[%s9 + $0x508] sm:$0xff]
  %v6729 = vld [vmem:[%s9 + $0x510] sm:$0xff]
  %v6730 = vld [vmem:[%s9 + $0x518] sm:$0xff]
  %v6731 = vld [vmem:[%s9 + $0x520] sm:$0xff]
  %v6732 = vld [vmem:[%s9 + $0x528] sm:$0xff]
  %v6733 = vld [vmem:[%s9 + $0x530] sm:$0xff]
  %v6734 = vld [vmem:[%s9 + $0x538] sm:$0xff]
  %v6735 = vld [vmem:[%s9 + $0x540] sm:$0xff]
  %v6736 = vld [vmem:[%s9 + $0x548] sm:$0xff]
  %v6737 = vld [vmem:[%s9 + $0x550] sm:$0xff]
  %v6738 = vld [vmem:[%s9 + $0x558] sm:$0xff]
  %v6739 = vld [vmem:[%s9 + $0x560] sm:$0xff]
  %v6740 = vld [vmem:[%s9 + $0x568] sm:$0xff]
  %v6741 = vld [vmem:[%s9 + $0x570] sm:$0xff]
  %v6742 = vld [vmem:[%s9 + $0x578] sm:$0xff]
  %v6743 = vld [vmem:[%s9 + $0x580] sm:$0xff]
  %v6744 = vld [vmem:[%s9 + $0x588] sm:$0xff]
  %v6745 = vld [vmem:[%s9 + $0x590] sm:$0xff]
  %v6746 = vld [vmem:[%s9 + $0x598] sm:$0xff]
  %v6747 = vld [vmem:[%s9 + $0x5a0] sm:$0xff]
  %v6748 = vld [vmem:[%s9 + $0x5a8] sm:$0xff]
  %v6749 = vld [vmem:[%s9 + $0x5b0] sm:$0xff]
  %v6750 = vld [vmem:[%s9 + $0x5b8] sm:$0xff]
  %v6751 = vld [vmem:[%s9 + $0x5c0] sm:$0xff]
  %v6752 = vld [vmem:[%s9 + $0x5c8] sm:$0xff]
  %v6753 = vld [vmem:[%s9 + $0x5d0] sm:$0xff]
  %v6754 = vld [vmem:[%s9 + $0x5d8] sm:$0xff]
  %v6755 = vld [vmem:[%s9 + $0x5e0] sm:$0xff]
  %v6756 = vld [vmem:[%s9 + $0x5e8] sm:$0xff]
  %v6757 = vld [vmem:[%s9 + $0x5f0] sm:$0xff]
  %v6758 = vld [vmem:[%s9 + $0x5f8] sm:$0xff]
  %v6759 = vld [vmem:[%s9 + $0x600] sm:$0xff]
  %v6760 = vld [vmem:[%s9 + $0x608] sm:$0xff]
  %v6761 = vld [vmem:[%s9 + $0x610] sm:$0xff]
  %v6762 = vld [vmem:[%s9 + $0x618] sm:$0xff]
  %v6763 = vld [vmem:[%s9 + $0x620] sm:$0xff]
  %v6764 = vld [vmem:[%s9 + $0x628] sm:$0xff]
  %v6765 = vld [vmem:[%s9 + $0x630] sm:$0xff]
  %v6766 = vld [vmem:[%s9 + $0x638] sm:$0xff]
  %v6767 = vld [vmem:[%s9 + $0x640] sm:$0xff]
  %v6768 = vld [vmem:[%s9 + $0x648] sm:$0xff]
  %v6769 = vld [vmem:[%s9 + $0x650] sm:$0xff]
  %v6770 = vld [vmem:[%s9 + $0x658] sm:$0xff]
  %v6771 = vld [vmem:[%s9 + $0x660] sm:$0xff]
  %v6772 = vld [vmem:[%s9 + $0x668] sm:$0xff]
  %v6773 = vld [vmem:[%s9 + $0x670] sm:$0xff]
  %v6774 = vld [vmem:[%s9 + $0x678] sm:$0xff]
  %v6775 = vld [vmem:[%s9 + $0x680] sm:$0xff]
  %v6776 = vld [vmem:[%s9 + $0x688] sm:$0xff]
  %v6777 = vld [vmem:[%s9 + $0x690] sm:$0xff]
  %v6778 = vld [vmem:[%s9 + $0x698] sm:$0xff]
  %v6779 = vld [vmem:[%s9 + $0x6a0] sm:$0xff]
  %v6780 = vld [vmem:[%s9 + $0x6a8] sm:$0xff]
  %v6781 = vld [vmem:[%s9 + $0x6b0] sm:$0xff]
  %v6782 = vld [vmem:[%s9 + $0x6b8] sm:$0xff]
  %v6783 = vld [vmem:[%s9 + $0x6c0] sm:$0xff]
  %v6784 = vld [vmem:[%s9 + $0x6c8] sm:$0xff]
  %v6785 = vld [vmem:[%s9 + $0x6d0] sm:$0xff]
  %v6786 = vld [vmem:[%s9 + $0x6d8] sm:$0xff]
  %v6787 = vld [vmem:[%s9 + $0x6e0] sm:$0xff]
  %v6788 = vld [vmem:[%s9 + $0x6e8] sm:$0xff]
  %v6789 = vld [vmem:[%s9 + $0x6f0] sm:$0xff]
  %v6790 = vld [vmem:[%s9 + $0x6f8] sm:$0xff]
  %v6791 = vld [vmem:[%s9 + $0x700] sm:$0xff]
  %v6792 = vld [vmem:[%s9 + $0x708] sm:$0xff]
  %v6793 = vld [vmem:[%s9 + $0x710] sm:$0xff]
  %v6794 = vld [vmem:[%s9 + $0x718] sm:$0xff]
  %v6795 = vld [vmem:[%s9 + $0x720] sm:$0xff]
  %v6796 = vld [vmem:[%s9 + $0x728] sm:$0xff]
  %v6797 = vld [vmem:[%s9 + $0x730] sm:$0xff]
  %v6798 = vld [vmem:[%s9 + $0x738] sm:$0xff]
  %v6799 = vld [vmem:[%s9 + $0x740] sm:$0xff]
  %v6800 = vld [vmem:[%s9 + $0x748] sm:$0xff]
  %v6801 = vld [vmem:[%s9 + $0x750] sm:$0xff]
  %v6802 = vld [vmem:[%s9 + $0x758] sm:$0xff]
  %v6803 = vld [vmem:[%s9 + $0x760] sm:$0xff]
  %v6804 = vld [vmem:[%s9 + $0x768] sm:$0xff]
  %v6805 = vld [vmem:[%s9 + $0x770] sm:$0xff]
  %v6806 = vld [vmem:[%s9 + $0x778] sm:$0xff]
  %v6807 = vld [vmem:[%s9 + $0x780] sm:$0xff]
  %v6808 = vld [vmem:[%s9 + $0x788] sm:$0xff]
  %v6809 = vld [vmem:[%s9 + $0x790] sm:$0xff]
  %v6810 = vld [vmem:[%s9 + $0x798] sm:$0xff]
  %v6811 = vld [vmem:[%s9 + $0x7a0] sm:$0xff]
  %v6812 = vld [vmem:[%s9 + $0x7a8] sm:$0xff]
  %v6813 = vld [vmem:[%s9 + $0x7b0] sm:$0xff]
  %v6814 = vld [vmem:[%s9 + $0x7b8] sm:$0xff]
  %v6815 = vld [vmem:[%s9 + $0x7c0] sm:$0xff]
  %v6816 = vld [vmem:[%s9 + $0x7c8] sm:$0xff]
  %v6817 = vld [vmem:[%s9 + $0x7d0] sm:$0xff]
  %v6818 = vld [vmem:[%s9 + $0x7d8] sm:$0xff]
  %v6819 = vld [vmem:[%s9 + $0x7e0] sm:$0xff]
  %v6820 = vld [vmem:[%s9 + $0x7e8] sm:$0xff]
  %v6821 = vld [vmem:[%s9 + $0x7f0] sm:$0xff]
  %v6822 = vld [vmem:[%s9 + $0x7f8] sm:$0xff]
  %v6823 = vld [vmem:[%s9 + $0x800] sm:$0xff]
  %v6824 = vld [vmem:[%s9 + $0x808] sm:$0xff]
  %v6825 = vld [vmem:[%s9 + $0x810] sm:$0xff]
  %v6826 = vld [vmem:[%s9 + $0x818] sm:$0xff]
  %v6827 = vld [vmem:[%s9 + $0x820] sm:$0xff]
  %v6828 = vld [vmem:[%s9 + $0x828] sm:$0xff]
  %v6829 = vld [vmem:[%s9 + $0x830] sm:$0xff]
  %v6830 = vld [vmem:[%s9 + $0x838] sm:$0xff]
  %v6831 = vld [vmem:[%s9 + $0x840] sm:$0xff]
  %v6832 = vld [vmem:[%s9 + $0x848] sm:$0xff]
  %v6833 = vld [vmem:[%s9 + $0x850] sm:$0xff]
  %v6834 = vld [vmem:[%s9 + $0x858] sm:$0xff]
  %v6835 = vld [vmem:[%s9 + $0x860] sm:$0xff]
  %v6836 = vld [vmem:[%s9 + $0x868] sm:$0xff]
  %v6837 = vld [vmem:[%s9 + $0x870] sm:$0xff]
  %v6838 = vld [vmem:[%s9 + $0x878] sm:$0xff]
  %v6839 = vld [vmem:[%s9 + $0x880] sm:$0xff]
  %v6840 = vld [vmem:[%s9 + $0x888] sm:$0xff]
  %v6841 = vld [vmem:[%s9 + $0x890] sm:$0xff]
  %v6842 = vld [vmem:[%s9 + $0x898] sm:$0xff]
  %v6843 = vld [vmem:[%s9 + $0x8a0] sm:$0xff]
  %v6844 = vld [vmem:[%s9 + $0x8a8] sm:$0xff]
  %v6845 = vld [vmem:[%s9 + $0x8b0] sm:$0xff]
  %v6846 = vld [vmem:[%s9 + $0x8b8] sm:$0xff]
  %v6847 = vld [vmem:[%s9 + $0x8c0] sm:$0xff]
  %v6848 = vld [vmem:[%s9 + $0x8c8] sm:$0xff]
  %v6849 = vld [vmem:[%s9 + $0x8d0] sm:$0xff]
  %v6850 = vld [vmem:[%s9 + $0x8d8] sm:$0xff]
  %v6851 = vld [vmem:[%s9 + $0x8e0] sm:$0xff]
  %v6852 = vld [vmem:[%s9 + $0x8e8] sm:$0xff]
  %v6853 = vld [vmem:[%s9 + $0x8f0] sm:$0xff]
  %v6854 = vld [vmem:[%s9 + $0x8f8] sm:$0xff]
  %v6855 = vld [vmem:[%s9 + $0x900] sm:$0xff]
  %v6856 = vld [vmem:[%s9 + $0x908] sm:$0xff]
  %v6857 = vld [vmem:[%s9 + $0x910] sm:$0xff]
  %v6858 = vld [vmem:[%s9 + $0x918] sm:$0xff]
  %v6859 = vld [vmem:[%s9 + $0x920] sm:$0xff]
  %v6860 = vld [vmem:[%s9 + $0x928] sm:$0xff]
  %v6861 = vld [vmem:[%s9 + $0x930] sm:$0xff]
  %v6862 = vld [vmem:[%s9 + $0x938] sm:$0xff]
  %v6863 = vld [vmem:[%s9 + $0x940] sm:$0xff]
  %v6864 = vld [vmem:[%s9 + $0x948] sm:$0xff]
  %v6865 = vld [vmem:[%s9 + $0x950] sm:$0xff]
  %v6866 = vld [vmem:[%s9 + $0x958] sm:$0xff]
  %v6867 = vld [vmem:[%s9 + $0x960] sm:$0xff]
  %v6868 = vld [vmem:[%s9 + $0x968] sm:$0xff]
  %v6869 = vld [vmem:[%s9 + $0x970] sm:$0xff]
  %v6870 = vld [vmem:[%s9 + $0x978] sm:$0xff]
  %v6871 = vld [vmem:[%s9 + $0x980] sm:$0xff]
  %v6872 = vld [vmem:[%s9 + $0x988] sm:$0xff]
  %v6873 = vld [vmem:[%s9 + $0x990] sm:$0xff]
  %v6874 = vld [vmem:[%s9 + $0x998] sm:$0xff]
  %v6875 = vld [vmem:[%s9 + $0x9a0] sm:$0xff]
  %v6876 = vld [vmem:[%s9 + $0x9a8] sm:$0xff]
  %v6877 = vld [vmem:[%s9 + $0x9b0] sm:$0xff]
  %v6878 = vld [vmem:[%s9 + $0x9b8] sm:$0xff]
  %v6879 = vld [vmem:[%s9 + $0x9c0] sm:$0xff]
  %v6880 = vld [vmem:[%s9 + $0x9c8] sm:$0xff]
  %v6881 = vld [vmem:[%s9 + $0x9d0] sm:$0xff]
  %v6882 = vld [vmem:[%s9 + $0x9d8] sm:$0xff]
  %v6883 = vld [vmem:[%s9 + $0x9e0] sm:$0xff]
  %v6884 = vld [vmem:[%s9 + $0x9e8] sm:$0xff]
  %v6885 = vld [vmem:[%s9 + $0x9f0] sm:$0xff]
  %v6886 = vld [vmem:[%s9 + $0x9f8] sm:$0xff]
  %v6887 = vld [vmem:[%s9 + $0xa00] sm:$0xff]
  %v6888 = vld [vmem:[%s9 + $0xa08] sm:$0xff]
  %v6889 = vld [vmem:[%s9 + $0xa10] sm:$0xff]
  %v6890 = vld [vmem:[%s9 + $0xa18] sm:$0xff]
  %v6891 = vld [vmem:[%s9 + $0xa20] sm:$0xff]
  %v6892 = vld [vmem:[%s9 + $0xa28] sm:$0xff]
  %v6893 = vld [vmem:[%s9 + $0xa30] sm:$0xff]
  %v6894 = vld [vmem:[%s9 + $0xa38] sm:$0xff]
  %v6895 = vld [vmem:[%s9 + $0xa40] sm:$0xff]
  %v6896 = vld [vmem:[%s9 + $0xa48] sm:$0xff]
  %v6897 = vld [vmem:[%s9 + $0xa50] sm:$0xff]
  %v6898 = vld [vmem:[%s9 + $0xa58] sm:$0xff]
  %v6899 = vld [vmem:[%s9 + $0xa60] sm:$0xff]
  %v6900 = vld [vmem:[%s9 + $0xa68] sm:$0xff]
  %v6901 = vld [vmem:[%s9 + $0xa70] sm:$0xff]
  %v6902 = vld [vmem:[%s9 + $0xa78] sm:$0xff]
  %v6903 = vld [vmem:[%s9 + $0xa80] sm:$0xff]
  %v6904 = vld [vmem:[%s9 + $0xa88] sm:$0xff]
  %v6905 = vld [vmem:[%s9 + $0xa90] sm:$0xff]
  %v6906 = vld [vmem:[%s9 + $0xa98] sm:$0xff]
  %v6907 = vld [vmem:[%s9 + $0xaa0] sm:$0xff]
  %v6908 = vld [vmem:[%s9 + $0xaa8] sm:$0xff]
  %v6909 = vld [vmem:[%s9 + $0xab0] sm:$0xff]
  %v6910 = vld [vmem:[%s9 + $0xab8] sm:$0xff]
  %v6911 = vld [vmem:[%s9 + $0xac0] sm:$0xff]
  %v6912 = vld [vmem:[%s9 + $0xac8] sm:$0xff]
  %v6913 = vld [vmem:[%s9 + $0xad0] sm:$0xff]
  %v6914 = vld [vmem:[%s9 + $0xad8] sm:$0xff]
  %v6915 = vld [vmem:[%s9 + $0xae0] sm:$0xff]
  %v6916 = vld [vmem:[%s9 + $0xae8] sm:$0xff]
  %v6917 = vld [vmem:[%s9 + $0xaf0] sm:$0xff]
  %v6918 = vld [vmem:[%s9 + $0xaf8] sm:$0xff]
  %v6919 = vld [vmem:[%s9 + $0xb00] sm:$0xff]
  %v6920 = vld [vmem:[%s9 + $0xb08] sm:$0xff]
  %v6921 = vld [vmem:[%s9 + $0xb10] sm:$0xff]
  %v6922 = vld [vmem:[%s9 + $0xb18] sm:$0xff]
  %v6923 = vld [vmem:[%s9 + $0xb20] sm:$0xff]
  %v6924 = vld [vmem:[%s9 + $0xb28] sm:$0xff]
  %v6925 = vld [vmem:[%s9 + $0xb30] sm:$0xff]
  %v6926 = vld [vmem:[%s9 + $0xb38] sm:$0xff]
  %v6927 = vld [vmem:[%s9 + $0xb40] sm:$0xff]
  %v6928 = vld [vmem:[%s9 + $0xb48] sm:$0xff]
  %v6929 = vld [vmem:[%s9 + $0xb50] sm:$0xff]
  %v6930 = vld [vmem:[%s9 + $0xb58] sm:$0xff]
  %v6931 = vld [vmem:[%s9 + $0xb60] sm:$0xff]
  %v6932 = vld [vmem:[%s9 + $0xb68] sm:$0xff]
  %v6933 = vld [vmem:[%s9 + $0xb70] sm:$0xff]
  %v6934 = vld [vmem:[%s9 + $0xb78] sm:$0xff]
  %v6935 = vld [vmem:[%s9 + $0xb80] sm:$0xff]
  %v6936 = vld [vmem:[%s9 + $0xb88] sm:$0xff]
  %v6937 = vld [vmem:[%s9 + $0xb90] sm:$0xff]
  %v6938 = vld [vmem:[%s9 + $0xb98] sm:$0xff]
  %v6939 = vld [vmem:[%s9 + $0xba0] sm:$0xff]
  %v6940 = vld [vmem:[%s9 + $0xba8] sm:$0xff]
  %v6941 = vld [vmem:[%s9 + $0xbb0] sm:$0xff]
  %v6942 = vld [vmem:[%s9 + $0xbb8] sm:$0xff]
  %v6943 = vld [vmem:[%s9 + $0xbc0] sm:$0xff]
  %v6944 = vld [vmem:[%s9 + $0xbc8] sm:$0xff]
  %v6945 = vld [vmem:[%s9 + $0xbd0] sm:$0xff]
  %v6946 = vld [vmem:[%s9 + $0xbd8] sm:$0xff]
  %v6947 = vld [vmem:[%s9 + $0xbe0] sm:$0xff]
  %v6948 = vld [vmem:[%s9 + $0xbe8] sm:$0xff]
  %v6949 = vld [vmem:[%s9 + $0xbf0] sm:$0xff]
  %v6950 = vld [vmem:[%s9 + $0xbf8] sm:$0xff]
  %v6951 = vld [vmem:[%s9 + $0xc00] sm:$0xff]
  %v6952 = vld [vmem:[%s9 + $0xc08] sm:$0xff]
  %v6953 = vld [vmem:[%s9 + $0xc10] sm:$0xff]
  %v6954 = vld [vmem:[%s9 + $0xc18] sm:$0xff]
  %v6955 = vld [vmem:[%s9 + $0xc20] sm:$0xff]
  %v6956 = vld [vmem:[%s9 + $0xc28] sm:$0xff]
  %v6957 = vld [vmem:[%s9 + $0xc30] sm:$0xff]
  %v6958 = vld [vmem:[%s9 + $0xc38] sm:$0xff]
  %v6959 = vld [vmem:[%s9 + $0xc40] sm:$0xff]
  %v6960 = vld [vmem:[%s9 + $0xc48] sm:$0xff]
  %v6961 = vld [vmem:[%s9 + $0xc50] sm:$0xff]
  %v6962 = vld [vmem:[%s9 + $0xc58] sm:$0xff]
  %v6963 = vld [vmem:[%s9 + $0xc60] sm:$0xff]
  %v6964 = vld [vmem:[%s9 + $0xc68] sm:$0xff]
  %v6965 = vld [vmem:[%s9 + $0xc70] sm:$0xff]
  %v6966 = vld [vmem:[%s9 + $0xc78] sm:$0xff]
  %v6967 = vld [vmem:[%s9 + $0xc80] sm:$0xff]
  %v6968 = vld [vmem:[%s9 + $0xc88] sm:$0xff]
  %v6969 = vld [vmem:[%s9 + $0xc90] sm:$0xff]
  %v6970 = vld [vmem:[%s9 + $0xc98] sm:$0xff]
  %v6971 = vld [vmem:[%s9 + $0xca0] sm:$0xff]
  %v6972 = vld [vmem:[%s9 + $0xca8] sm:$0xff]
  %v6973 = vld [vmem:[%s9 + $0xcb0] sm:$0xff]
  %v6974 = vld [vmem:[%s9 + $0xcb8] sm:$0xff]
  %v6975 = vld [vmem:[%s9 + $0xcc0] sm:$0xff]
  %v6976 = vld [vmem:[%s9 + $0xcc8] sm:$0xff]
  %v6977 = vld [vmem:[%s9 + $0xcd0] sm:$0xff]
  %v6978 = vld [vmem:[%s9 + $0xcd8] sm:$0xff]
  %v6979 = vld [vmem:[%s9 + $0xce0] sm:$0xff]
  %v6980 = vld [vmem:[%s9 + $0xce8] sm:$0xff]
  %v6981 = vld [vmem:[%s9 + $0xcf0] sm:$0xff]
  %v6982 = vld [vmem:[%s9 + $0xcf8] sm:$0xff]
  %v6983 = vld [vmem:[%s9 + $0xd00] sm:$0xff]
  %v6984 = vld [vmem:[%s9 + $0xd08] sm:$0xff]
  %v6985 = vld [vmem:[%s9 + $0xd10] sm:$0xff]
  %v6986 = vld [vmem:[%s9 + $0xd18] sm:$0xff]
  %v6987 = vld [vmem:[%s9 + $0xd20] sm:$0xff]
  %v6988 = vld [vmem:[%s9 + $0xd28] sm:$0xff]
  %v6989 = vld [vmem:[%s9 + $0xd30] sm:$0xff]
  %v6990 = vld [vmem:[%s9 + $0xd38] sm:$0xff]
  %v6991 = vld [vmem:[%s9 + $0xd40] sm:$0xff]
  %v6992 = vld [vmem:[%s9 + $0xd48] sm:$0xff]
  %v6993 = vld [vmem:[%s9 + $0xd50] sm:$0xff]
  %v6994 = vld [vmem:[%s9 + $0xd58] sm:$0xff]
  %v6995 = vld [vmem:[%s9 + $0xd60] sm:$0xff]
  %v6996 = vld [vmem:[%s9 + $0xd68] sm:$0xff]
  %v6997 = vld [vmem:[%s9 + $0xd70] sm:$0xff]
  %v6998 = vld [vmem:[%s9 + $0xd78] sm:$0xff]
  %v6999 = vld [vmem:[%s9 + $0xd80] sm:$0xff]
  %v7000 = vld [vmem:[%s9 + $0xd88] sm:$0xff]
  %v7001 = vld [vmem:[%s9 + $0xd90] sm:$0xff]
  %v7002 = vld [vmem:[%s9 + $0xd98] sm:$0xff]
  %v7003 = vld [vmem:[%s9 + $0xda0] sm:$0xff]
  %v7004 = vld [vmem:[%s9 + $0xda8] sm:$0xff]
  %v7005 = vld [vmem:[%s9 + $0xdb0] sm:$0xff]
  %v7006 = vld [vmem:[%s9 + $0xdb8] sm:$0xff]
  %v7007 = vld [vmem:[%s9 + $0xdc0] sm:$0xff]
  %v7008 = vld [vmem:[%s9 + $0xdc8] sm:$0xff]
  %v7009 = vld [vmem:[%s9 + $0xdd0] sm:$0xff]
  %v7010 = vld [vmem:[%s9 + $0xdd8] sm:$0xff]
  %v7011 = vld [vmem:[%s9 + $0xde0] sm:$0xff]
  %v7012 = vld [vmem:[%s9 + $0xde8] sm:$0xff]
  %v7013 = vld [vmem:[%s9 + $0xdf0] sm:$0xff]
  %v7014 = vld [vmem:[%s9 + $0xdf8] sm:$0xff]
  %v7015 = vld [vmem:[%s9 + $0xe00] sm:$0xff]
  %v7016 = vld [vmem:[%s9 + $0xe08] sm:$0xff]
  %v7017 = vld [vmem:[%s9 + $0xe10] sm:$0xff]
  %v7018 = vld [vmem:[%s9 + $0xe18] sm:$0xff]
  %v7019 = vld [vmem:[%s9 + $0xe20] sm:$0xff]
  %v7020 = vld [vmem:[%s9 + $0xe28] sm:$0xff]
  %v7021 = vld [vmem:[%s9 + $0xe30] sm:$0xff]
  %v7022 = vld [vmem:[%s9 + $0xe38] sm:$0xff]
  %v7023 = vld [vmem:[%s9 + $0xe40] sm:$0xff]
  %v7024 = vld [vmem:[%s9 + $0xe48] sm:$0xff]
  %v7025 = vld [vmem:[%s9 + $0xe50] sm:$0xff]
  %v7026 = vld [vmem:[%s9 + $0xe58] sm:$0xff]
  %v7027 = vld [vmem:[%s9 + $0xe60] sm:$0xff]
  %v7028 = vld [vmem:[%s9 + $0xe68] sm:$0xff]
  %v7029 = vld [vmem:[%s9 + $0xe70] sm:$0xff]
  %v7030 = vld [vmem:[%s9 + $0xe78] sm:$0xff]
  %v7031 = vld [vmem:[%s9 + $0xe80] sm:$0xff]
  %v7032 = vld [vmem:[%s9 + $0xe88] sm:$0xff]
  %v7033 = vld [vmem:[%s9 + $0xe90] sm:$0xff]
  %v7034 = vld [vmem:[%s9 + $0xe98] sm:$0xff]
  %v7035 = vld [vmem:[%s9 + $0xea0] sm:$0xff]
  %v7036 = vld [vmem:[%s9 + $0xea8] sm:$0xff]
  %v7037 = vld [vmem:[%s9 + $0xeb0] sm:$0xff]
  %v7038 = vld [vmem:[%s9 + $0xeb8] sm:$0xff]
  %v7039 = vld [vmem:[%s9 + $0xec0] sm:$0xff]
  %v7040 = vld [vmem:[%s9 + $0xec8] sm:$0xff]
  %v7041 = vld [vmem:[%s9 + $0xed0] sm:$0xff]
  %v7042 = vld [vmem:[%s9 + $0xed8] sm:$0xff]
  %v7043 = vld [vmem:[%s9 + $0xee0] sm:$0xff]
  %v7044 = vld [vmem:[%s9 + $0xee8] sm:$0xff]
  %v7045 = vld [vmem:[%s9 + $0xef0] sm:$0xff]
  %v7046 = vld [vmem:[%s9 + $0xef8] sm:$0xff]
  %v7047 = vld [vmem:[%s9 + $0xf00] sm:$0xff]
  %v7048 = vld [vmem:[%s9 + $0xf08] sm:$0xff]
  %v7049 = vld [vmem:[%s9 + $0xf10] sm:$0xff]
  %v7050 = vld [vmem:[%s9 + $0xf18] sm:$0xff]
  %v7051 = vld [vmem:[%s9 + $0xf20] sm:$0xff]
  %v7052 = vld [vmem:[%s9 + $0xf28] sm:$0xff]
  %v7053 = vld [vmem:[%s9 + $0xf30] sm:$0xff]
  %v7054 = vld [vmem:[%s9 + $0xf38] sm:$0xff]
  %v7055 = vld [vmem:[%s9 + $0xf40] sm:$0xff]
  %v7056 = vld [vmem:[%s9 + $0xf48] sm:$0xff]
  %v7057 = vld [vmem:[%s9 + $0xf50] sm:$0xff]
  %v7058 = vld [vmem:[%s9 + $0xf58] sm:$0xff]
  %v7059 = vld [vmem:[%s9 + $0xf60] sm:$0xff]
  %v7060 = vld [vmem:[%s9 + $0xf68] sm:$0xff]
  %v7061 = vld [vmem:[%s9 + $0xf70] sm:$0xff]
  %v7062 = vld [vmem:[%s9 + $0xf78] sm:$0xff]
  %v7063 = vld [vmem:[%s9 + $0xf80] sm:$0xff]
  %v7064 = vld [vmem:[%s9 + $0xf88] sm:$0xff]
  %v7065 = vld [vmem:[%s9 + $0xf90] sm:$0xff]
  %v7066 = vld [vmem:[%s9 + $0xf98] sm:$0xff]
  %v7067 = vld [vmem:[%s9 + $0xfa0] sm:$0xff]
  %v7068 = vld [vmem:[%s9 + $0xfa8] sm:$0xff]
  %v7069 = vld [vmem:[%s9 + $0xfb0] sm:$0xff]
  %v7070 = vld [vmem:[%s9 + $0xfb8] sm:$0xff]
  %v7071 = vld [vmem:[%s9 + $0xfc0] sm:$0xff]
  %v7072 = vld [vmem:[%s9 + $0xfc8] sm:$0xff]
  %v7073 = vld [vmem:[%s9 + $0xfd0] sm:$0xff]
  %v7074 = vld [vmem:[%s9 + $0xfd8] sm:$0xff]
  %v7075 = vld [vmem:[%s9 + $0xfe0] sm:$0xff]
  %v7076 = vld [vmem:[%s9 + $0xfe8] sm:$0xff]
  %v7077 = vld [vmem:[%s9 + $0xff0] sm:$0xff]
  %v7078 = vld [vmem:[%s9 + $0xff8] sm:$0xff]
  %v7079 = vld [vmem:[%s9 + $0x1000] sm:$0xff]
  %v7080 = vld [vmem:[%s9 + $0x1008] sm:$0xff]
  %v7081 = vld [vmem:[%s9 + $0x1010] sm:$0xff]
  %v7082 = vld [vmem:[%s9 + $0x1018] sm:$0xff]
  %v7083 = vld [vmem:[%s9 + $0x1020] sm:$0xff]
  %v7084 = vld [vmem:[%s9 + $0x1028] sm:$0xff]
  %v7085 = vld [vmem:[%s9 + $0x1030] sm:$0xff]
  %v7086 = vld [vmem:[%s9 + $0x1038] sm:$0xff]
  %v7087 = vld [vmem:[%s9 + $0x1040] sm:$0xff]
  %v7088 = vld [vmem:[%s9 + $0x1048] sm:$0xff]
  %v7089 = vld [vmem:[%s9 + $0x1050] sm:$0xff]
  %v7090 = vld [vmem:[%s9 + $0x1058] sm:$0xff]
  %v7091 = vld [vmem:[%s9 + $0x1060] sm:$0xff]
  %v7092 = vld [vmem:[%s9 + $0x1068] sm:$0xff]
  %v7093 = vld [vmem:[%s9 + $0x1070] sm:$0xff]
  %v7094 = vld [vmem:[%s9 + $0x1078] sm:$0xff]
  %v7095 = vld [vmem:[%s9 + $0x1080] sm:$0xff]
  %v7096 = vld [vmem:[%s9 + $0x1088] sm:$0xff]
  %v7097 = vld [vmem:[%s9 + $0x1090] sm:$0xff]
  %v7098 = vld [vmem:[%s9 + $0x1098] sm:$0xff]
  %v7099 = vld [vmem:[%s9 + $0x10a0] sm:$0xff]
  %v7100 = vld [vmem:[%s9 + $0x10a8] sm:$0xff]
  %v7101 = vld [vmem:[%s9 + $0x10b0] sm:$0xff]
  %v7102 = vld [vmem:[%s9 + $0x10b8] sm:$0xff]
  %v7103 = vld [vmem:[%s9 + $0x10c0] sm:$0xff]
  %v7104 = vld [vmem:[%s9 + $0x10c8] sm:$0xff]
  %v7105 = vld [vmem:[%s9 + $0x10d0] sm:$0xff]
  %v7106 = vld [vmem:[%s9 + $0x10d8] sm:$0xff]
  %v7107 = vld [vmem:[%s9 + $0x10e0] sm:$0xff]
  %v7108 = vld [vmem:[%s9 + $0x10e8] sm:$0xff]
  %v7109 = vld [vmem:[%s9 + $0x10f0] sm:$0xff]
  %v7110 = vld [vmem:[%s9 + $0x10f8] sm:$0xff]
  %v7111 = vld [vmem:[%s9 + $0x1100] sm:$0xff]
  %v7112 = vld [vmem:[%s9 + $0x1108] sm:$0xff]
  %v7113 = vld [vmem:[%s9 + $0x1110] sm:$0xff]
  %v7114 = vld [vmem:[%s9 + $0x1118] sm:$0xff]
  %v7115 = vld [vmem:[%s9 + $0x1120] sm:$0xff]
  %v7116 = vld [vmem:[%s9 + $0x1128] sm:$0xff]
  %v7117 = vld [vmem:[%s9 + $0x1130] sm:$0xff]
  %v7118 = vld [vmem:[%s9 + $0x1138] sm:$0xff]
  %v7119 = vld [vmem:[%s9 + $0x1140] sm:$0xff]
  %v7120 = vld [vmem:[%s9 + $0x1148] sm:$0xff]
  %v7121 = vld [vmem:[%s9 + $0x1150] sm:$0xff]
  %v7122 = vld [vmem:[%s9 + $0x1158] sm:$0xff]
  %v7123 = vld [vmem:[%s9 + $0x1160] sm:$0xff]
  %v7124 = vld [vmem:[%s9 + $0x1168] sm:$0xff]
  %v7125 = vld [vmem:[%s9 + $0x1170] sm:$0xff]
  %v7126 = vld [vmem:[%s9 + $0x1178] sm:$0xff]
  %v7127 = vld [vmem:[%s9 + $0x1180] sm:$0xff]
  %v7128 = vld [vmem:[%s9 + $0x1188] sm:$0xff]
  %v7129 = vld [vmem:[%s9 + $0x1190] sm:$0xff]
  %v7130 = vld [vmem:[%s9 + $0x1198] sm:$0xff]
  %v7131 = vld [vmem:[%s9 + $0x11a0] sm:$0xff]
  %v7132 = vld [vmem:[%s9 + $0x11a8] sm:$0xff]
  %v7133 = vld [vmem:[%s9 + $0x11b0] sm:$0xff]
  %v7134 = vld [vmem:[%s9 + $0x11b8] sm:$0xff]
  %v7135 = vld [vmem:[%s9 + $0x11c0] sm:$0xff]
  %v7136 = vld [vmem:[%s9 + $0x11c8] sm:$0xff]
  %v7137 = vld [vmem:[%s9 + $0x11d0] sm:$0xff]
  %v7138 = vld [vmem:[%s9 + $0x11d8] sm:$0xff]
  %v7139 = vld [vmem:[%s9 + $0x11e0] sm:$0xff]
  %v7140 = vld [vmem:[%s9 + $0x11e8] sm:$0xff]
  %v7141 = vld [vmem:[%s9 + $0x11f0] sm:$0xff]
  %v7142 = vld [vmem:[%s9 + $0x11f8] sm:$0xff]
  %v7143 = vld [vmem:[%s9 + $0x1200] sm:$0xff]
  %v7144 = vld [vmem:[%s9 + $0x1208] sm:$0xff]
  %v7145 = vld [vmem:[%s9 + $0x1210] sm:$0xff]
  %v7146 = vld [vmem:[%s9 + $0x1218] sm:$0xff]
  %v7147 = vld [vmem:[%s9 + $0x1220] sm:$0xff]
  %v7148 = vld [vmem:[%s9 + $0x1228] sm:$0xff]
  %v7149 = vld [vmem:[%s9 + $0x1230] sm:$0xff]
  %v7150 = vld [vmem:[%s9 + $0x1238] sm:$0xff]
  %v7151 = vld [vmem:[%s9 + $0x1240] sm:$0xff]
  %v7152 = vld [vmem:[%s9 + $0x1248] sm:$0xff]
  %v7153 = vld [vmem:[%s9 + $0x1250] sm:$0xff]
  %v7154 = vld [vmem:[%s9 + $0x1258] sm:$0xff]
  %v7155 = vld [vmem:[%s9 + $0x1260] sm:$0xff]
  %v7156 = vld [vmem:[%s9 + $0x1268] sm:$0xff]
  %v7157 = vld [vmem:[%s9 + $0x1270] sm:$0xff]
  %v7158 = vld [vmem:[%s9 + $0x1278] sm:$0xff]
  %v7159 = vld [vmem:[%s9 + $0x1280] sm:$0xff]
  %v7160 = vld [vmem:[%s9 + $0x1288] sm:$0xff]
  %v7161 = vld [vmem:[%s9 + $0x1290] sm:$0xff]
  %v7162 = vld [vmem:[%s9 + $0x1298] sm:$0xff]
  %v7163 = vld [vmem:[%s9 + $0x12a0] sm:$0xff]
  %v7164 = vld [vmem:[%s9 + $0x12a8] sm:$0xff]
  %v7165 = vld [vmem:[%s9 + $0x12b0] sm:$0xff]
  %v7166 = vld [vmem:[%s9 + $0x12b8] sm:$0xff]
  %v7167 = vld [vmem:[%s9 + $0x12c0] sm:$0xff]
  %v7168 = vld [vmem:[%s9 + $0x12c8] sm:$0xff]
  %v7169 = vld [vmem:[%s9 + $0x12d0] sm:$0xff]
  %v7170 = vld [vmem:[%s9 + $0x12d8] sm:$0xff]
  %v7171 = vld [vmem:[%s9 + $0x12e0] sm:$0xff]
  %v7172 = vld [vmem:[%s9 + $0x12e8] sm:$0xff]
  %v7173 = vld [vmem:[%s9 + $0x12f0] sm:$0xff]
  %v7174 = vld [vmem:[%s9 + $0x12f8] sm:$0xff]
  %v7175 = vld [vmem:[%s9 + $0x1300] sm:$0xff]
  %v7176 = vld [vmem:[%s9 + $0x1308] sm:$0xff]
  %v7177 = vld [vmem:[%s9 + $0x1310] sm:$0xff]
  %v7178 = vld [vmem:[%s9 + $0x1318] sm:$0xff]
  %v7179 = vld [vmem:[%s9 + $0x1320] sm:$0xff]
  %v7180 = vld [vmem:[%s9 + $0x1328] sm:$0xff]
  %v7181 = vld [vmem:[%s9 + $0x1330] sm:$0xff]
  %v7182 = vld [vmem:[%s9 + $0x1338] sm:$0xff]
  %v7183 = vld [vmem:[%s9 + $0x1340] sm:$0xff]
  %v7184 = vld [vmem:[%s9 + $0x1348] sm:$0xff]
  %v7185 = vld [vmem:[%s9 + $0x1350] sm:$0xff]
  %v7186 = vld [vmem:[%s9 + $0x1358] sm:$0xff]
  %v7187 = vld [vmem:[%s9 + $0x1360] sm:$0xff]
  %v7188 = vld [vmem:[%s9 + $0x1368] sm:$0xff]
  %v7189 = vld [vmem:[%s9 + $0x1370] sm:$0xff]
  %v7190 = vld [vmem:[%s9 + $0x1378] sm:$0xff]
  %v7191 = vld [vmem:[%s9 + $0x1380] sm:$0xff]
  %v7192 = vld [vmem:[%s9 + $0x1388] sm:$0xff]
  %v7193 = vld [vmem:[%s9 + $0x1390] sm:$0xff]
  %v7194 = vld [vmem:[%s9 + $0x1398] sm:$0xff]
  %v7195 = vld [vmem:[%s9 + $0x13a0] sm:$0xff]
  %v7196 = vld [vmem:[%s9 + $0x13a8] sm:$0xff]
  %v7197 = vld [vmem:[%s9 + $0x13b0] sm:$0xff]
  %v7198 = vld [vmem:[%s9 + $0x13b8] sm:$0xff]
  %v7199 = vld [vmem:[%s9 + $0x13c0] sm:$0xff]
  %v7200 = vld [vmem:[%s9 + $0x13c8] sm:$0xff]
  %v7201 = vld [vmem:[%s9 + $0x13d0] sm:$0xff]
  %v7202 = vld [vmem:[%s9 + $0x13d8] sm:$0xff]
  %v7203 = vld [vmem:[%s9 + $0x13e0] sm:$0xff]
  %v7204 = vld [vmem:[%s9 + $0x13e8] sm:$0xff]
  %v7205 = vld [vmem:[%s9 + $0x13f0] sm:$0xff]
  %v7206 = vld [vmem:[%s9 + $0x13f8] sm:$0xff]
  %v7207 = vld [vmem:[%s9 + $0x1400] sm:$0xff]
  %v7208 = vld [vmem:[%s9 + $0x1408] sm:$0xff]
  %v7209 = vld [vmem:[%s9 + $0x1410] sm:$0xff]
  %v7210 = vld [vmem:[%s9 + $0x1418] sm:$0xff]
  %v7211 = vld [vmem:[%s9 + $0x1420] sm:$0xff]
  %v7212 = vld [vmem:[%s9 + $0x1428] sm:$0xff]
  %v7213 = vld [vmem:[%s9 + $0x1430] sm:$0xff]
  %v7214 = vld [vmem:[%s9 + $0x1438] sm:$0xff]
  %v7215 = vld [vmem:[%s9 + $0x1440] sm:$0xff]
  %v7216 = vld [vmem:[%s9 + $0x1448] sm:$0xff]
  %v7217 = vld [vmem:[%s9 + $0x1450] sm:$0xff]
  %v7218 = vld [vmem:[%s9 + $0x1458] sm:$0xff]
  %v7219 = vld [vmem:[%s9 + $0x1460] sm:$0xff]
  %v7220 = vld [vmem:[%s9 + $0x1468] sm:$0xff]
  %v7221 = vld [vmem:[%s9 + $0x1470] sm:$0xff]
  %v7222 = vld [vmem:[%s9 + $0x1478] sm:$0xff]
  %v7223 = vld [vmem:[%s9 + $0x1480] sm:$0xff]
  %v7224 = vld [vmem:[%s9 + $0x1488] sm:$0xff]
  %v7225 = vld [vmem:[%s9 + $0x1490] sm:$0xff]
  %v7226 = vld [vmem:[%s9 + $0x1498] sm:$0xff]
  %v7227 = vld [vmem:[%s9 + $0x14a0] sm:$0xff]
  %v7228 = vld [vmem:[%s9 + $0x14a8] sm:$0xff]
  %v7229 = vld [vmem:[%s9 + $0x14b0] sm:$0xff]
  %v7230 = vld [vmem:[%s9 + $0x14b8] sm:$0xff]
  %v7231 = vld [vmem:[%s9 + $0x14c0] sm:$0xff]
  %v7232 = vld [vmem:[%s9 + $0x14c8] sm:$0xff]
  %v7233 = vld [vmem:[%s9 + $0x14d0] sm:$0xff]
  %v7234 = vld [vmem:[%s9 + $0x14d8] sm:$0xff]
  %v7235 = vld [vmem:[%s9 + $0x14e0] sm:$0xff]
  %v7236 = vld [vmem:[%s9 + $0x14e8] sm:$0xff]
  %v7237 = vld [vmem:[%s9 + $0x14f0] sm:$0xff]
  %v7238 = vld [vmem:[%s9 + $0x14f8] sm:$0xff]
  %v7239 = vld [vmem:[%s9 + $0x1500] sm:$0xff]
  %v7240 = vld [vmem:[%s9 + $0x1508] sm:$0xff]
  %v7241 = vld [vmem:[%s9 + $0x1510] sm:$0xff]
  %v7242 = vld [vmem:[%s9 + $0x1518] sm:$0xff]
  %v7243 = vld [vmem:[%s9 + $0x1520] sm:$0xff]
  %v7244 = vld [vmem:[%s9 + $0x1528] sm:$0xff]
  %v7245 = vld [vmem:[%s9 + $0x1530] sm:$0xff]
  %v7246 = vld [vmem:[%s9 + $0x1538] sm:$0xff]
  %v7247 = vld [vmem:[%s9 + $0x1540] sm:$0xff]
  %v7248 = vld [vmem:[%s9 + $0x1548] sm:$0xff]
  %v7249 = vld [vmem:[%s9 + $0x1550] sm:$0xff]
  %v7250 = vld [vmem:[%s9 + $0x1558] sm:$0xff]
  %v7251 = vld [vmem:[%s9 + $0x1560] sm:$0xff]
  %v7252 = vld [vmem:[%s9 + $0x1568] sm:$0xff]
  %v7253 = vld [vmem:[%s9 + $0x1570] sm:$0xff]
  %v7254 = vld [vmem:[%s9 + $0x1578] sm:$0xff]
  %v7255 = vld [vmem:[%s9 + $0x1580] sm:$0xff]
  %v7256 = vld [vmem:[%s9 + $0x1588] sm:$0xff]
  %v7257 = vld [vmem:[%s9 + $0x1590] sm:$0xff]
  %v7258 = vld [vmem:[%s9 + $0x1598] sm:$0xff]
  %v7259 = vld [vmem:[%s9 + $0x15a0] sm:$0xff]
  %v7260 = vld [vmem:[%s9 + $0x15a8] sm:$0xff]
  %v7261 = vld [vmem:[%s9 + $0x15b0] sm:$0xff]
  %v7262 = vld [vmem:[%s9 + $0x15b8] sm:$0xff]
  %v7263 = vld [vmem:[%s9 + $0x15c0] sm:$0xff]
  %v7264 = vld [vmem:[%s9 + $0x15c8] sm:$0xff]
  %v7265 = vld [vmem:[%s9 + $0x15d0] sm:$0xff]
  %v7266 = vld [vmem:[%s9 + $0x15d8] sm:$0xff]
  %v7267 = vld [vmem:[%s9 + $0x15e0] sm:$0xff]
  %v7268 = vld [vmem:[%s9 + $0x15e8] sm:$0xff]
  %v7269 = vld [vmem:[%s9 + $0x15f0] sm:$0xff]
  %v7270 = vld [vmem:[%s9 + $0x15f8] sm:$0xff]
  %v7271 = vld [vmem:[%s9 + $0x1600] sm:$0xff]
  %v7272 = vld [vmem:[%s9 + $0x1608] sm:$0xff]
  %v7273 = vld [vmem:[%s9 + $0x1610] sm:$0xff]
  %v7274 = vld [vmem:[%s9 + $0x1618] sm:$0xff]
  %v7275 = vld [vmem:[%s9 + $0x1620] sm:$0xff]
  %v7276 = vld [vmem:[%s9 + $0x1628] sm:$0xff]
  %v7277 = vld [vmem:[%s9 + $0x1630] sm:$0xff]
  %v7278 = vld [vmem:[%s9 + $0x1638] sm:$0xff]
  %v7279 = vld [vmem:[%s9 + $0x1640] sm:$0xff]
  %v7280 = vld [vmem:[%s9 + $0x1648] sm:$0xff]
  %v7281 = vld [vmem:[%s9 + $0x1650] sm:$0xff]
  %v7282 = vld [vmem:[%s9 + $0x1658] sm:$0xff]
  %v7283 = vld [vmem:[%s9 + $0x1660] sm:$0xff]
  %v7284 = vld [vmem:[%s9 + $0x1668] sm:$0xff]
  %v7285 = vld [vmem:[%s9 + $0x1670] sm:$0xff]
  %v7286 = vld [vmem:[%s9 + $0x1678] sm:$0xff]
  %v7287 = vld [vmem:[%s9 + $0x1680] sm:$0xff]
  %v7288 = vld [vmem:[%s9 + $0x1688] sm:$0xff]
  %v7289 = vld [vmem:[%s9 + $0x1690] sm:$0xff]
  %v7290 = vld [vmem:[%s9 + $0x1698] sm:$0xff]
  %v7291 = vld [vmem:[%s9 + $0x16a0] sm:$0xff]
  %v7292 = vld [vmem:[%s9 + $0x16a8] sm:$0xff]
  %v7293 = vld [vmem:[%s9 + $0x16b0] sm:$0xff]
  %v7294 = vld [vmem:[%s9 + $0x16b8] sm:$0xff]
  %v7295 = vld [vmem:[%s9 + $0x16c0] sm:$0xff]
  %v7296 = vld [vmem:[%s9 + $0x16c8] sm:$0xff]
  %v7297 = vld [vmem:[%s9 + $0x16d0] sm:$0xff]
  %v7298 = vld [vmem:[%s9 + $0x16d8] sm:$0xff]
  %v7299 = vld [vmem:[%s9 + $0x16e0] sm:$0xff]
  %v7300 = vld [vmem:[%s9 + $0x16e8] sm:$0xff]
  %v7301 = vld [vmem:[%s9 + $0x16f0] sm:$0xff]
  %v7302 = vld [vmem:[%s9 + $0x16f8] sm:$0xff]
  %v7303 = vld [vmem:[%s9 + $0x1700] sm:$0xff]
  %v7304 = vld [vmem:[%s9 + $0x1708] sm:$0xff]
  %v7305 = vld [vmem:[%s9 + $0x1710] sm:$0xff]
  %v7306 = vld [vmem:[%s9 + $0x1718] sm:$0xff]
  %v7307 = vld [vmem:[%s9 + $0x1720] sm:$0xff]
  %v7308 = vld [vmem:[%s9 + $0x1728] sm:$0xff]
  %v7309 = vld [vmem:[%s9 + $0x1730] sm:$0xff]
  %v7310 = vld [vmem:[%s9 + $0x1738] sm:$0xff]
  %v7311 = vld [vmem:[%s9 + $0x1740] sm:$0xff]
  %v7312 = vld [vmem:[%s9 + $0x1748] sm:$0xff]
  %v7313 = vld [vmem:[%s9 + $0x1750] sm:$0xff]
  %v7314 = vld [vmem:[%s9 + $0x1758] sm:$0xff]
  %v7315 = vld [vmem:[%s9 + $0x1760] sm:$0xff]
  %v7316 = vld [vmem:[%s9 + $0x1768] sm:$0xff]
  %v7317 = vld [vmem:[%s9 + $0x1770] sm:$0xff]
  %v7318 = vld [vmem:[%s9 + $0x1778] sm:$0xff]
  %v7319 = vld [vmem:[%s9 + $0x1780] sm:$0xff]
  %v7320 = vld [vmem:[%s9 + $0x1788] sm:$0xff]
  %v7321 = vld [vmem:[%s9 + $0x1790] sm:$0xff]
  %v7322 = vld [vmem:[%s9 + $0x1798] sm:$0xff]
  %v7323 = vld [vmem:[%s9 + $0x17a0] sm:$0xff]
  %v7324 = vld [vmem:[%s9 + $0x17a8] sm:$0xff]
  %v7325 = vld [vmem:[%s9 + $0x17b0] sm:$0xff]
  %v7326 = vld [vmem:[%s9 + $0x17b8] sm:$0xff]
  %v7327 = vld [vmem:[%s9 + $0x17c0] sm:$0xff]
  %v7328 = vld [vmem:[%s9 + $0x17c8] sm:$0xff]
  %v7329 = vld [vmem:[%s9 + $0x17d0] sm:$0xff]
  %v7330 = vld [vmem:[%s9 + $0x17d8] sm:$0xff]
  %v7331 = vld [vmem:[%s9 + $0x17e0] sm:$0xff]
  %v7332 = vld [vmem:[%s9 + $0x17e8] sm:$0xff]
  %v7333 = vld [vmem:[%s9 + $0x17f0] sm:$0xff]
  %v7334 = vld [vmem:[%s9 + $0x17f8] sm:$0xff]
  %v7335 = vld [vmem:[%s9 + $0x1800] sm:$0xff]
  %v7336 = vld [vmem:[%s9 + $0x1808] sm:$0xff]
  %v7337 = vld [vmem:[%s9 + $0x1810] sm:$0xff]
  %v7338 = vld [vmem:[%s9 + $0x1818] sm:$0xff]
  %v7339 = vld [vmem:[%s9 + $0x1820] sm:$0xff]
  %v7340 = vld [vmem:[%s9 + $0x1828] sm:$0xff]
  %v7341 = vld [vmem:[%s9 + $0x1830] sm:$0xff]
  %v7342 = vld [vmem:[%s9 + $0x1838] sm:$0xff]
  %v7343 = vld [vmem:[%s9 + $0x1840] sm:$0xff]
  %v7344 = vld [vmem:[%s9 + $0x1848] sm:$0xff]
  %v7345 = vld [vmem:[%s9 + $0x1850] sm:$0xff]
  %v7346 = vld [vmem:[%s9 + $0x1858] sm:$0xff]
  %v7347 = vld [vmem:[%s9 + $0x1860] sm:$0xff]
  %v7348 = vld [vmem:[%s9 + $0x1868] sm:$0xff]
  %v7349 = vld [vmem:[%s9 + $0x1870] sm:$0xff]
  %v7350 = vld [vmem:[%s9 + $0x1878] sm:$0xff]
  %v7351 = vld [vmem:[%s9 + $0x1880] sm:$0xff]
  %v7352 = vld [vmem:[%s9 + $0x1888] sm:$0xff]
  %v7353 = vld [vmem:[%s9 + $0x1890] sm:$0xff]
  %v7354 = vld [vmem:[%s9 + $0x1898] sm:$0xff]
  %v7355 = vld [vmem:[%s9 + $0x18a0] sm:$0xff]
  %v7356 = vld [vmem:[%s9 + $0x18a8] sm:$0xff]
  %v7357 = vld [vmem:[%s9 + $0x18b0] sm:$0xff]
  %v7358 = vld [vmem:[%s9 + $0x18b8] sm:$0xff]
  %v7359 = vld [vmem:[%s9 + $0x18c0] sm:$0xff]
  %v7360 = vld [vmem:[%s9 + $0x18c8] sm:$0xff]
  %v7361 = vld [vmem:[%s9 + $0x18d0] sm:$0xff]
  %v7362 = vld [vmem:[%s9 + $0x18d8] sm:$0xff]
  %v7363 = vld [vmem:[%s9 + $0x18e0] sm:$0xff]
  %v7364 = vld [vmem:[%s9 + $0x18e8] sm:$0xff]
  %v7365 = vld [vmem:[%s9 + $0x18f0] sm:$0xff]
  %v7366 = vld [vmem:[%s9 + $0x18f8] sm:$0xff]
  %v7367 = vld [vmem:[%s9 + $0x1900] sm:$0xff]
  %v7368 = vld [vmem:[%s9 + $0x1908] sm:$0xff]
  %v7369 = vld [vmem:[%s9 + $0x1910] sm:$0xff]
  %v7370 = vld [vmem:[%s9 + $0x1918] sm:$0xff]
  %v7371 = vld [vmem:[%s9 + $0x1920] sm:$0xff]
  %v7372 = vld [vmem:[%s9 + $0x1928] sm:$0xff]
  %v7373 = vld [vmem:[%s9 + $0x1930] sm:$0xff]
  %v7374 = vld [vmem:[%s9 + $0x1938] sm:$0xff]
  %v7375 = vld [vmem:[%s9 + $0x1940] sm:$0xff]
  %v7376 = vld [vmem:[%s9 + $0x1948] sm:$0xff]
  %v7377 = vld [vmem:[%s9 + $0x1950] sm:$0xff]
  %v7378 = vld [vmem:[%s9 + $0x1958] sm:$0xff]
  %v7379 = vld [vmem:[%s9 + $0x1960] sm:$0xff]
  %v7380 = vld [vmem:[%s9 + $0x1968] sm:$0xff]
  %v7381 = vld [vmem:[%s9 + $0x1970] sm:$0xff]
  %v7382 = vld [vmem:[%s9 + $0x1978] sm:$0xff]
  %v7383 = vld [vmem:[%s9 + $0x1980] sm:$0xff]
  %v7384 = vld [vmem:[%s9 + $0x1988] sm:$0xff]
  %v7385 = vld [vmem:[%s9 + $0x1990] sm:$0xff]
  %v7386 = vld [vmem:[%s9 + $0x1998] sm:$0xff]
  %v7387 = vld [vmem:[%s9 + $0x19a0] sm:$0xff]
  %v7388 = vld [vmem:[%s9 + $0x19a8] sm:$0xff]
  %v7389 = vld [vmem:[%s9 + $0x19b0] sm:$0xff]
  %v7390 = vld [vmem:[%s9 + $0x19b8] sm:$0xff]
  %v7391 = vld [vmem:[%s9 + $0x19c0] sm:$0xff]
  %v7392 = vld [vmem:[%s9 + $0x19c8] sm:$0xff]
  %v7393 = vld [vmem:[%s9 + $0x19d0] sm:$0xff]
  %v7394 = vld [vmem:[%s9 + $0x19d8] sm:$0xff]
  %v7395 = vld [vmem:[%s9 + $0x19e0] sm:$0xff]
  %v7396 = vld [vmem:[%s9 + $0x19e8] sm:$0xff]
  %v7397 = vld [vmem:[%s9 + $0x19f0] sm:$0xff]
  %v7398 = vld [vmem:[%s9 + $0x19f8] sm:$0xff]
  %v7399 = vld [vmem:[%s9 + $0x1a00] sm:$0xff]
  %v7400 = vld [vmem:[%s9 + $0x1a08] sm:$0xff]
  %v7401 = vld [vmem:[%s9 + $0x1a10] sm:$0xff]
  %v7402 = vld [vmem:[%s9 + $0x1a18] sm:$0xff]
  %v7403 = vld [vmem:[%s9 + $0x1a20] sm:$0xff]
  %v7404 = vld [vmem:[%s9 + $0x1a28] sm:$0xff]
  %v7405 = vld [vmem:[%s9 + $0x1a30] sm:$0xff]
  %v7406 = vld [vmem:[%s9 + $0x1a38] sm:$0xff]
  %v7407 = vld [vmem:[%s9 + $0x1a40] sm:$0xff]
  %v7408 = vld [vmem:[%s9 + $0x1a48] sm:$0xff]
  %v7409 = vld [vmem:[%s9 + $0x1a50] sm:$0xff]
  %v7410 = vld [vmem:[%s9 + $0x1a58] sm:$0xff]
  %v7411 = vld [vmem:[%s9 + $0x1a60] sm:$0xff]
  %v7412 = vld [vmem:[%s9 + $0x1a68] sm:$0xff]
  %v7413 = vld [vmem:[%s9 + $0x1a70] sm:$0xff]
  %v7414 = vld [vmem:[%s9 + $0x1a78] sm:$0xff]
  %v7415 = vld [vmem:[%s9 + $0x1a80] sm:$0xff]
  %v7416 = vld [vmem:[%s9 + $0x1a88] sm:$0xff]
  %v7417 = vld [vmem:[%s9 + $0x1a90] sm:$0xff]
  %v7418 = vld [vmem:[%s9 + $0x1a98] sm:$0xff]
  %v7419 = vld [vmem:[%s9 + $0x1aa0] sm:$0xff]
  %v7420 = vld [vmem:[%s9 + $0x1aa8] sm:$0xff]
  %v7421 = vld [vmem:[%s9 + $0x1ab0] sm:$0xff]
  %v7422 = vld [vmem:[%s9 + $0x1ab8] sm:$0xff]
  %v7423 = vld [vmem:[%s9 + $0x1ac0] sm:$0xff]
  %v7424 = vld [vmem:[%s9 + $0x1ac8] sm:$0xff]
  %v7425 = vld [vmem:[%s9 + $0x1ad0] sm:$0xff]
  %v7426 = vld [vmem:[%s9 + $0x1ad8] sm:$0xff]
  %v7427 = vld [vmem:[%s9 + $0x1ae0] sm:$0xff]
  %v7428 = vld [vmem:[%s9 + $0x1ae8] sm:$0xff]
  %v7429 = vld [vmem:[%s9 + $0x1af0] sm:$0xff]
  %v7430 = vld [vmem:[%s9 + $0x1af8] sm:$0xff]
  %v7431 = vld [vmem:[%s9 + $0x1b00] sm:$0xff]
  %v7432 = vld [vmem:[%s9 + $0x1b08] sm:$0xff]
  %v7433 = vld [vmem:[%s9 + $0x1b10] sm:$0xff]
  %v7434 = vld [vmem:[%s9 + $0x1b18] sm:$0xff]
  %v7435 = vld [vmem:[%s9 + $0x1b20] sm:$0xff]
  %v7436 = vld [vmem:[%s9 + $0x1b28] sm:$0xff]
  %v7437 = vld [vmem:[%s9 + $0x1b30] sm:$0xff]
  %v7438 = vld [vmem:[%s9 + $0x1b38] sm:$0xff]
  %v7439 = vld [vmem:[%s9 + $0x1b40] sm:$0xff]
  %v7440 = vld [vmem:[%s9 + $0x1b48] sm:$0xff]
  %v7441 = vld [vmem:[%s9 + $0x1b50] sm:$0xff]
  %v7442 = vld [vmem:[%s9 + $0x1b58] sm:$0xff]
  %v7443 = vld [vmem:[%s9 + $0x1b60] sm:$0xff]
  %v7444 = vld [vmem:[%s9 + $0x1b68] sm:$0xff]
  %v7445 = vld [vmem:[%s9 + $0x1b70] sm:$0xff]
  %v7446 = vld [vmem:[%s9 + $0x1b78] sm:$0xff]
  %v7447 = vld [vmem:[%s9 + $0x1b80] sm:$0xff]
  %v7448 = vld [vmem:[%s9 + $0x1b88] sm:$0xff]
  %v7449 = vld [vmem:[%s9 + $0x1b90] sm:$0xff]
  %v7450 = vld [vmem:[%s9 + $0x1b98] sm:$0xff]
  %v7451 = vld [vmem:[%s9 + $0x1ba0] sm:$0xff]
  %v7452 = vld [vmem:[%s9 + $0x1ba8] sm:$0xff]
  %v7453 = vld [vmem:[%s9 + $0x1bb0] sm:$0xff]
  %v7454 = vld [vmem:[%s9 + $0x1bb8] sm:$0xff]
  %v7455 = vld [vmem:[%s9 + $0x1bc0] sm:$0xff]
  %v7456 = vld [vmem:[%s9 + $0x1bc8] sm:$0xff]
  %v7457 = vld [vmem:[%s9 + $0x1bd0] sm:$0xff]
  %v7458 = vld [vmem:[%s9 + $0x1bd8] sm:$0xff]
  %v7459 = vld [vmem:[%s9 + $0x1be0] sm:$0xff]
  %v7460 = vld [vmem:[%s9 + $0x1be8] sm:$0xff]
  %v7461 = vld [vmem:[%s9 + $0x1bf0] sm:$0xff]
  %v7462 = vld [vmem:[%s9 + $0x1bf8] sm:$0xff]
  %v7463 = vld [vmem:[%s9 + $0x1c00] sm:$0xff]
  %v7464 = vld [vmem:[%s9 + $0x1c08] sm:$0xff]
  %v7465 = vld [vmem:[%s9 + $0x1c10] sm:$0xff]
  %v7466 = vld [vmem:[%s9 + $0x1c18] sm:$0xff]
  %v7467 = vld [vmem:[%s9 + $0x1c20] sm:$0xff]
  %v7468 = vld [vmem:[%s9 + $0x1c28] sm:$0xff]
  %v7469 = vld [vmem:[%s9 + $0x1c30] sm:$0xff]
  %v7470 = vld [vmem:[%s9 + $0x1c38] sm:$0xff]
  %v7471 = vld [vmem:[%s9 + $0x1c40] sm:$0xff]
  %v7472 = vld [vmem:[%s9 + $0x1c48] sm:$0xff]
  %v7473 = vld [vmem:[%s9 + $0x1c50] sm:$0xff]
  %v7474 = vld [vmem:[%s9 + $0x1c58] sm:$0xff]
  %v7475 = vld [vmem:[%s9 + $0x1c60] sm:$0xff]
  %v7476 = vld [vmem:[%s9 + $0x1c68] sm:$0xff]
  %v7477 = vld [vmem:[%s9 + $0x1c70] sm:$0xff]
  %v7478 = vld [vmem:[%s9 + $0x1c78] sm:$0xff]
  %v7479 = vld [vmem:[%s9 + $0x1c80] sm:$0xff]
  %v7480 = vld [vmem:[%s9 + $0x1c88] sm:$0xff]
  %v7481 = vld [vmem:[%s9 + $0x1c90] sm:$0xff]
  %v7482 = vld [vmem:[%s9 + $0x1c98] sm:$0xff]
  %v7483 = vld [vmem:[%s9 + $0x1ca0] sm:$0xff]
  %v7484 = vld [vmem:[%s9 + $0x1ca8] sm:$0xff]
  %v7485 = vld [vmem:[%s9 + $0x1cb0] sm:$0xff]
  %v7486 = vld [vmem:[%s9 + $0x1cb8] sm:$0xff]
  %v7487 = vld [vmem:[%s9 + $0x1cc0] sm:$0xff]
  %v7488 = vld [vmem:[%s9 + $0x1cc8] sm:$0xff]
  %v7489 = vld [vmem:[%s9 + $0x1cd0] sm:$0xff]
  %v7490 = vld [vmem:[%s9 + $0x1cd8] sm:$0xff]
  %v7491 = vld [vmem:[%s9 + $0x1ce0] sm:$0xff]
  %v7492 = vld [vmem:[%s9 + $0x1ce8] sm:$0xff]
  %v7493 = vld [vmem:[%s9 + $0x1cf0] sm:$0xff]
  %v7494 = vld [vmem:[%s9 + $0x1cf8] sm:$0xff]
  %v7495 = vld [vmem:[%s9 + $0x1d00] sm:$0xff]
  %v7496 = vld [vmem:[%s9 + $0x1d08] sm:$0xff]
  %v7497 = vld [vmem:[%s9 + $0x1d10] sm:$0xff]
  %v7498 = vld [vmem:[%s9 + $0x1d18] sm:$0xff]
  %v7499 = vld [vmem:[%s9 + $0x1d20] sm:$0xff]
  %v7500 = vld [vmem:[%s9 + $0x1d28] sm:$0xff]
  %v7501 = vld [vmem:[%s9 + $0x1d30] sm:$0xff]
  %v7502 = vld [vmem:[%s9 + $0x1d38] sm:$0xff]
  %v7503 = vld [vmem:[%s9 + $0x1d40] sm:$0xff]
  %v7504 = vld [vmem:[%s9 + $0x1d48] sm:$0xff]
  %v7505 = vld [vmem:[%s9 + $0x1d50] sm:$0xff]
  %v7506 = vld [vmem:[%s9 + $0x1d58] sm:$0xff]
  %v7507 = vld [vmem:[%s9 + $0x1d60] sm:$0xff]
  %v7508 = vld [vmem:[%s9 + $0x1d68] sm:$0xff]
  %v7509 = vld [vmem:[%s9 + $0x1d70] sm:$0xff]
  %v7510 = vld [vmem:[%s9 + $0x1d78] sm:$0xff]
  %v7511 = vld [vmem:[%s9 + $0x1d80] sm:$0xff]
  %v7512 = vld [vmem:[%s9 + $0x1d88] sm:$0xff]
  %v7513 = vld [vmem:[%s9 + $0x1d90] sm:$0xff]
  %v7514 = vld [vmem:[%s9 + $0x1d98] sm:$0xff]
  %v7515 = vld [vmem:[%s9 + $0x1da0] sm:$0xff]
  %v7516 = vld [vmem:[%s9 + $0x1da8] sm:$0xff]
  %v7517 = vld [vmem:[%s9 + $0x1db0] sm:$0xff]
  %v7518 = vld [vmem:[%s9 + $0x1db8] sm:$0xff]
  %v7519 = vld [vmem:[%s9 + $0x1dc0] sm:$0xff]
  %v7520 = vld [vmem:[%s9 + $0x1dc8] sm:$0xff]
  %v7521 = vld [vmem:[%s9 + $0x1dd0] sm:$0xff]
  %v7522 = vld [vmem:[%s9 + $0x1dd8] sm:$0xff]
  %v7523 = vld [vmem:[%s9 + $0x1de0] sm:$0xff]
  %v7524 = vld [vmem:[%s9 + $0x1de8] sm:$0xff]
  %v7525 = vld [vmem:[%s9 + $0x1df0] sm:$0xff]
  %v7526 = vld [vmem:[%s9 + $0x1df8] sm:$0xff]
  %v7527 = vld [vmem:[%s9 + $0x1e00] sm:$0xff]
  %v7528 = vld [vmem:[%s9 + $0x1e08] sm:$0xff]
  %v7529 = vld [vmem:[%s9 + $0x1e10] sm:$0xff]
  %v7530 = vld [vmem:[%s9 + $0x1e18] sm:$0xff]
  %v7531 = vld [vmem:[%s9 + $0x1e20] sm:$0xff]
  %v7532 = vld [vmem:[%s9 + $0x1e28] sm:$0xff]
  %v7533 = vld [vmem:[%s9 + $0x1e30] sm:$0xff]
  %v7534 = vld [vmem:[%s9 + $0x1e38] sm:$0xff]
  %v7535 = vld [vmem:[%s9 + $0x1e40] sm:$0xff]
  %v7536 = vld [vmem:[%s9 + $0x1e48] sm:$0xff]
  %v7537 = vld [vmem:[%s9 + $0x1e50] sm:$0xff]
  %v7538 = vld [vmem:[%s9 + $0x1e58] sm:$0xff]
  %v7539 = vld [vmem:[%s9 + $0x1e60] sm:$0xff]
  %v7540 = vld [vmem:[%s9 + $0x1e68] sm:$0xff]
  %v7541 = vld [vmem:[%s9 + $0x1e70] sm:$0xff]
  %v7542 = vld [vmem:[%s9 + $0x1e78] sm:$0xff]
  %v7543 = vld [vmem:[%s9 + $0x1e80] sm:$0xff]
  %v7544 = vld [vmem:[%s9 + $0x1e88] sm:$0xff]
  %v7545 = vld [vmem:[%s9 + $0x1e90] sm:$0xff]
  %v7546 = vld [vmem:[%s9 + $0x1e98] sm:$0xff]
  %v7547 = vld [vmem:[%s9 + $0x1ea0] sm:$0xff]
  %v7548 = vld [vmem:[%s9 + $0x1ea8] sm:$0xff]
  %v7549 = vld [vmem:[%s9 + $0x1eb0] sm:$0xff]
  %v7550 = vld [vmem:[%s9 + $0x1eb8] sm:$0xff]
  %v7551 = vld [vmem:[%s9 + $0x1ec0] sm:$0xff]
  %v7552 = vld [vmem:[%s9 + $0x1ec8] sm:$0xff]
  %v7553 = vld [vmem:[%s9 + $0x1ed0] sm:$0xff]
  %v7554 = vld [vmem:[%s9 + $0x1ed8] sm:$0xff]
  %v7555 = vld [vmem:[%s9 + $0x1ee0] sm:$0xff]
  %v7556 = vld [vmem:[%s9 + $0x1ee8] sm:$0xff]
  %v7557 = vld [vmem:[%s9 + $0x1ef0] sm:$0xff]
  %v7558 = vld [vmem:[%s9 + $0x1ef8] sm:$0xff]
  %v7559 = vld [vmem:[%s9 + $0x1f00] sm:$0xff]
  %v7560 = vld [vmem:[%s9 + $0x1f08] sm:$0xff]
  %v7561 = vld [vmem:[%s9 + $0x1f10] sm:$0xff]
  %v7562 = vld [vmem:[%s9 + $0x1f18] sm:$0xff]
  %v7563 = vld [vmem:[%s9 + $0x1f20] sm:$0xff]
  %v7564 = vld [vmem:[%s9 + $0x1f28] sm:$0xff]
  %v7565 = vld [vmem:[%s9 + $0x1f30] sm:$0xff]
  %v7566 = vld [vmem:[%s9 + $0x1f38] sm:$0xff]
  %v7567 = vld [vmem:[%s9 + $0x1f40] sm:$0xff]
  %v7568 = vld [vmem:[%s9 + $0x1f48] sm:$0xff]
  %v7569 = vld [vmem:[%s9 + $0x1f50] sm:$0xff]
  %v7570 = vld [vmem:[%s9 + $0x1f58] sm:$0xff]
  %v7571 = vld [vmem:[%s9 + $0x1f60] sm:$0xff]
  %v7572 = vld [vmem:[%s9 + $0x1f68] sm:$0xff]
  %v7573 = vld [vmem:[%s9 + $0x1f70] sm:$0xff]
  %v7574 = vld [vmem:[%s9 + $0x1f78] sm:$0xff]
  %v7575 = vld [vmem:[%s9 + $0x1f80] sm:$0xff]
  %v7576 = vld [vmem:[%s9 + $0x1f88] sm:$0xff]
  %v7577 = vld [vmem:[%s9 + $0x1f90] sm:$0xff]
  %v7578 = vld [vmem:[%s9 + $0x1f98] sm:$0xff]
  %v7579 = vld [vmem:[%s9 + $0x1fa0] sm:$0xff]
  %v7580 = vld [vmem:[%s9 + $0x1fa8] sm:$0xff]
  %v7581 = vld [vmem:[%s9 + $0x1fb0] sm:$0xff]
  %v7582 = vld [vmem:[%s9 + $0x1fb8] sm:$0xff]
  %v7583 = vld [vmem:[%s9 + $0x1fc0] sm:$0xff]
  %v7584 = vld [vmem:[%s9 + $0x1fc8] sm:$0xff]
  %v7585 = vld [vmem:[%s9 + $0x1fd0] sm:$0xff]
  %v7586 = vld [vmem:[%s9 + $0x1fd8] sm:$0xff]
  %v7587 = vld [vmem:[%s9 + $0x1fe0] sm:$0xff]
  %v7588 = vld [vmem:[%s9 + $0x1fe8] sm:$0xff]
  %v7589 = vld [vmem:[%s9 + $0x1ff0] sm:$0xff]
  %v7590 = vld [vmem:[%s9 + $0x1ff8] sm:$0xff]
  %v7591 = vld [vmem:[%s9 + $0x2000] sm:$0xff]
  %v7592 = vld [vmem:[%s9 + $0x2008] sm:$0xff]
  %v7593 = vld [vmem:[%s9 + $0x2010] sm:$0xff]
  %v7594 = vld [vmem:[%s9 + $0x2018] sm:$0xff]
  %v7595 = vld [vmem:[%s9 + $0x2020] sm:$0xff]
  %v7596 = vld [vmem:[%s9 + $0x2028] sm:$0xff]
  %v7597 = vld [vmem:[%s9 + $0x2030] sm:$0xff]
  %v7598 = vld [vmem:[%s9 + $0x2038] sm:$0xff]
  %v7599 = vld [vmem:[%s9 + $0x2040] sm:$0xff]
  %v7600 = vld [vmem:[%s9 + $0x2048] sm:$0xff]
  %v7601 = vld [vmem:[%s9 + $0x2050] sm:$0xff]
  %v7602 = vld [vmem:[%s9 + $0x2058] sm:$0xff]
  %v7603 = vld [vmem:[%s9 + $0x2060] sm:$0xff]
  %v7604 = vld [vmem:[%s9 + $0x2068] sm:$0xff]
  %v7605 = vld [vmem:[%s9 + $0x2070] sm:$0xff]
  %v7606 = vld [vmem:[%s9 + $0x2078] sm:$0xff]
  %v7607 = vld [vmem:[%s9 + $0x2080] sm:$0xff]
  %v7608 = vld [vmem:[%s9 + $0x2088] sm:$0xff]
  %v7609 = vld [vmem:[%s9 + $0x2090] sm:$0xff]
  %v7610 = vld [vmem:[%s9 + $0x2098] sm:$0xff]
  %v7611 = vld [vmem:[%s9 + $0x20a0] sm:$0xff]
  %v7612 = vld [vmem:[%s9 + $0x20a8] sm:$0xff]
  %v7613 = vld [vmem:[%s9 + $0x20b0] sm:$0xff]
  %v7614 = vld [vmem:[%s9 + $0x20b8] sm:$0xff]
  %v7615 = vld [vmem:[%s9 + $0x20c0] sm:$0xff]
  %v7616 = vld [vmem:[%s9 + $0x20c8] sm:$0xff]
  %v7617 = vld [vmem:[%s9 + $0x20d0] sm:$0xff]
  %v7618 = vld [vmem:[%s9 + $0x20d8] sm:$0xff]
  %v7619 = vld [vmem:[%s9 + $0x20e0] sm:$0xff]
  %v7620 = vld [vmem:[%s9 + $0x20e8] sm:$0xff]
  %v7621 = vld [vmem:[%s9 + $0x20f0] sm:$0xff]
  %v7622 = vld [vmem:[%s9 + $0x20f8] sm:$0xff]
  %v7623 = vld [vmem:[%s9 + $0x2100] sm:$0xff]
  %v7624 = vld [vmem:[%s9 + $0x2108] sm:$0xff]
  %v7625 = vld [vmem:[%s9 + $0x2110] sm:$0xff]
  %v7626 = vld [vmem:[%s9 + $0x2118] sm:$0xff]
  %v7627 = vld [vmem:[%s9 + $0x2120] sm:$0xff]
  %v7628 = vld [vmem:[%s9 + $0x2128] sm:$0xff]
  %v7629 = vld [vmem:[%s9 + $0x2130] sm:$0xff]
  %v7630 = vld [vmem:[%s9 + $0x2138] sm:$0xff]
  %v7631 = vld [vmem:[%s9 + $0x2140] sm:$0xff]
  %v7632 = vld [vmem:[%s9 + $0x2148] sm:$0xff]
  %v7633 = vld [vmem:[%s9 + $0x2150] sm:$0xff]
  %v7634 = vld [vmem:[%s9 + $0x2158] sm:$0xff]
  %v7635 = vld [vmem:[%s9 + $0x2160] sm:$0xff]
  %v7636 = vld [vmem:[%s9 + $0x2168] sm:$0xff]
  %v7637 = vld [vmem:[%s9 + $0x2170] sm:$0xff]
  %v7638 = vld [vmem:[%s9 + $0x2178] sm:$0xff]
  %v7639 = vld [vmem:[%s9 + $0x2180] sm:$0xff]
  %v7640 = vld [vmem:[%s9 + $0x2188] sm:$0xff]
  %v7641 = vld [vmem:[%s9 + $0x2190] sm:$0xff]
  %v7642 = vld [vmem:[%s9 + $0x2198] sm:$0xff]
  %v7643 = vld [vmem:[%s9 + $0x21a0] sm:$0xff]
  %v7644 = vld [vmem:[%s9 + $0x21a8] sm:$0xff]
  %v7645 = vld [vmem:[%s9 + $0x21b0] sm:$0xff]
  %v7646 = vld [vmem:[%s9 + $0x21b8] sm:$0xff]
  %v7647 = vld [vmem:[%s9 + $0x21c0] sm:$0xff]
  %v7648 = vld [vmem:[%s9 + $0x21c8] sm:$0xff]
  %v7649 = vld [vmem:[%s9 + $0x21d0] sm:$0xff]
  %v7650 = vld [vmem:[%s9 + $0x21d8] sm:$0xff]
  %v7651 = vld [vmem:[%s9 + $0x21e0] sm:$0xff]
  %v7652 = vld [vmem:[%s9 + $0x21e8] sm:$0xff]
  %v7653 = vld [vmem:[%s9 + $0x21f0] sm:$0xff]
  %v7654 = vld [vmem:[%s9 + $0x21f8] sm:$0xff]
  %v7655 = vld [vmem:[%s9 + $0x2200] sm:$0xff]
  %v7656 = vld [vmem:[%s9 + $0x2208] sm:$0xff]
  %v7657 = vld [vmem:[%s9 + $0x2210] sm:$0xff]
  %v7658 = vld [vmem:[%s9 + $0x2218] sm:$0xff]
  %v7659 = vld [vmem:[%s9 + $0x2220] sm:$0xff]
  %v7660 = vld [vmem:[%s9 + $0x2228] sm:$0xff]
  %v7661 = vld [vmem:[%s9 + $0x2230] sm:$0xff]
  %v7662 = vld [vmem:[%s9 + $0x2238] sm:$0xff]
  %v7663 = vld [vmem:[%s9 + $0x2240] sm:$0xff]
  %v7664 = vld [vmem:[%s9 + $0x2248] sm:$0xff]
  %v7665 = vld [vmem:[%s9 + $0x2250] sm:$0xff]
  %v7666 = vld [vmem:[%s9 + $0x2258] sm:$0xff]
  %v7667 = vld [vmem:[%s9 + $0x2260] sm:$0xff]
  %v7668 = vld [vmem:[%s9 + $0x2268] sm:$0xff]
  %v7669 = vld [vmem:[%s9 + $0x2270] sm:$0xff]
  %v7670 = vld [vmem:[%s9 + $0x2278] sm:$0xff]
  %v7671 = vld [vmem:[%s9 + $0x2280] sm:$0xff]
  %v7672 = vld [vmem:[%s9 + $0x2288] sm:$0xff]
  %v7673 = vld [vmem:[%s9 + $0x2290] sm:$0xff]
  %v7674 = vld [vmem:[%s9 + $0x2298] sm:$0xff]
  %v7675 = vld [vmem:[%s9 + $0x22a0] sm:$0xff]
  %v7676 = vld [vmem:[%s9 + $0x22a8] sm:$0xff]
  %v7677 = vld [vmem:[%s9 + $0x22b0] sm:$0xff]
  %v7678 = vld [vmem:[%s9 + $0x22b8] sm:$0xff]
  %v7679 = vld [vmem:[%s9 + $0x22c0] sm:$0xff]
  %v7680 = vld [vmem:[%s9 + $0x22c8] sm:$0xff]
  %v7681 = vld [vmem:[%s9 + $0x22d0] sm:$0xff]
  %v7682 = vld [vmem:[%s9 + $0x22d8] sm:$0xff]
  %v7683 = vld [vmem:[%s9 + $0x22e0] sm:$0xff]
  %v7684 = vld [vmem:[%s9 + $0x22e8] sm:$0xff]
  %v7685 = vld [vmem:[%s9 + $0x22f0] sm:$0xff]
  %v7686 = vld [vmem:[%s9 + $0x22f8] sm:$0xff]
  %v7687 = vld [vmem:[%s9 + $0x2300] sm:$0xff]
  %v7688 = vld [vmem:[%s9 + $0x2308] sm:$0xff]
  %v7689 = vld [vmem:[%s9 + $0x2310] sm:$0xff]
  %v7690 = vld [vmem:[%s9 + $0x2318] sm:$0xff]
  %v7691 = vld [vmem:[%s9 + $0x2320] sm:$0xff]
  %v7692 = vld [vmem:[%s9 + $0x2328] sm:$0xff]
  %v7693 = vld [vmem:[%s9 + $0x2330] sm:$0xff]
  %v7694 = vld [vmem:[%s9 + $0x2338] sm:$0xff]
  %v7695 = vld [vmem:[%s9 + $0x2340] sm:$0xff]
  %v7696 = vld [vmem:[%s9 + $0x2348] sm:$0xff]
  %v7697 = vld [vmem:[%s9 + $0x2350] sm:$0xff]
  %v7698 = vld [vmem:[%s9 + $0x2358] sm:$0xff]
  %v7699 = vld [vmem:[%s9 + $0x2360] sm:$0xff]
  %v7700 = vld [vmem:[%s9 + $0x2368] sm:$0xff]
  %v7701 = vld [vmem:[%s9 + $0x2370] sm:$0xff]
  %v7702 = vld [vmem:[%s9 + $0x2378] sm:$0xff]
  %v7703 = vld [vmem:[%s9 + $0x2380] sm:$0xff]
  %v7704 = vld [vmem:[%s9 + $0x2388] sm:$0xff]
  %v7705 = vld [vmem:[%s9 + $0x2390] sm:$0xff]
  %v7706 = vld [vmem:[%s9 + $0x2398] sm:$0xff]
  %v7707 = vld [vmem:[%s9 + $0x23a0] sm:$0xff]
  %v7708 = vld [vmem:[%s9 + $0x23a8] sm:$0xff]
  %v7709 = vld [vmem:[%s9 + $0x23b0] sm:$0xff]
  %v7710 = vld [vmem:[%s9 + $0x23b8] sm:$0xff]
  %v7711 = vld [vmem:[%s9 + $0x23c0] sm:$0xff]
  %v7712 = vld [vmem:[%s9 + $0x23c8] sm:$0xff]
  %v7713 = vld [vmem:[%s9 + $0x23d0] sm:$0xff]
  %v7714 = vld [vmem:[%s9 + $0x23d8] sm:$0xff]
  %v7715 = vld [vmem:[%s9 + $0x23e0] sm:$0xff]
  %v7716 = vld [vmem:[%s9 + $0x23e8] sm:$0xff]
  %v7717 = vld [vmem:[%s9 + $0x23f0] sm:$0xff]
  %v7718 = vld [vmem:[%s9 + $0x23f8] sm:$0xff]
  %v7719 = vld [vmem:[%s9 + $0x2400] sm:$0xff]
  %v7720 = vld [vmem:[%s9 + $0x2408] sm:$0xff]
  %v7721 = vld [vmem:[%s9 + $0x2410] sm:$0xff]
  %v7722 = vld [vmem:[%s9 + $0x2418] sm:$0xff]
  %v7723 = vld [vmem:[%s9 + $0x2420] sm:$0xff]
  %v7724 = vld [vmem:[%s9 + $0x2428] sm:$0xff]
  %v7725 = vld [vmem:[%s9 + $0x2430] sm:$0xff]
  %v7726 = vld [vmem:[%s9 + $0x2438] sm:$0xff]
  %v7727 = vld [vmem:[%s9 + $0x2440] sm:$0xff]
  %v7728 = vld [vmem:[%s9 + $0x2448] sm:$0xff]
  %v7729 = vld [vmem:[%s9 + $0x2450] sm:$0xff]
  %v7730 = vld [vmem:[%s9 + $0x2458] sm:$0xff]
  %v7731 = vld [vmem:[%s9 + $0x2460] sm:$0xff]
  %v7732 = vld [vmem:[%s9 + $0x2468] sm:$0xff]
  %v7733 = vld [vmem:[%s9 + $0x2470] sm:$0xff]
  %v7734 = vld [vmem:[%s9 + $0x2478] sm:$0xff]
  %v7735 = vld [vmem:[%s9 + $0x2480] sm:$0xff]
  %v7736 = vld [vmem:[%s9 + $0x2488] sm:$0xff]
  %v7737 = vld [vmem:[%s9 + $0x2490] sm:$0xff]
  %v7738 = vld [vmem:[%s9 + $0x2498] sm:$0xff]
  %v7739 = vld [vmem:[%s9 + $0x24a0] sm:$0xff]
  %v7740 = vld [vmem:[%s9 + $0x24a8] sm:$0xff]
  %v7741 = vld [vmem:[%s9 + $0x24b0] sm:$0xff]
  %v7742 = vld [vmem:[%s9 + $0x24b8] sm:$0xff]
  %v7743 = vld [vmem:[%s9 + $0x24c0] sm:$0xff]
  %v7744 = vld [vmem:[%s9 + $0x24c8] sm:$0xff]
  %v7745 = vld [vmem:[%s9 + $0x24d0] sm:$0xff]
  %v7746 = vld [vmem:[%s9 + $0x24d8] sm:$0xff]
  %v7747 = vld [vmem:[%s9 + $0x24e0] sm:$0xff]
  %v7748 = vld [vmem:[%s9 + $0x24e8] sm:$0xff]
  %v7749 = vld [vmem:[%s9 + $0x24f0] sm:$0xff]
  %v7750 = vld [vmem:[%s9 + $0x24f8] sm:$0xff]
  %v7751 = vld [vmem:[%s9 + $0x2500] sm:$0xff]
  %v7752 = vld [vmem:[%s9 + $0x2508] sm:$0xff]
  %v7753 = vld [vmem:[%s9 + $0x2510] sm:$0xff]
  %v7754 = vld [vmem:[%s9 + $0x2518] sm:$0xff]
  %v7755 = vld [vmem:[%s9 + $0x2520] sm:$0xff]
  %v7756 = vld [vmem:[%s9 + $0x2528] sm:$0xff]
  %v7757 = vld [vmem:[%s9 + $0x2530] sm:$0xff]
  %v7758 = vld [vmem:[%s9 + $0x2538] sm:$0xff]
  %v7759 = vld [vmem:[%s9 + $0x2540] sm:$0xff]
  %v7760 = vld [vmem:[%s9 + $0x2548] sm:$0xff]
  %v7761 = vld [vmem:[%s9 + $0x2550] sm:$0xff]
  %v7762 = vld [vmem:[%s9 + $0x2558] sm:$0xff]
  %v7763 = vld [vmem:[%s9 + $0x2560] sm:$0xff]
  %v7764 = vld [vmem:[%s9 + $0x2568] sm:$0xff]
  %v7765 = vld [vmem:[%s9 + $0x2570] sm:$0xff]
  %v7766 = vld [vmem:[%s9 + $0x2578] sm:$0xff]
  %v7767 = vld [vmem:[%s9 + $0x2580] sm:$0xff]
  %v7768 = vld [vmem:[%s9 + $0x2588] sm:$0xff]
  %v7769 = vld [vmem:[%s9 + $0x2590] sm:$0xff]
  %v7770 = vld [vmem:[%s9 + $0x2598] sm:$0xff]
  %v7771 = vld [vmem:[%s9 + $0x25a0] sm:$0xff]
  %v7772 = vld [vmem:[%s9 + $0x25a8] sm:$0xff]
  %v7773 = vld [vmem:[%s9 + $0x25b0] sm:$0xff]
  %v7774 = vld [vmem:[%s9 + $0x25b8] sm:$0xff]
  %v7775 = vld [vmem:[%s9 + $0x25c0] sm:$0xff]
  %v7776 = vld [vmem:[%s9 + $0x25c8] sm:$0xff]
  %v7777 = vld [vmem:[%s9 + $0x25d0] sm:$0xff]
  %v7778 = vld [vmem:[%s9 + $0x25d8] sm:$0xff]
  %v7779 = vld [vmem:[%s9 + $0x25e0] sm:$0xff]
  %v7780 = vld [vmem:[%s9 + $0x25e8] sm:$0xff]
  %v7781 = vld [vmem:[%s9 + $0x25f0] sm:$0xff]
  %v7782 = vld [vmem:[%s9 + $0x25f8] sm:$0xff]
  %v7783 = vld [vmem:[%s9 + $0x2600] sm:$0xff]
  %v7784 = vld [vmem:[%s9 + $0x2608] sm:$0xff]
  %v7785 = vld [vmem:[%s9 + $0x2610] sm:$0xff]
  %v7786 = vld [vmem:[%s9 + $0x2618] sm:$0xff]
  %v7787 = vld [vmem:[%s9 + $0x2620] sm:$0xff]
  %v7788 = vld [vmem:[%s9 + $0x2628] sm:$0xff]
  %v7789 = vld [vmem:[%s9 + $0x2630] sm:$0xff]
  %v7790 = vld [vmem:[%s9 + $0x2638] sm:$0xff]
  %v7791 = vld [vmem:[%s9 + $0x2640] sm:$0xff]
  %v7792 = vld [vmem:[%s9 + $0x2648] sm:$0xff]
  %v7793 = vld [vmem:[%s9 + $0x2650] sm:$0xff]
  %v7794 = vld [vmem:[%s9 + $0x2658] sm:$0xff]
  %v7795 = vld [vmem:[%s9 + $0x2660] sm:$0xff]
  %v7796 = vld [vmem:[%s9 + $0x2668] sm:$0xff]
  %v7797 = vld [vmem:[%s9 + $0x2670] sm:$0xff]
  %v7798 = vld [vmem:[%s9 + $0x2678] sm:$0xff]
  %v7799 = vld [vmem:[%s9 + $0x2680] sm:$0xff]
  %v7800 = vld [vmem:[%s9 + $0x2688] sm:$0xff]
  %v7801 = vld [vmem:[%s9 + $0x2690] sm:$0xff]
  %v7802 = vld [vmem:[%s9 + $0x2698] sm:$0xff]
  %v7803 = vld [vmem:[%s9 + $0x26a0] sm:$0xff]
  %v7804 = vld [vmem:[%s9 + $0x26a8] sm:$0xff]
  %v7805 = vld [vmem:[%s9 + $0x26b0] sm:$0xff]
  %v7806 = vld [vmem:[%s9 + $0x26b8] sm:$0xff]
  %v7807 = vld [vmem:[%s9 + $0x26c0] sm:$0xff]
  %v7808 = vld [vmem:[%s9 + $0x26c8] sm:$0xff]
  %v7809 = vld [vmem:[%s9 + $0x26d0] sm:$0xff]
  %v7810 = vld [vmem:[%s9 + $0x26d8] sm:$0xff]
  %v7811 = vld [vmem:[%s9 + $0x26e0] sm:$0xff]
  %v7812 = vld [vmem:[%s9 + $0x26e8] sm:$0xff]
  %v7813 = vld [vmem:[%s9 + $0x26f0] sm:$0xff]
  %v7814 = vld [vmem:[%s9 + $0x26f8] sm:$0xff]
  %v7815 = vld [vmem:[%s9 + $0x2700] sm:$0xff]
  %v7816 = vld [vmem:[%s9 + $0x2708] sm:$0xff]
  %v7817 = vld [vmem:[%s9 + $0x2710] sm:$0xff]
  %v7818 = vld [vmem:[%s9 + $0x2718] sm:$0xff]
  %v7819 = vld [vmem:[%s9 + $0x2720] sm:$0xff]
  %v7820 = vld [vmem:[%s9 + $0x2728] sm:$0xff]
  %v7821 = vld [vmem:[%s9 + $0x2730] sm:$0xff]
  %v7822 = vld [vmem:[%s9 + $0x2738] sm:$0xff]
  %v7823 = vld [vmem:[%s9 + $0x2740] sm:$0xff]
  %v7824 = vld [vmem:[%s9 + $0x2748] sm:$0xff]
  %v7825 = vld [vmem:[%s9 + $0x2750] sm:$0xff]
  %v7826 = vld [vmem:[%s9 + $0x2758] sm:$0xff]
  %v7827 = vld [vmem:[%s9 + $0x2760] sm:$0xff]
  %v7828 = vld [vmem:[%s9 + $0x2768] sm:$0xff]
  %v7829 = vld [vmem:[%s9 + $0x2770] sm:$0xff]
  %v7830 = vld [vmem:[%s9 + $0x2778] sm:$0xff]
  %v7831 = vld [vmem:[%s9 + $0x2780] sm:$0xff]
  %v7832 = vld [vmem:[%s9 + $0x2788] sm:$0xff]
  %v7833 = vld [vmem:[%s9 + $0x2790] sm:$0xff]
  %v7834 = vld [vmem:[%s9 + $0x2798] sm:$0xff]
  %v7835 = vld [vmem:[%s9 + $0x27a0] sm:$0xff]
  %v7836 = vld [vmem:[%s9 + $0x27a8] sm:$0xff]
  %v7837 = vld [vmem:[%s9 + $0x27b0] sm:$0xff]
  %v7838 = vld [vmem:[%s9 + $0x27b8] sm:$0xff]
  %v7839 = vld [vmem:[%s9 + $0x27c0] sm:$0xff]
  %v7840 = vld [vmem:[%s9 + $0x27c8] sm:$0xff]
  %v7841 = vld [vmem:[%s9 + $0x27d0] sm:$0xff]
  %v7842 = vld [vmem:[%s9 + $0x27d8] sm:$0xff]
  %v7843 = vld [vmem:[%s9 + $0x27e0] sm:$0xff]
  %v7844 = vld [vmem:[%s9 + $0x27e8] sm:$0xff]
  %v7845 = vld [vmem:[%s9 + $0x27f0] sm:$0xff]
  %v7846 = vld [vmem:[%s9 + $0x27f8] sm:$0xff]
  %v7847 = vld [vmem:[%s9 + $0x2800] sm:$0xff]
  %v7848 = vld [vmem:[%s9 + $0x2808] sm:$0xff]
  %v7849 = vld [vmem:[%s9 + $0x2810] sm:$0xff]
  %v7850 = vld [vmem:[%s9 + $0x2818] sm:$0xff]
  %v7851 = vld [vmem:[%s9 + $0x2820] sm:$0xff]
  %v7852 = vld [vmem:[%s9 + $0x2828] sm:$0xff]
  %v7853 = vld [vmem:[%s9 + $0x2830] sm:$0xff]
  %v7854 = vld [vmem:[%s9 + $0x2838] sm:$0xff]
  %v7855 = vld [vmem:[%s9 + $0x2840] sm:$0xff]
  %v7856 = vld [vmem:[%s9 + $0x2848] sm:$0xff]
  %v7857 = vld [vmem:[%s9 + $0x2850] sm:$0xff]
  %v7858 = vld [vmem:[%s9 + $0x2858] sm:$0xff]
  %v7859 = vld [vmem:[%s9 + $0x2860] sm:$0xff]
  %v7860 = vld [vmem:[%s9 + $0x2868] sm:$0xff]
  %v7861 = vld [vmem:[%s9 + $0x2870] sm:$0xff]
  %v7862 = vld [vmem:[%s9 + $0x2878] sm:$0xff]
  %v7863 = vld [vmem:[%s9 + $0x2880] sm:$0xff]
  %v7864 = vld [vmem:[%s9 + $0x2888] sm:$0xff]
  %v7865 = vld [vmem:[%s9 + $0x2890] sm:$0xff]
  %v7866 = vld [vmem:[%s9 + $0x2898] sm:$0xff]
  %v7867 = vld [vmem:[%s9 + $0x28a0] sm:$0xff]
  %v7868 = vld [vmem:[%s9 + $0x28a8] sm:$0xff]
  %v7869 = vld [vmem:[%s9 + $0x28b0] sm:$0xff]
  %v7870 = vld [vmem:[%s9 + $0x28b8] sm:$0xff]
  %v7871 = vld [vmem:[%s9 + $0x28c0] sm:$0xff]
  %v7872 = vld [vmem:[%s9 + $0x28c8] sm:$0xff]
  %v7873 = vld [vmem:[%s9 + $0x28d0] sm:$0xff]
  %v7874 = vld [vmem:[%s9 + $0x28d8] sm:$0xff]
  %v7875 = vld [vmem:[%s9 + $0x28e0] sm:$0xff]
  %v7876 = vld [vmem:[%s9 + $0x28e8] sm:$0xff]
  %v7877 = vld [vmem:[%s9 + $0x28f0] sm:$0xff]
  %v7878 = vld [vmem:[%s9 + $0x28f8] sm:$0xff]
  %v7879 = vld [vmem:[%s9 + $0x2900] sm:$0xff]
  %v7880 = vld [vmem:[%s9 + $0x2908] sm:$0xff]
  %v7881 = vld [vmem:[%s9 + $0x2910] sm:$0xff]
  %v7882 = vld [vmem:[%s9 + $0x2918] sm:$0xff]
  %v7883 = vld [vmem:[%s9 + $0x2920] sm:$0xff]
  %v7884 = vld [vmem:[%s9 + $0x2928] sm:$0xff]
  %v7885 = vld [vmem:[%s9 + $0x2930] sm:$0xff]
  %v7886 = vld [vmem:[%s9 + $0x2938] sm:$0xff]
  %v7887 = vld [vmem:[%s9 + $0x2940] sm:$0xff]
  %v7888 = vld [vmem:[%s9 + $0x2948] sm:$0xff]
  %v7889 = vld [vmem:[%s9 + $0x2950] sm:$0xff]
  %v7890 = vld [vmem:[%s9 + $0x2958] sm:$0xff]
  %v7891 = vld [vmem:[%s9 + $0x2960] sm:$0xff]
  %v7892 = vld [vmem:[%s9 + $0x2968] sm:$0xff]
  %v7893 = vld [vmem:[%s9 + $0x2970] sm:$0xff]
  %v7894 = vld [vmem:[%s9 + $0x2978] sm:$0xff]
  %v7895 = vld [vmem:[%s9 + $0x2980] sm:$0xff]
  %v7896 = vld [vmem:[%s9 + $0x2988] sm:$0xff]
  %v7897 = vld [vmem:[%s9 + $0x2990] sm:$0xff]
  %v7898 = vld [vmem:[%s9 + $0x2998] sm:$0xff]
  %v7899 = vld [vmem:[%s9 + $0x29a0] sm:$0xff]
  %v7900 = vld [vmem:[%s9 + $0x29a8] sm:$0xff]
  %v7901 = vld [vmem:[%s9 + $0x29b0] sm:$0xff]
  %v7902 = vld [vmem:[%s9 + $0x29b8] sm:$0xff]
  %v7903 = vld [vmem:[%s9 + $0x29c0] sm:$0xff]
  %v7904 = vld [vmem:[%s9 + $0x29c8] sm:$0xff]
  %v7905 = vld [vmem:[%s9 + $0x29d0] sm:$0xff]
  %v7906 = vld [vmem:[%s9 + $0x29d8] sm:$0xff]
  %v7907 = vld [vmem:[%s9 + $0x29e0] sm:$0xff]
  %v7908 = vld [vmem:[%s9 + $0x29e8] sm:$0xff]
  %v7909 = vld [vmem:[%s9 + $0x29f0] sm:$0xff]
  %v7910 = vld [vmem:[%s9 + $0x29f8] sm:$0xff]
  %v7911 = vld [vmem:[%s9 + $0x2a00] sm:$0xff]
  %v7912 = vld [vmem:[%s9 + $0x2a08] sm:$0xff]
  %v7913 = vld [vmem:[%s9 + $0x2a10] sm:$0xff]
  %v7914 = vld [vmem:[%s9 + $0x2a18] sm:$0xff]
  %v7915 = vld [vmem:[%s9 + $0x2a20] sm:$0xff]
  %v7916 = vld [vmem:[%s9 + $0x2a28] sm:$0xff]
  %v7917 = vld [vmem:[%s9 + $0x2a30] sm:$0xff]
  %v7918 = vld [vmem:[%s9 + $0x2a38] sm:$0xff]
  %v7919 = vld [vmem:[%s9 + $0x2a40] sm:$0xff]
  %v7920 = vld [vmem:[%s9 + $0x2a48] sm:$0xff]
  %v7921 = vld [vmem:[%s9 + $0x2a50] sm:$0xff]
  %v7922 = vld [vmem:[%s9 + $0x2a58] sm:$0xff]
  %v7923 = vld [vmem:[%s9 + $0x2a60] sm:$0xff]
  %v7924 = vld [vmem:[%s9 + $0x2a68] sm:$0xff]
  %v7925 = vld [vmem:[%s9 + $0x2a70] sm:$0xff]
  %v7926 = vld [vmem:[%s9 + $0x2a78] sm:$0xff]
  %v7927 = vld [vmem:[%s9 + $0x2a80] sm:$0xff]
  %v7928 = vld [vmem:[%s9 + $0x2a88] sm:$0xff]
  %v7929 = vld [vmem:[%s9 + $0x2a90] sm:$0xff]
  %v7930 = vld [vmem:[%s9 + $0x2a98] sm:$0xff]
  %v7931 = vld [vmem:[%s9 + $0x2aa0] sm:$0xff]
  %v7932 = vld [vmem:[%s9 + $0x2aa8] sm:$0xff]
  %v7933 = vld [vmem:[%s9 + $0x2ab0] sm:$0xff]
  %v7934 = vld [vmem:[%s9 + $0x2ab8] sm:$0xff]
  %v7935 = vld [vmem:[%s9 + $0x2ac0] sm:$0xff]
  %v7936 = vld [vmem:[%s9 + $0x2ac8] sm:$0xff]
  %v7937 = vld [vmem:[%s9 + $0x2ad0] sm:$0xff]
  %v7938 = vld [vmem:[%s9 + $0x2ad8] sm:$0xff]
  %v7939 = vld [vmem:[%s10] sm:$0x7f]
  %v7941 = vlaneseq
  %v7942 = vshrl.u32 %v7941, 7
  %v7943 = vsub.s32 0, %v7942
  %v7944 = vrot.slane %v7939, %v7943
  %v7945 = vlaneseq
  %v7946 = vshrl.u32 %v7945, 7
  %v7947 = vsub.s32 1, %v7946
  %v7948 = vrot.slane %v7939, %v7947
  %v7949 = vlaneseq
  %v7950 = vshrl.u32 %v7949, 7
  %v7951 = vsub.s32 2, %v7950
  %v7952 = vrot.slane %v7939, %v7951
  %v7953 = vlaneseq
  %v7954 = vshrl.u32 %v7953, 7
  %v7955 = vsub.s32 3, %v7954
  %v7956 = vrot.slane %v7939, %v7955
  %v7957 = vlaneseq
  %v7958 = vshrl.u32 %v7957, 7
  %v7959 = vsub.s32 4, %v7958
  %v7960 = vrot.slane %v7939, %v7959
  %v7961 = vlaneseq
  %v7962 = vshrl.u32 %v7961, 7
  %v7963 = vsub.s32 5, %v7962
  %v7964 = vrot.slane %v7939, %v7963
  %v7965 = vlaneseq
  %v7966 = vshrl.u32 %v7965, 7
  %v7967 = vsub.s32 6, %v7966
  %v7968 = vrot.slane %v7939, %v7967
  %v7977 = vsel %vm151, %v6566, 0
  %7979 = vmatprep.subr.mxu0 %v6673
  %7980 = vmatpush1.msra.mxu0 %v6672
  %7981 = vmatprep.subr.mxu0 %v6666
  %7982 = vmatpush1.msra.mxu0 %v6665
  %7983 = vmatprep.subr.mxu0 %v6659
  %7984 = vmatpush1.msra.mxu0 %v6658
  %7985 = vmatprep.subr.mxu0 %v6652
  %7986 = vmatpush1.msra.mxu0 %v6651
  %7987 = vmatprep.subr.mxu0 %v6645
  %7988 = vmatpush1.msra.mxu0 %v6644
  %7989 = vmatprep.subr.mxu0 %v6638
  %7990 = vmatpush1.msra.mxu0 %v6637
  %7991 = vmatprep.subr.mxu0 %v6631
  %7992 = vmatpush1.msra.mxu0 %v6630
  %7993 = vmatprep.subr.mxu0 %v6624
  %7994 = vmatpush1.msra.mxu0 %v6623
  %7995 = vmatprep.subr.mxu0 %v6617
  %7996 = vmatpush1.msra.mxu0 %v6616
  %7997 = vmatprep.subr.mxu0 %v6610
  %7998 = vmatpush1.msra.mxu0 %v6609
  %7999 = vmatprep.subr.mxu0 %v6603
  %8000 = vmatpush1.msra.mxu0 %v6602
  %8001 = vmatprep.subr.mxu0 %v6596
  %8002 = vmatpush1.msra.mxu0 %v6595
  %8003 = vmatprep.subr.mxu0 %v6589
  %8004 = vmatpush1.msra.mxu0 %v6588
  %8005 = vmatprep.subr.mxu0 %v6582
  %8006 = vmatpush1.msra.mxu0 %v6581
  %8007 = vmatprep.subr.mxu0 %v6575
  %8008 = vmatpush1.msra.mxu0 %v6574
  %8009 = vmatprep.subr.mxu0 %v6568
  %8010 = vmatpush1.msra.mxu0 %v6567
  %8011 = vmatprep.subr.mxu0 %v6785
  %8012 = vmatpush2.msra.mxu0 %v6784
  %8013 = vmatprep.subr.mxu0 %v6778
  %8014 = vmatpush2.msra.mxu0 %v6777
  %8015 = vmatprep.subr.mxu0 %v6771
  %8016 = vmatpush2.msra.mxu0 %v6770
  %8017 = vmatprep.subr.mxu0 %v6764
  %8018 = vmatpush2.msra.mxu0 %v6763
  %8019 = vmatprep.subr.mxu0 %v6757
  %8020 = vmatpush2.msra.mxu0 %v6756
  %8021 = vmatprep.subr.mxu0 %v6750
  %8022 = vmatpush2.msra.mxu0 %v6749
  %8023 = vmatprep.subr.mxu0 %v6743
  %8024 = vmatpush2.msra.mxu0 %v6742
  %8025 = vmatprep.subr.mxu0 %v6736
  %8026 = vmatpush2.msra.mxu0 %v6735
  %8027 = vmatprep.subr.mxu0 %v6729
  %8028 = vmatpush2.msra.mxu0 %v6728
  %8029 = vmatprep.subr.mxu0 %v6722
  %8030 = vmatpush2.msra.mxu0 %v6721
  %8031 = vmatprep.subr.mxu0 %v6715
  %8032 = vmatpush2.msra.mxu0 %v6714
  %8033 = vmatprep.subr.mxu0 %v6708
  %8034 = vmatpush2.msra.mxu0 %v6707
  %8035 = vmatprep.subr.mxu0 %v6701
  %8036 = vmatpush2.msra.mxu0 %v6700
  %8037 = vmatprep.subr.mxu0 %v6694
  %8038 = vmatpush2.msra.mxu0 %v6693
  %8039 = vmatprep.subr.mxu0 %v6687
  %8040 = vmatpush2.msra.mxu0 %v6686
  %8041 = vmatprep.subr.mxu0 %v6680
  %8042 = vmatpush2.msra.mxu0 %v6679
  %8043 = vmatprep.mubr.f32.mxu0 %v6555
  %8044 = vmatmul.mubr.f32.gmra.mxu0 %v6554
  %v8045 = vpop.f32.mrf.mxu0
  %v8046 = vadd.f32 %v7944, %v8045
  %v8047 = vpop.f32.mrf.mxu0
  %v8048 = vadd.f32 %v7948, %v8047
  %8049 = vdwg.mxu0
  %8050 = vmatprep.subr.mxu0 %v6897
  %8051 = vmatpush1.msra.mxu0 %v6896
  %8052 = vmatprep.subr.mxu0 %v6890
  %8053 = vmatpush1.msra.mxu0 %v6889
  %8054 = vmatprep.subr.mxu0 %v6883
  %8055 = vmatpush1.msra.mxu0 %v6882
  %8056 = vmatprep.subr.mxu0 %v6876
  %8057 = vmatpush1.msra.mxu0 %v6875
  %8058 = vmatprep.subr.mxu0 %v6869
  %8059 = vmatpush1.msra.mxu0 %v6868
  %8060 = vmatprep.subr.mxu0 %v6862
  %8061 = vmatpush1.msra.mxu0 %v6861
  %8062 = vmatprep.subr.mxu0 %v6855
  %8063 = vmatpush1.msra.mxu0 %v6854
  %8064 = vmatprep.subr.mxu0 %v6848
  %8065 = vmatpush1.msra.mxu0 %v6847
  %8066 = vmatprep.subr.mxu0 %v6841
  %8067 = vmatpush1.msra.mxu0 %v6840
  %8068 = vmatprep.subr.mxu0 %v6834
  %8069 = vmatpush1.msra.mxu0 %v6833
  %8070 = vmatprep.subr.mxu0 %v6827
  %8071 = vmatpush1.msra.mxu0 %v6826
  %8072 = vmatprep.subr.mxu0 %v6820
  %8073 = vmatpush1.msra.mxu0 %v6819
  %8074 = vmatprep.subr.mxu0 %v6813
  %8075 = vmatpush1.msra.mxu0 %v6812
  %8076 = vmatprep.subr.mxu0 %v6806
  %8077 = vmatpush1.msra.mxu0 %v6805
  %8078 = vmatprep.subr.mxu0 %v6799
  %8079 = vmatpush1.msra.mxu0 %v6798
  %8080 = vmatprep.subr.mxu0 %v6792
  %8081 = vmatpush1.msra.mxu0 %v6791
  %8082 = vmatprep.subr.mxu0 %v7009
  %8083 = vmatpush2.msra.mxu0 %v7008
  %8084 = vmatprep.subr.mxu0 %v7002
  %8085 = vmatpush2.msra.mxu0 %v7001
  %8086 = vmatprep.subr.mxu0 %v6995
  %8087 = vmatpush2.msra.mxu0 %v6994
  %8088 = vmatprep.subr.mxu0 %v6988
  %8089 = vmatpush2.msra.mxu0 %v6987
  %8090 = vmatprep.subr.mxu0 %v6981
  %8091 = vmatpush2.msra.mxu0 %v6980
  %8092 = vmatprep.subr.mxu0 %v6974
  %8093 = vmatpush2.msra.mxu0 %v6973
  %8094 = vmatprep.subr.mxu0 %v6967
  %8095 = vmatpush2.msra.mxu0 %v6966
  %8096 = vmatprep.subr.mxu0 %v6960
  %8097 = vmatpush2.msra.mxu0 %v6959
  %8098 = vmatprep.subr.mxu0 %v6953
  %8099 = vmatpush2.msra.mxu0 %v6952
  %8100 = vmatprep.subr.mxu0 %v6946
  %8101 = vmatpush2.msra.mxu0 %v6945
  %8102 = vmatprep.subr.mxu0 %v6939
  %8103 = vmatpush2.msra.mxu0 %v6938
  %8104 = vmatprep.subr.mxu0 %v6932
  %8105 = vmatpush2.msra.mxu0 %v6931
  %8106 = vmatprep.subr.mxu0 %v6925
  %8107 = vmatpush2.msra.mxu0 %v6924
  %8108 = vmatprep.subr.mxu0 %v6918
  %8109 = vmatpush2.msra.mxu0 %v6917
  %8110 = vmatprep.subr.mxu0 %v6911
  %8111 = vmatpush2.msra.mxu0 %v6910
  %8112 = vmatprep.subr.mxu0 %v6904
  %8113 = vmatpush2.msra.mxu0 %v6903
  %8114 = vmatprep.mubr.f32.mxu0 %v6557
  %8115 = vmatmul.mubr.f32.gmra.mxu0 %v6556
  %v8116 = vpop.f32.mrf.mxu0
  %v8117 = vadd.f32 %v8046, %v8116
  %v8118 = vpop.f32.mrf.mxu0
  %v8119 = vadd.f32 %v8048, %v8118
  %8120 = vdwg.mxu0
  %8121 = vmatprep.subr.mxu0 %v7121
  %8122 = vmatpush1.msra.mxu0 %v7120
  %8123 = vmatprep.subr.mxu0 %v7114
  %8124 = vmatpush1.msra.mxu0 %v7113
  %8125 = vmatprep.subr.mxu0 %v7107
  %8126 = vmatpush1.msra.mxu0 %v7106
  %8127 = vmatprep.subr.mxu0 %v7100
  %8128 = vmatpush1.msra.mxu0 %v7099
  %8129 = vmatprep.subr.mxu0 %v7093
  %8130 = vmatpush1.msra.mxu0 %v7092
  %8131 = vmatprep.subr.mxu0 %v7086
  %8132 = vmatpush1.msra.mxu0 %v7085
  %8133 = vmatprep.subr.mxu0 %v7079
  %8134 = vmatpush1.msra.mxu0 %v7078
  %8135 = vmatprep.subr.mxu0 %v7072
  %8136 = vmatpush1.msra.mxu0 %v7071
  %8137 = vmatprep.subr.mxu0 %v7065
  %8138 = vmatpush1.msra.mxu0 %v7064
  %8139 = vmatprep.subr.mxu0 %v7058
  %8140 = vmatpush1.msra.mxu0 %v7057
  %8141 = vmatprep.subr.mxu0 %v7051
  %8142 = vmatpush1.msra.mxu0 %v7050
  %8143 = vmatprep.subr.mxu0 %v7044
  %8144 = vmatpush1.msra.mxu0 %v7043
  %8145 = vmatprep.subr.mxu0 %v7037
  %8146 = vmatpush1.msra.mxu0 %v7036
  %8147 = vmatprep.subr.mxu0 %v7030
  %8148 = vmatpush1.msra.mxu0 %v7029
  %8149 = vmatprep.subr.mxu0 %v7023
  %8150 = vmatpush1.msra.mxu0 %v7022
  %8151 = vmatprep.subr.mxu0 %v7016
  %8152 = vmatpush1.msra.mxu0 %v7015
  %8153 = vmatprep.subr.mxu0 %v7233
  %8154 = vmatpush2.msra.mxu0 %v7232
  %8155 = vmatprep.subr.mxu0 %v7226
  %8156 = vmatpush2.msra.mxu0 %v7225
  %8157 = vmatprep.subr.mxu0 %v7219
  %8158 = vmatpush2.msra.mxu0 %v7218
  %8159 = vmatprep.subr.mxu0 %v7212
  %8160 = vmatpush2.msra.mxu0 %v7211
  %8161 = vmatprep.subr.mxu0 %v7205
  %8162 = vmatpush2.msra.mxu0 %v7204
  %8163 = vmatprep.subr.mxu0 %v7198
  %8164 = vmatpush2.msra.mxu0 %v7197
  %8165 = vmatprep.subr.mxu0 %v7191
  %8166 = vmatpush2.msra.mxu0 %v7190
  %8167 = vmatprep.subr.mxu0 %v7184
  %8168 = vmatpush2.msra.mxu0 %v7183
  %8169 = vmatprep.subr.mxu0 %v7177
  %8170 = vmatpush2.msra.mxu0 %v7176
  %8171 = vmatprep.subr.mxu0 %v7170
  %8172 = vmatpush2.msra.mxu0 %v7169
  %8173 = vmatprep.subr.mxu0 %v7163
  %8174 = vmatpush2.msra.mxu0 %v7162
  %8175 = vmatprep.subr.mxu0 %v7156
  %8176 = vmatpush2.msra.mxu0 %v7155
  %8177 = vmatprep.subr.mxu0 %v7149
  %8178 = vmatpush2.msra.mxu0 %v7148
  %8179 = vmatprep.subr.mxu0 %v7142
  %8180 = vmatpush2.msra.mxu0 %v7141
  %8181 = vmatprep.subr.mxu0 %v7135
  %8182 = vmatpush2.msra.mxu0 %v7134
  %8183 = vmatprep.subr.mxu0 %v7128
  %8184 = vmatpush2.msra.mxu0 %v7127
  %8185 = vmatprep.mubr.f32.mxu0 %v6559
  %8186 = vmatmul.mubr.f32.gmra.mxu0 %v6558
  %v8187 = vpop.f32.mrf.mxu0
  %v8188 = vadd.f32 %v8117, %v8187
  %v8189 = vpop.f32.mrf.mxu0
  %v8190 = vadd.f32 %v8119, %v8189
  %8191 = vdwg.mxu0
  %8192 = vmatprep.subr.mxu0 %v7345
  %8193 = vmatpush1.msra.mxu0 %v7344
  %8194 = vmatprep.subr.mxu0 %v7338
  %8195 = vmatpush1.msra.mxu0 %v7337
  %8196 = vmatprep.subr.mxu0 %v7331
  %8197 = vmatpush1.msra.mxu0 %v7330
  %8198 = vmatprep.subr.mxu0 %v7324
  %8199 = vmatpush1.msra.mxu0 %v7323
  %8200 = vmatprep.subr.mxu0 %v7317
  %8201 = vmatpush1.msra.mxu0 %v7316
  %8202 = vmatprep.subr.mxu0 %v7310
  %8203 = vmatpush1.msra.mxu0 %v7309
  %8204 = vmatprep.subr.mxu0 %v7303
  %8205 = vmatpush1.msra.mxu0 %v7302
  %8206 = vmatprep.subr.mxu0 %v7296
  %8207 = vmatpush1.msra.mxu0 %v7295
  %8208 = vmatprep.subr.mxu0 %v7289
  %8209 = vmatpush1.msra.mxu0 %v7288
  %8210 = vmatprep.subr.mxu0 %v7282
  %8211 = vmatpush1.msra.mxu0 %v7281
  %8212 = vmatprep.subr.mxu0 %v7275
  %8213 = vmatpush1.msra.mxu0 %v7274
  %8214 = vmatprep.subr.mxu0 %v7268
  %8215 = vmatpush1.msra.mxu0 %v7267
  %8216 = vmatprep.subr.mxu0 %v7261
  %8217 = vmatpush1.msra.mxu0 %v7260
  %8218 = vmatprep.subr.mxu0 %v7254
  %8219 = vmatpush1.msra.mxu0 %v7253
  %8220 = vmatprep.subr.mxu0 %v7247
  %8221 = vmatpush1.msra.mxu0 %v7246
  %8222 = vmatprep.subr.mxu0 %v7240
  %8223 = vmatpush1.msra.mxu0 %v7239
  %8224 = vmatprep.subr.mxu0 %v7457
  %8225 = vmatpush2.msra.mxu0 %v7456
  %8226 = vmatprep.subr.mxu0 %v7450
  %8227 = vmatpush2.msra.mxu0 %v7449
  %8228 = vmatprep.subr.mxu0 %v7443
  %8229 = vmatpush2.msra.mxu0 %v7442
  %8230 = vmatprep.subr.mxu0 %v7436
  %8231 = vmatpush2.msra.mxu0 %v7435
  %8232 = vmatprep.subr.mxu0 %v7429
  %8233 = vmatpush2.msra.mxu0 %v7428
  %8234 = vmatprep.subr.mxu0 %v7422
  %8235 = vmatpush2.msra.mxu0 %v7421
  %8236 = vmatprep.subr.mxu0 %v7415
  %8237 = vmatpush2.msra.mxu0 %v7414
  %8238 = vmatprep.subr.mxu0 %v7408
  %8239 = vmatpush2.msra.mxu0 %v7407
  %8240 = vmatprep.subr.mxu0 %v7401
  %8241 = vmatpush2.msra.mxu0 %v7400
  %8242 = vmatprep.subr.mxu0 %v7394
  %8243 = vmatpush2.msra.mxu0 %v7393
  %8244 = vmatprep.subr.mxu0 %v7387
  %8245 = vmatpush2.msra.mxu0 %v7386
  %8246 = vmatprep.subr.mxu0 %v7380
  %8247 = vmatpush2.msra.mxu0 %v7379
  %8248 = vmatprep.subr.mxu0 %v7373
  %8249 = vmatpush2.msra.mxu0 %v7372
  %8250 = vmatprep.subr.mxu0 %v7366
  %8251 = vmatpush2.msra.mxu0 %v7365
  %8252 = vmatprep.subr.mxu0 %v7359
  %8253 = vmatpush2.msra.mxu0 %v7358
  %8254 = vmatprep.subr.mxu0 %v7352
  %8255 = vmatpush2.msra.mxu0 %v7351
  %8256 = vmatprep.mubr.f32.mxu0 %v6561
  %8257 = vmatmul.mubr.f32.gmra.mxu0 %v6560
  %v8258 = vpop.f32.mrf.mxu0
  %v8259 = vadd.f32 %v8188, %v8258
  %v8260 = vpop.f32.mrf.mxu0
  %v8261 = vadd.f32 %v8190, %v8260
  %8262 = vdwg.mxu0
  %8263 = vmatprep.subr.mxu0 %v7569
  %8264 = vmatpush1.msra.mxu0 %v7568
  %8265 = vmatprep.subr.mxu0 %v7562
  %8266 = vmatpush1.msra.mxu0 %v7561
  %8267 = vmatprep.subr.mxu0 %v7555
  %8268 = vmatpush1.msra.mxu0 %v7554
  %8269 = vmatprep.subr.mxu0 %v7548
  %8270 = vmatpush1.msra.mxu0 %v7547
  %8271 = vmatprep.subr.mxu0 %v7541
  %8272 = vmatpush1.msra.mxu0 %v7540
  %8273 = vmatprep.subr.mxu0 %v7534
  %8274 = vmatpush1.msra.mxu0 %v7533
  %8275 = vmatprep.subr.mxu0 %v7527
  %8276 = vmatpush1.msra.mxu0 %v7526
  %8277 = vmatprep.subr.mxu0 %v7520
  %8278 = vmatpush1.msra.mxu0 %v7519
  %8279 = vmatprep.subr.mxu0 %v7513
  %8280 = vmatpush1.msra.mxu0 %v7512
  %8281 = vmatprep.subr.mxu0 %v7506
  %8282 = vmatpush1.msra.mxu0 %v7505
  %8283 = vmatprep.subr.mxu0 %v7499
  %8284 = vmatpush1.msra.mxu0 %v7498
  %8285 = vmatprep.subr.mxu0 %v7492
  %8286 = vmatpush1.msra.mxu0 %v7491
  %8287 = vmatprep.subr.mxu0 %v7485
  %8288 = vmatpush1.msra.mxu0 %v7484
  %8289 = vmatprep.subr.mxu0 %v7478
  %8290 = vmatpush1.msra.mxu0 %v7477
  %8291 = vmatprep.subr.mxu0 %v7471
  %8292 = vmatpush1.msra.mxu0 %v7470
  %8293 = vmatprep.subr.mxu0 %v7464
  %8294 = vmatpush1.msra.mxu0 %v7463
  %8295 = vmatprep.subr.mxu0 %v7681
  %8296 = vmatpush2.msra.mxu0 %v7680
  %8297 = vmatprep.subr.mxu0 %v7674
  %8298 = vmatpush2.msra.mxu0 %v7673
  %8299 = vmatprep.subr.mxu0 %v7667
  %8300 = vmatpush2.msra.mxu0 %v7666
  %8301 = vmatprep.subr.mxu0 %v7660
  %8302 = vmatpush2.msra.mxu0 %v7659
  %8303 = vmatprep.subr.mxu0 %v7653
  %8304 = vmatpush2.msra.mxu0 %v7652
  %8305 = vmatprep.subr.mxu0 %v7646
  %8306 = vmatpush2.msra.mxu0 %v7645
  %8307 = vmatprep.subr.mxu0 %v7639
  %8308 = vmatpush2.msra.mxu0 %v7638
  %8309 = vmatprep.subr.mxu0 %v7632
  %8310 = vmatpush2.msra.mxu0 %v7631
  %8311 = vmatprep.subr.mxu0 %v7625
  %8312 = vmatpush2.msra.mxu0 %v7624
  %8313 = vmatprep.subr.mxu0 %v7618
  %8314 = vmatpush2.msra.mxu0 %v7617
  %8315 = vmatprep.subr.mxu0 %v7611
  %8316 = vmatpush2.msra.mxu0 %v7610
  %8317 = vmatprep.subr.mxu0 %v7604
  %8318 = vmatpush2.msra.mxu0 %v7603
  %8319 = vmatprep.subr.mxu0 %v7597
  %8320 = vmatpush2.msra.mxu0 %v7596
  %8321 = vmatprep.subr.mxu0 %v7590
  %8322 = vmatpush2.msra.mxu0 %v7589
  %8323 = vmatprep.subr.mxu0 %v7583
  %8324 = vmatpush2.msra.mxu0 %v7582
  %8325 = vmatprep.subr.mxu0 %v7576
  %8326 = vmatpush2.msra.mxu0 %v7575
  %8327 = vmatprep.mubr.f32.mxu0 %v6563
  %8328 = vmatmul.mubr.f32.gmra.mxu0 %v6562
  %v8329 = vpop.f32.mrf.mxu0
  %v8330 = vadd.f32 %v8259, %v8329
  %v8331 = vpop.f32.mrf.mxu0
  %v8332 = vadd.f32 %v8261, %v8331
  %8333 = vdwg.mxu0
  %8334 = vmatprep.subr.mxu0 %v7793
  %8335 = vmatpush1.msra.mxu0 %v7792
  %8336 = vmatprep.subr.mxu0 %v7786
  %8337 = vmatpush1.msra.mxu0 %v7785
  %8338 = vmatprep.subr.mxu0 %v7779
  %8339 = vmatpush1.msra.mxu0 %v7778
  %8340 = vmatprep.subr.mxu0 %v7772
  %8341 = vmatpush1.msra.mxu0 %v7771
  %8342 = vmatprep.subr.mxu0 %v7765
  %8343 = vmatpush1.msra.mxu0 %v7764
  %8344 = vmatprep.subr.mxu0 %v7758
  %8345 = vmatpush1.msra.mxu0 %v7757
  %8346 = vmatprep.subr.mxu0 %v7751
  %8347 = vmatpush1.msra.mxu0 %v7750
  %8348 = vmatprep.subr.mxu0 %v7744
  %8349 = vmatpush1.msra.mxu0 %v7743
  %8350 = vmatprep.subr.mxu0 %v7737
  %8351 = vmatpush1.msra.mxu0 %v7736
  %8352 = vmatprep.subr.mxu0 %v7730
  %8353 = vmatpush1.msra.mxu0 %v7729
  %8354 = vmatprep.subr.mxu0 %v7723
  %8355 = vmatpush1.msra.mxu0 %v7722
  %8356 = vmatprep.subr.mxu0 %v7716
  %8357 = vmatpush1.msra.mxu0 %v7715
  %8358 = vmatprep.subr.mxu0 %v7709
  %8359 = vmatpush1.msra.mxu0 %v7708
  %8360 = vmatprep.subr.mxu0 %v7702
  %8361 = vmatpush1.msra.mxu0 %v7701
  %8362 = vmatprep.subr.mxu0 %v7695
  %8363 = vmatpush1.msra.mxu0 %v7694
  %8364 = vmatprep.subr.mxu0 %v7688
  %8365 = vmatpush1.msra.mxu0 %v7687
  %8366 = vmatprep.subr.mxu0 %v7905
  %8367 = vmatpush2.msra.mxu0 %v7904
  %8368 = vmatprep.subr.mxu0 %v7898
  %8369 = vmatpush2.msra.mxu0 %v7897
  %8370 = vmatprep.subr.mxu0 %v7891
  %8371 = vmatpush2.msra.mxu0 %v7890
  %8372 = vmatprep.subr.mxu0 %v7884
  %8373 = vmatpush2.msra.mxu0 %v7883
  %8374 = vmatprep.subr.mxu0 %v7877
  %8375 = vmatpush2.msra.mxu0 %v7876
  %8376 = vmatprep.subr.mxu0 %v7870
  %8377 = vmatpush2.msra.mxu0 %v7869
  %8378 = vmatprep.subr.mxu0 %v7863
  %8379 = vmatpush2.msra.mxu0 %v7862
  %8380 = vmatprep.subr.mxu0 %v7856
  %8381 = vmatpush2.msra.mxu0 %v7855
  %8382 = vmatprep.subr.mxu0 %v7849
  %8383 = vmatpush2.msra.mxu0 %v7848
  %8384 = vmatprep.subr.mxu0 %v7842
  %8385 = vmatpush2.msra.mxu0 %v7841
  %8386 = vmatprep.subr.mxu0 %v7835
  %8387 = vmatpush2.msra.mxu0 %v7834
  %8388 = vmatprep.subr.mxu0 %v7828
  %8389 = vmatpush2.msra.mxu0 %v7827
  %8390 = vmatprep.subr.mxu0 %v7821
  %8391 = vmatpush2.msra.mxu0 %v7820
  %8392 = vmatprep.subr.mxu0 %v7814
  %8393 = vmatpush2.msra.mxu0 %v7813
  %8394 = vmatprep.subr.mxu0 %v7807
  %8395 = vmatpush2.msra.mxu0 %v7806
  %8396 = vmatprep.subr.mxu0 %v7800
  %8397 = vmatpush2.msra.mxu0 %v7799
  %8398 = vmatprep.mubr.f32.mxu0 %v6565
  %8399 = vmatmul.mubr.f32.gmra.mxu0 %v6564
  %v8400 = vpop.f32.mrf.mxu0
  %v8401 = vadd.f32 %v8330, %v8400
  %v8402 = vpop.f32.mrf.mxu0
  %v8403 = vadd.f32 %v8332, %v8402
  %8404 = vdwg.mxu0
  %8405 = vmatprep.subr.mxu0 0.0
  %8406 = vmatpush1.msra.mxu0 0.0
  %8407 = vmatprep.subr.mxu0 0.0
  %8408 = vmatpush1.msra.mxu0 0.0
  %8409 = vmatprep.subr.mxu0 0.0
  %8410 = vmatpush1.msra.mxu0 0.0
  %8411 = vmatprep.subr.mxu0 0.0
  %8412 = vmatpush1.msra.mxu0 0.0
  %8413 = vmatprep.subr.mxu0 0.0
  %8414 = vmatpush1.msra.mxu0 0.0
  %8415 = vmatprep.subr.mxu0 0.0
  %8416 = vmatpush1.msra.mxu0 0.0
  %8417 = vmatprep.subr.mxu0 0.0
  %8418 = vmatpush1.msra.mxu0 0.0
  %8419 = vmatprep.subr.mxu0 0.0
  %8420 = vmatpush1.msra.mxu0 0.0
  %8421 = vmatprep.subr.mxu0 0.0
  %8422 = vmatpush1.msra.mxu0 0.0
  %8423 = vmatprep.subr.mxu0 0.0
  %8424 = vmatpush1.msra.mxu0 0.0
  %8425 = vmatprep.subr.mxu0 0.0
  %8426 = vmatpush1.msra.mxu0 0.0
  %8427 = vmatprep.subr.mxu0 0.0
  %8428 = vmatpush1.msra.mxu0 0.0
  %8429 = vmatprep.subr.mxu0 %v7933
  %8430 = vmatpush1.msra.mxu0 %v7932
  %8431 = vmatprep.subr.mxu0 %v7926
  %8432 = vmatpush1.msra.mxu0 %v7925
  %8433 = vmatprep.subr.mxu0 %v7919
  %8434 = vmatpush1.msra.mxu0 %v7918
  %8435 = vmatprep.subr.mxu0 %v7912
  %8436 = vmatpush1.msra.mxu0 %v7911
  %8437 = vmatprep.subr.mxu0 0.0
  %8438 = vmatpush2.msra.mxu0 0.0
  %8439 = vmatprep.subr.mxu0 0.0
  %8440 = vmatpush2.msra.mxu0 0.0
  %8441 = vmatprep.subr.mxu0 0.0
  %8442 = vmatpush2.msra.mxu0 0.0
  %8443 = vmatprep.subr.mxu0 0.0
  %8444 = vmatpush2.msra.mxu0 0.0
  %8445 = vmatprep.subr.mxu0 0.0
  %8446 = vmatpush2.msra.mxu0 0.0
  %8447 = vmatprep.subr.mxu0 0.0
  %8448 = vmatpush2.msra.mxu0 0.0
  %8449 = vmatprep.subr.mxu0 0.0
  %8450 = vmatpush2.msra.mxu0 0.0
  %8451 = vmatprep.subr.mxu0 0.0
  %8452 = vmatpush2.msra.mxu0 0.0
  %8453 = vmatprep.subr.mxu0 0.0
  %8454 = vmatpush2.msra.mxu0 0.0
  %8455 = vmatprep.subr.mxu0 0.0
  %8456 = vmatpush2.msra.mxu0 0.0
  %8457 = vmatprep.subr.mxu0 0.0
  %8458 = vmatpush2.msra.mxu0 0.0
  %8459 = vmatprep.subr.mxu0 0.0
  %8460 = vmatpush2.msra.mxu0 0.0
  %8461 = vmatprep.subr.mxu0 0.0
  %8462 = vmatpush2.msra.mxu0 0.0
  %8463 = vmatprep.subr.mxu0 0.0
  %8464 = vmatpush2.msra.mxu0 0.0
  %8465 = vmatprep.subr.mxu0 0.0
  %8466 = vmatpush2.msra.mxu0 0.0
  %8467 = vmatprep.subr.mxu0 0.0
  %8468 = vmatpush2.msra.mxu0 0.0
  %8469 = vmatprep.mubr.f32.mxu0 0.0
  %8470 = vmatmul.mubr.f32.gmra.mxu0 %v7977
  %v8471 = vpop.f32.mrf.mxu0
  %v8472 = vadd.f32 %v8401, %v8471
  %v8473 = vpop.f32.mrf.mxu0
  %v8474 = vadd.f32 %v8403, %v8473
  %8475 = vdwg.mxu0
  %8476 = vmatprep.subr.mxu0 %v6675
  %8477 = vmatpush1.msra.mxu0 %v6674
  %8478 = vmatprep.subr.mxu0 %v6668
  %8479 = vmatpush1.msra.mxu0 %v6667
  %8480 = vmatprep.subr.mxu0 %v6661
  %8481 = vmatpush1.msra.mxu0 %v6660
  %8482 = vmatprep.subr.mxu0 %v6654
  %8483 = vmatpush1.msra.mxu0 %v6653
  %8484 = vmatprep.subr.mxu0 %v6647
  %8485 = vmatpush1.msra.mxu0 %v6646
  %8486 = vmatprep.subr.mxu0 %v6640
  %8487 = vmatpush1.msra.mxu0 %v6639
  %8488 = vmatprep.subr.mxu0 %v6633
  %8489 = vmatpush1.msra.mxu0 %v6632
  %8490 = vmatprep.subr.mxu0 %v6626
  %8491 = vmatpush1.msra.mxu0 %v6625
  %8492 = vmatprep.subr.mxu0 %v6619
  %8493 = vmatpush1.msra.mxu0 %v6618
  %8494 = vmatprep.subr.mxu0 %v6612
  %8495 = vmatpush1.msra.mxu0 %v6611
  %8496 = vmatprep.subr.mxu0 %v6605
  %8497 = vmatpush1.msra.mxu0 %v6604
  %8498 = vmatprep.subr.mxu0 %v6598
  %8499 = vmatpush1.msra.mxu0 %v6597
  %8500 = vmatprep.subr.mxu0 %v6591
  %8501 = vmatpush1.msra.mxu0 %v6590
  %8502 = vmatprep.subr.mxu0 %v6584
  %8503 = vmatpush1.msra.mxu0 %v6583
  %8504 = vmatprep.subr.mxu0 %v6577
  %8505 = vmatpush1.msra.mxu0 %v6576
  %8506 = vmatprep.subr.mxu0 %v6570
  %8507 = vmatpush1.msra.mxu0 %v6569
  %8508 = vmatprep.subr.mxu0 %v6787
  %8509 = vmatpush2.msra.mxu0 %v6786
  %8510 = vmatprep.subr.mxu0 %v6780
  %8511 = vmatpush2.msra.mxu0 %v6779
  %8512 = vmatprep.subr.mxu0 %v6773
  %8513 = vmatpush2.msra.mxu0 %v6772
  %8514 = vmatprep.subr.mxu0 %v6766
  %8515 = vmatpush2.msra.mxu0 %v6765
  %8516 = vmatprep.subr.mxu0 %v6759
  %8517 = vmatpush2.msra.mxu0 %v6758
  %8518 = vmatprep.subr.mxu0 %v6752
  %8519 = vmatpush2.msra.mxu0 %v6751
  %8520 = vmatprep.subr.mxu0 %v6745
  %8521 = vmatpush2.msra.mxu0 %v6744
  %8522 = vmatprep.subr.mxu0 %v6738
  %8523 = vmatpush2.msra.mxu0 %v6737
  %8524 = vmatprep.subr.mxu0 %v6731
  %8525 = vmatpush2.msra.mxu0 %v6730
  %8526 = vmatprep.subr.mxu0 %v6724
  %8527 = vmatpush2.msra.mxu0 %v6723
  %8528 = vmatprep.subr.mxu0 %v6717
  %8529 = vmatpush2.msra.mxu0 %v6716
  %8530 = vmatprep.subr.mxu0 %v6710
  %8531 = vmatpush2.msra.mxu0 %v6709
  %8532 = vmatprep.subr.mxu0 %v6703
  %8533 = vmatpush2.msra.mxu0 %v6702
  %8534 = vmatprep.subr.mxu0 %v6696
  %8535 = vmatpush2.msra.mxu0 %v6695
  %8536 = vmatprep.subr.mxu0 %v6689
  %8537 = vmatpush2.msra.mxu0 %v6688
  %8538 = vmatprep.subr.mxu0 %v6682
  %8539 = vmatpush2.msra.mxu0 %v6681
  %8540 = vmatprep.mubr.f32.mxu0 %v6555
  %8541 = vmatmul.mubr.f32.gmra.mxu0 %v6554
  %v8542 = vpop.f32.mrf.mxu0
  %v8543 = vadd.f32 %v7952, %v8542
  %v8544 = vpop.f32.mrf.mxu0
  %v8545 = vadd.f32 %v7956, %v8544
  %8546 = vdwg.mxu0
  %8547 = vmatprep.subr.mxu0 %v6899
  %8548 = vmatpush1.msra.mxu0 %v6898
  %8549 = vmatprep.subr.mxu0 %v6892
  %8550 = vmatpush1.msra.mxu0 %v6891
  %8551 = vmatprep.subr.mxu0 %v6885
  %8552 = vmatpush1.msra.mxu0 %v6884
  %8553 = vmatprep.subr.mxu0 %v6878
  %8554 = vmatpush1.msra.mxu0 %v6877
  %8555 = vmatprep.subr.mxu0 %v6871
  %8556 = vmatpush1.msra.mxu0 %v6870
  %8557 = vmatprep.subr.mxu0 %v6864
  %8558 = vmatpush1.msra.mxu0 %v6863
  %8559 = vmatprep.subr.mxu0 %v6857
  %8560 = vmatpush1.msra.mxu0 %v6856
  %8561 = vmatprep.subr.mxu0 %v6850
  %8562 = vmatpush1.msra.mxu0 %v6849
  %8563 = vmatprep.subr.mxu0 %v6843
  %8564 = vmatpush1.msra.mxu0 %v6842
  %8565 = vmatprep.subr.mxu0 %v6836
  %8566 = vmatpush1.msra.mxu0 %v6835
  %8567 = vmatprep.subr.mxu0 %v6829
  %8568 = vmatpush1.msra.mxu0 %v6828
  %8569 = vmatprep.subr.mxu0 %v6822
  %8570 = vmatpush1.msra.mxu0 %v6821
  %8571 = vmatprep.subr.mxu0 %v6815
  %8572 = vmatpush1.msra.mxu0 %v6814
  %8573 = vmatprep.subr.mxu0 %v6808
  %8574 = vmatpush1.msra.mxu0 %v6807
  %8575 = vmatprep.subr.mxu0 %v6801
  %8576 = vmatpush1.msra.mxu0 %v6800
  %8577 = vmatprep.subr.mxu0 %v6794
  %8578 = vmatpush1.msra.mxu0 %v6793
  %8579 = vmatprep.subr.mxu0 %v7011
  %8580 = vmatpush2.msra.mxu0 %v7010
  %8581 = vmatprep.subr.mxu0 %v7004
  %8582 = vmatpush2.msra.mxu0 %v7003
  %8583 = vmatprep.subr.mxu0 %v6997
  %8584 = vmatpush2.msra.mxu0 %v6996
  %8585 = vmatprep.subr.mxu0 %v6990
  %8586 = vmatpush2.msra.mxu0 %v6989
  %8587 = vmatprep.subr.mxu0 %v6983
  %8588 = vmatpush2.msra.mxu0 %v6982
  %8589 = vmatprep.subr.mxu0 %v6976
  %8590 = vmatpush2.msra.mxu0 %v6975
  %8591 = vmatprep.subr.mxu0 %v6969
  %8592 = vmatpush2.msra.mxu0 %v6968
  %8593 = vmatprep.subr.mxu0 %v6962
  %8594 = vmatpush2.msra.mxu0 %v6961
  %8595 = vmatprep.subr.mxu0 %v6955
  %8596 = vmatpush2.msra.mxu0 %v6954
  %8597 = vmatprep.subr.mxu0 %v6948
  %8598 = vmatpush2.msra.mxu0 %v6947
  %8599 = vmatprep.subr.mxu0 %v6941
  %8600 = vmatpush2.msra.mxu0 %v6940
  %8601 = vmatprep.subr.mxu0 %v6934
  %8602 = vmatpush2.msra.mxu0 %v6933
  %8603 = vmatprep.subr.mxu0 %v6927
  %8604 = vmatpush2.msra.mxu0 %v6926
  %8605 = vmatprep.subr.mxu0 %v6920
  %8606 = vmatpush2.msra.mxu0 %v6919
  %8607 = vmatprep.subr.mxu0 %v6913
  %8608 = vmatpush2.msra.mxu0 %v6912
  %8609 = vmatprep.subr.mxu0 %v6906
  %8610 = vmatpush2.msra.mxu0 %v6905
  %8611 = vmatprep.mubr.f32.mxu0 %v6557
  %8612 = vmatmul.mubr.f32.gmra.mxu0 %v6556
  %v8613 = vpop.f32.mrf.mxu0
  %v8614 = vadd.f32 %v8543, %v8613
  %v8615 = vpop.f32.mrf.mxu0
  %v8616 = vadd.f32 %v8545, %v8615
  %8617 = vdwg.mxu0
  %8618 = vmatprep.subr.mxu0 %v7123
  %8619 = vmatpush1.msra.mxu0 %v7122
  %8620 = vmatprep.subr.mxu0 %v7116
  %8621 = vmatpush1.msra.mxu0 %v7115
  %8622 = vmatprep.subr.mxu0 %v7109
  %8623 = vmatpush1.msra.mxu0 %v7108
  %8624 = vmatprep.subr.mxu0 %v7102
  %8625 = vmatpush1.msra.mxu0 %v7101
  %8626 = vmatprep.subr.mxu0 %v7095
  %8627 = vmatpush1.msra.mxu0 %v7094
  %8628 = vmatprep.subr.mxu0 %v7088
  %8629 = vmatpush1.msra.mxu0 %v7087
  %8630 = vmatprep.subr.mxu0 %v7081
  %8631 = vmatpush1.msra.mxu0 %v7080
  %8632 = vmatprep.subr.mxu0 %v7074
  %8633 = vmatpush1.msra.mxu0 %v7073
  %8634 = vmatprep.subr.mxu0 %v7067
  %8635 = vmatpush1.msra.mxu0 %v7066
  %8636 = vmatprep.subr.mxu0 %v7060
  %8637 = vmatpush1.msra.mxu0 %v7059
  %8638 = vmatprep.subr.mxu0 %v7053
  %8639 = vmatpush1.msra.mxu0 %v7052
  %8640 = vmatprep.subr.mxu0 %v7046
  %8641 = vmatpush1.msra.mxu0 %v7045
  %8642 = vmatprep.subr.mxu0 %v7039
  %8643 = vmatpush1.msra.mxu0 %v7038
  %8644 = vmatprep.subr.mxu0 %v7032
  %8645 = vmatpush1.msra.mxu0 %v7031
  %8646 = vmatprep.subr.mxu0 %v7025
  %8647 = vmatpush1.msra.mxu0 %v7024
  %8648 = vmatprep.subr.mxu0 %v7018
  %8649 = vmatpush1.msra.mxu0 %v7017
  %8650 = vmatprep.subr.mxu0 %v7235
  %8651 = vmatpush2.msra.mxu0 %v7234
  %8652 = vmatprep.subr.mxu0 %v7228
  %8653 = vmatpush2.msra.mxu0 %v7227
  %8654 = vmatprep.subr.mxu0 %v7221
  %8655 = vmatpush2.msra.mxu0 %v7220
  %8656 = vmatprep.subr.mxu0 %v7214
  %8657 = vmatpush2.msra.mxu0 %v7213
  %8658 = vmatprep.subr.mxu0 %v7207
  %8659 = vmatpush2.msra.mxu0 %v7206
  %8660 = vmatprep.subr.mxu0 %v7200
  %8661 = vmatpush2.msra.mxu0 %v7199
  %8662 = vmatprep.subr.mxu0 %v7193
  %8663 = vmatpush2.msra.mxu0 %v7192
  %8664 = vmatprep.subr.mxu0 %v7186
  %8665 = vmatpush2.msra.mxu0 %v7185
  %8666 = vmatprep.subr.mxu0 %v7179
  %8667 = vmatpush2.msra.mxu0 %v7178
  %8668 = vmatprep.subr.mxu0 %v7172
  %8669 = vmatpush2.msra.mxu0 %v7171
  %8670 = vmatprep.subr.mxu0 %v7165
  %8671 = vmatpush2.msra.mxu0 %v7164
  %8672 = vmatprep.subr.mxu0 %v7158
  %8673 = vmatpush2.msra.mxu0 %v7157
  %8674 = vmatprep.subr.mxu0 %v7151
  %8675 = vmatpush2.msra.mxu0 %v7150
  %8676 = vmatprep.subr.mxu0 %v7144
  %8677 = vmatpush2.msra.mxu0 %v7143
  %8678 = vmatprep.subr.mxu0 %v7137
  %8679 = vmatpush2.msra.mxu0 %v7136
  %8680 = vmatprep.subr.mxu0 %v7130
  %8681 = vmatpush2.msra.mxu0 %v7129
  %8682 = vmatprep.mubr.f32.mxu0 %v6559
  %8683 = vmatmul.mubr.f32.gmra.mxu0 %v6558
  %v8684 = vpop.f32.mrf.mxu0
  %v8685 = vadd.f32 %v8614, %v8684
  %v8686 = vpop.f32.mrf.mxu0
  %v8687 = vadd.f32 %v8616, %v8686
  %8688 = vdwg.mxu0
  %8689 = vmatprep.subr.mxu0 %v7347
  %8690 = vmatpush1.msra.mxu0 %v7346
  %8691 = vmatprep.subr.mxu0 %v7340
  %8692 = vmatpush1.msra.mxu0 %v7339
  %8693 = vmatprep.subr.mxu0 %v7333
  %8694 = vmatpush1.msra.mxu0 %v7332
  %8695 = vmatprep.subr.mxu0 %v7326
  %8696 = vmatpush1.msra.mxu0 %v7325
  %8697 = vmatprep.subr.mxu0 %v7319
  %8698 = vmatpush1.msra.mxu0 %v7318
  %8699 = vmatprep.subr.mxu0 %v7312
  %8700 = vmatpush1.msra.mxu0 %v7311
  %8701 = vmatprep.subr.mxu0 %v7305
  %8702 = vmatpush1.msra.mxu0 %v7304
  %8703 = vmatprep.subr.mxu0 %v7298
  %8704 = vmatpush1.msra.mxu0 %v7297
  %8705 = vmatprep.subr.mxu0 %v7291
  %8706 = vmatpush1.msra.mxu0 %v7290
  %8707 = vmatprep.subr.mxu0 %v7284
  %8708 = vmatpush1.msra.mxu0 %v7283
  %8709 = vmatprep.subr.mxu0 %v7277
  %8710 = vmatpush1.msra.mxu0 %v7276
  %8711 = vmatprep.subr.mxu0 %v7270
  %8712 = vmatpush1.msra.mxu0 %v7269
  %8713 = vmatprep.subr.mxu0 %v7263
  %8714 = vmatpush1.msra.mxu0 %v7262
  %8715 = vmatprep.subr.mxu0 %v7256
  %8716 = vmatpush1.msra.mxu0 %v7255
  %8717 = vmatprep.subr.mxu0 %v7249
  %8718 = vmatpush1.msra.mxu0 %v7248
  %8719 = vmatprep.subr.mxu0 %v7242
  %8720 = vmatpush1.msra.mxu0 %v7241
  %8721 = vmatprep.subr.mxu0 %v7459
  %8722 = vmatpush2.msra.mxu0 %v7458
  %8723 = vmatprep.subr.mxu0 %v7452
  %8724 = vmatpush2.msra.mxu0 %v7451
  %8725 = vmatprep.subr.mxu0 %v7445
  %8726 = vmatpush2.msra.mxu0 %v7444
  %8727 = vmatprep.subr.mxu0 %v7438
  %8728 = vmatpush2.msra.mxu0 %v7437
  %8729 = vmatprep.subr.mxu0 %v7431
  %8730 = vmatpush2.msra.mxu0 %v7430
  %8731 = vmatprep.subr.mxu0 %v7424
  %8732 = vmatpush2.msra.mxu0 %v7423
  %8733 = vmatprep.subr.mxu0 %v7417
  %8734 = vmatpush2.msra.mxu0 %v7416
  %8735 = vmatprep.subr.mxu0 %v7410
  %8736 = vmatpush2.msra.mxu0 %v7409
  %8737 = vmatprep.subr.mxu0 %v7403
  %8738 = vmatpush2.msra.mxu0 %v7402
  %8739 = vmatprep.subr.mxu0 %v7396
  %8740 = vmatpush2.msra.mxu0 %v7395
  %8741 = vmatprep.subr.mxu0 %v7389
  %8742 = vmatpush2.msra.mxu0 %v7388
  %8743 = vmatprep.subr.mxu0 %v7382
  %8744 = vmatpush2.msra.mxu0 %v7381
  %8745 = vmatprep.subr.mxu0 %v7375
  %8746 = vmatpush2.msra.mxu0 %v7374
  %8747 = vmatprep.subr.mxu0 %v7368
  %8748 = vmatpush2.msra.mxu0 %v7367
  %8749 = vmatprep.subr.mxu0 %v7361
  %8750 = vmatpush2.msra.mxu0 %v7360
  %8751 = vmatprep.subr.mxu0 %v7354
  %8752 = vmatpush2.msra.mxu0 %v7353
  %8753 = vmatprep.mubr.f32.mxu0 %v6561
  %8754 = vmatmul.mubr.f32.gmra.mxu0 %v6560
  %v8755 = vpop.f32.mrf.mxu0
  %v8756 = vadd.f32 %v8685, %v8755
  %v8757 = vpop.f32.mrf.mxu0
  %v8758 = vadd.f32 %v8687, %v8757
  %8759 = vdwg.mxu0
  %8760 = vmatprep.subr.mxu0 %v7571
  %8761 = vmatpush1.msra.mxu0 %v7570
  %8762 = vmatprep.subr.mxu0 %v7564
  %8763 = vmatpush1.msra.mxu0 %v7563
  %8764 = vmatprep.subr.mxu0 %v7557
  %8765 = vmatpush1.msra.mxu0 %v7556
  %8766 = vmatprep.subr.mxu0 %v7550
  %8767 = vmatpush1.msra.mxu0 %v7549
  %8768 = vmatprep.subr.mxu0 %v7543
  %8769 = vmatpush1.msra.mxu0 %v7542
  %8770 = vmatprep.subr.mxu0 %v7536
  %8771 = vmatpush1.msra.mxu0 %v7535
  %8772 = vmatprep.subr.mxu0 %v7529
  %8773 = vmatpush1.msra.mxu0 %v7528
  %8774 = vmatprep.subr.mxu0 %v7522
  %8775 = vmatpush1.msra.mxu0 %v7521
  %8776 = vmatprep.subr.mxu0 %v7515
  %8777 = vmatpush1.msra.mxu0 %v7514
  %8778 = vmatprep.subr.mxu0 %v7508
  %8779 = vmatpush1.msra.mxu0 %v7507
  %8780 = vmatprep.subr.mxu0 %v7501
  %8781 = vmatpush1.msra.mxu0 %v7500
  %8782 = vmatprep.subr.mxu0 %v7494
  %8783 = vmatpush1.msra.mxu0 %v7493
  %8784 = vmatprep.subr.mxu0 %v7487
  %8785 = vmatpush1.msra.mxu0 %v7486
  %8786 = vmatprep.subr.mxu0 %v7480
  %8787 = vmatpush1.msra.mxu0 %v7479
  %8788 = vmatprep.subr.mxu0 %v7473
  %8789 = vmatpush1.msra.mxu0 %v7472
  %8790 = vmatprep.subr.mxu0 %v7466
  %8791 = vmatpush1.msra.mxu0 %v7465
  %8792 = vmatprep.subr.mxu0 %v7683
  %8793 = vmatpush2.msra.mxu0 %v7682
  %8794 = vmatprep.subr.mxu0 %v7676
  %8795 = vmatpush2.msra.mxu0 %v7675
  %8796 = vmatprep.subr.mxu0 %v7669
  %8797 = vmatpush2.msra.mxu0 %v7668
  %8798 = vmatprep.subr.mxu0 %v7662
  %8799 = vmatpush2.msra.mxu0 %v7661
  %8800 = vmatprep.subr.mxu0 %v7655
  %8801 = vmatpush2.msra.mxu0 %v7654
  %8802 = vmatprep.subr.mxu0 %v7648
  %8803 = vmatpush2.msra.mxu0 %v7647
  %8804 = vmatprep.subr.mxu0 %v7641
  %8805 = vmatpush2.msra.mxu0 %v7640
  %8806 = vmatprep.subr.mxu0 %v7634
  %8807 = vmatpush2.msra.mxu0 %v7633
  %8808 = vmatprep.subr.mxu0 %v7627
  %8809 = vmatpush2.msra.mxu0 %v7626
  %8810 = vmatprep.subr.mxu0 %v7620
  %8811 = vmatpush2.msra.mxu0 %v7619
  %8812 = vmatprep.subr.mxu0 %v7613
  %8813 = vmatpush2.msra.mxu0 %v7612
  %8814 = vmatprep.subr.mxu0 %v7606
  %8815 = vmatpush2.msra.mxu0 %v7605
  %8816 = vmatprep.subr.mxu0 %v7599
  %8817 = vmatpush2.msra.mxu0 %v7598
  %8818 = vmatprep.subr.mxu0 %v7592
  %8819 = vmatpush2.msra.mxu0 %v7591
  %8820 = vmatprep.subr.mxu0 %v7585
  %8821 = vmatpush2.msra.mxu0 %v7584
  %8822 = vmatprep.subr.mxu0 %v7578
  %8823 = vmatpush2.msra.mxu0 %v7577
  %8824 = vmatprep.mubr.f32.mxu0 %v6563
  %8825 = vmatmul.mubr.f32.gmra.mxu0 %v6562
  %v8826 = vpop.f32.mrf.mxu0
  %v8827 = vadd.f32 %v8756, %v8826
  %v8828 = vpop.f32.mrf.mxu0
  %v8829 = vadd.f32 %v8758, %v8828
  %8830 = vdwg.mxu0
  %8831 = vmatprep.subr.mxu0 %v7795
  %8832 = vmatpush1.msra.mxu0 %v7794
  %8833 = vmatprep.subr.mxu0 %v7788
  %8834 = vmatpush1.msra.mxu0 %v7787
  %8835 = vmatprep.subr.mxu0 %v7781
  %8836 = vmatpush1.msra.mxu0 %v7780
  %8837 = vmatprep.subr.mxu0 %v7774
  %8838 = vmatpush1.msra.mxu0 %v7773
  %8839 = vmatprep.subr.mxu0 %v7767
  %8840 = vmatpush1.msra.mxu0 %v7766
  %8841 = vmatprep.subr.mxu0 %v7760
  %8842 = vmatpush1.msra.mxu0 %v7759
  %8843 = vmatprep.subr.mxu0 %v7753
  %8844 = vmatpush1.msra.mxu0 %v7752
  %8845 = vmatprep.subr.mxu0 %v7746
  %8846 = vmatpush1.msra.mxu0 %v7745
  %8847 = vmatprep.subr.mxu0 %v7739
  %8848 = vmatpush1.msra.mxu0 %v7738
  %8849 = vmatprep.subr.mxu0 %v7732
  %8850 = vmatpush1.msra.mxu0 %v7731
  %8851 = vmatprep.subr.mxu0 %v7725
  %8852 = vmatpush1.msra.mxu0 %v7724
  %8853 = vmatprep.subr.mxu0 %v7718
  %8854 = vmatpush1.msra.mxu0 %v7717
  %8855 = vmatprep.subr.mxu0 %v7711
  %8856 = vmatpush1.msra.mxu0 %v7710
  %8857 = vmatprep.subr.mxu0 %v7704
  %8858 = vmatpush1.msra.mxu0 %v7703
  %8859 = vmatprep.subr.mxu0 %v7697
  %8860 = vmatpush1.msra.mxu0 %v7696
  %8861 = vmatprep.subr.mxu0 %v7690
  %8862 = vmatpush1.msra.mxu0 %v7689
  %8863 = vmatprep.subr.mxu0 %v7907
  %8864 = vmatpush2.msra.mxu0 %v7906
  %8865 = vmatprep.subr.mxu0 %v7900
  %8866 = vmatpush2.msra.mxu0 %v7899
  %8867 = vmatprep.subr.mxu0 %v7893
  %8868 = vmatpush2.msra.mxu0 %v7892
  %8869 = vmatprep.subr.mxu0 %v7886
  %8870 = vmatpush2.msra.mxu0 %v7885
  %8871 = vmatprep.subr.mxu0 %v7879
  %8872 = vmatpush2.msra.mxu0 %v7878
  %8873 = vmatprep.subr.mxu0 %v7872
  %8874 = vmatpush2.msra.mxu0 %v7871
  %8875 = vmatprep.subr.mxu0 %v7865
  %8876 = vmatpush2.msra.mxu0 %v7864
  %8877 = vmatprep.subr.mxu0 %v7858
  %8878 = vmatpush2.msra.mxu0 %v7857
  %8879 = vmatprep.subr.mxu0 %v7851
  %8880 = vmatpush2.msra.mxu0 %v7850
  %8881 = vmatprep.subr.mxu0 %v7844
  %8882 = vmatpush2.msra.mxu0 %v7843
  %8883 = vmatprep.subr.mxu0 %v7837
  %8884 = vmatpush2.msra.mxu0 %v7836
  %8885 = vmatprep.subr.mxu0 %v7830
  %8886 = vmatpush2.msra.mxu0 %v7829
  %8887 = vmatprep.subr.mxu0 %v7823
  %8888 = vmatpush2.msra.mxu0 %v7822
  %8889 = vmatprep.subr.mxu0 %v7816
  %8890 = vmatpush2.msra.mxu0 %v7815
  %8891 = vmatprep.subr.mxu0 %v7809
  %8892 = vmatpush2.msra.mxu0 %v7808
  %8893 = vmatprep.subr.mxu0 %v7802
  %8894 = vmatpush2.msra.mxu0 %v7801
  %8895 = vmatprep.mubr.f32.mxu0 %v6565
  %8896 = vmatmul.mubr.f32.gmra.mxu0 %v6564
  %v8897 = vpop.f32.mrf.mxu0
  %v8898 = vadd.f32 %v8827, %v8897
  %v8899 = vpop.f32.mrf.mxu0
  %v8900 = vadd.f32 %v8829, %v8899
  %8901 = vdwg.mxu0
  %8902 = vmatprep.subr.mxu0 0.0
  %8903 = vmatpush1.msra.mxu0 0.0
  %8904 = vmatprep.subr.mxu0 0.0
  %8905 = vmatpush1.msra.mxu0 0.0
  %8906 = vmatprep.subr.mxu0 0.0
  %8907 = vmatpush1.msra.mxu0 0.0
  %8908 = vmatprep.subr.mxu0 0.0
  %8909 = vmatpush1.msra.mxu0 0.0
  %8910 = vmatprep.subr.mxu0 0.0
  %8911 = vmatpush1.msra.mxu0 0.0
  %8912 = vmatprep.subr.mxu0 0.0
  %8913 = vmatpush1.msra.mxu0 0.0
  %8914 = vmatprep.subr.mxu0 0.0
  %8915 = vmatpush1.msra.mxu0 0.0
  %8916 = vmatprep.subr.mxu0 0.0
  %8917 = vmatpush1.msra.mxu0 0.0
  %8918 = vmatprep.subr.mxu0 0.0
  %8919 = vmatpush1.msra.mxu0 0.0
  %8920 = vmatprep.subr.mxu0 0.0
  %8921 = vmatpush1.msra.mxu0 0.0
  %8922 = vmatprep.subr.mxu0 0.0
  %8923 = vmatpush1.msra.mxu0 0.0
  %8924 = vmatprep.subr.mxu0 0.0
  %8925 = vmatpush1.msra.mxu0 0.0
  %8926 = vmatprep.subr.mxu0 %v7935
  %8927 = vmatpush1.msra.mxu0 %v7934
  %8928 = vmatprep.subr.mxu0 %v7928
  %8929 = vmatpush1.msra.mxu0 %v7927
  %8930 = vmatprep.subr.mxu0 %v7921
  %8931 = vmatpush1.msra.mxu0 %v7920
  %8932 = vmatprep.subr.mxu0 %v7914
  %8933 = vmatpush1.msra.mxu0 %v7913
  %8934 = vmatprep.subr.mxu0 0.0
  %8935 = vmatpush2.msra.mxu0 0.0
  %8936 = vmatprep.subr.mxu0 0.0
  %8937 = vmatpush2.msra.mxu0 0.0
  %8938 = vmatprep.subr.mxu0 0.0
  %8939 = vmatpush2.msra.mxu0 0.0
  %8940 = vmatprep.subr.mxu0 0.0
  %8941 = vmatpush2.msra.mxu0 0.0
  %8942 = vmatprep.subr.mxu0 0.0
  %8943 = vmatpush2.msra.mxu0 0.0
  %8944 = vmatprep.subr.mxu0 0.0
  %8945 = vmatpush2.msra.mxu0 0.0
  %8946 = vmatprep.subr.mxu0 0.0
  %8947 = vmatpush2.msra.mxu0 0.0
  %8948 = vmatprep.subr.mxu0 0.0
  %8949 = vmatpush2.msra.mxu0 0.0
  %8950 = vmatprep.subr.mxu0 0.0
  %8951 = vmatpush2.msra.mxu0 0.0
  %8952 = vmatprep.subr.mxu0 0.0
  %8953 = vmatpush2.msra.mxu0 0.0
  %8954 = vmatprep.subr.mxu0 0.0
  %8955 = vmatpush2.msra.mxu0 0.0
  %8956 = vmatprep.subr.mxu0 0.0
  %8957 = vmatpush2.msra.mxu0 0.0
  %8958 = vmatprep.subr.mxu0 0.0
  %8959 = vmatpush2.msra.mxu0 0.0
  %8960 = vmatprep.subr.mxu0 0.0
  %8961 = vmatpush2.msra.mxu0 0.0
  %8962 = vmatprep.subr.mxu0 0.0
  %8963 = vmatpush2.msra.mxu0 0.0
  %8964 = vmatprep.subr.mxu0 0.0
  %8965 = vmatpush2.msra.mxu0 0.0
  %8966 = vmatprep.mubr.f32.mxu0 0.0
  %8967 = vmatmul.mubr.f32.gmra.mxu0 %v7977
  %v8968 = vpop.f32.mrf.mxu0
  %v8969 = vadd.f32 %v8898, %v8968
  %v8970 = vpop.f32.mrf.mxu0
  %v8971 = vadd.f32 %v8900, %v8970
  %8972 = vdwg.mxu0
  %8973 = vmatprep.subr.mxu0 %v6677
  %8974 = vmatpush1.msra.mxu0 %v6676
  %8975 = vmatprep.subr.mxu0 %v6670
  %8976 = vmatpush1.msra.mxu0 %v6669
  %8977 = vmatprep.subr.mxu0 %v6663
  %8978 = vmatpush1.msra.mxu0 %v6662
  %8979 = vmatprep.subr.mxu0 %v6656
  %8980 = vmatpush1.msra.mxu0 %v6655
  %8981 = vmatprep.subr.mxu0 %v6649
  %8982 = vmatpush1.msra.mxu0 %v6648
  %8983 = vmatprep.subr.mxu0 %v6642
  %8984 = vmatpush1.msra.mxu0 %v6641
  %8985 = vmatprep.subr.mxu0 %v6635
  %8986 = vmatpush1.msra.mxu0 %v6634
  %8987 = vmatprep.subr.mxu0 %v6628
  %8988 = vmatpush1.msra.mxu0 %v6627
  %8989 = vmatprep.subr.mxu0 %v6621
  %8990 = vmatpush1.msra.mxu0 %v6620
  %8991 = vmatprep.subr.mxu0 %v6614
  %8992 = vmatpush1.msra.mxu0 %v6613
  %8993 = vmatprep.subr.mxu0 %v6607
  %8994 = vmatpush1.msra.mxu0 %v6606
  %8995 = vmatprep.subr.mxu0 %v6600
  %8996 = vmatpush1.msra.mxu0 %v6599
  %8997 = vmatprep.subr.mxu0 %v6593
  %8998 = vmatpush1.msra.mxu0 %v6592
  %8999 = vmatprep.subr.mxu0 %v6586
  %9000 = vmatpush1.msra.mxu0 %v6585
  %9001 = vmatprep.subr.mxu0 %v6579
  %9002 = vmatpush1.msra.mxu0 %v6578
  %9003 = vmatprep.subr.mxu0 %v6572
  %9004 = vmatpush1.msra.mxu0 %v6571
  %9005 = vmatprep.subr.mxu0 %v6789
  %9006 = vmatpush2.msra.mxu0 %v6788
  %9007 = vmatprep.subr.mxu0 %v6782
  %9008 = vmatpush2.msra.mxu0 %v6781
  %9009 = vmatprep.subr.mxu0 %v6775
  %9010 = vmatpush2.msra.mxu0 %v6774
  %9011 = vmatprep.subr.mxu0 %v6768
  %9012 = vmatpush2.msra.mxu0 %v6767
  %9013 = vmatprep.subr.mxu0 %v6761
  %9014 = vmatpush2.msra.mxu0 %v6760
  %9015 = vmatprep.subr.mxu0 %v6754
  %9016 = vmatpush2.msra.mxu0 %v6753
  %9017 = vmatprep.subr.mxu0 %v6747
  %9018 = vmatpush2.msra.mxu0 %v6746
  %9019 = vmatprep.subr.mxu0 %v6740
  %9020 = vmatpush2.msra.mxu0 %v6739
  %9021 = vmatprep.subr.mxu0 %v6733
  %9022 = vmatpush2.msra.mxu0 %v6732
  %9023 = vmatprep.subr.mxu0 %v6726
  %9024 = vmatpush2.msra.mxu0 %v6725
  %9025 = vmatprep.subr.mxu0 %v6719
  %9026 = vmatpush2.msra.mxu0 %v6718
  %9027 = vmatprep.subr.mxu0 %v6712
  %9028 = vmatpush2.msra.mxu0 %v6711
  %9029 = vmatprep.subr.mxu0 %v6705
  %9030 = vmatpush2.msra.mxu0 %v6704
  %9031 = vmatprep.subr.mxu0 %v6698
  %9032 = vmatpush2.msra.mxu0 %v6697
  %9033 = vmatprep.subr.mxu0 %v6691
  %9034 = vmatpush2.msra.mxu0 %v6690
  %9035 = vmatprep.subr.mxu0 %v6684
  %9036 = vmatpush2.msra.mxu0 %v6683
  %9037 = vmatprep.mubr.f32.mxu0 %v6555
  %9038 = vmatmul.mubr.f32.gmra.mxu0 %v6554
  %v9039 = vpop.f32.mrf.mxu0
  %v9040 = vadd.f32 %v7960, %v9039
  %v9041 = vpop.f32.mrf.mxu0
  %v9042 = vadd.f32 %v7964, %v9041
  %9043 = vdwg.mxu0
  %9044 = vmatprep.subr.mxu0 %v6901
  %9045 = vmatpush1.msra.mxu0 %v6900
  %9046 = vmatprep.subr.mxu0 %v6894
  %9047 = vmatpush1.msra.mxu0 %v6893
  %9048 = vmatprep.subr.mxu0 %v6887
  %9049 = vmatpush1.msra.mxu0 %v6886
  %9050 = vmatprep.subr.mxu0 %v6880
  %9051 = vmatpush1.msra.mxu0 %v6879
  %9052 = vmatprep.subr.mxu0 %v6873
  %9053 = vmatpush1.msra.mxu0 %v6872
  %9054 = vmatprep.subr.mxu0 %v6866
  %9055 = vmatpush1.msra.mxu0 %v6865
  %9056 = vmatprep.subr.mxu0 %v6859
  %9057 = vmatpush1.msra.mxu0 %v6858
  %9058 = vmatprep.subr.mxu0 %v6852
  %9059 = vmatpush1.msra.mxu0 %v6851
  %9060 = vmatprep.subr.mxu0 %v6845
  %9061 = vmatpush1.msra.mxu0 %v6844
  %9062 = vmatprep.subr.mxu0 %v6838
  %9063 = vmatpush1.msra.mxu0 %v6837
  %9064 = vmatprep.subr.mxu0 %v6831
  %9065 = vmatpush1.msra.mxu0 %v6830
  %9066 = vmatprep.subr.mxu0 %v6824
  %9067 = vmatpush1.msra.mxu0 %v6823
  %9068 = vmatprep.subr.mxu0 %v6817
  %9069 = vmatpush1.msra.mxu0 %v6816
  %9070 = vmatprep.subr.mxu0 %v6810
  %9071 = vmatpush1.msra.mxu0 %v6809
  %9072 = vmatprep.subr.mxu0 %v6803
  %9073 = vmatpush1.msra.mxu0 %v6802
  %9074 = vmatprep.subr.mxu0 %v6796
  %9075 = vmatpush1.msra.mxu0 %v6795
  %9076 = vmatprep.subr.mxu0 %v7013
  %9077 = vmatpush2.msra.mxu0 %v7012
  %9078 = vmatprep.subr.mxu0 %v7006
  %9079 = vmatpush2.msra.mxu0 %v7005
  %9080 = vmatprep.subr.mxu0 %v6999
  %9081 = vmatpush2.msra.mxu0 %v6998
  %9082 = vmatprep.subr.mxu0 %v6992
  %9083 = vmatpush2.msra.mxu0 %v6991
  %9084 = vmatprep.subr.mxu0 %v6985
  %9085 = vmatpush2.msra.mxu0 %v6984
  %9086 = vmatprep.subr.mxu0 %v6978
  %9087 = vmatpush2.msra.mxu0 %v6977
  %9088 = vmatprep.subr.mxu0 %v6971
  %9089 = vmatpush2.msra.mxu0 %v6970
  %9090 = vmatprep.subr.mxu0 %v6964
  %9091 = vmatpush2.msra.mxu0 %v6963
  %9092 = vmatprep.subr.mxu0 %v6957
  %9093 = vmatpush2.msra.mxu0 %v6956
  %9094 = vmatprep.subr.mxu0 %v6950
  %9095 = vmatpush2.msra.mxu0 %v6949
  %9096 = vmatprep.subr.mxu0 %v6943
  %9097 = vmatpush2.msra.mxu0 %v6942
  %9098 = vmatprep.subr.mxu0 %v6936
  %9099 = vmatpush2.msra.mxu0 %v6935
  %9100 = vmatprep.subr.mxu0 %v6929
  %9101 = vmatpush2.msra.mxu0 %v6928
  %9102 = vmatprep.subr.mxu0 %v6922
  %9103 = vmatpush2.msra.mxu0 %v6921
  %9104 = vmatprep.subr.mxu0 %v6915
  %9105 = vmatpush2.msra.mxu0 %v6914
  %9106 = vmatprep.subr.mxu0 %v6908
  %9107 = vmatpush2.msra.mxu0 %v6907
  %9108 = vmatprep.mubr.f32.mxu0 %v6557
  %9109 = vmatmul.mubr.f32.gmra.mxu0 %v6556
  %v9110 = vpop.f32.mrf.mxu0
  %v9111 = vadd.f32 %v9040, %v9110
  %v9112 = vpop.f32.mrf.mxu0
  %v9113 = vadd.f32 %v9042, %v9112
  %9114 = vdwg.mxu0
  %9115 = vmatprep.subr.mxu0 %v7125
  %9116 = vmatpush1.msra.mxu0 %v7124
  %9117 = vmatprep.subr.mxu0 %v7118
  %9118 = vmatpush1.msra.mxu0 %v7117
  %9119 = vmatprep.subr.mxu0 %v7111
  %9120 = vmatpush1.msra.mxu0 %v7110
  %9121 = vmatprep.subr.mxu0 %v7104
  %9122 = vmatpush1.msra.mxu0 %v7103
  %9123 = vmatprep.subr.mxu0 %v7097
  %9124 = vmatpush1.msra.mxu0 %v7096
  %9125 = vmatprep.subr.mxu0 %v7090
  %9126 = vmatpush1.msra.mxu0 %v7089
  %9127 = vmatprep.subr.mxu0 %v7083
  %9128 = vmatpush1.msra.mxu0 %v7082
  %9129 = vmatprep.subr.mxu0 %v7076
  %9130 = vmatpush1.msra.mxu0 %v7075
  %9131 = vmatprep.subr.mxu0 %v7069
  %9132 = vmatpush1.msra.mxu0 %v7068
  %9133 = vmatprep.subr.mxu0 %v7062
  %9134 = vmatpush1.msra.mxu0 %v7061
  %9135 = vmatprep.subr.mxu0 %v7055
  %9136 = vmatpush1.msra.mxu0 %v7054
  %9137 = vmatprep.subr.mxu0 %v7048
  %9138 = vmatpush1.msra.mxu0 %v7047
  %9139 = vmatprep.subr.mxu0 %v7041
  %9140 = vmatpush1.msra.mxu0 %v7040
  %9141 = vmatprep.subr.mxu0 %v7034
  %9142 = vmatpush1.msra.mxu0 %v7033
  %9143 = vmatprep.subr.mxu0 %v7027
  %9144 = vmatpush1.msra.mxu0 %v7026
  %9145 = vmatprep.subr.mxu0 %v7020
  %9146 = vmatpush1.msra.mxu0 %v7019
  %9147 = vmatprep.subr.mxu0 %v7237
  %9148 = vmatpush2.msra.mxu0 %v7236
  %9149 = vmatprep.subr.mxu0 %v7230
  %9150 = vmatpush2.msra.mxu0 %v7229
  %9151 = vmatprep.subr.mxu0 %v7223
  %9152 = vmatpush2.msra.mxu0 %v7222
  %9153 = vmatprep.subr.mxu0 %v7216
  %9154 = vmatpush2.msra.mxu0 %v7215
  %9155 = vmatprep.subr.mxu0 %v7209
  %9156 = vmatpush2.msra.mxu0 %v7208
  %9157 = vmatprep.subr.mxu0 %v7202
  %9158 = vmatpush2.msra.mxu0 %v7201
  %9159 = vmatprep.subr.mxu0 %v7195
  %9160 = vmatpush2.msra.mxu0 %v7194
  %9161 = vmatprep.subr.mxu0 %v7188
  %9162 = vmatpush2.msra.mxu0 %v7187
  %9163 = vmatprep.subr.mxu0 %v7181
  %9164 = vmatpush2.msra.mxu0 %v7180
  %9165 = vmatprep.subr.mxu0 %v7174
  %9166 = vmatpush2.msra.mxu0 %v7173
  %9167 = vmatprep.subr.mxu0 %v7167
  %9168 = vmatpush2.msra.mxu0 %v7166
  %9169 = vmatprep.subr.mxu0 %v7160
  %9170 = vmatpush2.msra.mxu0 %v7159
  %9171 = vmatprep.subr.mxu0 %v7153
  %9172 = vmatpush2.msra.mxu0 %v7152
  %9173 = vmatprep.subr.mxu0 %v7146
  %9174 = vmatpush2.msra.mxu0 %v7145
  %9175 = vmatprep.subr.mxu0 %v7139
  %9176 = vmatpush2.msra.mxu0 %v7138
  %9177 = vmatprep.subr.mxu0 %v7132
  %9178 = vmatpush2.msra.mxu0 %v7131
  %9179 = vmatprep.mubr.f32.mxu0 %v6559
  %9180 = vmatmul.mubr.f32.gmra.mxu0 %v6558
  %v9181 = vpop.f32.mrf.mxu0
  %v9182 = vadd.f32 %v9111, %v9181
  %v9183 = vpop.f32.mrf.mxu0
  %v9184 = vadd.f32 %v9113, %v9183
  %9185 = vdwg.mxu0
  %9186 = vmatprep.subr.mxu0 %v7349
  %9187 = vmatpush1.msra.mxu0 %v7348
  %9188 = vmatprep.subr.mxu0 %v7342
  %9189 = vmatpush1.msra.mxu0 %v7341
  %9190 = vmatprep.subr.mxu0 %v7335
  %9191 = vmatpush1.msra.mxu0 %v7334
  %9192 = vmatprep.subr.mxu0 %v7328
  %9193 = vmatpush1.msra.mxu0 %v7327
  %9194 = vmatprep.subr.mxu0 %v7321
  %9195 = vmatpush1.msra.mxu0 %v7320
  %9196 = vmatprep.subr.mxu0 %v7314
  %9197 = vmatpush1.msra.mxu0 %v7313
  %9198 = vmatprep.subr.mxu0 %v7307
  %9199 = vmatpush1.msra.mxu0 %v7306
  %9200 = vmatprep.subr.mxu0 %v7300
  %9201 = vmatpush1.msra.mxu0 %v7299
  %9202 = vmatprep.subr.mxu0 %v7293
  %9203 = vmatpush1.msra.mxu0 %v7292
  %9204 = vmatprep.subr.mxu0 %v7286
  %9205 = vmatpush1.msra.mxu0 %v7285
  %9206 = vmatprep.subr.mxu0 %v7279
  %9207 = vmatpush1.msra.mxu0 %v7278
  %9208 = vmatprep.subr.mxu0 %v7272
  %9209 = vmatpush1.msra.mxu0 %v7271
  %9210 = vmatprep.subr.mxu0 %v7265
  %9211 = vmatpush1.msra.mxu0 %v7264
  %9212 = vmatprep.subr.mxu0 %v7258
  %9213 = vmatpush1.msra.mxu0 %v7257
  %9214 = vmatprep.subr.mxu0 %v7251
  %9215 = vmatpush1.msra.mxu0 %v7250
  %9216 = vmatprep.subr.mxu0 %v7244
  %9217 = vmatpush1.msra.mxu0 %v7243
  %9218 = vmatprep.subr.mxu0 %v7461
  %9219 = vmatpush2.msra.mxu0 %v7460
  %9220 = vmatprep.subr.mxu0 %v7454
  %9221 = vmatpush2.msra.mxu0 %v7453
  %9222 = vmatprep.subr.mxu0 %v7447
  %9223 = vmatpush2.msra.mxu0 %v7446
  %9224 = vmatprep.subr.mxu0 %v7440
  %9225 = vmatpush2.msra.mxu0 %v7439
  %9226 = vmatprep.subr.mxu0 %v7433
  %9227 = vmatpush2.msra.mxu0 %v7432
  %9228 = vmatprep.subr.mxu0 %v7426
  %9229 = vmatpush2.msra.mxu0 %v7425
  %9230 = vmatprep.subr.mxu0 %v7419
  %9231 = vmatpush2.msra.mxu0 %v7418
  %9232 = vmatprep.subr.mxu0 %v7412
  %9233 = vmatpush2.msra.mxu0 %v7411
  %9234 = vmatprep.subr.mxu0 %v7405
  %9235 = vmatpush2.msra.mxu0 %v7404
  %9236 = vmatprep.subr.mxu0 %v7398
  %9237 = vmatpush2.msra.mxu0 %v7397
  %9238 = vmatprep.subr.mxu0 %v7391
  %9239 = vmatpush2.msra.mxu0 %v7390
  %9240 = vmatprep.subr.mxu0 %v7384
  %9241 = vmatpush2.msra.mxu0 %v7383
  %9242 = vmatprep.subr.mxu0 %v7377
  %9243 = vmatpush2.msra.mxu0 %v7376
  %9244 = vmatprep.subr.mxu0 %v7370
  %9245 = vmatpush2.msra.mxu0 %v7369
  %9246 = vmatprep.subr.mxu0 %v7363
  %9247 = vmatpush2.msra.mxu0 %v7362
  %9248 = vmatprep.subr.mxu0 %v7356
  %9249 = vmatpush2.msra.mxu0 %v7355
  %9250 = vmatprep.mubr.f32.mxu0 %v6561
  %9251 = vmatmul.mubr.f32.gmra.mxu0 %v6560
  %v9252 = vpop.f32.mrf.mxu0
  %v9253 = vadd.f32 %v9182, %v9252
  %v9254 = vpop.f32.mrf.mxu0
  %v9255 = vadd.f32 %v9184, %v9254
  %9256 = vdwg.mxu0
  %9257 = vmatprep.subr.mxu0 %v7573
  %9258 = vmatpush1.msra.mxu0 %v7572
  %9259 = vmatprep.subr.mxu0 %v7566
  %9260 = vmatpush1.msra.mxu0 %v7565
  %9261 = vmatprep.subr.mxu0 %v7559
  %9262 = vmatpush1.msra.mxu0 %v7558
  %9263 = vmatprep.subr.mxu0 %v7552
  %9264 = vmatpush1.msra.mxu0 %v7551
  %9265 = vmatprep.subr.mxu0 %v7545
  %9266 = vmatpush1.msra.mxu0 %v7544
  %9267 = vmatprep.subr.mxu0 %v7538
  %9268 = vmatpush1.msra.mxu0 %v7537
  %9269 = vmatprep.subr.mxu0 %v7531
  %9270 = vmatpush1.msra.mxu0 %v7530
  %9271 = vmatprep.subr.mxu0 %v7524
  %9272 = vmatpush1.msra.mxu0 %v7523
  %9273 = vmatprep.subr.mxu0 %v7517
  %9274 = vmatpush1.msra.mxu0 %v7516
  %9275 = vmatprep.subr.mxu0 %v7510
  %9276 = vmatpush1.msra.mxu0 %v7509
  %9277 = vmatprep.subr.mxu0 %v7503
  %9278 = vmatpush1.msra.mxu0 %v7502
  %9279 = vmatprep.subr.mxu0 %v7496
  %9280 = vmatpush1.msra.mxu0 %v7495
  %9281 = vmatprep.subr.mxu0 %v7489
  %9282 = vmatpush1.msra.mxu0 %v7488
  %9283 = vmatprep.subr.mxu0 %v7482
  %9284 = vmatpush1.msra.mxu0 %v7481
  %9285 = vmatprep.subr.mxu0 %v7475
  %9286 = vmatpush1.msra.mxu0 %v7474
  %9287 = vmatprep.subr.mxu0 %v7468
  %9288 = vmatpush1.msra.mxu0 %v7467
  %9289 = vmatprep.subr.mxu0 %v7685
  %9290 = vmatpush2.msra.mxu0 %v7684
  %9291 = vmatprep.subr.mxu0 %v7678
  %9292 = vmatpush2.msra.mxu0 %v7677
  %9293 = vmatprep.subr.mxu0 %v7671
  %9294 = vmatpush2.msra.mxu0 %v7670
  %9295 = vmatprep.subr.mxu0 %v7664
  %9296 = vmatpush2.msra.mxu0 %v7663
  %9297 = vmatprep.subr.mxu0 %v7657
  %9298 = vmatpush2.msra.mxu0 %v7656
  %9299 = vmatprep.subr.mxu0 %v7650
  %9300 = vmatpush2.msra.mxu0 %v7649
  %9301 = vmatprep.subr.mxu0 %v7643
  %9302 = vmatpush2.msra.mxu0 %v7642
  %9303 = vmatprep.subr.mxu0 %v7636
  %9304 = vmatpush2.msra.mxu0 %v7635
  %9305 = vmatprep.subr.mxu0 %v7629
  %9306 = vmatpush2.msra.mxu0 %v7628
  %9307 = vmatprep.subr.mxu0 %v7622
  %9308 = vmatpush2.msra.mxu0 %v7621
  %9309 = vmatprep.subr.mxu0 %v7615
  %9310 = vmatpush2.msra.mxu0 %v7614
  %9311 = vmatprep.subr.mxu0 %v7608
  %9312 = vmatpush2.msra.mxu0 %v7607
  %9313 = vmatprep.subr.mxu0 %v7601
  %9314 = vmatpush2.msra.mxu0 %v7600
  %9315 = vmatprep.subr.mxu0 %v7594
  %9316 = vmatpush2.msra.mxu0 %v7593
  %9317 = vmatprep.subr.mxu0 %v7587
  %9318 = vmatpush2.msra.mxu0 %v7586
  %9319 = vmatprep.subr.mxu0 %v7580
  %9320 = vmatpush2.msra.mxu0 %v7579
  %9321 = vmatprep.mubr.f32.mxu0 %v6563
  %9322 = vmatmul.mubr.f32.gmra.mxu0 %v6562
  %v9323 = vpop.f32.mrf.mxu0
  %v9324 = vadd.f32 %v9253, %v9323
  %v9325 = vpop.f32.mrf.mxu0
  %v9326 = vadd.f32 %v9255, %v9325
  %9327 = vdwg.mxu0
  %9328 = vmatprep.subr.mxu0 %v7797
  %9329 = vmatpush1.msra.mxu0 %v7796
  %9330 = vmatprep.subr.mxu0 %v7790
  %9331 = vmatpush1.msra.mxu0 %v7789
  %9332 = vmatprep.subr.mxu0 %v7783
  %9333 = vmatpush1.msra.mxu0 %v7782
  %9334 = vmatprep.subr.mxu0 %v7776
  %9335 = vmatpush1.msra.mxu0 %v7775
  %9336 = vmatprep.subr.mxu0 %v7769
  %9337 = vmatpush1.msra.mxu0 %v7768
  %9338 = vmatprep.subr.mxu0 %v7762
  %9339 = vmatpush1.msra.mxu0 %v7761
  %9340 = vmatprep.subr.mxu0 %v7755
  %9341 = vmatpush1.msra.mxu0 %v7754
  %9342 = vmatprep.subr.mxu0 %v7748
  %9343 = vmatpush1.msra.mxu0 %v7747
  %9344 = vmatprep.subr.mxu0 %v7741
  %9345 = vmatpush1.msra.mxu0 %v7740
  %9346 = vmatprep.subr.mxu0 %v7734
  %9347 = vmatpush1.msra.mxu0 %v7733
  %9348 = vmatprep.subr.mxu0 %v7727
  %9349 = vmatpush1.msra.mxu0 %v7726
  %9350 = vmatprep.subr.mxu0 %v7720
  %9351 = vmatpush1.msra.mxu0 %v7719
  %9352 = vmatprep.subr.mxu0 %v7713
  %9353 = vmatpush1.msra.mxu0 %v7712
  %9354 = vmatprep.subr.mxu0 %v7706
  %9355 = vmatpush1.msra.mxu0 %v7705
  %9356 = vmatprep.subr.mxu0 %v7699
  %9357 = vmatpush1.msra.mxu0 %v7698
  %9358 = vmatprep.subr.mxu0 %v7692
  %9359 = vmatpush1.msra.mxu0 %v7691
  %9360 = vmatprep.subr.mxu0 %v7909
  %9361 = vmatpush2.msra.mxu0 %v7908
  %9362 = vmatprep.subr.mxu0 %v7902
  %9363 = vmatpush2.msra.mxu0 %v7901
  %9364 = vmatprep.subr.mxu0 %v7895
  %9365 = vmatpush2.msra.mxu0 %v7894
  %9366 = vmatprep.subr.mxu0 %v7888
  %9367 = vmatpush2.msra.mxu0 %v7887
  %9368 = vmatprep.subr.mxu0 %v7881
  %9369 = vmatpush2.msra.mxu0 %v7880
  %9370 = vmatprep.subr.mxu0 %v7874
  %9371 = vmatpush2.msra.mxu0 %v7873
  %9372 = vmatprep.subr.mxu0 %v7867
  %9373 = vmatpush2.msra.mxu0 %v7866
  %9374 = vmatprep.subr.mxu0 %v7860
  %9375 = vmatpush2.msra.mxu0 %v7859
  %9376 = vmatprep.subr.mxu0 %v7853
  %9377 = vmatpush2.msra.mxu0 %v7852
  %9378 = vmatprep.subr.mxu0 %v7846
  %9379 = vmatpush2.msra.mxu0 %v7845
  %9380 = vmatprep.subr.mxu0 %v7839
  %9381 = vmatpush2.msra.mxu0 %v7838
  %9382 = vmatprep.subr.mxu0 %v7832
  %9383 = vmatpush2.msra.mxu0 %v7831
  %9384 = vmatprep.subr.mxu0 %v7825
  %9385 = vmatpush2.msra.mxu0 %v7824
  %9386 = vmatprep.subr.mxu0 %v7818
  %9387 = vmatpush2.msra.mxu0 %v7817
  %9388 = vmatprep.subr.mxu0 %v7811
  %9389 = vmatpush2.msra.mxu0 %v7810
  %9390 = vmatprep.subr.mxu0 %v7804
  %9391 = vmatpush2.msra.mxu0 %v7803
  %9392 = vmatprep.mubr.f32.mxu0 %v6565
  %9393 = vmatmul.mubr.f32.gmra.mxu0 %v6564
  %v9394 = vpop.f32.mrf.mxu0
  %v9395 = vadd.f32 %v9324, %v9394
  %v9396 = vpop.f32.mrf.mxu0
  %v9397 = vadd.f32 %v9326, %v9396
  %9398 = vdwg.mxu0
  %9399 = vmatprep.subr.mxu0 0.0
  %9400 = vmatpush1.msra.mxu0 0.0
  %9401 = vmatprep.subr.mxu0 0.0
  %9402 = vmatpush1.msra.mxu0 0.0
  %9403 = vmatprep.subr.mxu0 0.0
  %9404 = vmatpush1.msra.mxu0 0.0
  %9405 = vmatprep.subr.mxu0 0.0
  %9406 = vmatpush1.msra.mxu0 0.0
  %9407 = vmatprep.subr.mxu0 0.0
  %9408 = vmatpush1.msra.mxu0 0.0
  %9409 = vmatprep.subr.mxu0 0.0
  %9410 = vmatpush1.msra.mxu0 0.0
  %9411 = vmatprep.subr.mxu0 0.0
  %9412 = vmatpush1.msra.mxu0 0.0
  %9413 = vmatprep.subr.mxu0 0.0
  %9414 = vmatpush1.msra.mxu0 0.0
  %9415 = vmatprep.subr.mxu0 0.0
  %9416 = vmatpush1.msra.mxu0 0.0
  %9417 = vmatprep.subr.mxu0 0.0
  %9418 = vmatpush1.msra.mxu0 0.0
  %9419 = vmatprep.subr.mxu0 0.0
  %9420 = vmatpush1.msra.mxu0 0.0
  %9421 = vmatprep.subr.mxu0 0.0
  %9422 = vmatpush1.msra.mxu0 0.0
  %9423 = vmatprep.subr.mxu0 %v7937
  %9424 = vmatpush1.msra.mxu0 %v7936
  %9425 = vmatprep.subr.mxu0 %v7930
  %9426 = vmatpush1.msra.mxu0 %v7929
  %9427 = vmatprep.subr.mxu0 %v7923
  %9428 = vmatpush1.msra.mxu0 %v7922
  %9429 = vmatprep.subr.mxu0 %v7916
  %9430 = vmatpush1.msra.mxu0 %v7915
  %9431 = vmatprep.subr.mxu0 0.0
  %9432 = vmatpush2.msra.mxu0 0.0
  %9433 = vmatprep.subr.mxu0 0.0
  %9434 = vmatpush2.msra.mxu0 0.0
  %9435 = vmatprep.subr.mxu0 0.0
  %9436 = vmatpush2.msra.mxu0 0.0
  %9437 = vmatprep.subr.mxu0 0.0
  %9438 = vmatpush2.msra.mxu0 0.0
  %9439 = vmatprep.subr.mxu0 0.0
  %9440 = vmatpush2.msra.mxu0 0.0
  %9441 = vmatprep.subr.mxu0 0.0
  %9442 = vmatpush2.msra.mxu0 0.0
  %9443 = vmatprep.subr.mxu0 0.0
  %9444 = vmatpush2.msra.mxu0 0.0
  %9445 = vmatprep.subr.mxu0 0.0
  %9446 = vmatpush2.msra.mxu0 0.0
  %9447 = vmatprep.subr.mxu0 0.0
  %9448 = vmatpush2.msra.mxu0 0.0
  %9449 = vmatprep.subr.mxu0 0.0
  %9450 = vmatpush2.msra.mxu0 0.0
  %9451 = vmatprep.subr.mxu0 0.0
  %9452 = vmatpush2.msra.mxu0 0.0
  %9453 = vmatprep.subr.mxu0 0.0
  %9454 = vmatpush2.msra.mxu0 0.0
  %9455 = vmatprep.subr.mxu0 0.0
  %9456 = vmatpush2.msra.mxu0 0.0
  %9457 = vmatprep.subr.mxu0 0.0
  %9458 = vmatpush2.msra.mxu0 0.0
  %9459 = vmatprep.subr.mxu0 0.0
  %9460 = vmatpush2.msra.mxu0 0.0
  %9461 = vmatprep.subr.mxu0 0.0
  %9462 = vmatpush2.msra.mxu0 0.0
  %9463 = vmatprep.mubr.f32.mxu0 0.0
  %9464 = vmatmul.mubr.f32.gmra.mxu0 %v7977
  %v9465 = vpop.f32.mrf.mxu0
  %v9466 = vadd.f32 %v9395, %v9465
  %v9467 = vpop.f32.mrf.mxu0
  %v9468 = vadd.f32 %v9397, %v9467
  %9469 = vdwg.mxu0
  %9470 = vmatprep.subr.mxu0 0.0
  %9471 = vmatpush1.msra.mxu0 %v6678
  %9472 = vmatprep.subr.mxu0 0.0
  %9473 = vmatpush1.msra.mxu0 %v6671
  %9474 = vmatprep.subr.mxu0 0.0
  %9475 = vmatpush1.msra.mxu0 %v6664
  %9476 = vmatprep.subr.mxu0 0.0
  %9477 = vmatpush1.msra.mxu0 %v6657
  %9478 = vmatprep.subr.mxu0 0.0
  %9479 = vmatpush1.msra.mxu0 %v6650
  %9480 = vmatprep.subr.mxu0 0.0
  %9481 = vmatpush1.msra.mxu0 %v6643
  %9482 = vmatprep.subr.mxu0 0.0
  %9483 = vmatpush1.msra.mxu0 %v6636
  %9484 = vmatprep.subr.mxu0 0.0
  %9485 = vmatpush1.msra.mxu0 %v6629
  %9486 = vmatprep.subr.mxu0 0.0
  %9487 = vmatpush1.msra.mxu0 %v6622
  %9488 = vmatprep.subr.mxu0 0.0
  %9489 = vmatpush1.msra.mxu0 %v6615
  %9490 = vmatprep.subr.mxu0 0.0
  %9491 = vmatpush1.msra.mxu0 %v6608
  %9492 = vmatprep.subr.mxu0 0.0
  %9493 = vmatpush1.msra.mxu0 %v6601
  %9494 = vmatprep.subr.mxu0 0.0
  %9495 = vmatpush1.msra.mxu0 %v6594
  %9496 = vmatprep.subr.mxu0 0.0
  %9497 = vmatpush1.msra.mxu0 %v6587
  %9498 = vmatprep.subr.mxu0 0.0
  %9499 = vmatpush1.msra.mxu0 %v6580
  %9500 = vmatprep.subr.mxu0 0.0
  %9501 = vmatpush1.msra.mxu0 %v6573
  %9502 = vmatprep.subr.mxu0 0.0
  %9503 = vmatpush2.msra.mxu0 %v6790
  %9504 = vmatprep.subr.mxu0 0.0
  %9505 = vmatpush2.msra.mxu0 %v6783
  %9506 = vmatprep.subr.mxu0 0.0
  %9507 = vmatpush2.msra.mxu0 %v6776
  %9508 = vmatprep.subr.mxu0 0.0
  %9509 = vmatpush2.msra.mxu0 %v6769
  %9510 = vmatprep.subr.mxu0 0.0
  %9511 = vmatpush2.msra.mxu0 %v6762
  %9512 = vmatprep.subr.mxu0 0.0
  %9513 = vmatpush2.msra.mxu0 %v6755
  %9514 = vmatprep.subr.mxu0 0.0
  %9515 = vmatpush2.msra.mxu0 %v6748
  %9516 = vmatprep.subr.mxu0 0.0
  %9517 = vmatpush2.msra.mxu0 %v6741
  %9518 = vmatprep.subr.mxu0 0.0
  %9519 = vmatpush2.msra.mxu0 %v6734
  %9520 = vmatprep.subr.mxu0 0.0
  %9521 = vmatpush2.msra.mxu0 %v6727
  %9522 = vmatprep.subr.mxu0 0.0
  %9523 = vmatpush2.msra.mxu0 %v6720
  %9524 = vmatprep.subr.mxu0 0.0
  %9525 = vmatpush2.msra.mxu0 %v6713
  %9526 = vmatprep.subr.mxu0 0.0
  %9527 = vmatpush2.msra.mxu0 %v6706
  %9528 = vmatprep.subr.mxu0 0.0
  %9529 = vmatpush2.msra.mxu0 %v6699
  %9530 = vmatprep.subr.mxu0 0.0
  %9531 = vmatpush2.msra.mxu0 %v6692
  %9532 = vmatprep.subr.mxu0 0.0
  %9533 = vmatpush2.msra.mxu0 %v6685
  %9534 = vmatprep.mubr.f32.mxu0 %v6555
  %9535 = vmatmul.mubr.f32.gmra.mxu0 %v6554
  %v9536 = vpop.f32.mrf.mxu0
  %v9537 = vadd.f32 %v7968, %v9536
  %v9538 = vpop.f32.mrf.mxu0
  %9539 = vdwg.mxu0
  %9540 = vmatprep.subr.mxu0 0.0
  %9541 = vmatpush1.msra.mxu0 %v6902
  %9542 = vmatprep.subr.mxu0 0.0
  %9543 = vmatpush1.msra.mxu0 %v6895
  %9544 = vmatprep.subr.mxu0 0.0
  %9545 = vmatpush1.msra.mxu0 %v6888
  %9546 = vmatprep.subr.mxu0 0.0
  %9547 = vmatpush1.msra.mxu0 %v6881
  %9548 = vmatprep.subr.mxu0 0.0
  %9549 = vmatpush1.msra.mxu0 %v6874
  %9550 = vmatprep.subr.mxu0 0.0
  %9551 = vmatpush1.msra.mxu0 %v6867
  %9552 = vmatprep.subr.mxu0 0.0
  %9553 = vmatpush1.msra.mxu0 %v6860
  %9554 = vmatprep.subr.mxu0 0.0
  %9555 = vmatpush1.msra.mxu0 %v6853
  %9556 = vmatprep.subr.mxu0 0.0
  %9557 = vmatpush1.msra.mxu0 %v6846
  %9558 = vmatprep.subr.mxu0 0.0
  %9559 = vmatpush1.msra.mxu0 %v6839
  %9560 = vmatprep.subr.mxu0 0.0
  %9561 = vmatpush1.msra.mxu0 %v6832
  %9562 = vmatprep.subr.mxu0 0.0
  %9563 = vmatpush1.msra.mxu0 %v6825
  %9564 = vmatprep.subr.mxu0 0.0
  %9565 = vmatpush1.msra.mxu0 %v6818
  %9566 = vmatprep.subr.mxu0 0.0
  %9567 = vmatpush1.msra.mxu0 %v6811
  %9568 = vmatprep.subr.mxu0 0.0
  %9569 = vmatpush1.msra.mxu0 %v6804
  %9570 = vmatprep.subr.mxu0 0.0
  %9571 = vmatpush1.msra.mxu0 %v6797
  %9572 = vmatprep.subr.mxu0 0.0
  %9573 = vmatpush2.msra.mxu0 %v7014
  %9574 = vmatprep.subr.mxu0 0.0
  %9575 = vmatpush2.msra.mxu0 %v7007
  %9576 = vmatprep.subr.mxu0 0.0
  %9577 = vmatpush2.msra.mxu0 %v7000
  %9578 = vmatprep.subr.mxu0 0.0
  %9579 = vmatpush2.msra.mxu0 %v6993
  %9580 = vmatprep.subr.mxu0 0.0
  %9581 = vmatpush2.msra.mxu0 %v6986
  %9582 = vmatprep.subr.mxu0 0.0
  %9583 = vmatpush2.msra.mxu0 %v6979
  %9584 = vmatprep.subr.mxu0 0.0
  %9585 = vmatpush2.msra.mxu0 %v6972
  %9586 = vmatprep.subr.mxu0 0.0
  %9587 = vmatpush2.msra.mxu0 %v6965
  %9588 = vmatprep.subr.mxu0 0.0
  %9589 = vmatpush2.msra.mxu0 %v6958
  %9590 = vmatprep.subr.mxu0 0.0
  %9591 = vmatpush2.msra.mxu0 %v6951
  %9592 = vmatprep.subr.mxu0 0.0
  %9593 = vmatpush2.msra.mxu0 %v6944
  %9594 = vmatprep.subr.mxu0 0.0
  %9595 = vmatpush2.msra.mxu0 %v6937
  %9596 = vmatprep.subr.mxu0 0.0
  %9597 = vmatpush2.msra.mxu0 %v6930
  %9598 = vmatprep.subr.mxu0 0.0
  %9599 = vmatpush2.msra.mxu0 %v6923
  %9600 = vmatprep.subr.mxu0 0.0
  %9601 = vmatpush2.msra.mxu0 %v6916
  %9602 = vmatprep.subr.mxu0 0.0
  %9603 = vmatpush2.msra.mxu0 %v6909
  %9604 = vmatprep.mubr.f32.mxu0 %v6557
  %9605 = vmatmul.mubr.f32.gmra.mxu0 %v6556
  %v9606 = vpop.f32.mrf.mxu0
  %v9607 = vadd.f32 %v9537, %v9606
  %v9608 = vpop.f32.mrf.mxu0
  %9609 = vdwg.mxu0
  %9610 = vmatprep.subr.mxu0 0.0
  %9611 = vmatpush1.msra.mxu0 %v7126
  %9612 = vmatprep.subr.mxu0 0.0
  %9613 = vmatpush1.msra.mxu0 %v7119
  %9614 = vmatprep.subr.mxu0 0.0
  %9615 = vmatpush1.msra.mxu0 %v7112
  %9616 = vmatprep.subr.mxu0 0.0
  %9617 = vmatpush1.msra.mxu0 %v7105
  %9618 = vmatprep.subr.mxu0 0.0
  %9619 = vmatpush1.msra.mxu0 %v7098
  %9620 = vmatprep.subr.mxu0 0.0
  %9621 = vmatpush1.msra.mxu0 %v7091
  %9622 = vmatprep.subr.mxu0 0.0
  %9623 = vmatpush1.msra.mxu0 %v7084
  %9624 = vmatprep.subr.mxu0 0.0
  %9625 = vmatpush1.msra.mxu0 %v7077
  %9626 = vmatprep.subr.mxu0 0.0
  %9627 = vmatpush1.msra.mxu0 %v7070
  %9628 = vmatprep.subr.mxu0 0.0
  %9629 = vmatpush1.msra.mxu0 %v7063
  %9630 = vmatprep.subr.mxu0 0.0
  %9631 = vmatpush1.msra.mxu0 %v7056
  %9632 = vmatprep.subr.mxu0 0.0
  %9633 = vmatpush1.msra.mxu0 %v7049
  %9634 = vmatprep.subr.mxu0 0.0
  %9635 = vmatpush1.msra.mxu0 %v7042
  %9636 = vmatprep.subr.mxu0 0.0
  %9637 = vmatpush1.msra.mxu0 %v7035
  %9638 = vmatprep.subr.mxu0 0.0
  %9639 = vmatpush1.msra.mxu0 %v7028
  %9640 = vmatprep.subr.mxu0 0.0
  %9641 = vmatpush1.msra.mxu0 %v7021
  %9642 = vmatprep.subr.mxu0 0.0
  %9643 = vmatpush2.msra.mxu0 %v7238
  %9644 = vmatprep.subr.mxu0 0.0
  %9645 = vmatpush2.msra.mxu0 %v7231
  %9646 = vmatprep.subr.mxu0 0.0
  %9647 = vmatpush2.msra.mxu0 %v7224
  %9648 = vmatprep.subr.mxu0 0.0
  %9649 = vmatpush2.msra.mxu0 %v7217
  %9650 = vmatprep.subr.mxu0 0.0
  %9651 = vmatpush2.msra.mxu0 %v7210
  %9652 = vmatprep.subr.mxu0 0.0
  %9653 = vmatpush2.msra.mxu0 %v7203
  %9654 = vmatprep.subr.mxu0 0.0
  %9655 = vmatpush2.msra.mxu0 %v7196
  %9656 = vmatprep.subr.mxu0 0.0
  %9657 = vmatpush2.msra.mxu0 %v7189
  %9658 = vmatprep.subr.mxu0 0.0
  %9659 = vmatpush2.msra.mxu0 %v7182
  %9660 = vmatprep.subr.mxu0 0.0
  %9661 = vmatpush2.msra.mxu0 %v7175
  %9662 = vmatprep.subr.mxu0 0.0
  %9663 = vmatpush2.msra.mxu0 %v7168
  %9664 = vmatprep.subr.mxu0 0.0
  %9665 = vmatpush2.msra.mxu0 %v7161
  %9666 = vmatprep.subr.mxu0 0.0
  %9667 = vmatpush2.msra.mxu0 %v7154
  %9668 = vmatprep.subr.mxu0 0.0
  %9669 = vmatpush2.msra.mxu0 %v7147
  %9670 = vmatprep.subr.mxu0 0.0
  %9671 = vmatpush2.msra.mxu0 %v7140
  %9672 = vmatprep.subr.mxu0 0.0
  %9673 = vmatpush2.msra.mxu0 %v7133
  %9674 = vmatprep.mubr.f32.mxu0 %v6559
  %9675 = vmatmul.mubr.f32.gmra.mxu0 %v6558
  %v9676 = vpop.f32.mrf.mxu0
  %v9677 = vadd.f32 %v9607, %v9676
  %v9678 = vpop.f32.mrf.mxu0
  %9679 = vdwg.mxu0
  %9680 = vmatprep.subr.mxu0 0.0
  %9681 = vmatpush1.msra.mxu0 %v7350
  %9682 = vmatprep.subr.mxu0 0.0
  %9683 = vmatpush1.msra.mxu0 %v7343
  %9684 = vmatprep.subr.mxu0 0.0
  %9685 = vmatpush1.msra.mxu0 %v7336
  %9686 = vmatprep.subr.mxu0 0.0
  %9687 = vmatpush1.msra.mxu0 %v7329
  %9688 = vmatprep.subr.mxu0 0.0
  %9689 = vmatpush1.msra.mxu0 %v7322
  %9690 = vmatprep.subr.mxu0 0.0
  %9691 = vmatpush1.msra.mxu0 %v7315
  %9692 = vmatprep.subr.mxu0 0.0
  %9693 = vmatpush1.msra.mxu0 %v7308
  %9694 = vmatprep.subr.mxu0 0.0
  %9695 = vmatpush1.msra.mxu0 %v7301
  %9696 = vmatprep.subr.mxu0 0.0
  %9697 = vmatpush1.msra.mxu0 %v7294
  %9698 = vmatprep.subr.mxu0 0.0
  %9699 = vmatpush1.msra.mxu0 %v7287
  %9700 = vmatprep.subr.mxu0 0.0
  %9701 = vmatpush1.msra.mxu0 %v7280
  %9702 = vmatprep.subr.mxu0 0.0
  %9703 = vmatpush1.msra.mxu0 %v7273
  %9704 = vmatprep.subr.mxu0 0.0
  %9705 = vmatpush1.msra.mxu0 %v7266
  %9706 = vmatprep.subr.mxu0 0.0
  %9707 = vmatpush1.msra.mxu0 %v7259
  %9708 = vmatprep.subr.mxu0 0.0
  %9709 = vmatpush1.msra.mxu0 %v7252
  %9710 = vmatprep.subr.mxu0 0.0
  %9711 = vmatpush1.msra.mxu0 %v7245
  %9712 = vmatprep.subr.mxu0 0.0
  %9713 = vmatpush2.msra.mxu0 %v7462
  %9714 = vmatprep.subr.mxu0 0.0
  %9715 = vmatpush2.msra.mxu0 %v7455
  %9716 = vmatprep.subr.mxu0 0.0
  %9717 = vmatpush2.msra.mxu0 %v7448
  %9718 = vmatprep.subr.mxu0 0.0
  %9719 = vmatpush2.msra.mxu0 %v7441
  %9720 = vmatprep.subr.mxu0 0.0
  %9721 = vmatpush2.msra.mxu0 %v7434
  %9722 = vmatprep.subr.mxu0 0.0
  %9723 = vmatpush2.msra.mxu0 %v7427
  %9724 = vmatprep.subr.mxu0 0.0
  %9725 = vmatpush2.msra.mxu0 %v7420
  %9726 = vmatprep.subr.mxu0 0.0
  %9727 = vmatpush2.msra.mxu0 %v7413
  %9728 = vmatprep.subr.mxu0 0.0
  %9729 = vmatpush2.msra.mxu0 %v7406
  %9730 = vmatprep.subr.mxu0 0.0
  %9731 = vmatpush2.msra.mxu0 %v7399
  %9732 = vmatprep.subr.mxu0 0.0
  %9733 = vmatpush2.msra.mxu0 %v7392
  %9734 = vmatprep.subr.mxu0 0.0
  %9735 = vmatpush2.msra.mxu0 %v7385
  %9736 = vmatprep.subr.mxu0 0.0
  %9737 = vmatpush2.msra.mxu0 %v7378
  %9738 = vmatprep.subr.mxu0 0.0
  %9739 = vmatpush2.msra.mxu0 %v7371
  %9740 = vmatprep.subr.mxu0 0.0
  %9741 = vmatpush2.msra.mxu0 %v7364
  %9742 = vmatprep.subr.mxu0 0.0
  %9743 = vmatpush2.msra.mxu0 %v7357
  %9744 = vmatprep.mubr.f32.mxu0 %v6561
  %9745 = vmatmul.mubr.f32.gmra.mxu0 %v6560
  %v9746 = vpop.f32.mrf.mxu0
  %v9747 = vadd.f32 %v9677, %v9746
  %v9748 = vpop.f32.mrf.mxu0
  %9749 = vdwg.mxu0
  %9750 = vmatprep.subr.mxu0 0.0
  %9751 = vmatpush1.msra.mxu0 %v7574
  %9752 = vmatprep.subr.mxu0 0.0
  %9753 = vmatpush1.msra.mxu0 %v7567
  %9754 = vmatprep.subr.mxu0 0.0
  %9755 = vmatpush1.msra.mxu0 %v7560
  %9756 = vmatprep.subr.mxu0 0.0
  %9757 = vmatpush1.msra.mxu0 %v7553
  %9758 = vmatprep.subr.mxu0 0.0
  %9759 = vmatpush1.msra.mxu0 %v7546
  %9760 = vmatprep.subr.mxu0 0.0
  %9761 = vmatpush1.msra.mxu0 %v7539
  %9762 = vmatprep.subr.mxu0 0.0
  %9763 = vmatpush1.msra.mxu0 %v7532
  %9764 = vmatprep.subr.mxu0 0.0
  %9765 = vmatpush1.msra.mxu0 %v7525
  %9766 = vmatprep.subr.mxu0 0.0
  %9767 = vmatpush1.msra.mxu0 %v7518
  %9768 = vmatprep.subr.mxu0 0.0
  %9769 = vmatpush1.msra.mxu0 %v7511
  %9770 = vmatprep.subr.mxu0 0.0
  %9771 = vmatpush1.msra.mxu0 %v7504
  %9772 = vmatprep.subr.mxu0 0.0
  %9773 = vmatpush1.msra.mxu0 %v7497
  %9774 = vmatprep.subr.mxu0 0.0
  %9775 = vmatpush1.msra.mxu0 %v7490
  %9776 = vmatprep.subr.mxu0 0.0
  %9777 = vmatpush1.msra.mxu0 %v7483
  %9778 = vmatprep.subr.mxu0 0.0
  %9779 = vmatpush1.msra.mxu0 %v7476
  %9780 = vmatprep.subr.mxu0 0.0
  %9781 = vmatpush1.msra.mxu0 %v7469
  %9782 = vmatprep.subr.mxu0 0.0
  %9783 = vmatpush2.msra.mxu0 %v7686
  %9784 = vmatprep.subr.mxu0 0.0
  %9785 = vmatpush2.msra.mxu0 %v7679
  %9786 = vmatprep.subr.mxu0 0.0
  %9787 = vmatpush2.msra.mxu0 %v7672
  %9788 = vmatprep.subr.mxu0 0.0
  %9789 = vmatpush2.msra.mxu0 %v7665
  %9790 = vmatprep.subr.mxu0 0.0
  %9791 = vmatpush2.msra.mxu0 %v7658
  %9792 = vmatprep.subr.mxu0 0.0
  %9793 = vmatpush2.msra.mxu0 %v7651
  %9794 = vmatprep.subr.mxu0 0.0
  %9795 = vmatpush2.msra.mxu0 %v7644
  %9796 = vmatprep.subr.mxu0 0.0
  %9797 = vmatpush2.msra.mxu0 %v7637
  %9798 = vmatprep.subr.mxu0 0.0
  %9799 = vmatpush2.msra.mxu0 %v7630
  %9800 = vmatprep.subr.mxu0 0.0
  %9801 = vmatpush2.msra.mxu0 %v7623
  %9802 = vmatprep.subr.mxu0 0.0
  %9803 = vmatpush2.msra.mxu0 %v7616
  %9804 = vmatprep.subr.mxu0 0.0
  %9805 = vmatpush2.msra.mxu0 %v7609
  %9806 = vmatprep.subr.mxu0 0.0
  %9807 = vmatpush2.msra.mxu0 %v7602
  %9808 = vmatprep.subr.mxu0 0.0
  %9809 = vmatpush2.msra.mxu0 %v7595
  %9810 = vmatprep.subr.mxu0 0.0
  %9811 = vmatpush2.msra.mxu0 %v7588
  %9812 = vmatprep.subr.mxu0 0.0
  %9813 = vmatpush2.msra.mxu0 %v7581
  %9814 = vmatprep.mubr.f32.mxu0 %v6563
  %9815 = vmatmul.mubr.f32.gmra.mxu0 %v6562
  %v9816 = vpop.f32.mrf.mxu0
  %v9817 = vadd.f32 %v9747, %v9816
  %v9818 = vpop.f32.mrf.mxu0
  %9819 = vdwg.mxu0
  %9820 = vmatprep.subr.mxu0 0.0
  %9821 = vmatpush1.msra.mxu0 %v7798
  %9822 = vmatprep.subr.mxu0 0.0
  %9823 = vmatpush1.msra.mxu0 %v7791
  %9824 = vmatprep.subr.mxu0 0.0
  %9825 = vmatpush1.msra.mxu0 %v7784
  %9826 = vmatprep.subr.mxu0 0.0
  %9827 = vmatpush1.msra.mxu0 %v7777
  %9828 = vmatprep.subr.mxu0 0.0
  %9829 = vmatpush1.msra.mxu0 %v7770
  %9830 = vmatprep.subr.mxu0 0.0
  %9831 = vmatpush1.msra.mxu0 %v7763
  %9832 = vmatprep.subr.mxu0 0.0
  %9833 = vmatpush1.msra.mxu0 %v7756
  %9834 = vmatprep.subr.mxu0 0.0
  %9835 = vmatpush1.msra.mxu0 %v7749
  %9836 = vmatprep.subr.mxu0 0.0
  %9837 = vmatpush1.msra.mxu0 %v7742
  %9838 = vmatprep.subr.mxu0 0.0
  %9839 = vmatpush1.msra.mxu0 %v7735
  %9840 = vmatprep.subr.mxu0 0.0
  %9841 = vmatpush1.msra.mxu0 %v7728
  %9842 = vmatprep.subr.mxu0 0.0
  %9843 = vmatpush1.msra.mxu0 %v7721
  %9844 = vmatprep.subr.mxu0 0.0
  %9845 = vmatpush1.msra.mxu0 %v7714
  %9846 = vmatprep.subr.mxu0 0.0
  %9847 = vmatpush1.msra.mxu0 %v7707
  %9848 = vmatprep.subr.mxu0 0.0
  %9849 = vmatpush1.msra.mxu0 %v7700
  %9850 = vmatprep.subr.mxu0 0.0
  %9851 = vmatpush1.msra.mxu0 %v7693
  %9852 = vmatprep.subr.mxu0 0.0
  %9853 = vmatpush2.msra.mxu0 %v7910
  %9854 = vmatprep.subr.mxu0 0.0
  %9855 = vmatpush2.msra.mxu0 %v7903
  %9856 = vmatprep.subr.mxu0 0.0
  %9857 = vmatpush2.msra.mxu0 %v7896
  %9858 = vmatprep.subr.mxu0 0.0
  %9859 = vmatpush2.msra.mxu0 %v7889
  %9860 = vmatprep.subr.mxu0 0.0
  %9861 = vmatpush2.msra.mxu0 %v7882
  %9862 = vmatprep.subr.mxu0 0.0
  %9863 = vmatpush2.msra.mxu0 %v7875
  %9864 = vmatprep.subr.mxu0 0.0
  %9865 = vmatpush2.msra.mxu0 %v7868
  %9866 = vmatprep.subr.mxu0 0.0
  %9867 = vmatpush2.msra.mxu0 %v7861
  %9868 = vmatprep.subr.mxu0 0.0
  %9869 = vmatpush2.msra.mxu0 %v7854
  %9870 = vmatprep.subr.mxu0 0.0
  %9871 = vmatpush2.msra.mxu0 %v7847
  %9872 = vmatprep.subr.mxu0 0.0
  %9873 = vmatpush2.msra.mxu0 %v7840
  %9874 = vmatprep.subr.mxu0 0.0
  %9875 = vmatpush2.msra.mxu0 %v7833
  %9876 = vmatprep.subr.mxu0 0.0
  %9877 = vmatpush2.msra.mxu0 %v7826
  %9878 = vmatprep.subr.mxu0 0.0
  %9879 = vmatpush2.msra.mxu0 %v7819
  %9880 = vmatprep.subr.mxu0 0.0
  %9881 = vmatpush2.msra.mxu0 %v7812
  %9882 = vmatprep.subr.mxu0 0.0
  %9883 = vmatpush2.msra.mxu0 %v7805
  %9884 = vmatprep.mubr.f32.mxu0 %v6565
  %9885 = vmatmul.mubr.f32.gmra.mxu0 %v6564
  %v9886 = vpop.f32.mrf.mxu0
  %v9887 = vadd.f32 %v9817, %v9886
  %v9888 = vpop.f32.mrf.mxu0
  %9889 = vdwg.mxu0
  %9890 = vmatprep.subr.mxu0 0.0
  %9891 = vmatpush1.msra.mxu0 0.0
  %9892 = vmatprep.subr.mxu0 0.0
  %9893 = vmatpush1.msra.mxu0 0.0
  %9894 = vmatprep.subr.mxu0 0.0
  %9895 = vmatpush1.msra.mxu0 0.0
  %9896 = vmatprep.subr.mxu0 0.0
  %9897 = vmatpush1.msra.mxu0 0.0
  %9898 = vmatprep.subr.mxu0 0.0
  %9899 = vmatpush1.msra.mxu0 0.0
  %9900 = vmatprep.subr.mxu0 0.0
  %9901 = vmatpush1.msra.mxu0 0.0
  %9902 = vmatprep.subr.mxu0 0.0
  %9903 = vmatpush1.msra.mxu0 0.0
  %9904 = vmatprep.subr.mxu0 0.0
  %9905 = vmatpush1.msra.mxu0 0.0
  %9906 = vmatprep.subr.mxu0 0.0
  %9907 = vmatpush1.msra.mxu0 0.0
  %9908 = vmatprep.subr.mxu0 0.0
  %9909 = vmatpush1.msra.mxu0 0.0
  %9910 = vmatprep.subr.mxu0 0.0
  %9911 = vmatpush1.msra.mxu0 0.0
  %9912 = vmatprep.subr.mxu0 0.0
  %9913 = vmatpush1.msra.mxu0 0.0
  %9914 = vmatprep.subr.mxu0 0.0
  %9915 = vmatpush1.msra.mxu0 %v7938
  %9916 = vmatprep.subr.mxu0 0.0
  %9917 = vmatpush1.msra.mxu0 %v7931
  %9918 = vmatprep.subr.mxu0 0.0
  %9919 = vmatpush1.msra.mxu0 %v7924
  %9920 = vmatprep.subr.mxu0 0.0
  %9921 = vmatpush1.msra.mxu0 %v7917
  %9922 = vmatprep.subr.mxu0 0.0
  %9923 = vmatpush2.msra.mxu0 0.0
  %9924 = vmatprep.subr.mxu0 0.0
  %9925 = vmatpush2.msra.mxu0 0.0
  %9926 = vmatprep.subr.mxu0 0.0
  %9927 = vmatpush2.msra.mxu0 0.0
  %9928 = vmatprep.subr.mxu0 0.0
  %9929 = vmatpush2.msra.mxu0 0.0
  %9930 = vmatprep.subr.mxu0 0.0
  %9931 = vmatpush2.msra.mxu0 0.0
  %9932 = vmatprep.subr.mxu0 0.0
  %9933 = vmatpush2.msra.mxu0 0.0
  %9934 = vmatprep.subr.mxu0 0.0
  %9935 = vmatpush2.msra.mxu0 0.0
  %9936 = vmatprep.subr.mxu0 0.0
  %9937 = vmatpush2.msra.mxu0 0.0
  %9938 = vmatprep.subr.mxu0 0.0
  %9939 = vmatpush2.msra.mxu0 0.0
  %9940 = vmatprep.subr.mxu0 0.0
  %9941 = vmatpush2.msra.mxu0 0.0
  %9942 = vmatprep.subr.mxu0 0.0
  %9943 = vmatpush2.msra.mxu0 0.0
  %9944 = vmatprep.subr.mxu0 0.0
  %9945 = vmatpush2.msra.mxu0 0.0
  %9946 = vmatprep.subr.mxu0 0.0
  %9947 = vmatpush2.msra.mxu0 0.0
  %9948 = vmatprep.subr.mxu0 0.0
  %9949 = vmatpush2.msra.mxu0 0.0
  %9950 = vmatprep.subr.mxu0 0.0
  %9951 = vmatpush2.msra.mxu0 0.0
  %9952 = vmatprep.subr.mxu0 0.0
  %9953 = vmatpush2.msra.mxu0 0.0
  %9954 = vmatprep.mubr.f32.mxu0 0.0
  %9955 = vmatmul.mubr.f32.gmra.mxu0 %v7977
  %v9956 = vpop.f32.mrf.mxu0
  %v9957 = vadd.f32 %v9887, %v9956
  %v9958 = vpop.f32.mrf.mxu0
  %9959 = vdwg.mxu0
  %v9960 = vxor.u32 %v8472, 2147483648
  %v9961 = vxor.u32 %v8474, 2147483648
  %v9962 = vxor.u32 %v8969, 2147483648
  %v9963 = vxor.u32 %v8971, 2147483648
  %v9964 = vxor.u32 %v9466, 2147483648
  %v9965 = vxor.u32 %v9468, 2147483648
  %v9966 = vxor.u32 %v9957, 2147483648
  %v9967 = vmul.f32 %v9960, 1.442695
  %v9968 = vpow.pop %v9967
  %v9969 = vmul.f32 %v9961, 1.442695
  %v9970 = vpow.pop %v9969
  %v9971 = vmul.f32 %v9962, 1.442695
  %v9972 = vpow.pop %v9971
  %v9973 = vmul.f32 %v9963, 1.442695
  %v9974 = vpow.pop %v9973
  %v9975 = vmul.f32 %v9964, 1.442695
  %v9976 = vpow.pop %v9975
  %v9977 = vmul.f32 %v9965, 1.442695
  %v9978 = vpow.pop %v9977
  %v9979 = vmul.f32 %v9966, 1.442695
  %v9980 = vpow.pop %v9979
  %v9981 = vadd.f32 %v9968, 1.0
  %v9982 = vadd.f32 %v9970, 1.0
  %v9983 = vadd.f32 %v9972, 1.0
  %v9984 = vadd.f32 %v9974, 1.0
  %v9985 = vadd.f32 %v9976, 1.0
  %v9986 = vadd.f32 %v9978, 1.0
  %v9987 = vadd.f32 %v9980, 1.0
  %v9988 = vrcp.pop %v9981
  %v9989 = vmul.f32 1.0, %v9988
  %v9990 = vrcp.pop %v9982
  %v9991 = vmul.f32 1.0, %v9990
  %v9992 = vrcp.pop %v9983
  %v9993 = vmul.f32 1.0, %v9992
  %v9994 = vrcp.pop %v9984
  %v9995 = vmul.f32 1.0, %v9994
  %v9996 = vrcp.pop %v9985
  %v9997 = vmul.f32 1.0, %v9996
  %v9998 = vrcp.pop %v9986
  %v9999 = vmul.f32 1.0, %v9998
  %v10000 = vrcp.pop %v9987
  %v10001 = vmul.f32 1.0, %v10000
  %v10009 = vcombine.low %v9989, %v9991
  %v10010 = vcombine.low %v9993, %v9995
  %v10012 = vunpack.c.l.s4 1983009808
  %v10013 = vunpack.c.0.s8 %v10012
  %v10014 = vlaneseq
  %v10015 = vshrl.u32 %v10014, 7
  %v10016 = vsub.s32 %v10013, %v10015
  %v10017 = vrot.slane %v10009, %v10016
  %v10019 = vunpack.c.l.s4 1983009808
  %v10020 = vunpack.c.0.s8 %v10019
  %v10021 = vlaneseq
  %v10022 = vshrl.u32 %v10021, 7
  %v10023 = vsub.s32 %v10020, %v10022
  %v10024 = vrot.slane %v10010, %v10023
  %v10025 = vcombine.low %v10017, %v10024
  %v10026 = vcombine.low %v9997, %v9999
  %v10028 = vunpack.c.l.s4 1983009808
  %v10029 = vunpack.c.0.s8 %v10028
  %v10030 = vlaneseq
  %v10031 = vshrl.u32 %v10030, 7
  %v10032 = vsub.s32 %v10029, %v10031
  %v10033 = vrot.slane %v10026, %v10032
  %v10035 = vunpack.c.l.s4 1983009808
  %v10036 = vunpack.c.0.s8 %v10035
  %v10037 = vlaneseq
  %v10038 = vshrl.u32 %v10037, 7
  %v10039 = vsub.s32 %v10036, %v10038
  %v10040 = vrot.slane %v10001, %v10039
  %v10041 = vcombine.low %v10033, %v10040
  %10044 = vst [vmem:[%s11] sm:$0xff] %v10025
  %vm10045 = vcmask 1041408
  %vm10046 = vcmask 1043458
  %vm10047 = vmor %vm10046, %vm10045
  %vm10048 = vcmask 128004
  %vm10049 = vmor %vm10048, %vm10047
  %10050 = vst.msk [vmem:[%s11 + $0x8] sm:$0x3f] %vm10049, %v10041
  // Predicated region
  $region46: #{decoder_forward.1} parent=0 // pred_check
    _
  $region47: #{decoder_forward.1} parent=0 // pred_check_branch
    %10052 = sbr.rel (0) target = $region49
  $region48: #{decoder_forward.1} parent=0 // pred_region
    _
  $region49: #{decoder_forward.1} parent=0 // pred_fallthru
    _
  // Predicated region
  $region50: #{decoder_forward.1} parent=0 // pred_check
    _
  $region51: #{decoder_forward.1} parent=0 // pred_check_branch
    %10054 = sbr.rel (0) target = $region53
  $region52: #{decoder_forward.1} parent=0 // pred_region
    _
  $region53: #{decoder_forward.1} parent=0 // pred_fallthru
    _

</llo_original>
